<compile_context>
chip_gen: v6e
topology: v6e:2x2x1
jax: 0.10.0
libtpu: 0.0.40
codegen_flags: <defaults>
</compile_context>

<pallas_src>
import jax
import jax.numpy as jnp
from jax.experimental import pallas as pl
from jax.experimental.pallas import tpu as pltpu

# Small-shape config consistent with the module's forward
B, S, H, P, F, V, NH, NLAB = 2, 8, 32, 16, 64, 50, 4, 5
DH = H // NH
NTOT = 3 * B            # three encoder calls stacked into one batch


def _layer_norm(x, g, b, eps=1e-5):
    mu = jnp.mean(x, axis=-1, keepdims=True)
    var = jnp.mean((x - mu) ** 2, axis=-1, keepdims=True)
    return (x - mu) * jax.lax.rsqrt(var + eps) * g + b


# ---------------------------------------------------------------------------
# Single fused kernel: embedding + encoder layer (x3 stacked) + head + loss
# ---------------------------------------------------------------------------
def fused_kernel(ids_ref, mask_ref, p_ref, labels_ref,
                 emb_ref, wu_ref, wqkv_ref, bqkv_ref, wo_ref, bo_ref,
                 g1_ref, be1_ref, w1_ref, bf1_ref, w2_ref, bf2_ref,
                 g2_ref, be2_ref,
                 wo0_ref, bo0_ref, wo1_ref, bo1_ref, wo2_ref, bo2_ref,
                 tmp_ref,
                 loss_ref, logits_ref):
    # ---------------- embedding lookup (one-hot matmul on the MXU) ----------
    ids = ids_ref[...]                                       # (NTOT*S, 1) int32
    onehot = (jax.lax.broadcasted_iota(jnp.int32, (NTOT * S, V), 1)
              == ids).astype(jnp.float32)                    # (NTOT*S, V)
    x = jnp.dot(onehot, emb_ref[...],
                preferred_element_type=jnp.float32)          # (NTOT*S, H)

    # user conditioning (simplified stand-in for PLora user adaptation)
    u = jnp.dot(p_ref[...], wu_ref[...],
                preferred_element_type=jnp.float32)          # (NTOT, H)
    x3 = x.reshape(NTOT, S, H) + u.reshape(NTOT, 1, H)       # (NTOT, S, H)

    # ---------------- QKV projection (all tokens; K/V needed everywhere) ----
    qkv = (jnp.dot(x3.reshape(NTOT * S, H), wqkv_ref[...],
                   preferred_element_type=jnp.float32)
           + bqkv_ref[...])                                  # (NTOT*S, 3H)
    qkv3 = qkv.reshape(NTOT, S, 3 * H)
    q_cls = qkv3[:, 0:1, 0:H]                                # (NTOT, 1, H)  CLS query only
    k_all = qkv3[:, :, H:2 * H]                              # (NTOT, S, H)
    v_all = qkv3[:, :, 2 * H:3 * H]                          # (NTOT, S, H)

    bias = (mask_ref[...] - 1.0) * 1e9                       # (NTOT, 1, S): 0 keep, -1e9 mask
    scale = 1.0 / jnp.sqrt(jnp.float32(DH))

    # ---------------- multi-head attention for the CLS row ------------------
    # Per-head batched einsums over all 3*B sequences; output projection is
    # accumulated per head (sum_h ctx_h @ Wo[h] == concat(ctx) @ Wo), so no
    # lane-axis concatenation is needed.
    attn_out = jnp.zeros((NTOT, H), jnp.float32)
    for h in range(NH):
        lo, hi = h * DH, (h + 1) * DH
        qh = q_cls[:, :, lo:hi]                              # (NTOT, 1, DH)
        kh = k_all[:, :, lo:hi]                              # (NTOT, S, DH)
        vh = v_all[:, :, lo:hi]                              # (NTOT, S, DH)
        s = jnp.einsum('bqd,bkd->bqk', qh, kh,
                       preferred_element_type=jnp.float32) * scale + bias
        s = s - jnp.max(s, axis=-1, keepdims=True)
        e = jnp.exp(s)
        a = e * pl.reciprocal(jnp.sum(e, axis=-1, keepdims=True), approx=True)
        ctx = jnp.einsum('bqk,bkd->bqd', a, vh,
                         preferred_element_type=jnp.float32)  # (NTOT, 1, DH)
        attn_out = attn_out + jnp.dot(ctx.reshape(NTOT, DH), wo_ref[lo:hi, :],
                                      preferred_element_type=jnp.float32)
    attn_out = attn_out + bo_ref[...]

    # ---------------- residual + LN + FFN (CLS row only) --------------------
    x_cls = x3[:, 0, :]                                      # (NTOT, H)
    h1 = _layer_norm(x_cls + attn_out, g1_ref[...], be1_ref[...])
    ff = jnp.dot(h1, w1_ref[...], preferred_element_type=jnp.float32) + bf1_ref[...]
    ff = jax.nn.gelu(ff)
    ff = jnp.dot(ff, w2_ref[...], preferred_element_type=jnp.float32) + bf2_ref[...]
    h2 = _layer_norm(h1 + ff, g2_ref[...], be2_ref[...])     # (NTOT, H) CLS embeddings

    c0 = h2[0:B]                                             # encoder call 0
    c1 = h2[B:2 * B]                                         # encoder call 1
    c2 = h2[2 * B:3 * B]                                     # encoder call 2

    # ---------------- classification / distillation head + loss -------------
    tmp = tmp_ref[0, 0]
    l0 = jnp.dot(c0, wo0_ref[...], preferred_element_type=jnp.float32) + bo0_ref[...]
    l1 = jnp.dot(c1, wo1_ref[...], preferred_element_type=jnp.float32) + bo1_ref[...]
    l2 = jnp.dot(c2, wo2_ref[...], preferred_element_type=jnp.float32) + bo2_ref[...]

    def softmax(z):
        z = z - jnp.max(z, axis=-1, keepdims=True)
        e = jnp.exp(z)
        return e / jnp.sum(e, axis=-1, keepdims=True)

    def log_softmax(z):
        z = z - jnp.max(z, axis=-1, keepdims=True)
        return z - jnp.log(jnp.sum(jnp.exp(z), axis=-1, keepdims=True))

    nb = jnp.float32(B)

    def kl_batchmean(log_q, t):   # torch.nn.KLDivLoss(reduction='batchmean')(log_q, t)
        return jnp.sum(t * (jnp.log(t) - log_q)) / nb

    labels = labels_ref[...]                                  # (B, 1) int32
    onehot_lab = jax.lax.broadcasted_iota(jnp.int32, (B, NLAB), 1) == labels

    def ce(logits):               # CrossEntropyLoss(), reduction='mean'
        ls = log_softmax(logits)
        return -jnp.sum(jnp.where(onehot_lab, ls, 0.0)) / nb

    loss1 = kl_batchmean(log_softmax(l1 / tmp), softmax(l0 / tmp))
    loss2 = kl_batchmean(log_softmax(l2 / tmp), softmax(l0 / tmp))
    loss3 = kl_batchmean(log_softmax(l2 / tmp), softmax(l1 / tmp))
    loss4, loss5, loss6 = ce(l0), ce(l1), ce(l2)

    loss = 0.6 * (loss4 + loss5 + loss6) + 0.4 * (loss1 + loss2 + loss3) * tmp * tmp
    loss_ref[...] = jnp.reshape(loss, (1, 1))
    logits_ref[...] = l0 + l1 + l2


# ---------------------------------------------------------------------------
# Forward (mirrors xlm_robertamodel.forward) — a single pallas_call, no grid
# ---------------------------------------------------------------------------
def xlm_roberta_forward(prm, input_ids, attention_mask, p1,
                        b_input_ids_1, b_input_mask_1, p2,
                        b_input_ids_2, b_input_mask_2, p3, b_labels, tmp):
    # Stack the three encoder calls along a leading "call" axis (host-side glue).
    ids = jnp.stack([input_ids, b_input_ids_1, b_input_ids_2]) \
             .astype(jnp.int32).reshape(NTOT * S, 1)
    mask = jnp.stack([attention_mask, b_input_mask_1, b_input_mask_2]) \
              .astype(jnp.float32).reshape(NTOT, 1, S)
    p = jnp.stack([p1, p2, p3]).astype(jnp.float32).reshape(NTOT, P)
    labels = b_labels.reshape(B, 1).astype(jnp.int32)
    tmp_arr = jnp.asarray(tmp, jnp.float32).reshape(1, 1)

    vmem = lambda: pl.BlockSpec(memory_space=pltpu.MemorySpace.VMEM)
    smem = lambda: pl.BlockSpec(memory_space=pltpu.MemorySpace.SMEM)

    loss, logits = pl.pallas_call(
        fused_kernel,
        out_shape=(jax.ShapeDtypeStruct((1, 1), jnp.float32),
                   jax.ShapeDtypeStruct((B, NLAB), jnp.float32)),
        in_specs=[vmem()] * 24 + [smem()],
        out_specs=(vmem(), vmem()),
    )(ids, mask, p, labels,
      prm['emb'], prm['wu'], prm['wqkv'], prm['bqkv'], prm['wo'], prm['bo'],
      prm['g1'], prm['be1'], prm['w1'], prm['bf1'], prm['w2'], prm['bf2'],
      prm['g2'], prm['be2'],
      prm['wo0'], prm['bo0'], prm['wo1'], prm['bo1'], prm['wo2'], prm['bo2'],
      tmp_arr)
    return loss[0, 0], logits


# ---------------------------------------------------------------------------
# Parameter init (deterministic, in-script)
# ---------------------------------------------------------------------------
def init_params(key):
    ks = jax.random.split(key, 12)
    n = lambda k, shp, s=0.05: jax.random.normal(k, shp, jnp.float32) * s
    return {
        'emb':  n(ks[0], (V, H), 0.1),
        'wu':   n(ks[1], (P, H)),
        'wqkv': n(ks[2], (H, 3 * H)),
        'bqkv': jnp.zeros((1, 3 * H), jnp.float32),
        'wo':   n(ks[3], (H, H)),
        'bo':   jnp.zeros((1, H), jnp.float32),
        'g1':   jnp.ones((1, H), jnp.float32),
        'be1':  jnp.zeros((1, H), jnp.float32),
        'w1':   n(ks[4], (H, F)),
        'bf1':  jnp.zeros((1, F), jnp.float32),
        'w2':   n(ks[5], (F, H)),
        'bf2':  jnp.zeros((1, H), jnp.float32),
        'g2':   jnp.ones((1, H), jnp.float32),
        'be2':  jnp.zeros((1, H), jnp.float32),
        'wo0':  n(ks[6], (H, NLAB)),
        'bo0':  jnp.zeros((1, NLAB), jnp.float32),
        'wo1':  n(ks[7], (H, NLAB)),
        'bo1':  jnp.zeros((1, NLAB), jnp.float32),
        'wo2':  n(ks[8], (H, NLAB)),
        'bo2':  jnp.zeros((1, NLAB), jnp.float32),
    }


if __name__ == "__main__":
    key = jax.random.PRNGKey(0)
    kp, k1, k2, k3, k4, k5, k6, kl = jax.random.split(key, 8)
    prm = init_params(kp)

    input_ids = jax.random.randint(k1, (B, S), 0, V)
    b_input_ids_1 = jax.random.randint(k2, (B, S), 0, V)
    b_input_ids_2 = jax.random.randint(k3, (B, S), 0, V)
    attention_mask = jnp.ones((B, S), jnp.float32)
    b_input_mask_1 = jnp.ones((B, S), jnp.float32)
    b_input_mask_2 = jnp.ones((B, S), jnp.float32)
    p1 = jax.random.normal(k4, (B, P), jnp.float32)
    p2 = jax.random.normal(k5, (B, P), jnp.float32)
    p3 = jax.random.normal(k6, (B, P), jnp.float32)
    b_labels = jax.random.randint(kl, (B,), 0, NLAB)
    tmp = 2.0

    loss, logits = xlm_roberta_forward(prm, input_ids, attention_mask, p1,
                                       b_input_ids_1, b_input_mask_1, p2,
                                       b_input_ids_2, b_input_mask_2, p3,
                                       b_labels, tmp)
    jax.block_until_ready((loss, logits))
    assert logits.shape == (B, NLAB) and loss.shape == ()
    print("KERNEL_OK")
</pallas_src>

<mosaic_0001>
module attributes {stable_mosaic.version = 11 : i64} {
  func.func @fused_kernel(%arg0: memref<48x1xi32, #tpu.memory_space<vmem>>, %arg1: memref<6x1x8xf32, #tpu.memory_space<vmem>>, %arg2: memref<6x16xf32, #tpu.memory_space<vmem>>, %arg3: memref<2x1xi32, #tpu.memory_space<vmem>>, %arg4: memref<50x32xf32, #tpu.memory_space<vmem>>, %arg5: memref<16x32xf32, #tpu.memory_space<vmem>>, %arg6: memref<32x96xf32, #tpu.memory_space<vmem>>, %arg7: memref<1x96xf32, #tpu.memory_space<vmem>>, %arg8: memref<32x32xf32, #tpu.memory_space<vmem>>, %arg9: memref<1x32xf32, #tpu.memory_space<vmem>>, %arg10: memref<1x32xf32, #tpu.memory_space<vmem>>, %arg11: memref<1x32xf32, #tpu.memory_space<vmem>>, %arg12: memref<32x64xf32, #tpu.memory_space<vmem>>, %arg13: memref<1x64xf32, #tpu.memory_space<vmem>>, %arg14: memref<64x32xf32, #tpu.memory_space<vmem>>, %arg15: memref<1x32xf32, #tpu.memory_space<vmem>>, %arg16: memref<1x32xf32, #tpu.memory_space<vmem>>, %arg17: memref<1x32xf32, #tpu.memory_space<vmem>>, %arg18: memref<32x5xf32, #tpu.memory_space<vmem>>, %arg19: memref<1x5xf32, #tpu.memory_space<vmem>>, %arg20: memref<32x5xf32, #tpu.memory_space<vmem>>, %arg21: memref<1x5xf32, #tpu.memory_space<vmem>>, %arg22: memref<32x5xf32, #tpu.memory_space<vmem>>, %arg23: memref<1x5xf32, #tpu.memory_space<vmem>>, %arg24: memref<1x1xf32, #tpu.memory_space<smem>>, %arg25: memref<1x1xf32, #tpu.memory_space<vmem>>, %arg26: memref<2x5xf32, #tpu.memory_space<vmem>>) attributes {dimension_semantics = [], scalar_prefetch = 0 : i64, scratch_operands = 0 : i64, tpu.core_type = #tpu.core_type<tc>} {
    %c0 = arith.constant 0 : index
    %c0_0 = arith.constant 0 : index
    %0 = vector.load %arg0[%c0, %c0_0] : memref<48x1xi32, #tpu.memory_space<vmem>>, vector<48x1xi32>
    %1 = tpu.iota {dimensions = array<i32: 1>} : vector<48x50xi32>
    %2 = vector.broadcast %0 : vector<48x1xi32> to vector<48x50xi32>
    %3 = arith.cmpi eq, %1, %2 : vector<48x50xi32>
    %4 = arith.extui %3 : vector<48x50xi1> to vector<48x50xi32>
    %5 = arith.sitofp %4 : vector<48x50xi32> to vector<48x50xf32>
    %c0_1 = arith.constant 0 : index
    %c0_2 = arith.constant 0 : index
    %6 = vector.load %arg4[%c0_1, %c0_2] : memref<50x32xf32, #tpu.memory_space<vmem>>, vector<50x32xf32>
    %cst = arith.constant dense<0.000000e+00> : vector<48x32xf32>
    %7 = tpu.matmul %5, %6, %cst {dimension_numbers = #tpu.dot_dimension_numbers<[1], [0], [0], [1], [0, 0, 1, 1], [], []>} : vector<48x50xf32>, vector<50x32xf32>, vector<48x32xf32> -> vector<48x32xf32>
    %c0_3 = arith.constant 0 : index
    %c0_4 = arith.constant 0 : index
    %8 = vector.load %arg2[%c0_3, %c0_4] : memref<6x16xf32, #tpu.memory_space<vmem>>, vector<6x16xf32>
    %c0_5 = arith.constant 0 : index
    %c0_6 = arith.constant 0 : index
    %9 = vector.load %arg5[%c0_5, %c0_6] : memref<16x32xf32, #tpu.memory_space<vmem>>, vector<16x32xf32>
    %cst_7 = arith.constant dense<0.000000e+00> : vector<6x32xf32>
    %10 = tpu.matmul %8, %9, %cst_7 {dimension_numbers = #tpu.dot_dimension_numbers<[1], [0], [0], [1], [0, 0, 1, 1], [], []>} : vector<6x16xf32>, vector<16x32xf32>, vector<6x32xf32> -> vector<6x32xf32>
    %11 = vector.shape_cast %7 : vector<48x32xf32> to vector<6x8x32xf32>
    %12 = vector.shape_cast %10 : vector<6x32xf32> to vector<6x1x32xf32>
    %13 = vector.broadcast %12 : vector<6x1x32xf32> to vector<6x8x32xf32>
    %14 = arith.addf %11, %13 : vector<6x8x32xf32>
    %15 = vector.shape_cast %14 : vector<6x8x32xf32> to vector<48x32xf32>
    %c0_8 = arith.constant 0 : index
    %c0_9 = arith.constant 0 : index
    %16 = vector.load %arg6[%c0_8, %c0_9] : memref<32x96xf32, #tpu.memory_space<vmem>>, vector<32x96xf32>
    %cst_10 = arith.constant dense<0.000000e+00> : vector<48x96xf32>
    %17 = tpu.matmul %15, %16, %cst_10 {dimension_numbers = #tpu.dot_dimension_numbers<[1], [0], [0], [1], [0, 0, 1, 1], [], []>} : vector<48x32xf32>, vector<32x96xf32>, vector<48x96xf32> -> vector<48x96xf32>
    %c0_11 = arith.constant 0 : index
    %c0_12 = arith.constant 0 : index
    %18 = vector.load %arg7[%c0_11, %c0_12] : memref<1x96xf32, #tpu.memory_space<vmem>>, vector<1x96xf32>
    %19 = vector.broadcast %18 : vector<1x96xf32> to vector<48x96xf32>
    %20 = arith.addf %17, %19 : vector<48x96xf32>
    %21 = vector.shape_cast %20 : vector<48x96xf32> to vector<6x8x96xf32>
    %22 = vector.extract_strided_slice %21 {offsets = [0, 0, 0], sizes = [6, 1, 32], strides = [1, 1, 1]} : vector<6x8x96xf32> to vector<6x1x32xf32>
    %23 = vector.extract_strided_slice %21 {offsets = [0, 0, 32], sizes = [6, 8, 32], strides = [1, 1, 1]} : vector<6x8x96xf32> to vector<6x8x32xf32>
    %24 = vector.extract_strided_slice %21 {offsets = [0, 0, 64], sizes = [6, 8, 32], strides = [1, 1, 1]} : vector<6x8x96xf32> to vector<6x8x32xf32>
    %c0_13 = arith.constant 0 : index
    %c0_14 = arith.constant 0 : index
    %c0_15 = arith.constant 0 : index
    %25 = vector.load %arg1[%c0_13, %c0_14, %c0_15] : memref<6x1x8xf32, #tpu.memory_space<vmem>>, vector<6x1x8xf32>
    %cst_16 = arith.constant 1.000000e+00 : f32
    %26 = vector.broadcast %cst_16 : f32 to vector<6x1x8xf32>
    %27 = arith.subf %25, %26 : vector<6x1x8xf32>
    %cst_17 = arith.constant 1.000000e+09 : f32
    %28 = vector.broadcast %cst_17 : f32 to vector<6x1x8xf32>
    %29 = arith.mulf %27, %28 : vector<6x1x8xf32>
    %cst_18 = arith.constant 8.000000e+00 : f32
    %30 = math.sqrt %cst_18 : f32
    %cst_19 = arith.constant 1.000000e+00 : f32
    %31 = arith.divf %cst_19, %30 : f32
    %cst_20 = arith.constant 0.000000e+00 : f32
    %32 = vector.broadcast %cst_20 : f32 to vector<6x32xf32>
    %33 = vector.extract_strided_slice %22 {offsets = [0, 0, 0], sizes = [6, 1, 8], strides = [1, 1, 1]} : vector<6x1x32xf32> to vector<6x1x8xf32>
    %34 = vector.extract_strided_slice %23 {offsets = [0, 0, 0], sizes = [6, 8, 8], strides = [1, 1, 1]} : vector<6x8x32xf32> to vector<6x8x8xf32>
    %35 = vector.extract_strided_slice %24 {offsets = [0, 0, 0], sizes = [6, 8, 8], strides = [1, 1, 1]} : vector<6x8x32xf32> to vector<6x8x8xf32>
    "tpu.trace_start"() <{level = 10 : i32, message = "bqd,bkd->bqk"}> : () -> ()
    %cst_21 = arith.constant dense<0.000000e+00> : vector<6x1x8xf32>
    %36 = tpu.matmul %33, %34, %cst_21 {dimension_numbers = #tpu.dot_dimension_numbers<[2], [2], [1], [1], [0, 0, 0, 1, 1, 1], [0], [0]>} : vector<6x1x8xf32>, vector<6x8x8xf32>, vector<6x1x8xf32> -> vector<6x1x8xf32>
    "tpu.trace_stop"() : () -> ()
    %37 = vector.broadcast %31 : f32 to vector<6x1x8xf32>
    %38 = arith.mulf %36, %37 : vector<6x1x8xf32>
    %39 = arith.addf %38, %29 : vector<6x1x8xf32>
    %cst_22 = arith.constant dense<0xFF800000> : vector<6x1xf32>
    %40 = vector.multi_reduction <maximumf>, %39, %cst_22 [2] : vector<6x1x8xf32> to vector<6x1xf32>
    %41 = vector.shape_cast %40 : vector<6x1xf32> to vector<6x1x1xf32>
    %42 = vector.broadcast %41 : vector<6x1x1xf32> to vector<6x1x8xf32>
    %43 = arith.subf %39, %42 : vector<6x1x8xf32>
    %44 = math.exp %43 : vector<6x1x8xf32>
    %cst_23 = arith.constant dense<0.000000e+00> : vector<6x1xf32>
    %45 = vector.multi_reduction <add>, %44, %cst_23 [2] : vector<6x1x8xf32> to vector<6x1xf32>
    %46 = vector.shape_cast %45 : vector<6x1xf32> to vector<6x1x1xf32>
    %47 = tpu.reciprocal %46 {approx = true} : vector<6x1x1xf32> -> vector<6x1x1xf32>
    %48 = vector.broadcast %47 : vector<6x1x1xf32> to vector<6x1x8xf32>
    %49 = arith.mulf %44, %48 : vector<6x1x8xf32>
    "tpu.trace_start"() <{level = 10 : i32, message = "bqk,bkd->bqd"}> : () -> ()
    %cst_24 = arith.constant dense<0.000000e+00> : vector<6x1x8xf32>
    %50 = tpu.matmul %49, %35, %cst_24 {dimension_numbers = #tpu.dot_dimension_numbers<[2], [1], [1], [2], [0, 0, 0, 1, 1, 2], [0], [0]>} : vector<6x1x8xf32>, vector<6x8x8xf32>, vector<6x1x8xf32> -> vector<6x1x8xf32>
    "tpu.trace_stop"() : () -> ()
    %51 = vector.shape_cast %50 : vector<6x1x8xf32> to vector<6x8xf32>
    %c0_25 = arith.constant 0 : index
    %c0_26 = arith.constant 0 : index
    %52 = vector.load %arg8[%c0_25, %c0_26] : memref<32x32xf32, #tpu.memory_space<vmem>>, vector<8x32xf32>
    %cst_27 = arith.constant dense<0.000000e+00> : vector<6x32xf32>
    %53 = tpu.matmul %51, %52, %cst_27 {dimension_numbers = #tpu.dot_dimension_numbers<[1], [0], [0], [1], [0, 0, 1, 1], [], []>} : vector<6x8xf32>, vector<8x32xf32>, vector<6x32xf32> -> vector<6x32xf32>
    %54 = arith.addf %32, %53 : vector<6x32xf32>
    %55 = vector.extract_strided_slice %22 {offsets = [0, 0, 8], sizes = [6, 1, 8], strides = [1, 1, 1]} : vector<6x1x32xf32> to vector<6x1x8xf32>
    %56 = vector.extract_strided_slice %23 {offsets = [0, 0, 8], sizes = [6, 8, 8], strides = [1, 1, 1]} : vector<6x8x32xf32> to vector<6x8x8xf32>
    %57 = vector.extract_strided_slice %24 {offsets = [0, 0, 8], sizes = [6, 8, 8], strides = [1, 1, 1]} : vector<6x8x32xf32> to vector<6x8x8xf32>
    "tpu.trace_start"() <{level = 10 : i32, message = "bqd,bkd->bqk"}> : () -> ()
    %cst_28 = arith.constant dense<0.000000e+00> : vector<6x1x8xf32>
    %58 = tpu.matmul %55, %56, %cst_28 {dimension_numbers = #tpu.dot_dimension_numbers<[2], [2], [1], [1], [0, 0, 0, 1, 1, 1], [0], [0]>} : vector<6x1x8xf32>, vector<6x8x8xf32>, vector<6x1x8xf32> -> vector<6x1x8xf32>
    "tpu.trace_stop"() : () -> ()
    %59 = vector.broadcast %31 : f32 to vector<6x1x8xf32>
    %60 = arith.mulf %58, %59 : vector<6x1x8xf32>
    %61 = arith.addf %60, %29 : vector<6x1x8xf32>
    %cst_29 = arith.constant dense<0xFF800000> : vector<6x1xf32>
    %62 = vector.multi_reduction <maximumf>, %61, %cst_29 [2] : vector<6x1x8xf32> to vector<6x1xf32>
    %63 = vector.shape_cast %62 : vector<6x1xf32> to vector<6x1x1xf32>
    %64 = vector.broadcast %63 : vector<6x1x1xf32> to vector<6x1x8xf32>
    %65 = arith.subf %61, %64 : vector<6x1x8xf32>
    %66 = math.exp %65 : vector<6x1x8xf32>
    %cst_30 = arith.constant dense<0.000000e+00> : vector<6x1xf32>
    %67 = vector.multi_reduction <add>, %66, %cst_30 [2] : vector<6x1x8xf32> to vector<6x1xf32>
    %68 = vector.shape_cast %67 : vector<6x1xf32> to vector<6x1x1xf32>
    %69 = tpu.reciprocal %68 {approx = true} : vector<6x1x1xf32> -> vector<6x1x1xf32>
    %70 = vector.broadcast %69 : vector<6x1x1xf32> to vector<6x1x8xf32>
    %71 = arith.mulf %66, %70 : vector<6x1x8xf32>
    "tpu.trace_start"() <{level = 10 : i32, message = "bqk,bkd->bqd"}> : () -> ()
    %cst_31 = arith.constant dense<0.000000e+00> : vector<6x1x8xf32>
    %72 = tpu.matmul %71, %57, %cst_31 {dimension_numbers = #tpu.dot_dimension_numbers<[2], [1], [1], [2], [0, 0, 0, 1, 1, 2], [0], [0]>} : vector<6x1x8xf32>, vector<6x8x8xf32>, vector<6x1x8xf32> -> vector<6x1x8xf32>
    "tpu.trace_stop"() : () -> ()
    %73 = vector.shape_cast %72 : vector<6x1x8xf32> to vector<6x8xf32>
    %c8 = arith.constant 8 : index
    %c0_32 = arith.constant 0 : index
    %74 = vector.load %arg8[%c8, %c0_32] : memref<32x32xf32, #tpu.memory_space<vmem>>, vector<8x32xf32>
    %cst_33 = arith.constant dense<0.000000e+00> : vector<6x32xf32>
    %75 = tpu.matmul %73, %74, %cst_33 {dimension_numbers = #tpu.dot_dimension_numbers<[1], [0], [0], [1], [0, 0, 1, 1], [], []>} : vector<6x8xf32>, vector<8x32xf32>, vector<6x32xf32> -> vector<6x32xf32>
    %76 = arith.addf %54, %75 : vector<6x32xf32>
    %77 = vector.extract_strided_slice %22 {offsets = [0, 0, 16], sizes = [6, 1, 8], strides = [1, 1, 1]} : vector<6x1x32xf32> to vector<6x1x8xf32>
    %78 = vector.extract_strided_slice %23 {offsets = [0, 0, 16], sizes = [6, 8, 8], strides = [1, 1, 1]} : vector<6x8x32xf32> to vector<6x8x8xf32>
    %79 = vector.extract_strided_slice %24 {offsets = [0, 0, 16], sizes = [6, 8, 8], strides = [1, 1, 1]} : vector<6x8x32xf32> to vector<6x8x8xf32>
    "tpu.trace_start"() <{level = 10 : i32, message = "bqd,bkd->bqk"}> : () -> ()
    %cst_34 = arith.constant dense<0.000000e+00> : vector<6x1x8xf32>
    %80 = tpu.matmul %77, %78, %cst_34 {dimension_numbers = #tpu.dot_dimension_numbers<[2], [2], [1], [1], [0, 0, 0, 1, 1, 1], [0], [0]>} : vector<6x1x8xf32>, vector<6x8x8xf32>, vector<6x1x8xf32> -> vector<6x1x8xf32>
    "tpu.trace_stop"() : () -> ()
    %81 = vector.broadcast %31 : f32 to vector<6x1x8xf32>
    %82 = arith.mulf %80, %81 : vector<6x1x8xf32>
    %83 = arith.addf %82, %29 : vector<6x1x8xf32>
    %cst_35 = arith.constant dense<0xFF800000> : vector<6x1xf32>
    %84 = vector.multi_reduction <maximumf>, %83, %cst_35 [2] : vector<6x1x8xf32> to vector<6x1xf32>
    %85 = vector.shape_cast %84 : vector<6x1xf32> to vector<6x1x1xf32>
    %86 = vector.broadcast %85 : vector<6x1x1xf32> to vector<6x1x8xf32>
    %87 = arith.subf %83, %86 : vector<6x1x8xf32>
    %88 = math.exp %87 : vector<6x1x8xf32>
    %cst_36 = arith.constant dense<0.000000e+00> : vector<6x1xf32>
    %89 = vector.multi_reduction <add>, %88, %cst_36 [2] : vector<6x1x8xf32> to vector<6x1xf32>
    %90 = vector.shape_cast %89 : vector<6x1xf32> to vector<6x1x1xf32>
    %91 = tpu.reciprocal %90 {approx = true} : vector<6x1x1xf32> -> vector<6x1x1xf32>
    %92 = vector.broadcast %91 : vector<6x1x1xf32> to vector<6x1x8xf32>
    %93 = arith.mulf %88, %92 : vector<6x1x8xf32>
    "tpu.trace_start"() <{level = 10 : i32, message = "bqk,bkd->bqd"}> : () -> ()
    %cst_37 = arith.constant dense<0.000000e+00> : vector<6x1x8xf32>
    %94 = tpu.matmul %93, %79, %cst_37 {dimension_numbers = #tpu.dot_dimension_numbers<[2], [1], [1], [2], [0, 0, 0, 1, 1, 2], [0], [0]>} : vector<6x1x8xf32>, vector<6x8x8xf32>, vector<6x1x8xf32> -> vector<6x1x8xf32>
    "tpu.trace_stop"() : () -> ()
    %95 = vector.shape_cast %94 : vector<6x1x8xf32> to vector<6x8xf32>
    %c16 = arith.constant 16 : index
    %c0_38 = arith.constant 0 : index
    %96 = vector.load %arg8[%c16, %c0_38] : memref<32x32xf32, #tpu.memory_space<vmem>>, vector<8x32xf32>
    %cst_39 = arith.constant dense<0.000000e+00> : vector<6x32xf32>
    %97 = tpu.matmul %95, %96, %cst_39 {dimension_numbers = #tpu.dot_dimension_numbers<[1], [0], [0], [1], [0, 0, 1, 1], [], []>} : vector<6x8xf32>, vector<8x32xf32>, vector<6x32xf32> -> vector<6x32xf32>
    %98 = arith.addf %76, %97 : vector<6x32xf32>
    %99 = vector.extract_strided_slice %22 {offsets = [0, 0, 24], sizes = [6, 1, 8], strides = [1, 1, 1]} : vector<6x1x32xf32> to vector<6x1x8xf32>
    %100 = vector.extract_strided_slice %23 {offsets = [0, 0, 24], sizes = [6, 8, 8], strides = [1, 1, 1]} : vector<6x8x32xf32> to vector<6x8x8xf32>
    %101 = vector.extract_strided_slice %24 {offsets = [0, 0, 24], sizes = [6, 8, 8], strides = [1, 1, 1]} : vector<6x8x32xf32> to vector<6x8x8xf32>
    "tpu.trace_start"() <{level = 10 : i32, message = "bqd,bkd->bqk"}> : () -> ()
    %cst_40 = arith.constant dense<0.000000e+00> : vector<6x1x8xf32>
    %102 = tpu.matmul %99, %100, %cst_40 {dimension_numbers = #tpu.dot_dimension_numbers<[2], [2], [1], [1], [0, 0, 0, 1, 1, 1], [0], [0]>} : vector<6x1x8xf32>, vector<6x8x8xf32>, vector<6x1x8xf32> -> vector<6x1x8xf32>
    "tpu.trace_stop"() : () -> ()
    %103 = vector.broadcast %31 : f32 to vector<6x1x8xf32>
    %104 = arith.mulf %102, %103 : vector<6x1x8xf32>
    %105 = arith.addf %104, %29 : vector<6x1x8xf32>
    %cst_41 = arith.constant dense<0xFF800000> : vector<6x1xf32>
    %106 = vector.multi_reduction <maximumf>, %105, %cst_41 [2] : vector<6x1x8xf32> to vector<6x1xf32>
    %107 = vector.shape_cast %106 : vector<6x1xf32> to vector<6x1x1xf32>
    %108 = vector.broadcast %107 : vector<6x1x1xf32> to vector<6x1x8xf32>
    %109 = arith.subf %105, %108 : vector<6x1x8xf32>
    %110 = math.exp %109 : vector<6x1x8xf32>
    %cst_42 = arith.constant dense<0.000000e+00> : vector<6x1xf32>
    %111 = vector.multi_reduction <add>, %110, %cst_42 [2] : vector<6x1x8xf32> to vector<6x1xf32>
    %112 = vector.shape_cast %111 : vector<6x1xf32> to vector<6x1x1xf32>
    %113 = tpu.reciprocal %112 {approx = true} : vector<6x1x1xf32> -> vector<6x1x1xf32>
    %114 = vector.broadcast %113 : vector<6x1x1xf32> to vector<6x1x8xf32>
    %115 = arith.mulf %110, %114 : vector<6x1x8xf32>
    "tpu.trace_start"() <{level = 10 : i32, message = "bqk,bkd->bqd"}> : () -> ()
    %cst_43 = arith.constant dense<0.000000e+00> : vector<6x1x8xf32>
    %116 = tpu.matmul %115, %101, %cst_43 {dimension_numbers = #tpu.dot_dimension_numbers<[2], [1], [1], [2], [0, 0, 0, 1, 1, 2], [0], [0]>} : vector<6x1x8xf32>, vector<6x8x8xf32>, vector<6x1x8xf32> -> vector<6x1x8xf32>
    "tpu.trace_stop"() : () -> ()
    %117 = vector.shape_cast %116 : vector<6x1x8xf32> to vector<6x8xf32>
    %c24 = arith.constant 24 : index
    %c0_44 = arith.constant 0 : index
    %118 = vector.load %arg8[%c24, %c0_44] : memref<32x32xf32, #tpu.memory_space<vmem>>, vector<8x32xf32>
    %cst_45 = arith.constant dense<0.000000e+00> : vector<6x32xf32>
    %119 = tpu.matmul %117, %118, %cst_45 {dimension_numbers = #tpu.dot_dimension_numbers<[1], [0], [0], [1], [0, 0, 1, 1], [], []>} : vector<6x8xf32>, vector<8x32xf32>, vector<6x32xf32> -> vector<6x32xf32>
    %120 = arith.addf %98, %119 : vector<6x32xf32>
    %c0_46 = arith.constant 0 : index
    %c0_47 = arith.constant 0 : index
    %121 = vector.load %arg9[%c0_46, %c0_47] : memref<1x32xf32, #tpu.memory_space<vmem>>, vector<1x32xf32>
    %122 = vector.broadcast %121 : vector<1x32xf32> to vector<6x32xf32>
    %123 = arith.addf %120, %122 : vector<6x32xf32>
    %124 = vector.extract_strided_slice %14 {offsets = [0, 0, 0], sizes = [6, 1, 32], strides = [1, 1, 1]} : vector<6x8x32xf32> to vector<6x1x32xf32>
    %125 = vector.shape_cast %124 : vector<6x1x32xf32> to vector<6x32xf32>
    %126 = arith.addf %125, %123 : vector<6x32xf32>
    %c0_48 = arith.constant 0 : index
    %c0_49 = arith.constant 0 : index
    %127 = vector.load %arg10[%c0_48, %c0_49] : memref<1x32xf32, #tpu.memory_space<vmem>>, vector<1x32xf32>
    %c0_50 = arith.constant 0 : index
    %c0_51 = arith.constant 0 : index
    %128 = vector.load %arg11[%c0_50, %c0_51] : memref<1x32xf32, #tpu.memory_space<vmem>>, vector<1x32xf32>
    %cst_52 = arith.constant dense<0.000000e+00> : vector<6xf32>
    %129 = vector.multi_reduction <add>, %126, %cst_52 [1] : vector<6x32xf32> to vector<6xf32>
    %130 = vector.shape_cast %129 : vector<6xf32> to vector<6x1xf32>
    %cst_53 = arith.constant 3.200000e+01 : f32
    %131 = vector.broadcast %cst_53 : f32 to vector<6x1xf32>
    %132 = arith.divf %130, %131 : vector<6x1xf32>
    %133 = vector.broadcast %132 : vector<6x1xf32> to vector<6x32xf32>
    %134 = arith.subf %126, %133 : vector<6x32xf32>
    %135 = arith.mulf %134, %134 : vector<6x32xf32>
    %cst_54 = arith.constant dense<0.000000e+00> : vector<6xf32>
    %136 = vector.multi_reduction <add>, %135, %cst_54 [1] : vector<6x32xf32> to vector<6xf32>
    %137 = vector.shape_cast %136 : vector<6xf32> to vector<6x1xf32>
    %cst_55 = arith.constant 3.200000e+01 : f32
    %138 = vector.broadcast %cst_55 : f32 to vector<6x1xf32>
    %139 = arith.divf %137, %138 : vector<6x1xf32>
    %140 = vector.broadcast %132 : vector<6x1xf32> to vector<6x32xf32>
    %141 = arith.subf %126, %140 : vector<6x32xf32>
    %cst_56 = arith.constant 9.99999974E-6 : f32
    %142 = vector.broadcast %cst_56 : f32 to vector<6x1xf32>
    %143 = arith.addf %139, %142 : vector<6x1xf32>
    %144 = math.rsqrt %143 : vector<6x1xf32>
    %145 = vector.broadcast %144 : vector<6x1xf32> to vector<6x32xf32>
    %146 = arith.mulf %141, %145 : vector<6x32xf32>
    %147 = vector.broadcast %127 : vector<1x32xf32> to vector<6x32xf32>
    %148 = arith.mulf %146, %147 : vector<6x32xf32>
    %149 = vector.broadcast %128 : vector<1x32xf32> to vector<6x32xf32>
    %150 = arith.addf %148, %149 : vector<6x32xf32>
    %c0_57 = arith.constant 0 : index
    %c0_58 = arith.constant 0 : index
    %151 = vector.load %arg12[%c0_57, %c0_58] : memref<32x64xf32, #tpu.memory_space<vmem>>, vector<32x64xf32>
    %cst_59 = arith.constant dense<0.000000e+00> : vector<6x64xf32>
    %152 = tpu.matmul %150, %151, %cst_59 {dimension_numbers = #tpu.dot_dimension_numbers<[1], [0], [0], [1], [0, 0, 1, 1], [], []>} : vector<6x32xf32>, vector<32x64xf32>, vector<6x64xf32> -> vector<6x64xf32>
    %c0_60 = arith.constant 0 : index
    %c0_61 = arith.constant 0 : index
    %153 = vector.load %arg13[%c0_60, %c0_61] : memref<1x64xf32, #tpu.memory_space<vmem>>, vector<1x64xf32>
    %154 = vector.broadcast %153 : vector<1x64xf32> to vector<6x64xf32>
    %155 = arith.addf %152, %154 : vector<6x64xf32>
    %156 = arith.mulf %155, %155 : vector<6x64xf32>
    %157 = arith.mulf %155, %156 : vector<6x64xf32>
    %cst_62 = arith.constant 4.471500e-02 : f32
    %158 = vector.broadcast %cst_62 : f32 to vector<6x64xf32>
    %159 = arith.mulf %158, %157 : vector<6x64xf32>
    %160 = arith.addf %155, %159 : vector<6x64xf32>
    %cst_63 = arith.constant 0.797884583 : f32
    %161 = vector.broadcast %cst_63 : f32 to vector<6x64xf32>
    %162 = arith.mulf %161, %160 : vector<6x64xf32>
    %163 = math.tanh %162 : vector<6x64xf32>
    %cst_64 = arith.constant 1.000000e+00 : f32
    %164 = vector.broadcast %cst_64 : f32 to vector<6x64xf32>
    %165 = arith.addf %164, %163 : vector<6x64xf32>
    %cst_65 = arith.constant 5.000000e-01 : f32
    %166 = vector.broadcast %cst_65 : f32 to vector<6x64xf32>
    %167 = arith.mulf %166, %165 : vector<6x64xf32>
    %168 = arith.mulf %155, %167 : vector<6x64xf32>
    %c0_66 = arith.constant 0 : index
    %c0_67 = arith.constant 0 : index
    %169 = vector.load %arg14[%c0_66, %c0_67] : memref<64x32xf32, #tpu.memory_space<vmem>>, vector<64x32xf32>
    %cst_68 = arith.constant dense<0.000000e+00> : vector<6x32xf32>
    %170 = tpu.matmul %168, %169, %cst_68 {dimension_numbers = #tpu.dot_dimension_numbers<[1], [0], [0], [1], [0, 0, 1, 1], [], []>} : vector<6x64xf32>, vector<64x32xf32>, vector<6x32xf32> -> vector<6x32xf32>
    %c0_69 = arith.constant 0 : index
    %c0_70 = arith.constant 0 : index
    %171 = vector.load %arg15[%c0_69, %c0_70] : memref<1x32xf32, #tpu.memory_space<vmem>>, vector<1x32xf32>
    %172 = vector.broadcast %171 : vector<1x32xf32> to vector<6x32xf32>
    %173 = arith.addf %170, %172 : vector<6x32xf32>
    %174 = arith.addf %150, %173 : vector<6x32xf32>
    %c0_71 = arith.constant 0 : index
    %c0_72 = arith.constant 0 : index
    %175 = vector.load %arg16[%c0_71, %c0_72] : memref<1x32xf32, #tpu.memory_space<vmem>>, vector<1x32xf32>
    %c0_73 = arith.constant 0 : index
    %c0_74 = arith.constant 0 : index
    %176 = vector.load %arg17[%c0_73, %c0_74] : memref<1x32xf32, #tpu.memory_space<vmem>>, vector<1x32xf32>
    %cst_75 = arith.constant dense<0.000000e+00> : vector<6xf32>
    %177 = vector.multi_reduction <add>, %174, %cst_75 [1] : vector<6x32xf32> to vector<6xf32>
    %178 = vector.shape_cast %177 : vector<6xf32> to vector<6x1xf32>
    %cst_76 = arith.constant 3.200000e+01 : f32
    %179 = vector.broadcast %cst_76 : f32 to vector<6x1xf32>
    %180 = arith.divf %178, %179 : vector<6x1xf32>
    %181 = vector.broadcast %180 : vector<6x1xf32> to vector<6x32xf32>
    %182 = arith.subf %174, %181 : vector<6x32xf32>
    %183 = arith.mulf %182, %182 : vector<6x32xf32>
    %cst_77 = arith.constant dense<0.000000e+00> : vector<6xf32>
    %184 = vector.multi_reduction <add>, %183, %cst_77 [1] : vector<6x32xf32> to vector<6xf32>
    %185 = vector.shape_cast %184 : vector<6xf32> to vector<6x1xf32>
    %cst_78 = arith.constant 3.200000e+01 : f32
    %186 = vector.broadcast %cst_78 : f32 to vector<6x1xf32>
    %187 = arith.divf %185, %186 : vector<6x1xf32>
    %188 = vector.broadcast %180 : vector<6x1xf32> to vector<6x32xf32>
    %189 = arith.subf %174, %188 : vector<6x32xf32>
    %cst_79 = arith.constant 9.99999974E-6 : f32
    %190 = vector.broadcast %cst_79 : f32 to vector<6x1xf32>
    %191 = arith.addf %187, %190 : vector<6x1xf32>
    %192 = math.rsqrt %191 : vector<6x1xf32>
    %193 = vector.broadcast %192 : vector<6x1xf32> to vector<6x32xf32>
    %194 = arith.mulf %189, %193 : vector<6x32xf32>
    %195 = vector.broadcast %175 : vector<1x32xf32> to vector<6x32xf32>
    %196 = arith.mulf %194, %195 : vector<6x32xf32>
    %197 = vector.broadcast %176 : vector<1x32xf32> to vector<6x32xf32>
    %198 = arith.addf %196, %197 : vector<6x32xf32>
    %199 = vector.extract_strided_slice %198 {offsets = [0, 0], sizes = [2, 32], strides = [1, 1]} : vector<6x32xf32> to vector<2x32xf32>
    %200 = vector.extract_strided_slice %198 {offsets = [2, 0], sizes = [2, 32], strides = [1, 1]} : vector<6x32xf32> to vector<2x32xf32>
    %201 = vector.extract_strided_slice %198 {offsets = [4, 0], sizes = [2, 32], strides = [1, 1]} : vector<6x32xf32> to vector<2x32xf32>
    %c0_80 = arith.constant 0 : index
    %c0_81 = arith.constant 0 : index
    %202 = memref.load %arg24[%c0_80, %c0_81] : memref<1x1xf32, #tpu.memory_space<smem>>
    %c0_82 = arith.constant 0 : index
    %c0_83 = arith.constant 0 : index
    %203 = vector.load %arg18[%c0_82, %c0_83] : memref<32x5xf32, #tpu.memory_space<vmem>>, vector<32x5xf32>
    %cst_84 = arith.constant dense<0.000000e+00> : vector<2x5xf32>
    %204 = tpu.matmul %199, %203, %cst_84 {dimension_numbers = #tpu.dot_dimension_numbers<[1], [0], [0], [1], [0, 0, 1, 1], [], []>} : vector<2x32xf32>, vector<32x5xf32>, vector<2x5xf32> -> vector<2x5xf32>
    %c0_85 = arith.constant 0 : index
    %c0_86 = arith.constant 0 : index
    %205 = vector.load %arg19[%c0_85, %c0_86] : memref<1x5xf32, #tpu.memory_space<vmem>>, vector<1x5xf32>
    %206 = vector.broadcast %205 : vector<1x5xf32> to vector<2x5xf32>
    %207 = arith.addf %204, %206 : vector<2x5xf32>
    %c0_87 = arith.constant 0 : index
    %c0_88 = arith.constant 0 : index
    %208 = vector.load %arg20[%c0_87, %c0_88] : memref<32x5xf32, #tpu.memory_space<vmem>>, vector<32x5xf32>
    %cst_89 = arith.constant dense<0.000000e+00> : vector<2x5xf32>
    %209 = tpu.matmul %200, %208, %cst_89 {dimension_numbers = #tpu.dot_dimension_numbers<[1], [0], [0], [1], [0, 0, 1, 1], [], []>} : vector<2x32xf32>, vector<32x5xf32>, vector<2x5xf32> -> vector<2x5xf32>
    %c0_90 = arith.constant 0 : index
    %c0_91 = arith.constant 0 : index
    %210 = vector.load %arg21[%c0_90, %c0_91] : memref<1x5xf32, #tpu.memory_space<vmem>>, vector<1x5xf32>
    %211 = vector.broadcast %210 : vector<1x5xf32> to vector<2x5xf32>
    %212 = arith.addf %209, %211 : vector<2x5xf32>
    %c0_92 = arith.constant 0 : index
    %c0_93 = arith.constant 0 : index
    %213 = vector.load %arg22[%c0_92, %c0_93] : memref<32x5xf32, #tpu.memory_space<vmem>>, vector<32x5xf32>
    %cst_94 = arith.constant dense<0.000000e+00> : vector<2x5xf32>
    %214 = tpu.matmul %201, %213, %cst_94 {dimension_numbers = #tpu.dot_dimension_numbers<[1], [0], [0], [1], [0, 0, 1, 1], [], []>} : vector<2x32xf32>, vector<32x5xf32>, vector<2x5xf32> -> vector<2x5xf32>
    %c0_95 = arith.constant 0 : index
    %c0_96 = arith.constant 0 : index
    %215 = vector.load %arg23[%c0_95, %c0_96] : memref<1x5xf32, #tpu.memory_space<vmem>>, vector<1x5xf32>
    %216 = vector.broadcast %215 : vector<1x5xf32> to vector<2x5xf32>
    %217 = arith.addf %214, %216 : vector<2x5xf32>
    %c0_97 = arith.constant 0 : index
    %c0_98 = arith.constant 0 : index
    %218 = vector.load %arg3[%c0_97, %c0_98] : memref<2x1xi32, #tpu.memory_space<vmem>>, vector<2x1xi32>
    %219 = tpu.iota {dimensions = array<i32: 1>} : vector<2x5xi32>
    %220 = vector.broadcast %218 : vector<2x1xi32> to vector<2x5xi32>
    %221 = arith.cmpi eq, %219, %220 : vector<2x5xi32>
    %222 = vector.broadcast %202 : f32 to vector<2x5xf32>
    %223 = arith.divf %212, %222 : vector<2x5xf32>
    %cst_99 = arith.constant dense<0xFF800000> : vector<2xf32>
    %224 = vector.multi_reduction <maximumf>, %223, %cst_99 [1] : vector<2x5xf32> to vector<2xf32>
    %225 = vector.shape_cast %224 : vector<2xf32> to vector<2x1xf32>
    %226 = vector.broadcast %225 : vector<2x1xf32> to vector<2x5xf32>
    %227 = arith.subf %223, %226 : vector<2x5xf32>
    %228 = math.exp %227 : vector<2x5xf32>
    %cst_100 = arith.constant dense<0.000000e+00> : vector<2xf32>
    %229 = vector.multi_reduction <add>, %228, %cst_100 [1] : vector<2x5xf32> to vector<2xf32>
    %230 = vector.shape_cast %229 : vector<2xf32> to vector<2x1xf32>
    %231 = math.log %230 : vector<2x1xf32>
    %232 = vector.broadcast %231 : vector<2x1xf32> to vector<2x5xf32>
    %233 = arith.subf %227, %232 : vector<2x5xf32>
    %234 = vector.broadcast %202 : f32 to vector<2x5xf32>
    %235 = arith.divf %207, %234 : vector<2x5xf32>
    %cst_101 = arith.constant dense<0xFF800000> : vector<2xf32>
    %236 = vector.multi_reduction <maximumf>, %235, %cst_101 [1] : vector<2x5xf32> to vector<2xf32>
    %237 = vector.shape_cast %236 : vector<2xf32> to vector<2x1xf32>
    %238 = vector.broadcast %237 : vector<2x1xf32> to vector<2x5xf32>
    %239 = arith.subf %235, %238 : vector<2x5xf32>
    %240 = math.exp %239 : vector<2x5xf32>
    %cst_102 = arith.constant dense<0.000000e+00> : vector<2xf32>
    %241 = vector.multi_reduction <add>, %240, %cst_102 [1] : vector<2x5xf32> to vector<2xf32>
    %242 = vector.shape_cast %241 : vector<2xf32> to vector<2x1xf32>
    %243 = vector.broadcast %242 : vector<2x1xf32> to vector<2x5xf32>
    %244 = arith.divf %240, %243 : vector<2x5xf32>
    %245 = math.log %244 : vector<2x5xf32>
    %246 = arith.subf %245, %233 : vector<2x5xf32>
    %247 = arith.mulf %244, %246 : vector<2x5xf32>
    %248 = vector.shape_cast %247 : vector<2x5xf32> to vector<1x2x5xf32>
    %cst_103 = arith.constant dense<0.000000e+00> : vector<1xf32>
    %249 = vector.multi_reduction <add>, %248, %cst_103 [1, 2] : vector<1x2x5xf32> to vector<1xf32>
    %250 = vector.shape_cast %249 : vector<1xf32> to vector<1x1x1xf32>
    %251 = vector.extract %250[0, 0, 0] : f32 from vector<1x1x1xf32>
    %cst_104 = arith.constant 2.000000e+00 : f32
    %252 = arith.divf %251, %cst_104 : f32
    %253 = vector.broadcast %202 : f32 to vector<2x5xf32>
    %254 = arith.divf %217, %253 : vector<2x5xf32>
    %cst_105 = arith.constant dense<0xFF800000> : vector<2xf32>
    %255 = vector.multi_reduction <maximumf>, %254, %cst_105 [1] : vector<2x5xf32> to vector<2xf32>
    %256 = vector.shape_cast %255 : vector<2xf32> to vector<2x1xf32>
    %257 = vector.broadcast %256 : vector<2x1xf32> to vector<2x5xf32>
    %258 = arith.subf %254, %257 : vector<2x5xf32>
    %259 = math.exp %258 : vector<2x5xf32>
    %cst_106 = arith.constant dense<0.000000e+00> : vector<2xf32>
    %260 = vector.multi_reduction <add>, %259, %cst_106 [1] : vector<2x5xf32> to vector<2xf32>
    %261 = vector.shape_cast %260 : vector<2xf32> to vector<2x1xf32>
    %262 = math.log %261 : vector<2x1xf32>
    %263 = vector.broadcast %262 : vector<2x1xf32> to vector<2x5xf32>
    %264 = arith.subf %258, %263 : vector<2x5xf32>
    %265 = vector.broadcast %202 : f32 to vector<2x5xf32>
    %266 = arith.divf %207, %265 : vector<2x5xf32>
    %cst_107 = arith.constant dense<0xFF800000> : vector<2xf32>
    %267 = vector.multi_reduction <maximumf>, %266, %cst_107 [1] : vector<2x5xf32> to vector<2xf32>
    %268 = vector.shape_cast %267 : vector<2xf32> to vector<2x1xf32>
    %269 = vector.broadcast %268 : vector<2x1xf32> to vector<2x5xf32>
    %270 = arith.subf %266, %269 : vector<2x5xf32>
    %271 = math.exp %270 : vector<2x5xf32>
    %cst_108 = arith.constant dense<0.000000e+00> : vector<2xf32>
    %272 = vector.multi_reduction <add>, %271, %cst_108 [1] : vector<2x5xf32> to vector<2xf32>
    %273 = vector.shape_cast %272 : vector<2xf32> to vector<2x1xf32>
    %274 = vector.broadcast %273 : vector<2x1xf32> to vector<2x5xf32>
    %275 = arith.divf %271, %274 : vector<2x5xf32>
    %276 = math.log %275 : vector<2x5xf32>
    %277 = arith.subf %276, %264 : vector<2x5xf32>
    %278 = arith.mulf %275, %277 : vector<2x5xf32>
    %279 = vector.shape_cast %278 : vector<2x5xf32> to vector<1x2x5xf32>
    %cst_109 = arith.constant dense<0.000000e+00> : vector<1xf32>
    %280 = vector.multi_reduction <add>, %279, %cst_109 [1, 2] : vector<1x2x5xf32> to vector<1xf32>
    %281 = vector.shape_cast %280 : vector<1xf32> to vector<1x1x1xf32>
    %282 = vector.extract %281[0, 0, 0] : f32 from vector<1x1x1xf32>
    %cst_110 = arith.constant 2.000000e+00 : f32
    %283 = arith.divf %282, %cst_110 : f32
    %284 = vector.broadcast %202 : f32 to vector<2x5xf32>
    %285 = arith.divf %217, %284 : vector<2x5xf32>
    %cst_111 = arith.constant dense<0xFF800000> : vector<2xf32>
    %286 = vector.multi_reduction <maximumf>, %285, %cst_111 [1] : vector<2x5xf32> to vector<2xf32>
    %287 = vector.shape_cast %286 : vector<2xf32> to vector<2x1xf32>
    %288 = vector.broadcast %287 : vector<2x1xf32> to vector<2x5xf32>
    %289 = arith.subf %285, %288 : vector<2x5xf32>
    %290 = math.exp %289 : vector<2x5xf32>
    %cst_112 = arith.constant dense<0.000000e+00> : vector<2xf32>
    %291 = vector.multi_reduction <add>, %290, %cst_112 [1] : vector<2x5xf32> to vector<2xf32>
    %292 = vector.shape_cast %291 : vector<2xf32> to vector<2x1xf32>
    %293 = math.log %292 : vector<2x1xf32>
    %294 = vector.broadcast %293 : vector<2x1xf32> to vector<2x5xf32>
    %295 = arith.subf %289, %294 : vector<2x5xf32>
    %296 = vector.broadcast %202 : f32 to vector<2x5xf32>
    %297 = arith.divf %212, %296 : vector<2x5xf32>
    %cst_113 = arith.constant dense<0xFF800000> : vector<2xf32>
    %298 = vector.multi_reduction <maximumf>, %297, %cst_113 [1] : vector<2x5xf32> to vector<2xf32>
    %299 = vector.shape_cast %298 : vector<2xf32> to vector<2x1xf32>
    %300 = vector.broadcast %299 : vector<2x1xf32> to vector<2x5xf32>
    %301 = arith.subf %297, %300 : vector<2x5xf32>
    %302 = math.exp %301 : vector<2x5xf32>
    %cst_114 = arith.constant dense<0.000000e+00> : vector<2xf32>
    %303 = vector.multi_reduction <add>, %302, %cst_114 [1] : vector<2x5xf32> to vector<2xf32>
    %304 = vector.shape_cast %303 : vector<2xf32> to vector<2x1xf32>
    %305 = vector.broadcast %304 : vector<2x1xf32> to vector<2x5xf32>
    %306 = arith.divf %302, %305 : vector<2x5xf32>
    %307 = math.log %306 : vector<2x5xf32>
    %308 = arith.subf %307, %295 : vector<2x5xf32>
    %309 = arith.mulf %306, %308 : vector<2x5xf32>
    %310 = vector.shape_cast %309 : vector<2x5xf32> to vector<1x2x5xf32>
    %cst_115 = arith.constant dense<0.000000e+00> : vector<1xf32>
    %311 = vector.multi_reduction <add>, %310, %cst_115 [1, 2] : vector<1x2x5xf32> to vector<1xf32>
    %312 = vector.shape_cast %311 : vector<1xf32> to vector<1x1x1xf32>
    %313 = vector.extract %312[0, 0, 0] : f32 from vector<1x1x1xf32>
    %cst_116 = arith.constant 2.000000e+00 : f32
    %314 = arith.divf %313, %cst_116 : f32
    %cst_117 = arith.constant dense<0xFF800000> : vector<2xf32>
    %315 = vector.multi_reduction <maximumf>, %207, %cst_117 [1] : vector<2x5xf32> to vector<2xf32>
    %316 = vector.shape_cast %315 : vector<2xf32> to vector<2x1xf32>
    %317 = vector.broadcast %316 : vector<2x1xf32> to vector<2x5xf32>
    %318 = arith.subf %207, %317 : vector<2x5xf32>
    %319 = math.exp %318 : vector<2x5xf32>
    %cst_118 = arith.constant dense<0.000000e+00> : vector<2xf32>
    %320 = vector.multi_reduction <add>, %319, %cst_118 [1] : vector<2x5xf32> to vector<2xf32>
    %321 = vector.shape_cast %320 : vector<2xf32> to vector<2x1xf32>
    %322 = math.log %321 : vector<2x1xf32>
    %323 = vector.broadcast %322 : vector<2x1xf32> to vector<2x5xf32>
    %324 = arith.subf %318, %323 : vector<2x5xf32>
    %cst_119 = arith.constant 0.000000e+00 : f32
    %325 = vector.broadcast %cst_119 : f32 to vector<2x5xf32>
    %326 = arith.select %221, %324, %325 : vector<2x5xi1>, vector<2x5xf32>
    %327 = vector.shape_cast %326 : vector<2x5xf32> to vector<1x2x5xf32>
    %cst_120 = arith.constant dense<0.000000e+00> : vector<1xf32>
    %328 = vector.multi_reduction <add>, %327, %cst_120 [1, 2] : vector<1x2x5xf32> to vector<1xf32>
    %329 = vector.shape_cast %328 : vector<1xf32> to vector<1x1x1xf32>
    %330 = vector.extract %329[0, 0, 0] : f32 from vector<1x1x1xf32>
    %cst_121 = arith.constant 0.000000e+00 : f32
    %331 = arith.subf %cst_121, %330 : f32
    %cst_122 = arith.constant 2.000000e+00 : f32
    %332 = arith.divf %331, %cst_122 : f32
    %cst_123 = arith.constant dense<0xFF800000> : vector<2xf32>
    %333 = vector.multi_reduction <maximumf>, %212, %cst_123 [1] : vector<2x5xf32> to vector<2xf32>
    %334 = vector.shape_cast %333 : vector<2xf32> to vector<2x1xf32>
    %335 = vector.broadcast %334 : vector<2x1xf32> to vector<2x5xf32>
    %336 = arith.subf %212, %335 : vector<2x5xf32>
    %337 = math.exp %336 : vector<2x5xf32>
    %cst_124 = arith.constant dense<0.000000e+00> : vector<2xf32>
    %338 = vector.multi_reduction <add>, %337, %cst_124 [1] : vector<2x5xf32> to vector<2xf32>
    %339 = vector.shape_cast %338 : vector<2xf32> to vector<2x1xf32>
    %340 = math.log %339 : vector<2x1xf32>
    %341 = vector.broadcast %340 : vector<2x1xf32> to vector<2x5xf32>
    %342 = arith.subf %336, %341 : vector<2x5xf32>
    %cst_125 = arith.constant 0.000000e+00 : f32
    %343 = vector.broadcast %cst_125 : f32 to vector<2x5xf32>
    %344 = arith.select %221, %342, %343 : vector<2x5xi1>, vector<2x5xf32>
    %345 = vector.shape_cast %344 : vector<2x5xf32> to vector<1x2x5xf32>
    %cst_126 = arith.constant dense<0.000000e+00> : vector<1xf32>
    %346 = vector.multi_reduction <add>, %345, %cst_126 [1, 2] : vector<1x2x5xf32> to vector<1xf32>
    %347 = vector.shape_cast %346 : vector<1xf32> to vector<1x1x1xf32>
    %348 = vector.extract %347[0, 0, 0] : f32 from vector<1x1x1xf32>
    %cst_127 = arith.constant 0.000000e+00 : f32
    %349 = arith.subf %cst_127, %348 : f32
    %cst_128 = arith.constant 2.000000e+00 : f32
    %350 = arith.divf %349, %cst_128 : f32
    %cst_129 = arith.constant dense<0xFF800000> : vector<2xf32>
    %351 = vector.multi_reduction <maximumf>, %217, %cst_129 [1] : vector<2x5xf32> to vector<2xf32>
    %352 = vector.shape_cast %351 : vector<2xf32> to vector<2x1xf32>
    %353 = vector.broadcast %352 : vector<2x1xf32> to vector<2x5xf32>
    %354 = arith.subf %217, %353 : vector<2x5xf32>
    %355 = math.exp %354 : vector<2x5xf32>
    %cst_130 = arith.constant dense<0.000000e+00> : vector<2xf32>
    %356 = vector.multi_reduction <add>, %355, %cst_130 [1] : vector<2x5xf32> to vector<2xf32>
    %357 = vector.shape_cast %356 : vector<2xf32> to vector<2x1xf32>
    %358 = math.log %357 : vector<2x1xf32>
    %359 = vector.broadcast %358 : vector<2x1xf32> to vector<2x5xf32>
    %360 = arith.subf %354, %359 : vector<2x5xf32>
    %cst_131 = arith.constant 0.000000e+00 : f32
    %361 = vector.broadcast %cst_131 : f32 to vector<2x5xf32>
    %362 = arith.select %221, %360, %361 : vector<2x5xi1>, vector<2x5xf32>
    %363 = vector.shape_cast %362 : vector<2x5xf32> to vector<1x2x5xf32>
    %cst_132 = arith.constant dense<0.000000e+00> : vector<1xf32>
    %364 = vector.multi_reduction <add>, %363, %cst_132 [1, 2] : vector<1x2x5xf32> to vector<1xf32>
    %365 = vector.shape_cast %364 : vector<1xf32> to vector<1x1x1xf32>
    %366 = vector.extract %365[0, 0, 0] : f32 from vector<1x1x1xf32>
    %cst_133 = arith.constant 0.000000e+00 : f32
    %367 = arith.subf %cst_133, %366 : f32
    %cst_134 = arith.constant 2.000000e+00 : f32
    %368 = arith.divf %367, %cst_134 : f32
    %369 = arith.addf %332, %350 : f32
    %370 = arith.addf %369, %368 : f32
    %cst_135 = arith.constant 6.000000e-01 : f32
    %371 = arith.mulf %cst_135, %370 : f32
    %372 = arith.addf %252, %283 : f32
    %373 = arith.addf %372, %314 : f32
    %cst_136 = arith.constant 4.000000e-01 : f32
    %374 = arith.mulf %cst_136, %373 : f32
    %375 = arith.mulf %374, %202 : f32
    %376 = arith.mulf %375, %202 : f32
    %377 = arith.addf %371, %376 : f32
    %378 = vector.broadcast %377 : f32 to vector<1x1xf32>
    %c0_137 = arith.constant 0 : index
    %c0_138 = arith.constant 0 : index
    %379 = vector.load %arg25[%c0_137, %c0_138] : memref<1x1xf32, #tpu.memory_space<vmem>>, vector<1x1xf32>
    tpu.vector_store %arg25[%c0_137, %c0_138], %378 {strides = array<i32>} : memref<1x1xf32, #tpu.memory_space<vmem>>, vector<1x1xf32>,
    %380 = arith.addf %207, %212 : vector<2x5xf32>
    %381 = arith.addf %380, %217 : vector<2x5xf32>
    %c0_139 = arith.constant 0 : index
    %c0_140 = arith.constant 0 : index
    %382 = vector.load %arg26[%c0_139, %c0_140] : memref<2x5xf32, #tpu.memory_space<vmem>>, vector<2x5xf32>
    tpu.vector_store %arg26[%c0_139, %c0_140], %381 {strides = array<i32>} : memref<2x5xf32, #tpu.memory_space<vmem>>, vector<2x5xf32>,
    return
  }
}

</mosaic_0001>

<llo_original>
// kernel: tpu_custom_call.1
$region0: #{tpu_custom_call.1}
  #allocation0 [shape = 'u32[]', space=smem, size = 0x4, offset = 0x4, fixed_abs, tag = 'smem constant byte address 0x4 - core index']
  #allocation1 [shape = 'u32[144,128]{1,0:T(1,128)}', space=vmem, size = 0x12000, scoped, tag = 'internal scratch']
  #allocation2 [shape = 'f32[1,1]{1,0:T(1,128)S(6)}', space=smem, size = 0x200, scoped, tag = 'scoped memory for tpu_custom_call.1']
  %s0 = inlined_call_operand.vmem [shape: s32[48,1], index: 0, kind: input, shape index: {}]
  %s1 = inlined_call_operand.vmem [shape: f32[6,1,8], index: 1, kind: input, shape index: {}]
  %s2 = inlined_call_operand.vmem [shape: f32[6,16], index: 2, kind: input, shape index: {}]
  %s3 = inlined_call_operand.vmem [shape: s32[2,1], index: 3, kind: input, shape index: {}]
  %s4 = inlined_call_operand.vmem [shape: f32[50,32], index: 4, kind: input, shape index: {}]
  %s5 = inlined_call_operand.vmem [shape: f32[16,32], index: 5, kind: input, shape index: {}]
  %s6 = inlined_call_operand.vmem [shape: f32[32,96], index: 6, kind: input, shape index: {}]
  %s7 = inlined_call_operand.vmem [shape: f32[1,96], index: 7, kind: input, shape index: {}]
  %s8 = inlined_call_operand.vmem [shape: f32[32,32], index: 8, kind: input, shape index: {}]
  %s9 = inlined_call_operand.vmem [shape: f32[1,32], index: 9, kind: input, shape index: {}]
  %s10 = inlined_call_operand.vmem [shape: f32[1,32], index: 10, kind: input, shape index: {}]
  %s11 = inlined_call_operand.vmem [shape: f32[1,32], index: 11, kind: input, shape index: {}]
  %s12 = inlined_call_operand.vmem [shape: f32[32,64], index: 12, kind: input, shape index: {}]
  %s13 = inlined_call_operand.vmem [shape: f32[1,64], index: 13, kind: input, shape index: {}]
  %s14 = inlined_call_operand.vmem [shape: f32[64,32], index: 14, kind: input, shape index: {}]
  %s15 = inlined_call_operand.vmem [shape: f32[1,32], index: 15, kind: input, shape index: {}]
  %s16 = inlined_call_operand.vmem [shape: f32[1,32], index: 16, kind: input, shape index: {}]
  %s17 = inlined_call_operand.vmem [shape: f32[1,32], index: 17, kind: input, shape index: {}]
  %s18 = inlined_call_operand.vmem [shape: f32[32,5], index: 18, kind: input, shape index: {}]
  %s19 = inlined_call_operand.vmem [shape: f32[1,5], index: 19, kind: input, shape index: {}]
  %s20 = inlined_call_operand.vmem [shape: f32[32,5], index: 20, kind: input, shape index: {}]
  %s21 = inlined_call_operand.vmem [shape: f32[1,5], index: 21, kind: input, shape index: {}]
  %s22 = inlined_call_operand.vmem [shape: f32[32,5], index: 22, kind: input, shape index: {}]
  %s23 = inlined_call_operand.vmem [shape: f32[1,5], index: 23, kind: input, shape index: {}]
  %s24 = inlined_call_operand.<no memory space> [shape: f32[1,1], index: 24, kind: input, shape index: {}]
  %s25 = inlined_call_operand.hbm [shape: f32[1,1], index: 25, kind: output, shape index: {0}]
  %s26 = inlined_call_operand.hbm [shape: f32[2,5], index: 26, kind: output, shape index: {1}]
  %27 = xla_tuple %s25, %s26
  %s28 = sld [smem:[#allocation0]]
  $region118: #{tpu_custom_call.1} parent=0
    _
  %s30 = ssub.s32 1, %s28
  %s31 = scalar_select 0, %s30, %s28
  %32 = sst [smem:[#allocation2]] %s24
  $region1: #{tpu_custom_call.1} parent=0
    #allocation3 [shape = 'u8[512]{0}', space=vmem, size = 0x400, scoped, tag = 'output window, operand 0, single buffered']
    #allocation4 [shape = 's32[1]{0}', space=sflag, size = 0x4, scoped, tag = 'scoped memory for tpu_custom_call.1']
    #allocation5 [shape = 'u8[1024]{0}', space=vmem, size = 0x400, scoped, tag = 'output window, operand 1, single buffered']
    #allocation6 [shape = 's32[1]{0}', space=sflag, size = 0x4, scoped, tag = 'scoped memory for tpu_custom_call.1']
    %33 = vsyncpa [#allocation4], 0
    %34 = vsyncpa [#allocation6], 0
    // Predicated region
    $region2: #{tpu_custom_call.1} parent=1 // pred_check
      _
    $region3: #{tpu_custom_call.1} parent=1 // pred_check_branch
      %36 = sbr.rel (0) target = $region5
    $region4: #{tpu_custom_call.1} parent=1 // pred_region
      _
    $region5: #{tpu_custom_call.1} parent=1 // pred_fallthru
      _
    // Predicated region
    $region6: #{tpu_custom_call.1} parent=1 // pred_check
      _
    $region7: #{tpu_custom_call.1} parent=1 // pred_check_branch
      %38 = sbr.rel (0) target = $region9
    $region8: #{tpu_custom_call.1} parent=1 // pred_region
      _
    $region9: #{tpu_custom_call.1} parent=1 // pred_fallthru
      _
    // Predicated region
    $region10: #{tpu_custom_call.1} parent=1 // pred_check
      _
    $region11: #{tpu_custom_call.1} parent=1 // pred_check_branch
      %40 = sbr.rel (0) target = $region13
    $region12: #{tpu_custom_call.1} parent=1 // pred_region
      _
    $region13: #{tpu_custom_call.1} parent=1 // pred_fallthru
      _
    // Predicated region
    $region14: #{tpu_custom_call.1} parent=1 // pred_check
      _
    $region15: #{tpu_custom_call.1} parent=1 // pred_check_branch
      %42 = sbr.rel (0) target = $region17
    $region16: #{tpu_custom_call.1} parent=1 // pred_region
      _
    $region17: #{tpu_custom_call.1} parent=1 // pred_fallthru
      _
    // Predicated region
    $region18: #{tpu_custom_call.1} parent=1 // pred_check
      _
    $region19: #{tpu_custom_call.1} parent=1 // pred_check_branch
      %44 = sbr.rel (0) target = $region21
    $region20: #{tpu_custom_call.1} parent=1 // pred_region
      _
    $region21: #{tpu_custom_call.1} parent=1 // pred_fallthru
      _
    // Predicated region
    $region22: #{tpu_custom_call.1} parent=1 // pred_check
      _
    $region23: #{tpu_custom_call.1} parent=1 // pred_check_branch
      %46 = sbr.rel (0) target = $region25
    $region24: #{tpu_custom_call.1} parent=1 // pred_region
      _
    $region25: #{tpu_custom_call.1} parent=1 // pred_fallthru
      _
    // Predicated region
    $region26: #{tpu_custom_call.1} parent=1 // pred_check
      _
    $region27: #{tpu_custom_call.1} parent=1 // pred_check_branch
      %48 = sbr.rel (0) target = $region29
    $region28: #{tpu_custom_call.1} parent=1 // pred_region
      _
    $region29: #{tpu_custom_call.1} parent=1 // pred_fallthru
      _
    // Predicated region
    $region30: #{tpu_custom_call.1} parent=1 // pred_check
      _
    $region31: #{tpu_custom_call.1} parent=1 // pred_check_branch
      %50 = sbr.rel (0) target = $region33
    $region32: #{tpu_custom_call.1} parent=1 // pred_region
      _
    $region33: #{tpu_custom_call.1} parent=1 // pred_fallthru
      _
    // Predicated region
    $region34: #{tpu_custom_call.1} parent=1 // pred_check
      _
    $region35: #{tpu_custom_call.1} parent=1 // pred_check_branch
      %52 = sbr.rel (0) target = $region37
    $region36: #{tpu_custom_call.1} parent=1 // pred_region
      _
    $region37: #{tpu_custom_call.1} parent=1 // pred_fallthru
      _
    // Predicated region
    $region38: #{tpu_custom_call.1} parent=1 // pred_check
      _
    $region39: #{tpu_custom_call.1} parent=1 // pred_check_branch
      %54 = sbr.rel (0) target = $region41
    $region40: #{tpu_custom_call.1} parent=1 // pred_region
      _
    $region41: #{tpu_custom_call.1} parent=1 // pred_fallthru
      _
    // Predicated region
    $region42: #{tpu_custom_call.1} parent=1 // pred_check
      _
    $region43: #{tpu_custom_call.1} parent=1 // pred_check_branch
      %56 = sbr.rel (0) target = $region45
    $region44: #{tpu_custom_call.1} parent=1 // pred_region
      _
    $region45: #{tpu_custom_call.1} parent=1 // pred_fallthru
      _
    // Predicated region
    $region46: #{tpu_custom_call.1} parent=1 // pred_check
      _
    $region47: #{tpu_custom_call.1} parent=1 // pred_check_branch
      %58 = sbr.rel (0) target = $region49
    $region48: #{tpu_custom_call.1} parent=1 // pred_region
      _
    $region49: #{tpu_custom_call.1} parent=1 // pred_fallthru
      _
    // Predicated region
    $region50: #{tpu_custom_call.1} parent=1 // pred_check
      _
    $region51: #{tpu_custom_call.1} parent=1 // pred_check_branch
      %60 = sbr.rel (0) target = $region53
    $region52: #{tpu_custom_call.1} parent=1 // pred_region
      _
    $region53: #{tpu_custom_call.1} parent=1 // pred_fallthru
      _
    // Predicated region
    $region54: #{tpu_custom_call.1} parent=1 // pred_check
      _
    $region55: #{tpu_custom_call.1} parent=1 // pred_check_branch
      %62 = sbr.rel (0) target = $region57
    $region56: #{tpu_custom_call.1} parent=1 // pred_region
      _
    $region57: #{tpu_custom_call.1} parent=1 // pred_fallthru
      _
    // Predicated region
    $region58: #{tpu_custom_call.1} parent=1 // pred_check
      _
    $region59: #{tpu_custom_call.1} parent=1 // pred_check_branch
      %64 = sbr.rel (0) target = $region61
    $region60: #{tpu_custom_call.1} parent=1 // pred_region
      _
    $region61: #{tpu_custom_call.1} parent=1 // pred_fallthru
      _
    // Predicated region
    $region62: #{tpu_custom_call.1} parent=1 // pred_check
      _
    $region63: #{tpu_custom_call.1} parent=1 // pred_check_branch
      %66 = sbr.rel (0) target = $region65
    $region64: #{tpu_custom_call.1} parent=1 // pred_region
      _
    $region65: #{tpu_custom_call.1} parent=1 // pred_fallthru
      _
    // Predicated region
    $region66: #{tpu_custom_call.1} parent=1 // pred_check
      _
    $region67: #{tpu_custom_call.1} parent=1 // pred_check_branch
      %68 = sbr.rel (0) target = $region69
    $region68: #{tpu_custom_call.1} parent=1 // pred_region
      _
    $region69: #{tpu_custom_call.1} parent=1 // pred_fallthru
      _
    // Predicated region
    $region70: #{tpu_custom_call.1} parent=1 // pred_check
      _
    $region71: #{tpu_custom_call.1} parent=1 // pred_check_branch
      %70 = sbr.rel (0) target = $region73
    $region72: #{tpu_custom_call.1} parent=1 // pred_region
      _
    $region73: #{tpu_custom_call.1} parent=1 // pred_fallthru
      _
    // Predicated region
    $region74: #{tpu_custom_call.1} parent=1 // pred_check
      _
    $region75: #{tpu_custom_call.1} parent=1 // pred_check_branch
      %72 = sbr.rel (0) target = $region77
    $region76: #{tpu_custom_call.1} parent=1 // pred_region
      _
    $region77: #{tpu_custom_call.1} parent=1 // pred_fallthru
      _
    // Predicated region
    $region78: #{tpu_custom_call.1} parent=1 // pred_check
      _
    $region79: #{tpu_custom_call.1} parent=1 // pred_check_branch
      %74 = sbr.rel (0) target = $region81
    $region80: #{tpu_custom_call.1} parent=1 // pred_region
      _
    $region81: #{tpu_custom_call.1} parent=1 // pred_fallthru
      _
    // Predicated region
    $region82: #{tpu_custom_call.1} parent=1 // pred_check
      _
    $region83: #{tpu_custom_call.1} parent=1 // pred_check_branch
      %76 = sbr.rel (0) target = $region85
    $region84: #{tpu_custom_call.1} parent=1 // pred_region
      _
    $region85: #{tpu_custom_call.1} parent=1 // pred_fallthru
      _
    // Predicated region
    $region86: #{tpu_custom_call.1} parent=1 // pred_check
      _
    $region87: #{tpu_custom_call.1} parent=1 // pred_check_branch
      %78 = sbr.rel (0) target = $region89
    $region88: #{tpu_custom_call.1} parent=1 // pred_region
      _
    $region89: #{tpu_custom_call.1} parent=1 // pred_fallthru
      _
    // Predicated region
    $region90: #{tpu_custom_call.1} parent=1 // pred_check
      _
    $region91: #{tpu_custom_call.1} parent=1 // pred_check_branch
      %80 = sbr.rel (0) target = $region93
    $region92: #{tpu_custom_call.1} parent=1 // pred_region
      _
    $region93: #{tpu_custom_call.1} parent=1 // pred_fallthru
      _
    // Predicated region
    $region94: #{tpu_custom_call.1} parent=1 // pred_check
      _
    $region95: #{tpu_custom_call.1} parent=1 // pred_check_branch
      %82 = sbr.rel (0) target = $region97
    $region96: #{tpu_custom_call.1} parent=1 // pred_region
      _
    $region97: #{tpu_custom_call.1} parent=1 // pred_fallthru
      _
    // Predicated region
    $region98: #{tpu_custom_call.1} parent=1 // pred_check
      _
    $region99: #{tpu_custom_call.1} parent=1 // pred_check_branch
      %84 = sbr.rel (0) target = $region101
    $region100: #{tpu_custom_call.1} parent=1 // pred_region
      _
    $region101: #{tpu_custom_call.1} parent=1 // pred_fallthru
      _
    %v85 = vld [vmem:[%s0] sm:$0xff]
    %v86 = vld [vmem:[%s0 + $0x8] sm:$0xff]
    %v87 = vld [vmem:[%s0 + $0x10] sm:$0xff]
    %v88 = vld [vmem:[%s0 + $0x18] sm:$0xff]
    %v89 = vld [vmem:[%s0 + $0x20] sm:$0xff]
    %v90 = vld [vmem:[%s0 + $0x28] sm:$0xff]
    %v91 = vlaneseq
    %v92 = vand.u32 %v91, 127
    %93 = vset.pattern.permute.xlu0 0
    %94 = vperm.xlu0 %93, %v85
    %v95 = vpop.permute.xlu0 %94
    %96 = vset.pattern.permute.xlu0 0
    %97 = vperm.xlu0 %96, %v86
    %v98 = vpop.permute.xlu0 %97
    %99 = vset.pattern.permute.xlu0 0
    %100 = vperm.xlu0 %99, %v87
    %v101 = vpop.permute.xlu0 %100
    %102 = vset.pattern.permute.xlu0 0
    %103 = vperm.xlu0 %102, %v88
    %v104 = vpop.permute.xlu0 %103
    %105 = vset.pattern.permute.xlu0 0
    %106 = vperm.xlu0 %105, %v89
    %v107 = vpop.permute.xlu0 %106
    %108 = vset.pattern.permute.xlu0 0
    %109 = vperm.xlu0 %108, %v90
    %v110 = vpop.permute.xlu0 %109
    %vm111 = vcmp.eq.s32.totalorder %v92, %v95
    %vm112 = vcmp.eq.s32.totalorder %v92, %v98
    %vm113 = vcmp.eq.s32.totalorder %v92, %v101
    %vm114 = vcmp.eq.s32.totalorder %v92, %v104
    %vm115 = vcmp.eq.s32.totalorder %v92, %v107
    %vm116 = vcmp.eq.s32.totalorder %v92, %v110
    %v117 = vsel %vm111, 1, 0
    %v118 = vsel %vm112, 1, 0
    %v119 = vsel %vm113, 1, 0
    %v120 = vsel %vm114, 1, 0
    %v121 = vsel %vm115, 1, 0
    %v122 = vsel %vm116, 1, 0
    %v123 = vcvt.s32.f32 %v117
    %v124 = vcvt.s32.f32 %v118
    %v125 = vcvt.s32.f32 %v119
    %v126 = vcvt.s32.f32 %v120
    %v127 = vcvt.s32.f32 %v121
    %v128 = vcvt.s32.f32 %v122
    %v129 = vld [vmem:[%s4] sm:$0xff]
    %v130 = vld [vmem:[%s4 + $0x8] sm:$0xff]
    %v131 = vld [vmem:[%s4 + $0x10] sm:$0xff]
    %v132 = vld [vmem:[%s4 + $0x18] sm:$0xff]
    %v133 = vld [vmem:[%s4 + $0x20] sm:$0xff]
    %v134 = vld [vmem:[%s4 + $0x28] sm:$0xff]
    %v135 = vld [vmem:[%s4 + $0x30] sm:$0x3]
    %vm136 = vcmask 408576
    %v138 = vsel %vm136, %v123, 0
    %v141 = vsel %vm136, %v124, 0
    %v144 = vsel %vm136, %v125, 0
    %v147 = vsel %vm136, %v126, 0
    %v150 = vsel %vm136, %v127, 0
    %v153 = vsel %vm136, %v128, 0
    %vm155 = vcmask 1041408
    %v157 = vsel %vm155, %v135, 0
    %159 = vmatprep.subr.mxu0 0.0
    %160 = vmatpush1.msra.mxu0 0.0
    %161 = vmatprep.subr.mxu0 0.0
    %162 = vmatpush1.msra.mxu0 0.0
    %163 = vmatprep.subr.mxu0 0.0
    %164 = vmatpush1.msra.mxu0 0.0
    %165 = vmatprep.subr.mxu0 0.0
    %166 = vmatpush1.msra.mxu0 0.0
    %167 = vmatprep.subr.mxu0 0.0
    %168 = vmatpush1.msra.mxu0 0.0
    %169 = vmatprep.subr.mxu0 0.0
    %170 = vmatpush1.msra.mxu0 0.0
    %171 = vmatprep.subr.mxu0 0.0
    %172 = vmatpush1.msra.mxu0 0.0
    %173 = vmatprep.subr.mxu0 0.0
    %174 = vmatpush1.msra.mxu0 0.0
    %175 = vmatprep.subr.mxu0 0.0
    %176 = vmatpush1.msra.mxu0 0.0
    %177 = vmatprep.subr.mxu0 0.0
    %178 = vmatpush1.msra.mxu0 %v157
    %179 = vmatprep.subr.mxu0 0.0
    %180 = vmatpush1.msra.mxu0 %v134
    %181 = vmatprep.subr.mxu0 0.0
    %182 = vmatpush1.msra.mxu0 %v133
    %183 = vmatprep.subr.mxu0 0.0
    %184 = vmatpush1.msra.mxu0 %v132
    %185 = vmatprep.subr.mxu0 0.0
    %186 = vmatpush1.msra.mxu0 %v131
    %187 = vmatprep.subr.mxu0 0.0
    %188 = vmatpush1.msra.mxu0 %v130
    %189 = vmatprep.subr.mxu0 0.0
    %190 = vmatpush1.msra.mxu0 %v129
    %191 = vmatprep.subr.mxu0 0.0
    %192 = vmatpush2.msra.mxu0 0.0
    %193 = vmatprep.subr.mxu0 0.0
    %194 = vmatpush2.msra.mxu0 0.0
    %195 = vmatprep.subr.mxu0 0.0
    %196 = vmatpush2.msra.mxu0 0.0
    %197 = vmatprep.subr.mxu0 0.0
    %198 = vmatpush2.msra.mxu0 0.0
    %199 = vmatprep.subr.mxu0 0.0
    %200 = vmatpush2.msra.mxu0 0.0
    %201 = vmatprep.subr.mxu0 0.0
    %202 = vmatpush2.msra.mxu0 0.0
    %203 = vmatprep.subr.mxu0 0.0
    %204 = vmatpush2.msra.mxu0 0.0
    %205 = vmatprep.subr.mxu0 0.0
    %206 = vmatpush2.msra.mxu0 0.0
    %207 = vmatprep.subr.mxu0 0.0
    %208 = vmatpush2.msra.mxu0 0.0
    %209 = vmatprep.subr.mxu0 0.0
    %210 = vmatpush2.msra.mxu0 0.0
    %211 = vmatprep.subr.mxu0 0.0
    %212 = vmatpush2.msra.mxu0 0.0
    %213 = vmatprep.subr.mxu0 0.0
    %214 = vmatpush2.msra.mxu0 0.0
    %215 = vmatprep.subr.mxu0 0.0
    %216 = vmatpush2.msra.mxu0 0.0
    %217 = vmatprep.subr.mxu0 0.0
    %218 = vmatpush2.msra.mxu0 0.0
    %219 = vmatprep.subr.mxu0 0.0
    %220 = vmatpush2.msra.mxu0 0.0
    %221 = vmatprep.subr.mxu0 0.0
    %222 = vmatpush2.msra.mxu0 0.0
    %223 = vmatprep.mubr.f32.mxu0 0.0
    %224 = vmatmul.mubr.f32.gmra.mxu0 %v138
    %v225 = vpop.f32.mrf.mxu0
    %v226 = vadd.f32 0.0, %v225
    %v227 = vpop.f32.mrf.mxu0
    %228 = vmatprep.mubr.f32.mxu0 0.0
    %229 = vmatmul.mubr.f32.gmra.mxu0 %v141
    %v230 = vpop.f32.mrf.mxu0
    %v231 = vadd.f32 0.0, %v230
    %v232 = vpop.f32.mrf.mxu0
    %233 = vmatprep.mubr.f32.mxu0 0.0
    %234 = vmatmul.mubr.f32.gmra.mxu0 %v144
    %v235 = vpop.f32.mrf.mxu0
    %v236 = vadd.f32 0.0, %v235
    %v237 = vpop.f32.mrf.mxu0
    %238 = vmatprep.mubr.f32.mxu0 0.0
    %239 = vmatmul.mubr.f32.gmra.mxu0 %v147
    %v240 = vpop.f32.mrf.mxu0
    %v241 = vadd.f32 0.0, %v240
    %v242 = vpop.f32.mrf.mxu0
    %243 = vmatprep.mubr.f32.mxu0 0.0
    %244 = vmatmul.mubr.f32.gmra.mxu0 %v150
    %v245 = vpop.f32.mrf.mxu0
    %v246 = vadd.f32 0.0, %v245
    %v247 = vpop.f32.mrf.mxu0
    %248 = vmatprep.mubr.f32.mxu0 0.0
    %249 = vmatmul.mubr.f32.gmra.mxu0 %v153
    %v250 = vpop.f32.mrf.mxu0
    %v251 = vadd.f32 0.0, %v250
    %v252 = vpop.f32.mrf.mxu0
    %253 = vdwg.mxu0
    %v254 = vld [vmem:[%s2] sm:$0x3f]
    %v255 = vld [vmem:[%s5] sm:$0xff]
    %v256 = vld [vmem:[%s5 + $0x8] sm:$0xff]
    %vm257 = vcmask 130048
    %v259 = vsel %vm257, %v254, 0
    %261 = vmatprep.subr.mxu0 0.0
    %262 = vmatpush1.msra.mxu0 0.0
    %263 = vmatprep.subr.mxu0 0.0
    %264 = vmatpush1.msra.mxu0 0.0
    %265 = vmatprep.subr.mxu0 0.0
    %266 = vmatpush1.msra.mxu0 0.0
    %267 = vmatprep.subr.mxu0 0.0
    %268 = vmatpush1.msra.mxu0 0.0
    %269 = vmatprep.subr.mxu0 0.0
    %270 = vmatpush1.msra.mxu0 0.0
    %271 = vmatprep.subr.mxu0 0.0
    %272 = vmatpush1.msra.mxu0 0.0
    %273 = vmatprep.subr.mxu0 0.0
    %274 = vmatpush1.msra.mxu0 0.0
    %275 = vmatprep.subr.mxu0 0.0
    %276 = vmatpush1.msra.mxu0 0.0
    %277 = vmatprep.subr.mxu0 0.0
    %278 = vmatpush1.msra.mxu0 0.0
    %279 = vmatprep.subr.mxu0 0.0
    %280 = vmatpush1.msra.mxu0 0.0
    %281 = vmatprep.subr.mxu0 0.0
    %282 = vmatpush1.msra.mxu0 0.0
    %283 = vmatprep.subr.mxu0 0.0
    %284 = vmatpush1.msra.mxu0 0.0
    %285 = vmatprep.subr.mxu0 0.0
    %286 = vmatpush1.msra.mxu0 0.0
    %287 = vmatprep.subr.mxu0 0.0
    %288 = vmatpush1.msra.mxu0 0.0
    %289 = vmatprep.subr.mxu0 0.0
    %290 = vmatpush1.msra.mxu0 %v256
    %291 = vmatprep.subr.mxu0 0.0
    %292 = vmatpush1.msra.mxu0 %v255
    %293 = vmatprep.subr.mxu0 0.0
    %294 = vmatpush2.msra.mxu0 0.0
    %295 = vmatprep.subr.mxu0 0.0
    %296 = vmatpush2.msra.mxu0 0.0
    %297 = vmatprep.subr.mxu0 0.0
    %298 = vmatpush2.msra.mxu0 0.0
    %299 = vmatprep.subr.mxu0 0.0
    %300 = vmatpush2.msra.mxu0 0.0
    %301 = vmatprep.subr.mxu0 0.0
    %302 = vmatpush2.msra.mxu0 0.0
    %303 = vmatprep.subr.mxu0 0.0
    %304 = vmatpush2.msra.mxu0 0.0
    %305 = vmatprep.subr.mxu0 0.0
    %306 = vmatpush2.msra.mxu0 0.0
    %307 = vmatprep.subr.mxu0 0.0
    %308 = vmatpush2.msra.mxu0 0.0
    %309 = vmatprep.subr.mxu0 0.0
    %310 = vmatpush2.msra.mxu0 0.0
    %311 = vmatprep.subr.mxu0 0.0
    %312 = vmatpush2.msra.mxu0 0.0
    %313 = vmatprep.subr.mxu0 0.0
    %314 = vmatpush2.msra.mxu0 0.0
    %315 = vmatprep.subr.mxu0 0.0
    %316 = vmatpush2.msra.mxu0 0.0
    %317 = vmatprep.subr.mxu0 0.0
    %318 = vmatpush2.msra.mxu0 0.0
    %319 = vmatprep.subr.mxu0 0.0
    %320 = vmatpush2.msra.mxu0 0.0
    %321 = vmatprep.subr.mxu0 0.0
    %322 = vmatpush2.msra.mxu0 0.0
    %323 = vmatprep.subr.mxu0 0.0
    %324 = vmatpush2.msra.mxu0 0.0
    %325 = vmatprep.mubr.f32.mxu0 0.0
    %326 = vmatmul.mubr.f32.gmra.mxu0 %v259
    %v327 = vpop.f32.mrf.mxu0
    %v328 = vadd.f32 0.0, %v327
    %v329 = vpop.f32.mrf.mxu0
    %330 = vdwg.mxu0
    %v332 = vcombine.high %v328, %v328
    %v334 = vunpack.c.l.s4 1966171168
    %v335 = vunpack.c.0.s8 %v334
    %v336 = vlaneseq
    %v337 = vshrl.u32 %v336, 7
    %v338 = vsub.s32 %v335, %v337
    %v339 = vrot.slane %v328, %v338
    %v341 = vunpack.c.l.s4 1966171168
    %v342 = vunpack.c.0.s8 %v341
    %v343 = vlaneseq
    %v344 = vshrl.u32 %v343, 7
    %v345 = vsub.s32 %v342, %v344
    %v346 = vrot.slane %v332, %v345
    %v347 = vcombine.high %v339, %v339
    %v348 = vcombine.high %v346, %v346
    %v350 = vunpack.c.l.s4 1966171168
    %v351 = vunpack.c.0.s8 %v350
    %v352 = vlaneseq
    %v353 = vshrl.u32 %v352, 7
    %v354 = vsub.s32 %v351, %v353
    %v355 = vrot.slane %v339, %v354
    %v357 = vunpack.c.l.s4 1966171168
    %v358 = vunpack.c.0.s8 %v357
    %v359 = vlaneseq
    %v360 = vshrl.u32 %v359, 7
    %v361 = vsub.s32 %v358, %v360
    %v362 = vrot.slane %v346, %v361
    %v364 = vunpack.c.l.s4 1966171168
    %v365 = vunpack.c.0.s8 %v364
    %v366 = vlaneseq
    %v367 = vshrl.u32 %v366, 7
    %v368 = vsub.s32 %v365, %v367
    %v369 = vrot.slane %v347, %v368
    %v371 = vunpack.c.l.s4 1966171168
    %v372 = vunpack.c.0.s8 %v371
    %v373 = vlaneseq
    %v374 = vshrl.u32 %v373, 7
    %v375 = vsub.s32 %v372, %v374
    %v376 = vrot.slane %v348, %v375
    %v377 = vcombine.high %v355, %v355
    %v378 = vcombine.high %v369, %v369
    %v379 = vlaneseq
    %v380 = vshrl.u32 %v379, 7
    %v381 = vsub.s32 0, %v380
    %v382 = vrot.slane %v355, %v381
    %v383 = vlaneseq
    %v384 = vshrl.u32 %v383, 7
    %v385 = vsub.s32 0, %v384
    %v386 = vrot.slane %v369, %v385
    %v387 = vlaneseq
    %v388 = vshrl.u32 %v387, 7
    %v389 = vsub.s32 0, %v388
    %v390 = vrot.slane %v377, %v389
    %v391 = vlaneseq
    %v392 = vshrl.u32 %v391, 7
    %v393 = vsub.s32 0, %v392
    %v394 = vrot.slane %v378, %v393
    %v395 = vlaneseq
    %v396 = vshrl.u32 %v395, 7
    %v397 = vsub.s32 0, %v396
    %v398 = vrot.slane %v362, %v397
    %v399 = vlaneseq
    %v400 = vshrl.u32 %v399, 7
    %v401 = vsub.s32 0, %v400
    %v402 = vrot.slane %v376, %v401
    %v409 = vadd.f32 %v226, %v382
    %v410 = vadd.f32 %v231, %v386
    %v411 = vadd.f32 %v236, %v390
    %v412 = vadd.f32 %v241, %v394
    %v413 = vadd.f32 %v246, %v398
    %v414 = vadd.f32 %v251, %v402
    %v415 = vld [vmem:[%s6] sm:$0xff]
    %v416 = vld [vmem:[%s6 + $0x8] sm:$0xff]
    %v417 = vld [vmem:[%s6 + $0x10] sm:$0xff]
    %v418 = vld [vmem:[%s6 + $0x18] sm:$0xff]
    %v419 = vld [vmem:[%s7] sm:$0x1]
    %v421 = vlaneseq
    %v422 = vshrl.u32 %v421, 7
    %v423 = vsub.s32 0, %v422
    %v424 = vrot.slane %v419, %v423
    %vm426 = vcmask 261120
    %v428 = vsel %vm426, %v409, 0
    %v431 = vsel %vm426, %v410, 0
    %v434 = vsel %vm426, %v411, 0
    %v437 = vsel %vm426, %v412, 0
    %v440 = vsel %vm426, %v413, 0
    %v443 = vsel %vm426, %v414, 0
    %445 = vmatprep.subr.mxu0 0.0
    %446 = vmatpush1.msra.mxu0 0.0
    %447 = vmatprep.subr.mxu0 0.0
    %448 = vmatpush1.msra.mxu0 0.0
    %449 = vmatprep.subr.mxu0 0.0
    %450 = vmatpush1.msra.mxu0 0.0
    %451 = vmatprep.subr.mxu0 0.0
    %452 = vmatpush1.msra.mxu0 0.0
    %453 = vmatprep.subr.mxu0 0.0
    %454 = vmatpush1.msra.mxu0 0.0
    %455 = vmatprep.subr.mxu0 0.0
    %456 = vmatpush1.msra.mxu0 0.0
    %457 = vmatprep.subr.mxu0 0.0
    %458 = vmatpush1.msra.mxu0 0.0
    %459 = vmatprep.subr.mxu0 0.0
    %460 = vmatpush1.msra.mxu0 0.0
    %461 = vmatprep.subr.mxu0 0.0
    %462 = vmatpush1.msra.mxu0 0.0
    %463 = vmatprep.subr.mxu0 0.0
    %464 = vmatpush1.msra.mxu0 0.0
    %465 = vmatprep.subr.mxu0 0.0
    %466 = vmatpush1.msra.mxu0 0.0
    %467 = vmatprep.subr.mxu0 0.0
    %468 = vmatpush1.msra.mxu0 0.0
    %469 = vmatprep.subr.mxu0 0.0
    %470 = vmatpush1.msra.mxu0 %v418
    %471 = vmatprep.subr.mxu0 0.0
    %472 = vmatpush1.msra.mxu0 %v417
    %473 = vmatprep.subr.mxu0 0.0
    %474 = vmatpush1.msra.mxu0 %v416
    %475 = vmatprep.subr.mxu0 0.0
    %476 = vmatpush1.msra.mxu0 %v415
    %477 = vmatprep.subr.mxu0 0.0
    %478 = vmatpush2.msra.mxu0 0.0
    %479 = vmatprep.subr.mxu0 0.0
    %480 = vmatpush2.msra.mxu0 0.0
    %481 = vmatprep.subr.mxu0 0.0
    %482 = vmatpush2.msra.mxu0 0.0
    %483 = vmatprep.subr.mxu0 0.0
    %484 = vmatpush2.msra.mxu0 0.0
    %485 = vmatprep.subr.mxu0 0.0
    %486 = vmatpush2.msra.mxu0 0.0
    %487 = vmatprep.subr.mxu0 0.0
    %488 = vmatpush2.msra.mxu0 0.0
    %489 = vmatprep.subr.mxu0 0.0
    %490 = vmatpush2.msra.mxu0 0.0
    %491 = vmatprep.subr.mxu0 0.0
    %492 = vmatpush2.msra.mxu0 0.0
    %493 = vmatprep.subr.mxu0 0.0
    %494 = vmatpush2.msra.mxu0 0.0
    %495 = vmatprep.subr.mxu0 0.0
    %496 = vmatpush2.msra.mxu0 0.0
    %497 = vmatprep.subr.mxu0 0.0
    %498 = vmatpush2.msra.mxu0 0.0
    %499 = vmatprep.subr.mxu0 0.0
    %500 = vmatpush2.msra.mxu0 0.0
    %501 = vmatprep.subr.mxu0 0.0
    %502 = vmatpush2.msra.mxu0 0.0
    %503 = vmatprep.subr.mxu0 0.0
    %504 = vmatpush2.msra.mxu0 0.0
    %505 = vmatprep.subr.mxu0 0.0
    %506 = vmatpush2.msra.mxu0 0.0
    %507 = vmatprep.subr.mxu0 0.0
    %508 = vmatpush2.msra.mxu0 0.0
    %509 = vmatprep.mubr.f32.mxu0 0.0
    %510 = vmatmul.mubr.f32.gmra.mxu0 %v428
    %v511 = vpop.f32.mrf.mxu0
    %v512 = vadd.f32 %v424, %v511
    %v513 = vpop.f32.mrf.mxu0
    %514 = vmatprep.mubr.f32.mxu0 0.0
    %515 = vmatmul.mubr.f32.gmra.mxu0 %v431
    %v516 = vpop.f32.mrf.mxu0
    %v517 = vadd.f32 %v424, %v516
    %v518 = vpop.f32.mrf.mxu0
    %519 = vmatprep.mubr.f32.mxu0 0.0
    %520 = vmatmul.mubr.f32.gmra.mxu0 %v434
    %v521 = vpop.f32.mrf.mxu0
    %v522 = vadd.f32 %v424, %v521
    %v523 = vpop.f32.mrf.mxu0
    %524 = vmatprep.mubr.f32.mxu0 0.0
    %525 = vmatmul.mubr.f32.gmra.mxu0 %v437
    %v526 = vpop.f32.mrf.mxu0
    %v527 = vadd.f32 %v424, %v526
    %v528 = vpop.f32.mrf.mxu0
    %529 = vmatprep.mubr.f32.mxu0 0.0
    %530 = vmatmul.mubr.f32.gmra.mxu0 %v440
    %v531 = vpop.f32.mrf.mxu0
    %v532 = vadd.f32 %v424, %v531
    %v533 = vpop.f32.mrf.mxu0
    %534 = vmatprep.mubr.f32.mxu0 0.0
    %535 = vmatmul.mubr.f32.gmra.mxu0 %v443
    %v536 = vpop.f32.mrf.mxu0
    %v537 = vadd.f32 %v424, %v536
    %v538 = vpop.f32.mrf.mxu0
    %539 = vdwg.mxu0
    %v540 = vld [vmem:[%s1] sm:$0x1]
    %v541 = vld [vmem:[%s1 + $0x1] sm:$0x1]
    %v542 = vld [vmem:[%s1 + $0x2] sm:$0x1]
    %v543 = vld [vmem:[%s1 + $0x3] sm:$0x1]
    %v544 = vld [vmem:[%s1 + $0x4] sm:$0x1]
    %v545 = vld [vmem:[%s1 + $0x5] sm:$0x1]
    %v546 = vsub.f32 %v540, 1.0
    %v547 = vsub.f32 %v541, 1.0
    %v548 = vsub.f32 %v542, 1.0
    %v549 = vsub.f32 %v543, 1.0
    %v550 = vsub.f32 %v544, 1.0
    %v551 = vsub.f32 %v545, 1.0
    %v552 = vmul.f32 %v546, 1e+09
    %v553 = vmul.f32 %v547, 1e+09
    %v554 = vmul.f32 %v548, 1e+09
    %v555 = vmul.f32 %v549, 1e+09
    %v556 = vmul.f32 %v550, 1e+09
    %v557 = vmul.f32 %v551, 1e+09
    %559 = vrot.lane.b32.xlu0 %v512, 96
    %v560 = vpop.permute.xlu0 %559
    %vm561 = vcmask 64512
    %v562 = vsel %vm561, %v512, 0
    %v564 = vsel %vm561, %v560, 0
    %566 = vmatprep.subr.mxu0 0.0
    %567 = vmatpush1.xpose.msra.mxu0 0.0
    %568 = vmatprep.subr.mxu0 0.0
    %569 = vmatpush1.xpose.msra.mxu0 0.0
    %570 = vmatprep.subr.mxu0 0.0
    %571 = vmatpush1.xpose.msra.mxu0 0.0
    %572 = vmatprep.subr.mxu0 0.0
    %573 = vmatpush1.xpose.msra.mxu0 0.0
    %574 = vmatprep.subr.mxu0 0.0
    %575 = vmatpush1.xpose.msra.mxu0 0.0
    %576 = vmatprep.subr.mxu0 0.0
    %577 = vmatpush1.xpose.msra.mxu0 0.0
    %578 = vmatprep.subr.mxu0 0.0
    %579 = vmatpush1.xpose.msra.mxu0 0.0
    %580 = vmatprep.subr.mxu0 0.0
    %581 = vmatpush1.xpose.msra.mxu0 0.0
    %582 = vmatprep.subr.mxu0 0.0
    %583 = vmatpush1.xpose.msra.mxu0 0.0
    %584 = vmatprep.subr.mxu0 0.0
    %585 = vmatpush1.xpose.msra.mxu0 0.0
    %586 = vmatprep.subr.mxu0 0.0
    %587 = vmatpush1.xpose.msra.mxu0 0.0
    %588 = vmatprep.subr.mxu0 0.0
    %589 = vmatpush1.xpose.msra.mxu0 0.0
    %590 = vmatprep.subr.mxu0 0.0
    %591 = vmatpush1.xpose.msra.mxu0 0.0
    %592 = vmatprep.subr.mxu0 0.0
    %593 = vmatpush1.xpose.msra.mxu0 0.0
    %594 = vmatprep.subr.mxu0 0.0
    %595 = vmatpush1.xpose.msra.mxu0 0.0
    %596 = vmatprep.subr.mxu0 0.0
    %597 = vmatpush1.xpose.msra.mxu0 %v564
    %598 = vmatprep.subr.mxu0 0.0
    %599 = vmatpush2.xpose.msra.mxu0 0.0
    %600 = vmatprep.subr.mxu0 0.0
    %601 = vmatpush2.xpose.msra.mxu0 0.0
    %602 = vmatprep.subr.mxu0 0.0
    %603 = vmatpush2.xpose.msra.mxu0 0.0
    %604 = vmatprep.subr.mxu0 0.0
    %605 = vmatpush2.xpose.msra.mxu0 0.0
    %606 = vmatprep.subr.mxu0 0.0
    %607 = vmatpush2.xpose.msra.mxu0 0.0
    %608 = vmatprep.subr.mxu0 0.0
    %609 = vmatpush2.xpose.msra.mxu0 0.0
    %610 = vmatprep.subr.mxu0 0.0
    %611 = vmatpush2.xpose.msra.mxu0 0.0
    %612 = vmatprep.subr.mxu0 0.0
    %613 = vmatpush2.xpose.msra.mxu0 0.0
    %614 = vmatprep.subr.mxu0 0.0
    %615 = vmatpush2.xpose.msra.mxu0 0.0
    %616 = vmatprep.subr.mxu0 0.0
    %617 = vmatpush2.xpose.msra.mxu0 0.0
    %618 = vmatprep.subr.mxu0 0.0
    %619 = vmatpush2.xpose.msra.mxu0 0.0
    %620 = vmatprep.subr.mxu0 0.0
    %621 = vmatpush2.xpose.msra.mxu0 0.0
    %622 = vmatprep.subr.mxu0 0.0
    %623 = vmatpush2.xpose.msra.mxu0 0.0
    %624 = vmatprep.subr.mxu0 0.0
    %625 = vmatpush2.xpose.msra.mxu0 0.0
    %626 = vmatprep.subr.mxu0 0.0
    %627 = vmatpush2.xpose.msra.mxu0 0.0
    %628 = vmatprep.subr.mxu0 0.0
    %629 = vmatpush2.xpose.msra.mxu0 0.0
    %630 = vmatprep.mubr.f32.mxu0 0.0
    %631 = vmatmul.mubr.f32.gmra.mxu0 %v562
    %v632 = vpop.f32.mrf.mxu0
    %v633 = vadd.f32 0.0, %v632
    %v634 = vpop.f32.mrf.mxu0
    %635 = vdwg.mxu0
    %637 = vrot.lane.b32.xlu0 %v517, 96
    %v638 = vpop.permute.xlu0 %637
    %v639 = vsel %vm561, %v517, 0
    %v641 = vsel %vm561, %v638, 0
    %643 = vmatprep.subr.mxu0 0.0
    %644 = vmatpush1.xpose.msra.mxu0 0.0
    %645 = vmatprep.subr.mxu0 0.0
    %646 = vmatpush1.xpose.msra.mxu0 0.0
    %647 = vmatprep.subr.mxu0 0.0
    %648 = vmatpush1.xpose.msra.mxu0 0.0
    %649 = vmatprep.subr.mxu0 0.0
    %650 = vmatpush1.xpose.msra.mxu0 0.0
    %651 = vmatprep.subr.mxu0 0.0
    %652 = vmatpush1.xpose.msra.mxu0 0.0
    %653 = vmatprep.subr.mxu0 0.0
    %654 = vmatpush1.xpose.msra.mxu0 0.0
    %655 = vmatprep.subr.mxu0 0.0
    %656 = vmatpush1.xpose.msra.mxu0 0.0
    %657 = vmatprep.subr.mxu0 0.0
    %658 = vmatpush1.xpose.msra.mxu0 0.0
    %659 = vmatprep.subr.mxu0 0.0
    %660 = vmatpush1.xpose.msra.mxu0 0.0
    %661 = vmatprep.subr.mxu0 0.0
    %662 = vmatpush1.xpose.msra.mxu0 0.0
    %663 = vmatprep.subr.mxu0 0.0
    %664 = vmatpush1.xpose.msra.mxu0 0.0
    %665 = vmatprep.subr.mxu0 0.0
    %666 = vmatpush1.xpose.msra.mxu0 0.0
    %667 = vmatprep.subr.mxu0 0.0
    %668 = vmatpush1.xpose.msra.mxu0 0.0
    %669 = vmatprep.subr.mxu0 0.0
    %670 = vmatpush1.xpose.msra.mxu0 0.0
    %671 = vmatprep.subr.mxu0 0.0
    %672 = vmatpush1.xpose.msra.mxu0 0.0
    %673 = vmatprep.subr.mxu0 0.0
    %674 = vmatpush1.xpose.msra.mxu0 %v641
    %675 = vmatprep.subr.mxu0 0.0
    %676 = vmatpush2.xpose.msra.mxu0 0.0
    %677 = vmatprep.subr.mxu0 0.0
    %678 = vmatpush2.xpose.msra.mxu0 0.0
    %679 = vmatprep.subr.mxu0 0.0
    %680 = vmatpush2.xpose.msra.mxu0 0.0
    %681 = vmatprep.subr.mxu0 0.0
    %682 = vmatpush2.xpose.msra.mxu0 0.0
    %683 = vmatprep.subr.mxu0 0.0
    %684 = vmatpush2.xpose.msra.mxu0 0.0
    %685 = vmatprep.subr.mxu0 0.0
    %686 = vmatpush2.xpose.msra.mxu0 0.0
    %687 = vmatprep.subr.mxu0 0.0
    %688 = vmatpush2.xpose.msra.mxu0 0.0
    %689 = vmatprep.subr.mxu0 0.0
    %690 = vmatpush2.xpose.msra.mxu0 0.0
    %691 = vmatprep.subr.mxu0 0.0
    %692 = vmatpush2.xpose.msra.mxu0 0.0
    %693 = vmatprep.subr.mxu0 0.0
    %694 = vmatpush2.xpose.msra.mxu0 0.0
    %695 = vmatprep.subr.mxu0 0.0
    %696 = vmatpush2.xpose.msra.mxu0 0.0
    %697 = vmatprep.subr.mxu0 0.0
    %698 = vmatpush2.xpose.msra.mxu0 0.0
    %699 = vmatprep.subr.mxu0 0.0
    %700 = vmatpush2.xpose.msra.mxu0 0.0
    %701 = vmatprep.subr.mxu0 0.0
    %702 = vmatpush2.xpose.msra.mxu0 0.0
    %703 = vmatprep.subr.mxu0 0.0
    %704 = vmatpush2.xpose.msra.mxu0 0.0
    %705 = vmatprep.subr.mxu0 0.0
    %706 = vmatpush2.xpose.msra.mxu0 0.0
    %707 = vmatprep.mubr.f32.mxu0 0.0
    %708 = vmatmul.mubr.f32.gmra.mxu0 %v639
    %v709 = vpop.f32.mrf.mxu0
    %v710 = vadd.f32 0.0, %v709
    %v711 = vpop.f32.mrf.mxu0
    %712 = vdwg.mxu0
    %714 = vrot.lane.b32.xlu0 %v522, 96
    %v715 = vpop.permute.xlu0 %714
    %v716 = vsel %vm561, %v522, 0
    %v718 = vsel %vm561, %v715, 0
    %720 = vmatprep.subr.mxu0 0.0
    %721 = vmatpush1.xpose.msra.mxu0 0.0
    %722 = vmatprep.subr.mxu0 0.0
    %723 = vmatpush1.xpose.msra.mxu0 0.0
    %724 = vmatprep.subr.mxu0 0.0
    %725 = vmatpush1.xpose.msra.mxu0 0.0
    %726 = vmatprep.subr.mxu0 0.0
    %727 = vmatpush1.xpose.msra.mxu0 0.0
    %728 = vmatprep.subr.mxu0 0.0
    %729 = vmatpush1.xpose.msra.mxu0 0.0
    %730 = vmatprep.subr.mxu0 0.0
    %731 = vmatpush1.xpose.msra.mxu0 0.0
    %732 = vmatprep.subr.mxu0 0.0
    %733 = vmatpush1.xpose.msra.mxu0 0.0
    %734 = vmatprep.subr.mxu0 0.0
    %735 = vmatpush1.xpose.msra.mxu0 0.0
    %736 = vmatprep.subr.mxu0 0.0
    %737 = vmatpush1.xpose.msra.mxu0 0.0
    %738 = vmatprep.subr.mxu0 0.0
    %739 = vmatpush1.xpose.msra.mxu0 0.0
    %740 = vmatprep.subr.mxu0 0.0
    %741 = vmatpush1.xpose.msra.mxu0 0.0
    %742 = vmatprep.subr.mxu0 0.0
    %743 = vmatpush1.xpose.msra.mxu0 0.0
    %744 = vmatprep.subr.mxu0 0.0
    %745 = vmatpush1.xpose.msra.mxu0 0.0
    %746 = vmatprep.subr.mxu0 0.0
    %747 = vmatpush1.xpose.msra.mxu0 0.0
    %748 = vmatprep.subr.mxu0 0.0
    %749 = vmatpush1.xpose.msra.mxu0 0.0
    %750 = vmatprep.subr.mxu0 0.0
    %751 = vmatpush1.xpose.msra.mxu0 %v718
    %752 = vmatprep.subr.mxu0 0.0
    %753 = vmatpush2.xpose.msra.mxu0 0.0
    %754 = vmatprep.subr.mxu0 0.0
    %755 = vmatpush2.xpose.msra.mxu0 0.0
    %756 = vmatprep.subr.mxu0 0.0
    %757 = vmatpush2.xpose.msra.mxu0 0.0
    %758 = vmatprep.subr.mxu0 0.0
    %759 = vmatpush2.xpose.msra.mxu0 0.0
    %760 = vmatprep.subr.mxu0 0.0
    %761 = vmatpush2.xpose.msra.mxu0 0.0
    %762 = vmatprep.subr.mxu0 0.0
    %763 = vmatpush2.xpose.msra.mxu0 0.0
    %764 = vmatprep.subr.mxu0 0.0
    %765 = vmatpush2.xpose.msra.mxu0 0.0
    %766 = vmatprep.subr.mxu0 0.0
    %767 = vmatpush2.xpose.msra.mxu0 0.0
    %768 = vmatprep.subr.mxu0 0.0
    %769 = vmatpush2.xpose.msra.mxu0 0.0
    %770 = vmatprep.subr.mxu0 0.0
    %771 = vmatpush2.xpose.msra.mxu0 0.0
    %772 = vmatprep.subr.mxu0 0.0
    %773 = vmatpush2.xpose.msra.mxu0 0.0
    %774 = vmatprep.subr.mxu0 0.0
    %775 = vmatpush2.xpose.msra.mxu0 0.0
    %776 = vmatprep.subr.mxu0 0.0
    %777 = vmatpush2.xpose.msra.mxu0 0.0
    %778 = vmatprep.subr.mxu0 0.0
    %779 = vmatpush2.xpose.msra.mxu0 0.0
    %780 = vmatprep.subr.mxu0 0.0
    %781 = vmatpush2.xpose.msra.mxu0 0.0
    %782 = vmatprep.subr.mxu0 0.0
    %783 = vmatpush2.xpose.msra.mxu0 0.0
    %784 = vmatprep.mubr.f32.mxu0 0.0
    %785 = vmatmul.mubr.f32.gmra.mxu0 %v716
    %v786 = vpop.f32.mrf.mxu0
    %v787 = vadd.f32 0.0, %v786
    %v788 = vpop.f32.mrf.mxu0
    %789 = vdwg.mxu0
    %791 = vrot.lane.b32.xlu0 %v527, 96
    %v792 = vpop.permute.xlu0 %791
    %v793 = vsel %vm561, %v527, 0
    %v795 = vsel %vm561, %v792, 0
    %797 = vmatprep.subr.mxu0 0.0
    %798 = vmatpush1.xpose.msra.mxu0 0.0
    %799 = vmatprep.subr.mxu0 0.0
    %800 = vmatpush1.xpose.msra.mxu0 0.0
    %801 = vmatprep.subr.mxu0 0.0
    %802 = vmatpush1.xpose.msra.mxu0 0.0
    %803 = vmatprep.subr.mxu0 0.0
    %804 = vmatpush1.xpose.msra.mxu0 0.0
    %805 = vmatprep.subr.mxu0 0.0
    %806 = vmatpush1.xpose.msra.mxu0 0.0
    %807 = vmatprep.subr.mxu0 0.0
    %808 = vmatpush1.xpose.msra.mxu0 0.0
    %809 = vmatprep.subr.mxu0 0.0
    %810 = vmatpush1.xpose.msra.mxu0 0.0
    %811 = vmatprep.subr.mxu0 0.0
    %812 = vmatpush1.xpose.msra.mxu0 0.0
    %813 = vmatprep.subr.mxu0 0.0
    %814 = vmatpush1.xpose.msra.mxu0 0.0
    %815 = vmatprep.subr.mxu0 0.0
    %816 = vmatpush1.xpose.msra.mxu0 0.0
    %817 = vmatprep.subr.mxu0 0.0
    %818 = vmatpush1.xpose.msra.mxu0 0.0
    %819 = vmatprep.subr.mxu0 0.0
    %820 = vmatpush1.xpose.msra.mxu0 0.0
    %821 = vmatprep.subr.mxu0 0.0
    %822 = vmatpush1.xpose.msra.mxu0 0.0
    %823 = vmatprep.subr.mxu0 0.0
    %824 = vmatpush1.xpose.msra.mxu0 0.0
    %825 = vmatprep.subr.mxu0 0.0
    %826 = vmatpush1.xpose.msra.mxu0 0.0
    %827 = vmatprep.subr.mxu0 0.0
    %828 = vmatpush1.xpose.msra.mxu0 %v795
    %829 = vmatprep.subr.mxu0 0.0
    %830 = vmatpush2.xpose.msra.mxu0 0.0
    %831 = vmatprep.subr.mxu0 0.0
    %832 = vmatpush2.xpose.msra.mxu0 0.0
    %833 = vmatprep.subr.mxu0 0.0
    %834 = vmatpush2.xpose.msra.mxu0 0.0
    %835 = vmatprep.subr.mxu0 0.0
    %836 = vmatpush2.xpose.msra.mxu0 0.0
    %837 = vmatprep.subr.mxu0 0.0
    %838 = vmatpush2.xpose.msra.mxu0 0.0
    %839 = vmatprep.subr.mxu0 0.0
    %840 = vmatpush2.xpose.msra.mxu0 0.0
    %841 = vmatprep.subr.mxu0 0.0
    %842 = vmatpush2.xpose.msra.mxu0 0.0
    %843 = vmatprep.subr.mxu0 0.0
    %844 = vmatpush2.xpose.msra.mxu0 0.0
    %845 = vmatprep.subr.mxu0 0.0
    %846 = vmatpush2.xpose.msra.mxu0 0.0
    %847 = vmatprep.subr.mxu0 0.0
    %848 = vmatpush2.xpose.msra.mxu0 0.0
    %849 = vmatprep.subr.mxu0 0.0
    %850 = vmatpush2.xpose.msra.mxu0 0.0
    %851 = vmatprep.subr.mxu0 0.0
    %852 = vmatpush2.xpose.msra.mxu0 0.0
    %853 = vmatprep.subr.mxu0 0.0
    %854 = vmatpush2.xpose.msra.mxu0 0.0
    %855 = vmatprep.subr.mxu0 0.0
    %856 = vmatpush2.xpose.msra.mxu0 0.0
    %857 = vmatprep.subr.mxu0 0.0
    %858 = vmatpush2.xpose.msra.mxu0 0.0
    %859 = vmatprep.subr.mxu0 0.0
    %860 = vmatpush2.xpose.msra.mxu0 0.0
    %861 = vmatprep.mubr.f32.mxu0 0.0
    %862 = vmatmul.mubr.f32.gmra.mxu0 %v793
    %v863 = vpop.f32.mrf.mxu0
    %v864 = vadd.f32 0.0, %v863
    %v865 = vpop.f32.mrf.mxu0
    %866 = vdwg.mxu0
    %868 = vrot.lane.b32.xlu0 %v532, 96
    %v869 = vpop.permute.xlu0 %868
    %v870 = vsel %vm561, %v532, 0
    %v872 = vsel %vm561, %v869, 0
    %874 = vmatprep.subr.mxu0 0.0
    %875 = vmatpush1.xpose.msra.mxu0 0.0
    %876 = vmatprep.subr.mxu0 0.0
    %877 = vmatpush1.xpose.msra.mxu0 0.0
    %878 = vmatprep.subr.mxu0 0.0
    %879 = vmatpush1.xpose.msra.mxu0 0.0
    %880 = vmatprep.subr.mxu0 0.0
    %881 = vmatpush1.xpose.msra.mxu0 0.0
    %882 = vmatprep.subr.mxu0 0.0
    %883 = vmatpush1.xpose.msra.mxu0 0.0
    %884 = vmatprep.subr.mxu0 0.0
    %885 = vmatpush1.xpose.msra.mxu0 0.0
    %886 = vmatprep.subr.mxu0 0.0
    %887 = vmatpush1.xpose.msra.mxu0 0.0
    %888 = vmatprep.subr.mxu0 0.0
    %889 = vmatpush1.xpose.msra.mxu0 0.0
    %890 = vmatprep.subr.mxu0 0.0
    %891 = vmatpush1.xpose.msra.mxu0 0.0
    %892 = vmatprep.subr.mxu0 0.0
    %893 = vmatpush1.xpose.msra.mxu0 0.0
    %894 = vmatprep.subr.mxu0 0.0
    %895 = vmatpush1.xpose.msra.mxu0 0.0
    %896 = vmatprep.subr.mxu0 0.0
    %897 = vmatpush1.xpose.msra.mxu0 0.0
    %898 = vmatprep.subr.mxu0 0.0
    %899 = vmatpush1.xpose.msra.mxu0 0.0
    %900 = vmatprep.subr.mxu0 0.0
    %901 = vmatpush1.xpose.msra.mxu0 0.0
    %902 = vmatprep.subr.mxu0 0.0
    %903 = vmatpush1.xpose.msra.mxu0 0.0
    %904 = vmatprep.subr.mxu0 0.0
    %905 = vmatpush1.xpose.msra.mxu0 %v872
    %906 = vmatprep.subr.mxu0 0.0
    %907 = vmatpush2.xpose.msra.mxu0 0.0
    %908 = vmatprep.subr.mxu0 0.0
    %909 = vmatpush2.xpose.msra.mxu0 0.0
    %910 = vmatprep.subr.mxu0 0.0
    %911 = vmatpush2.xpose.msra.mxu0 0.0
    %912 = vmatprep.subr.mxu0 0.0
    %913 = vmatpush2.xpose.msra.mxu0 0.0
    %914 = vmatprep.subr.mxu0 0.0
    %915 = vmatpush2.xpose.msra.mxu0 0.0
    %916 = vmatprep.subr.mxu0 0.0
    %917 = vmatpush2.xpose.msra.mxu0 0.0
    %918 = vmatprep.subr.mxu0 0.0
    %919 = vmatpush2.xpose.msra.mxu0 0.0
    %920 = vmatprep.subr.mxu0 0.0
    %921 = vmatpush2.xpose.msra.mxu0 0.0
    %922 = vmatprep.subr.mxu0 0.0
    %923 = vmatpush2.xpose.msra.mxu0 0.0
    %924 = vmatprep.subr.mxu0 0.0
    %925 = vmatpush2.xpose.msra.mxu0 0.0
    %926 = vmatprep.subr.mxu0 0.0
    %927 = vmatpush2.xpose.msra.mxu0 0.0
    %928 = vmatprep.subr.mxu0 0.0
    %929 = vmatpush2.xpose.msra.mxu0 0.0
    %930 = vmatprep.subr.mxu0 0.0
    %931 = vmatpush2.xpose.msra.mxu0 0.0
    %932 = vmatprep.subr.mxu0 0.0
    %933 = vmatpush2.xpose.msra.mxu0 0.0
    %934 = vmatprep.subr.mxu0 0.0
    %935 = vmatpush2.xpose.msra.mxu0 0.0
    %936 = vmatprep.subr.mxu0 0.0
    %937 = vmatpush2.xpose.msra.mxu0 0.0
    %938 = vmatprep.mubr.f32.mxu0 0.0
    %939 = vmatmul.mubr.f32.gmra.mxu0 %v870
    %v940 = vpop.f32.mrf.mxu0
    %v941 = vadd.f32 0.0, %v940
    %v942 = vpop.f32.mrf.mxu0
    %943 = vdwg.mxu0
    %945 = vrot.lane.b32.xlu0 %v537, 96
    %v946 = vpop.permute.xlu0 %945
    %v947 = vsel %vm561, %v537, 0
    %v949 = vsel %vm561, %v946, 0
    %951 = vmatprep.subr.mxu0 0.0
    %952 = vmatpush1.xpose.msra.mxu0 0.0
    %953 = vmatprep.subr.mxu0 0.0
    %954 = vmatpush1.xpose.msra.mxu0 0.0
    %955 = vmatprep.subr.mxu0 0.0
    %956 = vmatpush1.xpose.msra.mxu0 0.0
    %957 = vmatprep.subr.mxu0 0.0
    %958 = vmatpush1.xpose.msra.mxu0 0.0
    %959 = vmatprep.subr.mxu0 0.0
    %960 = vmatpush1.xpose.msra.mxu0 0.0
    %961 = vmatprep.subr.mxu0 0.0
    %962 = vmatpush1.xpose.msra.mxu0 0.0
    %963 = vmatprep.subr.mxu0 0.0
    %964 = vmatpush1.xpose.msra.mxu0 0.0
    %965 = vmatprep.subr.mxu0 0.0
    %966 = vmatpush1.xpose.msra.mxu0 0.0
    %967 = vmatprep.subr.mxu0 0.0
    %968 = vmatpush1.xpose.msra.mxu0 0.0
    %969 = vmatprep.subr.mxu0 0.0
    %970 = vmatpush1.xpose.msra.mxu0 0.0
    %971 = vmatprep.subr.mxu0 0.0
    %972 = vmatpush1.xpose.msra.mxu0 0.0
    %973 = vmatprep.subr.mxu0 0.0
    %974 = vmatpush1.xpose.msra.mxu0 0.0
    %975 = vmatprep.subr.mxu0 0.0
    %976 = vmatpush1.xpose.msra.mxu0 0.0
    %977 = vmatprep.subr.mxu0 0.0
    %978 = vmatpush1.xpose.msra.mxu0 0.0
    %979 = vmatprep.subr.mxu0 0.0
    %980 = vmatpush1.xpose.msra.mxu0 0.0
    %981 = vmatprep.subr.mxu0 0.0
    %982 = vmatpush1.xpose.msra.mxu0 %v949
    %983 = vmatprep.subr.mxu0 0.0
    %984 = vmatpush2.xpose.msra.mxu0 0.0
    %985 = vmatprep.subr.mxu0 0.0
    %986 = vmatpush2.xpose.msra.mxu0 0.0
    %987 = vmatprep.subr.mxu0 0.0
    %988 = vmatpush2.xpose.msra.mxu0 0.0
    %989 = vmatprep.subr.mxu0 0.0
    %990 = vmatpush2.xpose.msra.mxu0 0.0
    %991 = vmatprep.subr.mxu0 0.0
    %992 = vmatpush2.xpose.msra.mxu0 0.0
    %993 = vmatprep.subr.mxu0 0.0
    %994 = vmatpush2.xpose.msra.mxu0 0.0
    %995 = vmatprep.subr.mxu0 0.0
    %996 = vmatpush2.xpose.msra.mxu0 0.0
    %997 = vmatprep.subr.mxu0 0.0
    %998 = vmatpush2.xpose.msra.mxu0 0.0
    %999 = vmatprep.subr.mxu0 0.0
    %1000 = vmatpush2.xpose.msra.mxu0 0.0
    %1001 = vmatprep.subr.mxu0 0.0
    %1002 = vmatpush2.xpose.msra.mxu0 0.0
    %1003 = vmatprep.subr.mxu0 0.0
    %1004 = vmatpush2.xpose.msra.mxu0 0.0
    %1005 = vmatprep.subr.mxu0 0.0
    %1006 = vmatpush2.xpose.msra.mxu0 0.0
    %1007 = vmatprep.subr.mxu0 0.0
    %1008 = vmatpush2.xpose.msra.mxu0 0.0
    %1009 = vmatprep.subr.mxu0 0.0
    %1010 = vmatpush2.xpose.msra.mxu0 0.0
    %1011 = vmatprep.subr.mxu0 0.0
    %1012 = vmatpush2.xpose.msra.mxu0 0.0
    %1013 = vmatprep.subr.mxu0 0.0
    %1014 = vmatpush2.xpose.msra.mxu0 0.0
    %1015 = vmatprep.mubr.f32.mxu0 0.0
    %1016 = vmatmul.mubr.f32.gmra.mxu0 %v947
    %v1017 = vpop.f32.mrf.mxu0
    %v1018 = vadd.f32 0.0, %v1017
    %v1019 = vpop.f32.mrf.mxu0
    %1020 = vdwg.mxu0
    %v1021 = vmul.f32 %v633, 0.35355338
    %v1022 = vmul.f32 %v710, 0.35355338
    %v1023 = vmul.f32 %v787, 0.35355338
    %v1024 = vmul.f32 %v864, 0.35355338
    %v1025 = vmul.f32 %v941, 0.35355338
    %v1026 = vmul.f32 %v1018, 0.35355338
    %v1027 = vadd.f32 %v1021, %v552
    %v1028 = vadd.f32 %v1022, %v553
    %v1029 = vadd.f32 %v1023, %v554
    %v1030 = vadd.f32 %v1024, %v555
    %v1031 = vadd.f32 %v1025, %v556
    %v1032 = vadd.f32 %v1026, %v557
    %vm1033 = vcmask 57344
    %v1034 = vsel %vm1033, %v1027, -inf
    %1035 = vmax.xlane.f32.xlu0 %v1034
    %v1036 = vpop.xlane.xlu0 %1035
    %v1037 = vsel %vm1033, %v1028, -inf
    %1038 = vmax.xlane.f32.xlu0 %v1037
    %v1039 = vpop.xlane.xlu0 %1038
    %v1040 = vsel %vm1033, %v1029, -inf
    %1041 = vmax.xlane.f32.xlu0 %v1040
    %v1042 = vpop.xlane.xlu0 %1041
    %v1043 = vsel %vm1033, %v1030, -inf
    %1044 = vmax.xlane.f32.xlu0 %v1043
    %v1045 = vpop.xlane.xlu0 %1044
    %v1046 = vsel %vm1033, %v1031, -inf
    %1047 = vmax.xlane.f32.xlu0 %v1046
    %v1048 = vpop.xlane.xlu0 %1047
    %v1049 = vsel %vm1033, %v1032, -inf
    %1050 = vmax.xlane.f32.xlu0 %v1049
    %v1051 = vpop.xlane.xlu0 %1050
    %v1052 = vsub.f32 %v1027, %v1036
    %v1053 = vsub.f32 %v1028, %v1039
    %v1054 = vsub.f32 %v1029, %v1042
    %v1055 = vsub.f32 %v1030, %v1045
    %v1056 = vsub.f32 %v1031, %v1048
    %v1057 = vsub.f32 %v1032, %v1051
    %v1058 = vmul.f32 %v1052, 1.442695
    %v1059 = vpow.pop %v1058
    %v1060 = vmul.f32 %v1053, 1.442695
    %v1061 = vpow.pop %v1060
    %v1062 = vmul.f32 %v1054, 1.442695
    %v1063 = vpow.pop %v1062
    %v1064 = vmul.f32 %v1055, 1.442695
    %v1065 = vpow.pop %v1064
    %v1066 = vmul.f32 %v1056, 1.442695
    %v1067 = vpow.pop %v1066
    %v1068 = vmul.f32 %v1057, 1.442695
    %v1069 = vpow.pop %v1068
    %v1070 = vsel %vm1033, %v1059, 0.0
    %1071 = vadd.xlane.f32.xlu0 %v1070
    %v1072 = vpop.xlane.xlu0 %1071
    %v1073 = vsel %vm1033, %v1061, 0.0
    %1074 = vadd.xlane.f32.xlu0 %v1073
    %v1075 = vpop.xlane.xlu0 %1074
    %v1076 = vsel %vm1033, %v1063, 0.0
    %1077 = vadd.xlane.f32.xlu0 %v1076
    %v1078 = vpop.xlane.xlu0 %1077
    %v1079 = vsel %vm1033, %v1065, 0.0
    %1080 = vadd.xlane.f32.xlu0 %v1079
    %v1081 = vpop.xlane.xlu0 %1080
    %v1082 = vsel %vm1033, %v1067, 0.0
    %1083 = vadd.xlane.f32.xlu0 %v1082
    %v1084 = vpop.xlane.xlu0 %1083
    %v1085 = vsel %vm1033, %v1069, 0.0
    %1086 = vadd.xlane.f32.xlu0 %v1085
    %v1087 = vpop.xlane.xlu0 %1086
    %v1088 = vrcp.pop %v1072
    %v1089 = vrcp.pop %v1075
    %v1090 = vrcp.pop %v1078
    %v1091 = vrcp.pop %v1081
    %v1092 = vrcp.pop %v1084
    %v1093 = vrcp.pop %v1087
    %v1094 = vmul.f32 %v1059, %v1088
    %v1095 = vmul.f32 %v1061, %v1089
    %v1096 = vmul.f32 %v1063, %v1090
    %v1097 = vmul.f32 %v1065, %v1091
    %v1098 = vmul.f32 %v1067, %v1092
    %v1099 = vmul.f32 %v1069, %v1093
    %1100 = vrot.lane.b32.xlu0 %v512, 64
    %v1101 = vpop.permute.xlu0 %1100
    %v1104 = vsel %vm561, %v1094, 0
    %1106 = vmatprep.subr.mxu0 0.0
    %1107 = vmatpush1.msra.mxu0 0.0
    %1108 = vmatprep.subr.mxu0 0.0
    %1109 = vmatpush1.msra.mxu0 0.0
    %1110 = vmatprep.subr.mxu0 0.0
    %1111 = vmatpush1.msra.mxu0 0.0
    %1112 = vmatprep.subr.mxu0 0.0
    %1113 = vmatpush1.msra.mxu0 0.0
    %1114 = vmatprep.subr.mxu0 0.0
    %1115 = vmatpush1.msra.mxu0 0.0
    %1116 = vmatprep.subr.mxu0 0.0
    %1117 = vmatpush1.msra.mxu0 0.0
    %1118 = vmatprep.subr.mxu0 0.0
    %1119 = vmatpush1.msra.mxu0 0.0
    %1120 = vmatprep.subr.mxu0 0.0
    %1121 = vmatpush1.msra.mxu0 0.0
    %1122 = vmatprep.subr.mxu0 0.0
    %1123 = vmatpush1.msra.mxu0 0.0
    %1124 = vmatprep.subr.mxu0 0.0
    %1125 = vmatpush1.msra.mxu0 0.0
    %1126 = vmatprep.subr.mxu0 0.0
    %1127 = vmatpush1.msra.mxu0 0.0
    %1128 = vmatprep.subr.mxu0 0.0
    %1129 = vmatpush1.msra.mxu0 0.0
    %1130 = vmatprep.subr.mxu0 0.0
    %1131 = vmatpush1.msra.mxu0 0.0
    %1132 = vmatprep.subr.mxu0 0.0
    %1133 = vmatpush1.msra.mxu0 0.0
    %1134 = vmatprep.subr.mxu0 0.0
    %1135 = vmatpush1.msra.mxu0 0.0
    %1136 = vmatprep.subr.mxu0 0.0
    %1137 = vmatpush1.msra.mxu0 %v1101
    %1138 = vmatprep.subr.mxu0 0.0
    %1139 = vmatpush2.msra.mxu0 0.0
    %1140 = vmatprep.subr.mxu0 0.0
    %1141 = vmatpush2.msra.mxu0 0.0
    %1142 = vmatprep.subr.mxu0 0.0
    %1143 = vmatpush2.msra.mxu0 0.0
    %1144 = vmatprep.subr.mxu0 0.0
    %1145 = vmatpush2.msra.mxu0 0.0
    %1146 = vmatprep.subr.mxu0 0.0
    %1147 = vmatpush2.msra.mxu0 0.0
    %1148 = vmatprep.subr.mxu0 0.0
    %1149 = vmatpush2.msra.mxu0 0.0
    %1150 = vmatprep.subr.mxu0 0.0
    %1151 = vmatpush2.msra.mxu0 0.0
    %1152 = vmatprep.subr.mxu0 0.0
    %1153 = vmatpush2.msra.mxu0 0.0
    %1154 = vmatprep.subr.mxu0 0.0
    %1155 = vmatpush2.msra.mxu0 0.0
    %1156 = vmatprep.subr.mxu0 0.0
    %1157 = vmatpush2.msra.mxu0 0.0
    %1158 = vmatprep.subr.mxu0 0.0
    %1159 = vmatpush2.msra.mxu0 0.0
    %1160 = vmatprep.subr.mxu0 0.0
    %1161 = vmatpush2.msra.mxu0 0.0
    %1162 = vmatprep.subr.mxu0 0.0
    %1163 = vmatpush2.msra.mxu0 0.0
    %1164 = vmatprep.subr.mxu0 0.0
    %1165 = vmatpush2.msra.mxu0 0.0
    %1166 = vmatprep.subr.mxu0 0.0
    %1167 = vmatpush2.msra.mxu0 0.0
    %1168 = vmatprep.subr.mxu0 0.0
    %1169 = vmatpush2.msra.mxu0 0.0
    %1170 = vmatprep.mubr.f32.mxu0 0.0
    %1171 = vmatmul.mubr.f32.gmra.mxu0 %v1104
    %v1172 = vpop.f32.mrf.mxu0
    %v1173 = vadd.f32 0.0, %v1172
    %v1174 = vpop.f32.mrf.mxu0
    %1175 = vdwg.mxu0
    %1176 = vrot.lane.b32.xlu0 %v517, 64
    %v1177 = vpop.permute.xlu0 %1176
    %v1180 = vsel %vm561, %v1095, 0
    %1182 = vmatprep.subr.mxu0 0.0
    %1183 = vmatpush1.msra.mxu0 0.0
    %1184 = vmatprep.subr.mxu0 0.0
    %1185 = vmatpush1.msra.mxu0 0.0
    %1186 = vmatprep.subr.mxu0 0.0
    %1187 = vmatpush1.msra.mxu0 0.0
    %1188 = vmatprep.subr.mxu0 0.0
    %1189 = vmatpush1.msra.mxu0 0.0
    %1190 = vmatprep.subr.mxu0 0.0
    %1191 = vmatpush1.msra.mxu0 0.0
    %1192 = vmatprep.subr.mxu0 0.0
    %1193 = vmatpush1.msra.mxu0 0.0
    %1194 = vmatprep.subr.mxu0 0.0
    %1195 = vmatpush1.msra.mxu0 0.0
    %1196 = vmatprep.subr.mxu0 0.0
    %1197 = vmatpush1.msra.mxu0 0.0
    %1198 = vmatprep.subr.mxu0 0.0
    %1199 = vmatpush1.msra.mxu0 0.0
    %1200 = vmatprep.subr.mxu0 0.0
    %1201 = vmatpush1.msra.mxu0 0.0
    %1202 = vmatprep.subr.mxu0 0.0
    %1203 = vmatpush1.msra.mxu0 0.0
    %1204 = vmatprep.subr.mxu0 0.0
    %1205 = vmatpush1.msra.mxu0 0.0
    %1206 = vmatprep.subr.mxu0 0.0
    %1207 = vmatpush1.msra.mxu0 0.0
    %1208 = vmatprep.subr.mxu0 0.0
    %1209 = vmatpush1.msra.mxu0 0.0
    %1210 = vmatprep.subr.mxu0 0.0
    %1211 = vmatpush1.msra.mxu0 0.0
    %1212 = vmatprep.subr.mxu0 0.0
    %1213 = vmatpush1.msra.mxu0 %v1177
    %1214 = vmatprep.subr.mxu0 0.0
    %1215 = vmatpush2.msra.mxu0 0.0
    %1216 = vmatprep.subr.mxu0 0.0
    %1217 = vmatpush2.msra.mxu0 0.0
    %1218 = vmatprep.subr.mxu0 0.0
    %1219 = vmatpush2.msra.mxu0 0.0
    %1220 = vmatprep.subr.mxu0 0.0
    %1221 = vmatpush2.msra.mxu0 0.0
    %1222 = vmatprep.subr.mxu0 0.0
    %1223 = vmatpush2.msra.mxu0 0.0
    %1224 = vmatprep.subr.mxu0 0.0
    %1225 = vmatpush2.msra.mxu0 0.0
    %1226 = vmatprep.subr.mxu0 0.0
    %1227 = vmatpush2.msra.mxu0 0.0
    %1228 = vmatprep.subr.mxu0 0.0
    %1229 = vmatpush2.msra.mxu0 0.0
    %1230 = vmatprep.subr.mxu0 0.0
    %1231 = vmatpush2.msra.mxu0 0.0
    %1232 = vmatprep.subr.mxu0 0.0
    %1233 = vmatpush2.msra.mxu0 0.0
    %1234 = vmatprep.subr.mxu0 0.0
    %1235 = vmatpush2.msra.mxu0 0.0
    %1236 = vmatprep.subr.mxu0 0.0
    %1237 = vmatpush2.msra.mxu0 0.0
    %1238 = vmatprep.subr.mxu0 0.0
    %1239 = vmatpush2.msra.mxu0 0.0
    %1240 = vmatprep.subr.mxu0 0.0
    %1241 = vmatpush2.msra.mxu0 0.0
    %1242 = vmatprep.subr.mxu0 0.0
    %1243 = vmatpush2.msra.mxu0 0.0
    %1244 = vmatprep.subr.mxu0 0.0
    %1245 = vmatpush2.msra.mxu0 0.0
    %1246 = vmatprep.mubr.f32.mxu0 0.0
    %1247 = vmatmul.mubr.f32.gmra.mxu0 %v1180
    %v1248 = vpop.f32.mrf.mxu0
    %v1249 = vadd.f32 0.0, %v1248
    %v1250 = vpop.f32.mrf.mxu0
    %1251 = vdwg.mxu0
    %1252 = vrot.lane.b32.xlu0 %v522, 64
    %v1253 = vpop.permute.xlu0 %1252
    %v1256 = vsel %vm561, %v1096, 0
    %1258 = vmatprep.subr.mxu0 0.0
    %1259 = vmatpush1.msra.mxu0 0.0
    %1260 = vmatprep.subr.mxu0 0.0
    %1261 = vmatpush1.msra.mxu0 0.0
    %1262 = vmatprep.subr.mxu0 0.0
    %1263 = vmatpush1.msra.mxu0 0.0
    %1264 = vmatprep.subr.mxu0 0.0
    %1265 = vmatpush1.msra.mxu0 0.0
    %1266 = vmatprep.subr.mxu0 0.0
    %1267 = vmatpush1.msra.mxu0 0.0
    %1268 = vmatprep.subr.mxu0 0.0
    %1269 = vmatpush1.msra.mxu0 0.0
    %1270 = vmatprep.subr.mxu0 0.0
    %1271 = vmatpush1.msra.mxu0 0.0
    %1272 = vmatprep.subr.mxu0 0.0
    %1273 = vmatpush1.msra.mxu0 0.0
    %1274 = vmatprep.subr.mxu0 0.0
    %1275 = vmatpush1.msra.mxu0 0.0
    %1276 = vmatprep.subr.mxu0 0.0
    %1277 = vmatpush1.msra.mxu0 0.0
    %1278 = vmatprep.subr.mxu0 0.0
    %1279 = vmatpush1.msra.mxu0 0.0
    %1280 = vmatprep.subr.mxu0 0.0
    %1281 = vmatpush1.msra.mxu0 0.0
    %1282 = vmatprep.subr.mxu0 0.0
    %1283 = vmatpush1.msra.mxu0 0.0
    %1284 = vmatprep.subr.mxu0 0.0
    %1285 = vmatpush1.msra.mxu0 0.0
    %1286 = vmatprep.subr.mxu0 0.0
    %1287 = vmatpush1.msra.mxu0 0.0
    %1288 = vmatprep.subr.mxu0 0.0
    %1289 = vmatpush1.msra.mxu0 %v1253
    %1290 = vmatprep.subr.mxu0 0.0
    %1291 = vmatpush2.msra.mxu0 0.0
    %1292 = vmatprep.subr.mxu0 0.0
    %1293 = vmatpush2.msra.mxu0 0.0
    %1294 = vmatprep.subr.mxu0 0.0
    %1295 = vmatpush2.msra.mxu0 0.0
    %1296 = vmatprep.subr.mxu0 0.0
    %1297 = vmatpush2.msra.mxu0 0.0
    %1298 = vmatprep.subr.mxu0 0.0
    %1299 = vmatpush2.msra.mxu0 0.0
    %1300 = vmatprep.subr.mxu0 0.0
    %1301 = vmatpush2.msra.mxu0 0.0
    %1302 = vmatprep.subr.mxu0 0.0
    %1303 = vmatpush2.msra.mxu0 0.0
    %1304 = vmatprep.subr.mxu0 0.0
    %1305 = vmatpush2.msra.mxu0 0.0
    %1306 = vmatprep.subr.mxu0 0.0
    %1307 = vmatpush2.msra.mxu0 0.0
    %1308 = vmatprep.subr.mxu0 0.0
    %1309 = vmatpush2.msra.mxu0 0.0
    %1310 = vmatprep.subr.mxu0 0.0
    %1311 = vmatpush2.msra.mxu0 0.0
    %1312 = vmatprep.subr.mxu0 0.0
    %1313 = vmatpush2.msra.mxu0 0.0
    %1314 = vmatprep.subr.mxu0 0.0
    %1315 = vmatpush2.msra.mxu0 0.0
    %1316 = vmatprep.subr.mxu0 0.0
    %1317 = vmatpush2.msra.mxu0 0.0
    %1318 = vmatprep.subr.mxu0 0.0
    %1319 = vmatpush2.msra.mxu0 0.0
    %1320 = vmatprep.subr.mxu0 0.0
    %1321 = vmatpush2.msra.mxu0 0.0
    %1322 = vmatprep.mubr.f32.mxu0 0.0
    %1323 = vmatmul.mubr.f32.gmra.mxu0 %v1256
    %v1324 = vpop.f32.mrf.mxu0
    %v1325 = vadd.f32 0.0, %v1324
    %v1326 = vpop.f32.mrf.mxu0
    %1327 = vdwg.mxu0
    %1328 = vrot.lane.b32.xlu0 %v527, 64
    %v1329 = vpop.permute.xlu0 %1328
    %v1332 = vsel %vm561, %v1097, 0
    %1334 = vmatprep.subr.mxu0 0.0
    %1335 = vmatpush1.msra.mxu0 0.0
    %1336 = vmatprep.subr.mxu0 0.0
    %1337 = vmatpush1.msra.mxu0 0.0
    %1338 = vmatprep.subr.mxu0 0.0
    %1339 = vmatpush1.msra.mxu0 0.0
    %1340 = vmatprep.subr.mxu0 0.0
    %1341 = vmatpush1.msra.mxu0 0.0
    %1342 = vmatprep.subr.mxu0 0.0
    %1343 = vmatpush1.msra.mxu0 0.0
    %1344 = vmatprep.subr.mxu0 0.0
    %1345 = vmatpush1.msra.mxu0 0.0
    %1346 = vmatprep.subr.mxu0 0.0
    %1347 = vmatpush1.msra.mxu0 0.0
    %1348 = vmatprep.subr.mxu0 0.0
    %1349 = vmatpush1.msra.mxu0 0.0
    %1350 = vmatprep.subr.mxu0 0.0
    %1351 = vmatpush1.msra.mxu0 0.0
    %1352 = vmatprep.subr.mxu0 0.0
    %1353 = vmatpush1.msra.mxu0 0.0
    %1354 = vmatprep.subr.mxu0 0.0
    %1355 = vmatpush1.msra.mxu0 0.0
    %1356 = vmatprep.subr.mxu0 0.0
    %1357 = vmatpush1.msra.mxu0 0.0
    %1358 = vmatprep.subr.mxu0 0.0
    %1359 = vmatpush1.msra.mxu0 0.0
    %1360 = vmatprep.subr.mxu0 0.0
    %1361 = vmatpush1.msra.mxu0 0.0
    %1362 = vmatprep.subr.mxu0 0.0
    %1363 = vmatpush1.msra.mxu0 0.0
    %1364 = vmatprep.subr.mxu0 0.0
    %1365 = vmatpush1.msra.mxu0 %v1329
    %1366 = vmatprep.subr.mxu0 0.0
    %1367 = vmatpush2.msra.mxu0 0.0
    %1368 = vmatprep.subr.mxu0 0.0
    %1369 = vmatpush2.msra.mxu0 0.0
    %1370 = vmatprep.subr.mxu0 0.0
    %1371 = vmatpush2.msra.mxu0 0.0
    %1372 = vmatprep.subr.mxu0 0.0
    %1373 = vmatpush2.msra.mxu0 0.0
    %1374 = vmatprep.subr.mxu0 0.0
    %1375 = vmatpush2.msra.mxu0 0.0
    %1376 = vmatprep.subr.mxu0 0.0
    %1377 = vmatpush2.msra.mxu0 0.0
    %1378 = vmatprep.subr.mxu0 0.0
    %1379 = vmatpush2.msra.mxu0 0.0
    %1380 = vmatprep.subr.mxu0 0.0
    %1381 = vmatpush2.msra.mxu0 0.0
    %1382 = vmatprep.subr.mxu0 0.0
    %1383 = vmatpush2.msra.mxu0 0.0
    %1384 = vmatprep.subr.mxu0 0.0
    %1385 = vmatpush2.msra.mxu0 0.0
    %1386 = vmatprep.subr.mxu0 0.0
    %1387 = vmatpush2.msra.mxu0 0.0
    %1388 = vmatprep.subr.mxu0 0.0
    %1389 = vmatpush2.msra.mxu0 0.0
    %1390 = vmatprep.subr.mxu0 0.0
    %1391 = vmatpush2.msra.mxu0 0.0
    %1392 = vmatprep.subr.mxu0 0.0
    %1393 = vmatpush2.msra.mxu0 0.0
    %1394 = vmatprep.subr.mxu0 0.0
    %1395 = vmatpush2.msra.mxu0 0.0
    %1396 = vmatprep.subr.mxu0 0.0
    %1397 = vmatpush2.msra.mxu0 0.0
    %1398 = vmatprep.mubr.f32.mxu0 0.0
    %1399 = vmatmul.mubr.f32.gmra.mxu0 %v1332
    %v1400 = vpop.f32.mrf.mxu0
    %v1401 = vadd.f32 0.0, %v1400
    %v1402 = vpop.f32.mrf.mxu0
    %1403 = vdwg.mxu0
    %1404 = vrot.lane.b32.xlu0 %v532, 64
    %v1405 = vpop.permute.xlu0 %1404
    %v1408 = vsel %vm561, %v1098, 0
    %1410 = vmatprep.subr.mxu0 0.0
    %1411 = vmatpush1.msra.mxu0 0.0
    %1412 = vmatprep.subr.mxu0 0.0
    %1413 = vmatpush1.msra.mxu0 0.0
    %1414 = vmatprep.subr.mxu0 0.0
    %1415 = vmatpush1.msra.mxu0 0.0
    %1416 = vmatprep.subr.mxu0 0.0
    %1417 = vmatpush1.msra.mxu0 0.0
    %1418 = vmatprep.subr.mxu0 0.0
    %1419 = vmatpush1.msra.mxu0 0.0
    %1420 = vmatprep.subr.mxu0 0.0
    %1421 = vmatpush1.msra.mxu0 0.0
    %1422 = vmatprep.subr.mxu0 0.0
    %1423 = vmatpush1.msra.mxu0 0.0
    %1424 = vmatprep.subr.mxu0 0.0
    %1425 = vmatpush1.msra.mxu0 0.0
    %1426 = vmatprep.subr.mxu0 0.0
    %1427 = vmatpush1.msra.mxu0 0.0
    %1428 = vmatprep.subr.mxu0 0.0
    %1429 = vmatpush1.msra.mxu0 0.0
    %1430 = vmatprep.subr.mxu0 0.0
    %1431 = vmatpush1.msra.mxu0 0.0
    %1432 = vmatprep.subr.mxu0 0.0
    %1433 = vmatpush1.msra.mxu0 0.0
    %1434 = vmatprep.subr.mxu0 0.0
    %1435 = vmatpush1.msra.mxu0 0.0
    %1436 = vmatprep.subr.mxu0 0.0
    %1437 = vmatpush1.msra.mxu0 0.0
    %1438 = vmatprep.subr.mxu0 0.0
    %1439 = vmatpush1.msra.mxu0 0.0
    %1440 = vmatprep.subr.mxu0 0.0
    %1441 = vmatpush1.msra.mxu0 %v1405
    %1442 = vmatprep.subr.mxu0 0.0
    %1443 = vmatpush2.msra.mxu0 0.0
    %1444 = vmatprep.subr.mxu0 0.0
    %1445 = vmatpush2.msra.mxu0 0.0
    %1446 = vmatprep.subr.mxu0 0.0
    %1447 = vmatpush2.msra.mxu0 0.0
    %1448 = vmatprep.subr.mxu0 0.0
    %1449 = vmatpush2.msra.mxu0 0.0
    %1450 = vmatprep.subr.mxu0 0.0
    %1451 = vmatpush2.msra.mxu0 0.0
    %1452 = vmatprep.subr.mxu0 0.0
    %1453 = vmatpush2.msra.mxu0 0.0
    %1454 = vmatprep.subr.mxu0 0.0
    %1455 = vmatpush2.msra.mxu0 0.0
    %1456 = vmatprep.subr.mxu0 0.0
    %1457 = vmatpush2.msra.mxu0 0.0
    %1458 = vmatprep.subr.mxu0 0.0
    %1459 = vmatpush2.msra.mxu0 0.0
    %1460 = vmatprep.subr.mxu0 0.0
    %1461 = vmatpush2.msra.mxu0 0.0
    %1462 = vmatprep.subr.mxu0 0.0
    %1463 = vmatpush2.msra.mxu0 0.0
    %1464 = vmatprep.subr.mxu0 0.0
    %1465 = vmatpush2.msra.mxu0 0.0
    %1466 = vmatprep.subr.mxu0 0.0
    %1467 = vmatpush2.msra.mxu0 0.0
    %1468 = vmatprep.subr.mxu0 0.0
    %1469 = vmatpush2.msra.mxu0 0.0
    %1470 = vmatprep.subr.mxu0 0.0
    %1471 = vmatpush2.msra.mxu0 0.0
    %1472 = vmatprep.subr.mxu0 0.0
    %1473 = vmatpush2.msra.mxu0 0.0
    %1474 = vmatprep.mubr.f32.mxu0 0.0
    %1475 = vmatmul.mubr.f32.gmra.mxu0 %v1408
    %v1476 = vpop.f32.mrf.mxu0
    %v1477 = vadd.f32 0.0, %v1476
    %v1478 = vpop.f32.mrf.mxu0
    %1479 = vdwg.mxu0
    %1480 = vrot.lane.b32.xlu0 %v537, 64
    %v1481 = vpop.permute.xlu0 %1480
    %v1484 = vsel %vm561, %v1099, 0
    %1486 = vmatprep.subr.mxu0 0.0
    %1487 = vmatpush1.msra.mxu0 0.0
    %1488 = vmatprep.subr.mxu0 0.0
    %1489 = vmatpush1.msra.mxu0 0.0
    %1490 = vmatprep.subr.mxu0 0.0
    %1491 = vmatpush1.msra.mxu0 0.0
    %1492 = vmatprep.subr.mxu0 0.0
    %1493 = vmatpush1.msra.mxu0 0.0
    %1494 = vmatprep.subr.mxu0 0.0
    %1495 = vmatpush1.msra.mxu0 0.0
    %1496 = vmatprep.subr.mxu0 0.0
    %1497 = vmatpush1.msra.mxu0 0.0
    %1498 = vmatprep.subr.mxu0 0.0
    %1499 = vmatpush1.msra.mxu0 0.0
    %1500 = vmatprep.subr.mxu0 0.0
    %1501 = vmatpush1.msra.mxu0 0.0
    %1502 = vmatprep.subr.mxu0 0.0
    %1503 = vmatpush1.msra.mxu0 0.0
    %1504 = vmatprep.subr.mxu0 0.0
    %1505 = vmatpush1.msra.mxu0 0.0
    %1506 = vmatprep.subr.mxu0 0.0
    %1507 = vmatpush1.msra.mxu0 0.0
    %1508 = vmatprep.subr.mxu0 0.0
    %1509 = vmatpush1.msra.mxu0 0.0
    %1510 = vmatprep.subr.mxu0 0.0
    %1511 = vmatpush1.msra.mxu0 0.0
    %1512 = vmatprep.subr.mxu0 0.0
    %1513 = vmatpush1.msra.mxu0 0.0
    %1514 = vmatprep.subr.mxu0 0.0
    %1515 = vmatpush1.msra.mxu0 0.0
    %1516 = vmatprep.subr.mxu0 0.0
    %1517 = vmatpush1.msra.mxu0 %v1481
    %1518 = vmatprep.subr.mxu0 0.0
    %1519 = vmatpush2.msra.mxu0 0.0
    %1520 = vmatprep.subr.mxu0 0.0
    %1521 = vmatpush2.msra.mxu0 0.0
    %1522 = vmatprep.subr.mxu0 0.0
    %1523 = vmatpush2.msra.mxu0 0.0
    %1524 = vmatprep.subr.mxu0 0.0
    %1525 = vmatpush2.msra.mxu0 0.0
    %1526 = vmatprep.subr.mxu0 0.0
    %1527 = vmatpush2.msra.mxu0 0.0
    %1528 = vmatprep.subr.mxu0 0.0
    %1529 = vmatpush2.msra.mxu0 0.0
    %1530 = vmatprep.subr.mxu0 0.0
    %1531 = vmatpush2.msra.mxu0 0.0
    %1532 = vmatprep.subr.mxu0 0.0
    %1533 = vmatpush2.msra.mxu0 0.0
    %1534 = vmatprep.subr.mxu0 0.0
    %1535 = vmatpush2.msra.mxu0 0.0
    %1536 = vmatprep.subr.mxu0 0.0
    %1537 = vmatpush2.msra.mxu0 0.0
    %1538 = vmatprep.subr.mxu0 0.0
    %1539 = vmatpush2.msra.mxu0 0.0
    %1540 = vmatprep.subr.mxu0 0.0
    %1541 = vmatpush2.msra.mxu0 0.0
    %1542 = vmatprep.subr.mxu0 0.0
    %1543 = vmatpush2.msra.mxu0 0.0
    %1544 = vmatprep.subr.mxu0 0.0
    %1545 = vmatpush2.msra.mxu0 0.0
    %1546 = vmatprep.subr.mxu0 0.0
    %1547 = vmatpush2.msra.mxu0 0.0
    %1548 = vmatprep.subr.mxu0 0.0
    %1549 = vmatpush2.msra.mxu0 0.0
    %1550 = vmatprep.mubr.f32.mxu0 0.0
    %1551 = vmatmul.mubr.f32.gmra.mxu0 %v1484
    %v1552 = vpop.f32.mrf.mxu0
    %v1553 = vadd.f32 0.0, %v1552
    %v1554 = vpop.f32.mrf.mxu0
    %1555 = vdwg.mxu0
    %v1556 = vld [vmem:[%s8] sm:$0xff]
    %1557 = vrot.lane.b32.xlu0 %v512, 120
    %v1558 = vpop.permute.xlu0 %1557
    %1559 = vrot.lane.b32.xlu0 %v512, 88
    %v1560 = vpop.permute.xlu0 %1559
    %v1561 = vsel %vm561, %v1558, 0
    %v1563 = vsel %vm561, %v1560, 0
    %1565 = vmatprep.subr.mxu0 0.0
    %1566 = vmatpush1.xpose.msra.mxu0 0.0
    %1567 = vmatprep.subr.mxu0 0.0
    %1568 = vmatpush1.xpose.msra.mxu0 0.0
    %1569 = vmatprep.subr.mxu0 0.0
    %1570 = vmatpush1.xpose.msra.mxu0 0.0
    %1571 = vmatprep.subr.mxu0 0.0
    %1572 = vmatpush1.xpose.msra.mxu0 0.0
    %1573 = vmatprep.subr.mxu0 0.0
    %1574 = vmatpush1.xpose.msra.mxu0 0.0
    %1575 = vmatprep.subr.mxu0 0.0
    %1576 = vmatpush1.xpose.msra.mxu0 0.0
    %1577 = vmatprep.subr.mxu0 0.0
    %1578 = vmatpush1.xpose.msra.mxu0 0.0
    %1579 = vmatprep.subr.mxu0 0.0
    %1580 = vmatpush1.xpose.msra.mxu0 0.0
    %1581 = vmatprep.subr.mxu0 0.0
    %1582 = vmatpush1.xpose.msra.mxu0 0.0
    %1583 = vmatprep.subr.mxu0 0.0
    %1584 = vmatpush1.xpose.msra.mxu0 0.0
    %1585 = vmatprep.subr.mxu0 0.0
    %1586 = vmatpush1.xpose.msra.mxu0 0.0
    %1587 = vmatprep.subr.mxu0 0.0
    %1588 = vmatpush1.xpose.msra.mxu0 0.0
    %1589 = vmatprep.subr.mxu0 0.0
    %1590 = vmatpush1.xpose.msra.mxu0 0.0
    %1591 = vmatprep.subr.mxu0 0.0
    %1592 = vmatpush1.xpose.msra.mxu0 0.0
    %1593 = vmatprep.subr.mxu0 0.0
    %1594 = vmatpush1.xpose.msra.mxu0 0.0
    %1595 = vmatprep.subr.mxu0 0.0
    %1596 = vmatpush1.xpose.msra.mxu0 %v1563
    %1597 = vmatprep.subr.mxu0 0.0
    %1598 = vmatpush2.xpose.msra.mxu0 0.0
    %1599 = vmatprep.subr.mxu0 0.0
    %1600 = vmatpush2.xpose.msra.mxu0 0.0
    %1601 = vmatprep.subr.mxu0 0.0
    %1602 = vmatpush2.xpose.msra.mxu0 0.0
    %1603 = vmatprep.subr.mxu0 0.0
    %1604 = vmatpush2.xpose.msra.mxu0 0.0
    %1605 = vmatprep.subr.mxu0 0.0
    %1606 = vmatpush2.xpose.msra.mxu0 0.0
    %1607 = vmatprep.subr.mxu0 0.0
    %1608 = vmatpush2.xpose.msra.mxu0 0.0
    %1609 = vmatprep.subr.mxu0 0.0
    %1610 = vmatpush2.xpose.msra.mxu0 0.0
    %1611 = vmatprep.subr.mxu0 0.0
    %1612 = vmatpush2.xpose.msra.mxu0 0.0
    %1613 = vmatprep.subr.mxu0 0.0
    %1614 = vmatpush2.xpose.msra.mxu0 0.0
    %1615 = vmatprep.subr.mxu0 0.0
    %1616 = vmatpush2.xpose.msra.mxu0 0.0
    %1617 = vmatprep.subr.mxu0 0.0
    %1618 = vmatpush2.xpose.msra.mxu0 0.0
    %1619 = vmatprep.subr.mxu0 0.0
    %1620 = vmatpush2.xpose.msra.mxu0 0.0
    %1621 = vmatprep.subr.mxu0 0.0
    %1622 = vmatpush2.xpose.msra.mxu0 0.0
    %1623 = vmatprep.subr.mxu0 0.0
    %1624 = vmatpush2.xpose.msra.mxu0 0.0
    %1625 = vmatprep.subr.mxu0 0.0
    %1626 = vmatpush2.xpose.msra.mxu0 0.0
    %1627 = vmatprep.subr.mxu0 0.0
    %1628 = vmatpush2.xpose.msra.mxu0 0.0
    %1629 = vmatprep.mubr.f32.mxu0 0.0
    %1630 = vmatmul.mubr.f32.gmra.mxu0 %v1561
    %v1631 = vpop.f32.mrf.mxu0
    %v1632 = vadd.f32 0.0, %v1631
    %v1633 = vpop.f32.mrf.mxu0
    %1634 = vdwg.mxu0
    %1635 = vrot.lane.b32.xlu0 %v517, 120
    %v1636 = vpop.permute.xlu0 %1635
    %1637 = vrot.lane.b32.xlu0 %v517, 88
    %v1638 = vpop.permute.xlu0 %1637
    %v1639 = vsel %vm561, %v1636, 0
    %v1641 = vsel %vm561, %v1638, 0
    %1643 = vmatprep.subr.mxu0 0.0
    %1644 = vmatpush1.xpose.msra.mxu0 0.0
    %1645 = vmatprep.subr.mxu0 0.0
    %1646 = vmatpush1.xpose.msra.mxu0 0.0
    %1647 = vmatprep.subr.mxu0 0.0
    %1648 = vmatpush1.xpose.msra.mxu0 0.0
    %1649 = vmatprep.subr.mxu0 0.0
    %1650 = vmatpush1.xpose.msra.mxu0 0.0
    %1651 = vmatprep.subr.mxu0 0.0
    %1652 = vmatpush1.xpose.msra.mxu0 0.0
    %1653 = vmatprep.subr.mxu0 0.0
    %1654 = vmatpush1.xpose.msra.mxu0 0.0
    %1655 = vmatprep.subr.mxu0 0.0
    %1656 = vmatpush1.xpose.msra.mxu0 0.0
    %1657 = vmatprep.subr.mxu0 0.0
    %1658 = vmatpush1.xpose.msra.mxu0 0.0
    %1659 = vmatprep.subr.mxu0 0.0
    %1660 = vmatpush1.xpose.msra.mxu0 0.0
    %1661 = vmatprep.subr.mxu0 0.0
    %1662 = vmatpush1.xpose.msra.mxu0 0.0
    %1663 = vmatprep.subr.mxu0 0.0
    %1664 = vmatpush1.xpose.msra.mxu0 0.0
    %1665 = vmatprep.subr.mxu0 0.0
    %1666 = vmatpush1.xpose.msra.mxu0 0.0
    %1667 = vmatprep.subr.mxu0 0.0
    %1668 = vmatpush1.xpose.msra.mxu0 0.0
    %1669 = vmatprep.subr.mxu0 0.0
    %1670 = vmatpush1.xpose.msra.mxu0 0.0
    %1671 = vmatprep.subr.mxu0 0.0
    %1672 = vmatpush1.xpose.msra.mxu0 0.0
    %1673 = vmatprep.subr.mxu0 0.0
    %1674 = vmatpush1.xpose.msra.mxu0 %v1641
    %1675 = vmatprep.subr.mxu0 0.0
    %1676 = vmatpush2.xpose.msra.mxu0 0.0
    %1677 = vmatprep.subr.mxu0 0.0
    %1678 = vmatpush2.xpose.msra.mxu0 0.0
    %1679 = vmatprep.subr.mxu0 0.0
    %1680 = vmatpush2.xpose.msra.mxu0 0.0
    %1681 = vmatprep.subr.mxu0 0.0
    %1682 = vmatpush2.xpose.msra.mxu0 0.0
    %1683 = vmatprep.subr.mxu0 0.0
    %1684 = vmatpush2.xpose.msra.mxu0 0.0
    %1685 = vmatprep.subr.mxu0 0.0
    %1686 = vmatpush2.xpose.msra.mxu0 0.0
    %1687 = vmatprep.subr.mxu0 0.0
    %1688 = vmatpush2.xpose.msra.mxu0 0.0
    %1689 = vmatprep.subr.mxu0 0.0
    %1690 = vmatpush2.xpose.msra.mxu0 0.0
    %1691 = vmatprep.subr.mxu0 0.0
    %1692 = vmatpush2.xpose.msra.mxu0 0.0
    %1693 = vmatprep.subr.mxu0 0.0
    %1694 = vmatpush2.xpose.msra.mxu0 0.0
    %1695 = vmatprep.subr.mxu0 0.0
    %1696 = vmatpush2.xpose.msra.mxu0 0.0
    %1697 = vmatprep.subr.mxu0 0.0
    %1698 = vmatpush2.xpose.msra.mxu0 0.0
    %1699 = vmatprep.subr.mxu0 0.0
    %1700 = vmatpush2.xpose.msra.mxu0 0.0
    %1701 = vmatprep.subr.mxu0 0.0
    %1702 = vmatpush2.xpose.msra.mxu0 0.0
    %1703 = vmatprep.subr.mxu0 0.0
    %1704 = vmatpush2.xpose.msra.mxu0 0.0
    %1705 = vmatprep.subr.mxu0 0.0
    %1706 = vmatpush2.xpose.msra.mxu0 0.0
    %1707 = vmatprep.mubr.f32.mxu0 0.0
    %1708 = vmatmul.mubr.f32.gmra.mxu0 %v1639
    %v1709 = vpop.f32.mrf.mxu0
    %v1710 = vadd.f32 0.0, %v1709
    %v1711 = vpop.f32.mrf.mxu0
    %1712 = vdwg.mxu0
    %1713 = vrot.lane.b32.xlu0 %v522, 120
    %v1714 = vpop.permute.xlu0 %1713
    %1715 = vrot.lane.b32.xlu0 %v522, 88
    %v1716 = vpop.permute.xlu0 %1715
    %v1717 = vsel %vm561, %v1714, 0
    %v1719 = vsel %vm561, %v1716, 0
    %1721 = vmatprep.subr.mxu0 0.0
    %1722 = vmatpush1.xpose.msra.mxu0 0.0
    %1723 = vmatprep.subr.mxu0 0.0
    %1724 = vmatpush1.xpose.msra.mxu0 0.0
    %1725 = vmatprep.subr.mxu0 0.0
    %1726 = vmatpush1.xpose.msra.mxu0 0.0
    %1727 = vmatprep.subr.mxu0 0.0
    %1728 = vmatpush1.xpose.msra.mxu0 0.0
    %1729 = vmatprep.subr.mxu0 0.0
    %1730 = vmatpush1.xpose.msra.mxu0 0.0
    %1731 = vmatprep.subr.mxu0 0.0
    %1732 = vmatpush1.xpose.msra.mxu0 0.0
    %1733 = vmatprep.subr.mxu0 0.0
    %1734 = vmatpush1.xpose.msra.mxu0 0.0
    %1735 = vmatprep.subr.mxu0 0.0
    %1736 = vmatpush1.xpose.msra.mxu0 0.0
    %1737 = vmatprep.subr.mxu0 0.0
    %1738 = vmatpush1.xpose.msra.mxu0 0.0
    %1739 = vmatprep.subr.mxu0 0.0
    %1740 = vmatpush1.xpose.msra.mxu0 0.0
    %1741 = vmatprep.subr.mxu0 0.0
    %1742 = vmatpush1.xpose.msra.mxu0 0.0
    %1743 = vmatprep.subr.mxu0 0.0
    %1744 = vmatpush1.xpose.msra.mxu0 0.0
    %1745 = vmatprep.subr.mxu0 0.0
    %1746 = vmatpush1.xpose.msra.mxu0 0.0
    %1747 = vmatprep.subr.mxu0 0.0
    %1748 = vmatpush1.xpose.msra.mxu0 0.0
    %1749 = vmatprep.subr.mxu0 0.0
    %1750 = vmatpush1.xpose.msra.mxu0 0.0
    %1751 = vmatprep.subr.mxu0 0.0
    %1752 = vmatpush1.xpose.msra.mxu0 %v1719
    %1753 = vmatprep.subr.mxu0 0.0
    %1754 = vmatpush2.xpose.msra.mxu0 0.0
    %1755 = vmatprep.subr.mxu0 0.0
    %1756 = vmatpush2.xpose.msra.mxu0 0.0
    %1757 = vmatprep.subr.mxu0 0.0
    %1758 = vmatpush2.xpose.msra.mxu0 0.0
    %1759 = vmatprep.subr.mxu0 0.0
    %1760 = vmatpush2.xpose.msra.mxu0 0.0
    %1761 = vmatprep.subr.mxu0 0.0
    %1762 = vmatpush2.xpose.msra.mxu0 0.0
    %1763 = vmatprep.subr.mxu0 0.0
    %1764 = vmatpush2.xpose.msra.mxu0 0.0
    %1765 = vmatprep.subr.mxu0 0.0
    %1766 = vmatpush2.xpose.msra.mxu0 0.0
    %1767 = vmatprep.subr.mxu0 0.0
    %1768 = vmatpush2.xpose.msra.mxu0 0.0
    %1769 = vmatprep.subr.mxu0 0.0
    %1770 = vmatpush2.xpose.msra.mxu0 0.0
    %1771 = vmatprep.subr.mxu0 0.0
    %1772 = vmatpush2.xpose.msra.mxu0 0.0
    %1773 = vmatprep.subr.mxu0 0.0
    %1774 = vmatpush2.xpose.msra.mxu0 0.0
    %1775 = vmatprep.subr.mxu0 0.0
    %1776 = vmatpush2.xpose.msra.mxu0 0.0
    %1777 = vmatprep.subr.mxu0 0.0
    %1778 = vmatpush2.xpose.msra.mxu0 0.0
    %1779 = vmatprep.subr.mxu0 0.0
    %1780 = vmatpush2.xpose.msra.mxu0 0.0
    %1781 = vmatprep.subr.mxu0 0.0
    %1782 = vmatpush2.xpose.msra.mxu0 0.0
    %1783 = vmatprep.subr.mxu0 0.0
    %1784 = vmatpush2.xpose.msra.mxu0 0.0
    %1785 = vmatprep.mubr.f32.mxu0 0.0
    %1786 = vmatmul.mubr.f32.gmra.mxu0 %v1717
    %v1787 = vpop.f32.mrf.mxu0
    %v1788 = vadd.f32 0.0, %v1787
    %v1789 = vpop.f32.mrf.mxu0
    %1790 = vdwg.mxu0
    %1791 = vrot.lane.b32.xlu0 %v527, 120
    %v1792 = vpop.permute.xlu0 %1791
    %1793 = vrot.lane.b32.xlu0 %v527, 88
    %v1794 = vpop.permute.xlu0 %1793
    %v1795 = vsel %vm561, %v1792, 0
    %v1797 = vsel %vm561, %v1794, 0
    %1799 = vmatprep.subr.mxu0 0.0
    %1800 = vmatpush1.xpose.msra.mxu0 0.0
    %1801 = vmatprep.subr.mxu0 0.0
    %1802 = vmatpush1.xpose.msra.mxu0 0.0
    %1803 = vmatprep.subr.mxu0 0.0
    %1804 = vmatpush1.xpose.msra.mxu0 0.0
    %1805 = vmatprep.subr.mxu0 0.0
    %1806 = vmatpush1.xpose.msra.mxu0 0.0
    %1807 = vmatprep.subr.mxu0 0.0
    %1808 = vmatpush1.xpose.msra.mxu0 0.0
    %1809 = vmatprep.subr.mxu0 0.0
    %1810 = vmatpush1.xpose.msra.mxu0 0.0
    %1811 = vmatprep.subr.mxu0 0.0
    %1812 = vmatpush1.xpose.msra.mxu0 0.0
    %1813 = vmatprep.subr.mxu0 0.0
    %1814 = vmatpush1.xpose.msra.mxu0 0.0
    %1815 = vmatprep.subr.mxu0 0.0
    %1816 = vmatpush1.xpose.msra.mxu0 0.0
    %1817 = vmatprep.subr.mxu0 0.0
    %1818 = vmatpush1.xpose.msra.mxu0 0.0
    %1819 = vmatprep.subr.mxu0 0.0
    %1820 = vmatpush1.xpose.msra.mxu0 0.0
    %1821 = vmatprep.subr.mxu0 0.0
    %1822 = vmatpush1.xpose.msra.mxu0 0.0
    %1823 = vmatprep.subr.mxu0 0.0
    %1824 = vmatpush1.xpose.msra.mxu0 0.0
    %1825 = vmatprep.subr.mxu0 0.0
    %1826 = vmatpush1.xpose.msra.mxu0 0.0
    %1827 = vmatprep.subr.mxu0 0.0
    %1828 = vmatpush1.xpose.msra.mxu0 0.0
    %1829 = vmatprep.subr.mxu0 0.0
    %1830 = vmatpush1.xpose.msra.mxu0 %v1797
    %1831 = vmatprep.subr.mxu0 0.0
    %1832 = vmatpush2.xpose.msra.mxu0 0.0
    %1833 = vmatprep.subr.mxu0 0.0
    %1834 = vmatpush2.xpose.msra.mxu0 0.0
    %1835 = vmatprep.subr.mxu0 0.0
    %1836 = vmatpush2.xpose.msra.mxu0 0.0
    %1837 = vmatprep.subr.mxu0 0.0
    %1838 = vmatpush2.xpose.msra.mxu0 0.0
    %1839 = vmatprep.subr.mxu0 0.0
    %1840 = vmatpush2.xpose.msra.mxu0 0.0
    %1841 = vmatprep.subr.mxu0 0.0
    %1842 = vmatpush2.xpose.msra.mxu0 0.0
    %1843 = vmatprep.subr.mxu0 0.0
    %1844 = vmatpush2.xpose.msra.mxu0 0.0
    %1845 = vmatprep.subr.mxu0 0.0
    %1846 = vmatpush2.xpose.msra.mxu0 0.0
    %1847 = vmatprep.subr.mxu0 0.0
    %1848 = vmatpush2.xpose.msra.mxu0 0.0
    %1849 = vmatprep.subr.mxu0 0.0
    %1850 = vmatpush2.xpose.msra.mxu0 0.0
    %1851 = vmatprep.subr.mxu0 0.0
    %1852 = vmatpush2.xpose.msra.mxu0 0.0
    %1853 = vmatprep.subr.mxu0 0.0
    %1854 = vmatpush2.xpose.msra.mxu0 0.0
    %1855 = vmatprep.subr.mxu0 0.0
    %1856 = vmatpush2.xpose.msra.mxu0 0.0
    %1857 = vmatprep.subr.mxu0 0.0
    %1858 = vmatpush2.xpose.msra.mxu0 0.0
    %1859 = vmatprep.subr.mxu0 0.0
    %1860 = vmatpush2.xpose.msra.mxu0 0.0
    %1861 = vmatprep.subr.mxu0 0.0
    %1862 = vmatpush2.xpose.msra.mxu0 0.0
    %1863 = vmatprep.mubr.f32.mxu0 0.0
    %1864 = vmatmul.mubr.f32.gmra.mxu0 %v1795
    %v1865 = vpop.f32.mrf.mxu0
    %v1866 = vadd.f32 0.0, %v1865
    %v1867 = vpop.f32.mrf.mxu0
    %1868 = vdwg.mxu0
    %1869 = vrot.lane.b32.xlu0 %v532, 120
    %v1870 = vpop.permute.xlu0 %1869
    %1871 = vrot.lane.b32.xlu0 %v532, 88
    %v1872 = vpop.permute.xlu0 %1871
    %v1873 = vsel %vm561, %v1870, 0
    %v1875 = vsel %vm561, %v1872, 0
    %1877 = vmatprep.subr.mxu0 0.0
    %1878 = vmatpush1.xpose.msra.mxu0 0.0
    %1879 = vmatprep.subr.mxu0 0.0
    %1880 = vmatpush1.xpose.msra.mxu0 0.0
    %1881 = vmatprep.subr.mxu0 0.0
    %1882 = vmatpush1.xpose.msra.mxu0 0.0
    %1883 = vmatprep.subr.mxu0 0.0
    %1884 = vmatpush1.xpose.msra.mxu0 0.0
    %1885 = vmatprep.subr.mxu0 0.0
    %1886 = vmatpush1.xpose.msra.mxu0 0.0
    %1887 = vmatprep.subr.mxu0 0.0
    %1888 = vmatpush1.xpose.msra.mxu0 0.0
    %1889 = vmatprep.subr.mxu0 0.0
    %1890 = vmatpush1.xpose.msra.mxu0 0.0
    %1891 = vmatprep.subr.mxu0 0.0
    %1892 = vmatpush1.xpose.msra.mxu0 0.0
    %1893 = vmatprep.subr.mxu0 0.0
    %1894 = vmatpush1.xpose.msra.mxu0 0.0
    %1895 = vmatprep.subr.mxu0 0.0
    %1896 = vmatpush1.xpose.msra.mxu0 0.0
    %1897 = vmatprep.subr.mxu0 0.0
    %1898 = vmatpush1.xpose.msra.mxu0 0.0
    %1899 = vmatprep.subr.mxu0 0.0
    %1900 = vmatpush1.xpose.msra.mxu0 0.0
    %1901 = vmatprep.subr.mxu0 0.0
    %1902 = vmatpush1.xpose.msra.mxu0 0.0
    %1903 = vmatprep.subr.mxu0 0.0
    %1904 = vmatpush1.xpose.msra.mxu0 0.0
    %1905 = vmatprep.subr.mxu0 0.0
    %1906 = vmatpush1.xpose.msra.mxu0 0.0
    %1907 = vmatprep.subr.mxu0 0.0
    %1908 = vmatpush1.xpose.msra.mxu0 %v1875
    %1909 = vmatprep.subr.mxu0 0.0
    %1910 = vmatpush2.xpose.msra.mxu0 0.0
    %1911 = vmatprep.subr.mxu0 0.0
    %1912 = vmatpush2.xpose.msra.mxu0 0.0
    %1913 = vmatprep.subr.mxu0 0.0
    %1914 = vmatpush2.xpose.msra.mxu0 0.0
    %1915 = vmatprep.subr.mxu0 0.0
    %1916 = vmatpush2.xpose.msra.mxu0 0.0
    %1917 = vmatprep.subr.mxu0 0.0
    %1918 = vmatpush2.xpose.msra.mxu0 0.0
    %1919 = vmatprep.subr.mxu0 0.0
    %1920 = vmatpush2.xpose.msra.mxu0 0.0
    %1921 = vmatprep.subr.mxu0 0.0
    %1922 = vmatpush2.xpose.msra.mxu0 0.0
    %1923 = vmatprep.subr.mxu0 0.0
    %1924 = vmatpush2.xpose.msra.mxu0 0.0
    %1925 = vmatprep.subr.mxu0 0.0
    %1926 = vmatpush2.xpose.msra.mxu0 0.0
    %1927 = vmatprep.subr.mxu0 0.0
    %1928 = vmatpush2.xpose.msra.mxu0 0.0
    %1929 = vmatprep.subr.mxu0 0.0
    %1930 = vmatpush2.xpose.msra.mxu0 0.0
    %1931 = vmatprep.subr.mxu0 0.0
    %1932 = vmatpush2.xpose.msra.mxu0 0.0
    %1933 = vmatprep.subr.mxu0 0.0
    %1934 = vmatpush2.xpose.msra.mxu0 0.0
    %1935 = vmatprep.subr.mxu0 0.0
    %1936 = vmatpush2.xpose.msra.mxu0 0.0
    %1937 = vmatprep.subr.mxu0 0.0
    %1938 = vmatpush2.xpose.msra.mxu0 0.0
    %1939 = vmatprep.subr.mxu0 0.0
    %1940 = vmatpush2.xpose.msra.mxu0 0.0
    %1941 = vmatprep.mubr.f32.mxu0 0.0
    %1942 = vmatmul.mubr.f32.gmra.mxu0 %v1873
    %v1943 = vpop.f32.mrf.mxu0
    %v1944 = vadd.f32 0.0, %v1943
    %v1945 = vpop.f32.mrf.mxu0
    %1946 = vdwg.mxu0
    %1947 = vrot.lane.b32.xlu0 %v537, 120
    %v1948 = vpop.permute.xlu0 %1947
    %1949 = vrot.lane.b32.xlu0 %v537, 88
    %v1950 = vpop.permute.xlu0 %1949
    %v1951 = vsel %vm561, %v1948, 0
    %v1953 = vsel %vm561, %v1950, 0
    %1955 = vmatprep.subr.mxu0 0.0
    %1956 = vmatpush1.xpose.msra.mxu0 0.0
    %1957 = vmatprep.subr.mxu0 0.0
    %1958 = vmatpush1.xpose.msra.mxu0 0.0
    %1959 = vmatprep.subr.mxu0 0.0
    %1960 = vmatpush1.xpose.msra.mxu0 0.0
    %1961 = vmatprep.subr.mxu0 0.0
    %1962 = vmatpush1.xpose.msra.mxu0 0.0
    %1963 = vmatprep.subr.mxu0 0.0
    %1964 = vmatpush1.xpose.msra.mxu0 0.0
    %1965 = vmatprep.subr.mxu0 0.0
    %1966 = vmatpush1.xpose.msra.mxu0 0.0
    %1967 = vmatprep.subr.mxu0 0.0
    %1968 = vmatpush1.xpose.msra.mxu0 0.0
    %1969 = vmatprep.subr.mxu0 0.0
    %1970 = vmatpush1.xpose.msra.mxu0 0.0
    %1971 = vmatprep.subr.mxu0 0.0
    %1972 = vmatpush1.xpose.msra.mxu0 0.0
    %1973 = vmatprep.subr.mxu0 0.0
    %1974 = vmatpush1.xpose.msra.mxu0 0.0
    %1975 = vmatprep.subr.mxu0 0.0
    %1976 = vmatpush1.xpose.msra.mxu0 0.0
    %1977 = vmatprep.subr.mxu0 0.0
    %1978 = vmatpush1.xpose.msra.mxu0 0.0
    %1979 = vmatprep.subr.mxu0 0.0
    %1980 = vmatpush1.xpose.msra.mxu0 0.0
    %1981 = vmatprep.subr.mxu0 0.0
    %1982 = vmatpush1.xpose.msra.mxu0 0.0
    %1983 = vmatprep.subr.mxu0 0.0
    %1984 = vmatpush1.xpose.msra.mxu0 0.0
    %1985 = vmatprep.subr.mxu0 0.0
    %1986 = vmatpush1.xpose.msra.mxu0 %v1953
    %1987 = vmatprep.subr.mxu0 0.0
    %1988 = vmatpush2.xpose.msra.mxu0 0.0
    %1989 = vmatprep.subr.mxu0 0.0
    %1990 = vmatpush2.xpose.msra.mxu0 0.0
    %1991 = vmatprep.subr.mxu0 0.0
    %1992 = vmatpush2.xpose.msra.mxu0 0.0
    %1993 = vmatprep.subr.mxu0 0.0
    %1994 = vmatpush2.xpose.msra.mxu0 0.0
    %1995 = vmatprep.subr.mxu0 0.0
    %1996 = vmatpush2.xpose.msra.mxu0 0.0
    %1997 = vmatprep.subr.mxu0 0.0
    %1998 = vmatpush2.xpose.msra.mxu0 0.0
    %1999 = vmatprep.subr.mxu0 0.0
    %2000 = vmatpush2.xpose.msra.mxu0 0.0
    %2001 = vmatprep.subr.mxu0 0.0
    %2002 = vmatpush2.xpose.msra.mxu0 0.0
    %2003 = vmatprep.subr.mxu0 0.0
    %2004 = vmatpush2.xpose.msra.mxu0 0.0
    %2005 = vmatprep.subr.mxu0 0.0
    %2006 = vmatpush2.xpose.msra.mxu0 0.0
    %2007 = vmatprep.subr.mxu0 0.0
    %2008 = vmatpush2.xpose.msra.mxu0 0.0
    %2009 = vmatprep.subr.mxu0 0.0
    %2010 = vmatpush2.xpose.msra.mxu0 0.0
    %2011 = vmatprep.subr.mxu0 0.0
    %2012 = vmatpush2.xpose.msra.mxu0 0.0
    %2013 = vmatprep.subr.mxu0 0.0
    %2014 = vmatpush2.xpose.msra.mxu0 0.0
    %2015 = vmatprep.subr.mxu0 0.0
    %2016 = vmatpush2.xpose.msra.mxu0 0.0
    %2017 = vmatprep.subr.mxu0 0.0
    %2018 = vmatpush2.xpose.msra.mxu0 0.0
    %2019 = vmatprep.mubr.f32.mxu0 0.0
    %2020 = vmatmul.mubr.f32.gmra.mxu0 %v1951
    %v2021 = vpop.f32.mrf.mxu0
    %v2022 = vadd.f32 0.0, %v2021
    %v2023 = vpop.f32.mrf.mxu0
    %2024 = vdwg.mxu0
    %v2025 = vmul.f32 %v1632, 0.35355338
    %v2026 = vmul.f32 %v1710, 0.35355338
    %v2027 = vmul.f32 %v1788, 0.35355338
    %v2028 = vmul.f32 %v1866, 0.35355338
    %v2029 = vmul.f32 %v1944, 0.35355338
    %v2030 = vmul.f32 %v2022, 0.35355338
    %v2031 = vadd.f32 %v2025, %v552
    %v2032 = vadd.f32 %v2026, %v553
    %v2033 = vadd.f32 %v2027, %v554
    %v2034 = vadd.f32 %v2028, %v555
    %v2035 = vadd.f32 %v2029, %v556
    %v2036 = vadd.f32 %v2030, %v557
    %v2037 = vsel %vm1033, %v2031, -inf
    %2038 = vmax.xlane.f32.xlu0 %v2037
    %v2039 = vpop.xlane.xlu0 %2038
    %v2040 = vsel %vm1033, %v2032, -inf
    %2041 = vmax.xlane.f32.xlu0 %v2040
    %v2042 = vpop.xlane.xlu0 %2041
    %v2043 = vsel %vm1033, %v2033, -inf
    %2044 = vmax.xlane.f32.xlu0 %v2043
    %v2045 = vpop.xlane.xlu0 %2044
    %v2046 = vsel %vm1033, %v2034, -inf
    %2047 = vmax.xlane.f32.xlu0 %v2046
    %v2048 = vpop.xlane.xlu0 %2047
    %v2049 = vsel %vm1033, %v2035, -inf
    %2050 = vmax.xlane.f32.xlu0 %v2049
    %v2051 = vpop.xlane.xlu0 %2050
    %v2052 = vsel %vm1033, %v2036, -inf
    %2053 = vmax.xlane.f32.xlu0 %v2052
    %v2054 = vpop.xlane.xlu0 %2053
    %v2055 = vsub.f32 %v2031, %v2039
    %v2056 = vsub.f32 %v2032, %v2042
    %v2057 = vsub.f32 %v2033, %v2045
    %v2058 = vsub.f32 %v2034, %v2048
    %v2059 = vsub.f32 %v2035, %v2051
    %v2060 = vsub.f32 %v2036, %v2054
    %v2061 = vmul.f32 %v2055, 1.442695
    %v2062 = vpow.pop %v2061
    %v2063 = vmul.f32 %v2056, 1.442695
    %v2064 = vpow.pop %v2063
    %v2065 = vmul.f32 %v2057, 1.442695
    %v2066 = vpow.pop %v2065
    %v2067 = vmul.f32 %v2058, 1.442695
    %v2068 = vpow.pop %v2067
    %v2069 = vmul.f32 %v2059, 1.442695
    %v2070 = vpow.pop %v2069
    %v2071 = vmul.f32 %v2060, 1.442695
    %v2072 = vpow.pop %v2071
    %v2073 = vsel %vm1033, %v2062, 0.0
    %2074 = vadd.xlane.f32.xlu0 %v2073
    %v2075 = vpop.xlane.xlu0 %2074
    %v2076 = vsel %vm1033, %v2064, 0.0
    %2077 = vadd.xlane.f32.xlu0 %v2076
    %v2078 = vpop.xlane.xlu0 %2077
    %v2079 = vsel %vm1033, %v2066, 0.0
    %2080 = vadd.xlane.f32.xlu0 %v2079
    %v2081 = vpop.xlane.xlu0 %2080
    %v2082 = vsel %vm1033, %v2068, 0.0
    %2083 = vadd.xlane.f32.xlu0 %v2082
    %v2084 = vpop.xlane.xlu0 %2083
    %v2085 = vsel %vm1033, %v2070, 0.0
    %2086 = vadd.xlane.f32.xlu0 %v2085
    %v2087 = vpop.xlane.xlu0 %2086
    %v2088 = vsel %vm1033, %v2072, 0.0
    %2089 = vadd.xlane.f32.xlu0 %v2088
    %v2090 = vpop.xlane.xlu0 %2089
    %v2091 = vrcp.pop %v2075
    %v2092 = vrcp.pop %v2078
    %v2093 = vrcp.pop %v2081
    %v2094 = vrcp.pop %v2084
    %v2095 = vrcp.pop %v2087
    %v2096 = vrcp.pop %v2090
    %v2097 = vmul.f32 %v2062, %v2091
    %v2098 = vmul.f32 %v2064, %v2092
    %v2099 = vmul.f32 %v2066, %v2093
    %v2100 = vmul.f32 %v2068, %v2094
    %v2101 = vmul.f32 %v2070, %v2095
    %v2102 = vmul.f32 %v2072, %v2096
    %2103 = vrot.lane.b32.xlu0 %v512, 56
    %v2104 = vpop.permute.xlu0 %2103
    %v2107 = vsel %vm561, %v2097, 0
    %2109 = vmatprep.subr.mxu0 0.0
    %2110 = vmatpush1.msra.mxu0 0.0
    %2111 = vmatprep.subr.mxu0 0.0
    %2112 = vmatpush1.msra.mxu0 0.0
    %2113 = vmatprep.subr.mxu0 0.0
    %2114 = vmatpush1.msra.mxu0 0.0
    %2115 = vmatprep.subr.mxu0 0.0
    %2116 = vmatpush1.msra.mxu0 0.0
    %2117 = vmatprep.subr.mxu0 0.0
    %2118 = vmatpush1.msra.mxu0 0.0
    %2119 = vmatprep.subr.mxu0 0.0
    %2120 = vmatpush1.msra.mxu0 0.0
    %2121 = vmatprep.subr.mxu0 0.0
    %2122 = vmatpush1.msra.mxu0 0.0
    %2123 = vmatprep.subr.mxu0 0.0
    %2124 = vmatpush1.msra.mxu0 0.0
    %2125 = vmatprep.subr.mxu0 0.0
    %2126 = vmatpush1.msra.mxu0 0.0
    %2127 = vmatprep.subr.mxu0 0.0
    %2128 = vmatpush1.msra.mxu0 0.0
    %2129 = vmatprep.subr.mxu0 0.0
    %2130 = vmatpush1.msra.mxu0 0.0
    %2131 = vmatprep.subr.mxu0 0.0
    %2132 = vmatpush1.msra.mxu0 0.0
    %2133 = vmatprep.subr.mxu0 0.0
    %2134 = vmatpush1.msra.mxu0 0.0
    %2135 = vmatprep.subr.mxu0 0.0
    %2136 = vmatpush1.msra.mxu0 0.0
    %2137 = vmatprep.subr.mxu0 0.0
    %2138 = vmatpush1.msra.mxu0 0.0
    %2139 = vmatprep.subr.mxu0 0.0
    %2140 = vmatpush1.msra.mxu0 %v2104
    %2141 = vmatprep.subr.mxu0 0.0
    %2142 = vmatpush2.msra.mxu0 0.0
    %2143 = vmatprep.subr.mxu0 0.0
    %2144 = vmatpush2.msra.mxu0 0.0
    %2145 = vmatprep.subr.mxu0 0.0
    %2146 = vmatpush2.msra.mxu0 0.0
    %2147 = vmatprep.subr.mxu0 0.0
    %2148 = vmatpush2.msra.mxu0 0.0
    %2149 = vmatprep.subr.mxu0 0.0
    %2150 = vmatpush2.msra.mxu0 0.0
    %2151 = vmatprep.subr.mxu0 0.0
    %2152 = vmatpush2.msra.mxu0 0.0
    %2153 = vmatprep.subr.mxu0 0.0
    %2154 = vmatpush2.msra.mxu0 0.0
    %2155 = vmatprep.subr.mxu0 0.0
    %2156 = vmatpush2.msra.mxu0 0.0
    %2157 = vmatprep.subr.mxu0 0.0
    %2158 = vmatpush2.msra.mxu0 0.0
    %2159 = vmatprep.subr.mxu0 0.0
    %2160 = vmatpush2.msra.mxu0 0.0
    %2161 = vmatprep.subr.mxu0 0.0
    %2162 = vmatpush2.msra.mxu0 0.0
    %2163 = vmatprep.subr.mxu0 0.0
    %2164 = vmatpush2.msra.mxu0 0.0
    %2165 = vmatprep.subr.mxu0 0.0
    %2166 = vmatpush2.msra.mxu0 0.0
    %2167 = vmatprep.subr.mxu0 0.0
    %2168 = vmatpush2.msra.mxu0 0.0
    %2169 = vmatprep.subr.mxu0 0.0
    %2170 = vmatpush2.msra.mxu0 0.0
    %2171 = vmatprep.subr.mxu0 0.0
    %2172 = vmatpush2.msra.mxu0 0.0
    %2173 = vmatprep.mubr.f32.mxu0 0.0
    %2174 = vmatmul.mubr.f32.gmra.mxu0 %v2107
    %v2175 = vpop.f32.mrf.mxu0
    %v2176 = vadd.f32 0.0, %v2175
    %v2177 = vpop.f32.mrf.mxu0
    %2178 = vdwg.mxu0
    %2179 = vrot.lane.b32.xlu0 %v517, 56
    %v2180 = vpop.permute.xlu0 %2179
    %v2183 = vsel %vm561, %v2098, 0
    %2185 = vmatprep.subr.mxu0 0.0
    %2186 = vmatpush1.msra.mxu0 0.0
    %2187 = vmatprep.subr.mxu0 0.0
    %2188 = vmatpush1.msra.mxu0 0.0
    %2189 = vmatprep.subr.mxu0 0.0
    %2190 = vmatpush1.msra.mxu0 0.0
    %2191 = vmatprep.subr.mxu0 0.0
    %2192 = vmatpush1.msra.mxu0 0.0
    %2193 = vmatprep.subr.mxu0 0.0
    %2194 = vmatpush1.msra.mxu0 0.0
    %2195 = vmatprep.subr.mxu0 0.0
    %2196 = vmatpush1.msra.mxu0 0.0
    %2197 = vmatprep.subr.mxu0 0.0
    %2198 = vmatpush1.msra.mxu0 0.0
    %2199 = vmatprep.subr.mxu0 0.0
    %2200 = vmatpush1.msra.mxu0 0.0
    %2201 = vmatprep.subr.mxu0 0.0
    %2202 = vmatpush1.msra.mxu0 0.0
    %2203 = vmatprep.subr.mxu0 0.0
    %2204 = vmatpush1.msra.mxu0 0.0
    %2205 = vmatprep.subr.mxu0 0.0
    %2206 = vmatpush1.msra.mxu0 0.0
    %2207 = vmatprep.subr.mxu0 0.0
    %2208 = vmatpush1.msra.mxu0 0.0
    %2209 = vmatprep.subr.mxu0 0.0
    %2210 = vmatpush1.msra.mxu0 0.0
    %2211 = vmatprep.subr.mxu0 0.0
    %2212 = vmatpush1.msra.mxu0 0.0
    %2213 = vmatprep.subr.mxu0 0.0
    %2214 = vmatpush1.msra.mxu0 0.0
    %2215 = vmatprep.subr.mxu0 0.0
    %2216 = vmatpush1.msra.mxu0 %v2180
    %2217 = vmatprep.subr.mxu0 0.0
    %2218 = vmatpush2.msra.mxu0 0.0
    %2219 = vmatprep.subr.mxu0 0.0
    %2220 = vmatpush2.msra.mxu0 0.0
    %2221 = vmatprep.subr.mxu0 0.0
    %2222 = vmatpush2.msra.mxu0 0.0
    %2223 = vmatprep.subr.mxu0 0.0
    %2224 = vmatpush2.msra.mxu0 0.0
    %2225 = vmatprep.subr.mxu0 0.0
    %2226 = vmatpush2.msra.mxu0 0.0
    %2227 = vmatprep.subr.mxu0 0.0
    %2228 = vmatpush2.msra.mxu0 0.0
    %2229 = vmatprep.subr.mxu0 0.0
    %2230 = vmatpush2.msra.mxu0 0.0
    %2231 = vmatprep.subr.mxu0 0.0
    %2232 = vmatpush2.msra.mxu0 0.0
    %2233 = vmatprep.subr.mxu0 0.0
    %2234 = vmatpush2.msra.mxu0 0.0
    %2235 = vmatprep.subr.mxu0 0.0
    %2236 = vmatpush2.msra.mxu0 0.0
    %2237 = vmatprep.subr.mxu0 0.0
    %2238 = vmatpush2.msra.mxu0 0.0
    %2239 = vmatprep.subr.mxu0 0.0
    %2240 = vmatpush2.msra.mxu0 0.0
    %2241 = vmatprep.subr.mxu0 0.0
    %2242 = vmatpush2.msra.mxu0 0.0
    %2243 = vmatprep.subr.mxu0 0.0
    %2244 = vmatpush2.msra.mxu0 0.0
    %2245 = vmatprep.subr.mxu0 0.0
    %2246 = vmatpush2.msra.mxu0 0.0
    %2247 = vmatprep.subr.mxu0 0.0
    %2248 = vmatpush2.msra.mxu0 0.0
    %2249 = vmatprep.mubr.f32.mxu0 0.0
    %2250 = vmatmul.mubr.f32.gmra.mxu0 %v2183
    %v2251 = vpop.f32.mrf.mxu0
    %v2252 = vadd.f32 0.0, %v2251
    %v2253 = vpop.f32.mrf.mxu0
    %2254 = vdwg.mxu0
    %2255 = vrot.lane.b32.xlu0 %v522, 56
    %v2256 = vpop.permute.xlu0 %2255
    %v2259 = vsel %vm561, %v2099, 0
    %2261 = vmatprep.subr.mxu0 0.0
    %2262 = vmatpush1.msra.mxu0 0.0
    %2263 = vmatprep.subr.mxu0 0.0
    %2264 = vmatpush1.msra.mxu0 0.0
    %2265 = vmatprep.subr.mxu0 0.0
    %2266 = vmatpush1.msra.mxu0 0.0
    %2267 = vmatprep.subr.mxu0 0.0
    %2268 = vmatpush1.msra.mxu0 0.0
    %2269 = vmatprep.subr.mxu0 0.0
    %2270 = vmatpush1.msra.mxu0 0.0
    %2271 = vmatprep.subr.mxu0 0.0
    %2272 = vmatpush1.msra.mxu0 0.0
    %2273 = vmatprep.subr.mxu0 0.0
    %2274 = vmatpush1.msra.mxu0 0.0
    %2275 = vmatprep.subr.mxu0 0.0
    %2276 = vmatpush1.msra.mxu0 0.0
    %2277 = vmatprep.subr.mxu0 0.0
    %2278 = vmatpush1.msra.mxu0 0.0
    %2279 = vmatprep.subr.mxu0 0.0
    %2280 = vmatpush1.msra.mxu0 0.0
    %2281 = vmatprep.subr.mxu0 0.0
    %2282 = vmatpush1.msra.mxu0 0.0
    %2283 = vmatprep.subr.mxu0 0.0
    %2284 = vmatpush1.msra.mxu0 0.0
    %2285 = vmatprep.subr.mxu0 0.0
    %2286 = vmatpush1.msra.mxu0 0.0
    %2287 = vmatprep.subr.mxu0 0.0
    %2288 = vmatpush1.msra.mxu0 0.0
    %2289 = vmatprep.subr.mxu0 0.0
    %2290 = vmatpush1.msra.mxu0 0.0
    %2291 = vmatprep.subr.mxu0 0.0
    %2292 = vmatpush1.msra.mxu0 %v2256
    %2293 = vmatprep.subr.mxu0 0.0
    %2294 = vmatpush2.msra.mxu0 0.0
    %2295 = vmatprep.subr.mxu0 0.0
    %2296 = vmatpush2.msra.mxu0 0.0
    %2297 = vmatprep.subr.mxu0 0.0
    %2298 = vmatpush2.msra.mxu0 0.0
    %2299 = vmatprep.subr.mxu0 0.0
    %2300 = vmatpush2.msra.mxu0 0.0
    %2301 = vmatprep.subr.mxu0 0.0
    %2302 = vmatpush2.msra.mxu0 0.0
    %2303 = vmatprep.subr.mxu0 0.0
    %2304 = vmatpush2.msra.mxu0 0.0
    %2305 = vmatprep.subr.mxu0 0.0
    %2306 = vmatpush2.msra.mxu0 0.0
    %2307 = vmatprep.subr.mxu0 0.0
    %2308 = vmatpush2.msra.mxu0 0.0
    %2309 = vmatprep.subr.mxu0 0.0
    %2310 = vmatpush2.msra.mxu0 0.0
    %2311 = vmatprep.subr.mxu0 0.0
    %2312 = vmatpush2.msra.mxu0 0.0
    %2313 = vmatprep.subr.mxu0 0.0
    %2314 = vmatpush2.msra.mxu0 0.0
    %2315 = vmatprep.subr.mxu0 0.0
    %2316 = vmatpush2.msra.mxu0 0.0
    %2317 = vmatprep.subr.mxu0 0.0
    %2318 = vmatpush2.msra.mxu0 0.0
    %2319 = vmatprep.subr.mxu0 0.0
    %2320 = vmatpush2.msra.mxu0 0.0
    %2321 = vmatprep.subr.mxu0 0.0
    %2322 = vmatpush2.msra.mxu0 0.0
    %2323 = vmatprep.subr.mxu0 0.0
    %2324 = vmatpush2.msra.mxu0 0.0
    %2325 = vmatprep.mubr.f32.mxu0 0.0
    %2326 = vmatmul.mubr.f32.gmra.mxu0 %v2259
    %v2327 = vpop.f32.mrf.mxu0
    %v2328 = vadd.f32 0.0, %v2327
    %v2329 = vpop.f32.mrf.mxu0
    %2330 = vdwg.mxu0
    %2331 = vrot.lane.b32.xlu0 %v527, 56
    %v2332 = vpop.permute.xlu0 %2331
    %v2335 = vsel %vm561, %v2100, 0
    %2337 = vmatprep.subr.mxu0 0.0
    %2338 = vmatpush1.msra.mxu0 0.0
    %2339 = vmatprep.subr.mxu0 0.0
    %2340 = vmatpush1.msra.mxu0 0.0
    %2341 = vmatprep.subr.mxu0 0.0
    %2342 = vmatpush1.msra.mxu0 0.0
    %2343 = vmatprep.subr.mxu0 0.0
    %2344 = vmatpush1.msra.mxu0 0.0
    %2345 = vmatprep.subr.mxu0 0.0
    %2346 = vmatpush1.msra.mxu0 0.0
    %2347 = vmatprep.subr.mxu0 0.0
    %2348 = vmatpush1.msra.mxu0 0.0
    %2349 = vmatprep.subr.mxu0 0.0
    %2350 = vmatpush1.msra.mxu0 0.0
    %2351 = vmatprep.subr.mxu0 0.0
    %2352 = vmatpush1.msra.mxu0 0.0
    %2353 = vmatprep.subr.mxu0 0.0
    %2354 = vmatpush1.msra.mxu0 0.0
    %2355 = vmatprep.subr.mxu0 0.0
    %2356 = vmatpush1.msra.mxu0 0.0
    %2357 = vmatprep.subr.mxu0 0.0
    %2358 = vmatpush1.msra.mxu0 0.0
    %2359 = vmatprep.subr.mxu0 0.0
    %2360 = vmatpush1.msra.mxu0 0.0
    %2361 = vmatprep.subr.mxu0 0.0
    %2362 = vmatpush1.msra.mxu0 0.0
    %2363 = vmatprep.subr.mxu0 0.0
    %2364 = vmatpush1.msra.mxu0 0.0
    %2365 = vmatprep.subr.mxu0 0.0
    %2366 = vmatpush1.msra.mxu0 0.0
    %2367 = vmatprep.subr.mxu0 0.0
    %2368 = vmatpush1.msra.mxu0 %v2332
    %2369 = vmatprep.subr.mxu0 0.0
    %2370 = vmatpush2.msra.mxu0 0.0
    %2371 = vmatprep.subr.mxu0 0.0
    %2372 = vmatpush2.msra.mxu0 0.0
    %2373 = vmatprep.subr.mxu0 0.0
    %2374 = vmatpush2.msra.mxu0 0.0
    %2375 = vmatprep.subr.mxu0 0.0
    %2376 = vmatpush2.msra.mxu0 0.0
    %2377 = vmatprep.subr.mxu0 0.0
    %2378 = vmatpush2.msra.mxu0 0.0
    %2379 = vmatprep.subr.mxu0 0.0
    %2380 = vmatpush2.msra.mxu0 0.0
    %2381 = vmatprep.subr.mxu0 0.0
    %2382 = vmatpush2.msra.mxu0 0.0
    %2383 = vmatprep.subr.mxu0 0.0
    %2384 = vmatpush2.msra.mxu0 0.0
    %2385 = vmatprep.subr.mxu0 0.0
    %2386 = vmatpush2.msra.mxu0 0.0
    %2387 = vmatprep.subr.mxu0 0.0
    %2388 = vmatpush2.msra.mxu0 0.0
    %2389 = vmatprep.subr.mxu0 0.0
    %2390 = vmatpush2.msra.mxu0 0.0
    %2391 = vmatprep.subr.mxu0 0.0
    %2392 = vmatpush2.msra.mxu0 0.0
    %2393 = vmatprep.subr.mxu0 0.0
    %2394 = vmatpush2.msra.mxu0 0.0
    %2395 = vmatprep.subr.mxu0 0.0
    %2396 = vmatpush2.msra.mxu0 0.0
    %2397 = vmatprep.subr.mxu0 0.0
    %2398 = vmatpush2.msra.mxu0 0.0
    %2399 = vmatprep.subr.mxu0 0.0
    %2400 = vmatpush2.msra.mxu0 0.0
    %2401 = vmatprep.mubr.f32.mxu0 0.0
    %2402 = vmatmul.mubr.f32.gmra.mxu0 %v2335
    %v2403 = vpop.f32.mrf.mxu0
    %v2404 = vadd.f32 0.0, %v2403
    %v2405 = vpop.f32.mrf.mxu0
    %2406 = vdwg.mxu0
    %2407 = vrot.lane.b32.xlu0 %v532, 56
    %v2408 = vpop.permute.xlu0 %2407
    %v2411 = vsel %vm561, %v2101, 0
    %2413 = vmatprep.subr.mxu0 0.0
    %2414 = vmatpush1.msra.mxu0 0.0
    %2415 = vmatprep.subr.mxu0 0.0
    %2416 = vmatpush1.msra.mxu0 0.0
    %2417 = vmatprep.subr.mxu0 0.0
    %2418 = vmatpush1.msra.mxu0 0.0
    %2419 = vmatprep.subr.mxu0 0.0
    %2420 = vmatpush1.msra.mxu0 0.0
    %2421 = vmatprep.subr.mxu0 0.0
    %2422 = vmatpush1.msra.mxu0 0.0
    %2423 = vmatprep.subr.mxu0 0.0
    %2424 = vmatpush1.msra.mxu0 0.0
    %2425 = vmatprep.subr.mxu0 0.0
    %2426 = vmatpush1.msra.mxu0 0.0
    %2427 = vmatprep.subr.mxu0 0.0
    %2428 = vmatpush1.msra.mxu0 0.0
    %2429 = vmatprep.subr.mxu0 0.0
    %2430 = vmatpush1.msra.mxu0 0.0
    %2431 = vmatprep.subr.mxu0 0.0
    %2432 = vmatpush1.msra.mxu0 0.0
    %2433 = vmatprep.subr.mxu0 0.0
    %2434 = vmatpush1.msra.mxu0 0.0
    %2435 = vmatprep.subr.mxu0 0.0
    %2436 = vmatpush1.msra.mxu0 0.0
    %2437 = vmatprep.subr.mxu0 0.0
    %2438 = vmatpush1.msra.mxu0 0.0
    %2439 = vmatprep.subr.mxu0 0.0
    %2440 = vmatpush1.msra.mxu0 0.0
    %2441 = vmatprep.subr.mxu0 0.0
    %2442 = vmatpush1.msra.mxu0 0.0
    %2443 = vmatprep.subr.mxu0 0.0
    %2444 = vmatpush1.msra.mxu0 %v2408
    %2445 = vmatprep.subr.mxu0 0.0
    %2446 = vmatpush2.msra.mxu0 0.0
    %2447 = vmatprep.subr.mxu0 0.0
    %2448 = vmatpush2.msra.mxu0 0.0
    %2449 = vmatprep.subr.mxu0 0.0
    %2450 = vmatpush2.msra.mxu0 0.0
    %2451 = vmatprep.subr.mxu0 0.0
    %2452 = vmatpush2.msra.mxu0 0.0
    %2453 = vmatprep.subr.mxu0 0.0
    %2454 = vmatpush2.msra.mxu0 0.0
    %2455 = vmatprep.subr.mxu0 0.0
    %2456 = vmatpush2.msra.mxu0 0.0
    %2457 = vmatprep.subr.mxu0 0.0
    %2458 = vmatpush2.msra.mxu0 0.0
    %2459 = vmatprep.subr.mxu0 0.0
    %2460 = vmatpush2.msra.mxu0 0.0
    %2461 = vmatprep.subr.mxu0 0.0
    %2462 = vmatpush2.msra.mxu0 0.0
    %2463 = vmatprep.subr.mxu0 0.0
    %2464 = vmatpush2.msra.mxu0 0.0
    %2465 = vmatprep.subr.mxu0 0.0
    %2466 = vmatpush2.msra.mxu0 0.0
    %2467 = vmatprep.subr.mxu0 0.0
    %2468 = vmatpush2.msra.mxu0 0.0
    %2469 = vmatprep.subr.mxu0 0.0
    %2470 = vmatpush2.msra.mxu0 0.0
    %2471 = vmatprep.subr.mxu0 0.0
    %2472 = vmatpush2.msra.mxu0 0.0
    %2473 = vmatprep.subr.mxu0 0.0
    %2474 = vmatpush2.msra.mxu0 0.0
    %2475 = vmatprep.subr.mxu0 0.0
    %2476 = vmatpush2.msra.mxu0 0.0
    %2477 = vmatprep.mubr.f32.mxu0 0.0
    %2478 = vmatmul.mubr.f32.gmra.mxu0 %v2411
    %v2479 = vpop.f32.mrf.mxu0
    %v2480 = vadd.f32 0.0, %v2479
    %v2481 = vpop.f32.mrf.mxu0
    %2482 = vdwg.mxu0
    %2483 = vrot.lane.b32.xlu0 %v537, 56
    %v2484 = vpop.permute.xlu0 %2483
    %v2487 = vsel %vm561, %v2102, 0
    %2489 = vmatprep.subr.mxu0 0.0
    %2490 = vmatpush1.msra.mxu0 0.0
    %2491 = vmatprep.subr.mxu0 0.0
    %2492 = vmatpush1.msra.mxu0 0.0
    %2493 = vmatprep.subr.mxu0 0.0
    %2494 = vmatpush1.msra.mxu0 0.0
    %2495 = vmatprep.subr.mxu0 0.0
    %2496 = vmatpush1.msra.mxu0 0.0
    %2497 = vmatprep.subr.mxu0 0.0
    %2498 = vmatpush1.msra.mxu0 0.0
    %2499 = vmatprep.subr.mxu0 0.0
    %2500 = vmatpush1.msra.mxu0 0.0
    %2501 = vmatprep.subr.mxu0 0.0
    %2502 = vmatpush1.msra.mxu0 0.0
    %2503 = vmatprep.subr.mxu0 0.0
    %2504 = vmatpush1.msra.mxu0 0.0
    %2505 = vmatprep.subr.mxu0 0.0
    %2506 = vmatpush1.msra.mxu0 0.0
    %2507 = vmatprep.subr.mxu0 0.0
    %2508 = vmatpush1.msra.mxu0 0.0
    %2509 = vmatprep.subr.mxu0 0.0
    %2510 = vmatpush1.msra.mxu0 0.0
    %2511 = vmatprep.subr.mxu0 0.0
    %2512 = vmatpush1.msra.mxu0 0.0
    %2513 = vmatprep.subr.mxu0 0.0
    %2514 = vmatpush1.msra.mxu0 0.0
    %2515 = vmatprep.subr.mxu0 0.0
    %2516 = vmatpush1.msra.mxu0 0.0
    %2517 = vmatprep.subr.mxu0 0.0
    %2518 = vmatpush1.msra.mxu0 0.0
    %2519 = vmatprep.subr.mxu0 0.0
    %2520 = vmatpush1.msra.mxu0 %v2484
    %2521 = vmatprep.subr.mxu0 0.0
    %2522 = vmatpush2.msra.mxu0 0.0
    %2523 = vmatprep.subr.mxu0 0.0
    %2524 = vmatpush2.msra.mxu0 0.0
    %2525 = vmatprep.subr.mxu0 0.0
    %2526 = vmatpush2.msra.mxu0 0.0
    %2527 = vmatprep.subr.mxu0 0.0
    %2528 = vmatpush2.msra.mxu0 0.0
    %2529 = vmatprep.subr.mxu0 0.0
    %2530 = vmatpush2.msra.mxu0 0.0
    %2531 = vmatprep.subr.mxu0 0.0
    %2532 = vmatpush2.msra.mxu0 0.0
    %2533 = vmatprep.subr.mxu0 0.0
    %2534 = vmatpush2.msra.mxu0 0.0
    %2535 = vmatprep.subr.mxu0 0.0
    %2536 = vmatpush2.msra.mxu0 0.0
    %2537 = vmatprep.subr.mxu0 0.0
    %2538 = vmatpush2.msra.mxu0 0.0
    %2539 = vmatprep.subr.mxu0 0.0
    %2540 = vmatpush2.msra.mxu0 0.0
    %2541 = vmatprep.subr.mxu0 0.0
    %2542 = vmatpush2.msra.mxu0 0.0
    %2543 = vmatprep.subr.mxu0 0.0
    %2544 = vmatpush2.msra.mxu0 0.0
    %2545 = vmatprep.subr.mxu0 0.0
    %2546 = vmatpush2.msra.mxu0 0.0
    %2547 = vmatprep.subr.mxu0 0.0
    %2548 = vmatpush2.msra.mxu0 0.0
    %2549 = vmatprep.subr.mxu0 0.0
    %2550 = vmatpush2.msra.mxu0 0.0
    %2551 = vmatprep.subr.mxu0 0.0
    %2552 = vmatpush2.msra.mxu0 0.0
    %2553 = vmatprep.mubr.f32.mxu0 0.0
    %2554 = vmatmul.mubr.f32.gmra.mxu0 %v2487
    %v2555 = vpop.f32.mrf.mxu0
    %v2556 = vadd.f32 0.0, %v2555
    %v2557 = vpop.f32.mrf.mxu0
    %2558 = vdwg.mxu0
    %v2559 = vld [vmem:[%s8 + $0x8] sm:$0xff]
    %v2566 = vrot.slane %v2252, 7
    %vm2567 = vcmask 1041409
    %v2568 = vsel %vm2567, %v2566, %v2176
    %v2569 = vrot.slane %v2328, 6
    %vm2570 = vcmask 1042434
    %v2571 = vsel %vm2570, %v2569, %v2568
    %v2572 = vrot.slane %v2404, 5
    %vm2573 = vcmask 1043459
    %v2574 = vsel %vm2573, %v2572, %v2571
    %v2575 = vrot.slane %v2480, 4
    %vm2576 = vcmask 1044484
    %v2577 = vsel %vm2576, %v2575, %v2574
    %v2578 = vrot.slane %v2556, 3
    %vm2579 = vcmask 1045509
    %v2580 = vsel %vm2579, %v2578, %v2577
    %v2581 = vsel %vm561, %v2580, 0
    %2583 = vmatprep.subr.mxu0 0.0
    %2584 = vmatpush1.msra.mxu0 0.0
    %2585 = vmatprep.subr.mxu0 0.0
    %2586 = vmatpush1.msra.mxu0 0.0
    %2587 = vmatprep.subr.mxu0 0.0
    %2588 = vmatpush1.msra.mxu0 0.0
    %2589 = vmatprep.subr.mxu0 0.0
    %2590 = vmatpush1.msra.mxu0 0.0
    %2591 = vmatprep.subr.mxu0 0.0
    %2592 = vmatpush1.msra.mxu0 0.0
    %2593 = vmatprep.subr.mxu0 0.0
    %2594 = vmatpush1.msra.mxu0 0.0
    %2595 = vmatprep.subr.mxu0 0.0
    %2596 = vmatpush1.msra.mxu0 0.0
    %2597 = vmatprep.subr.mxu0 0.0
    %2598 = vmatpush1.msra.mxu0 0.0
    %2599 = vmatprep.subr.mxu0 0.0
    %2600 = vmatpush1.msra.mxu0 0.0
    %2601 = vmatprep.subr.mxu0 0.0
    %2602 = vmatpush1.msra.mxu0 0.0
    %2603 = vmatprep.subr.mxu0 0.0
    %2604 = vmatpush1.msra.mxu0 0.0
    %2605 = vmatprep.subr.mxu0 0.0
    %2606 = vmatpush1.msra.mxu0 0.0
    %2607 = vmatprep.subr.mxu0 0.0
    %2608 = vmatpush1.msra.mxu0 0.0
    %2609 = vmatprep.subr.mxu0 0.0
    %2610 = vmatpush1.msra.mxu0 0.0
    %2611 = vmatprep.subr.mxu0 0.0
    %2612 = vmatpush1.msra.mxu0 0.0
    %2613 = vmatprep.subr.mxu0 0.0
    %2614 = vmatpush1.msra.mxu0 %v2559
    %2615 = vmatprep.subr.mxu0 0.0
    %2616 = vmatpush2.msra.mxu0 0.0
    %2617 = vmatprep.subr.mxu0 0.0
    %2618 = vmatpush2.msra.mxu0 0.0
    %2619 = vmatprep.subr.mxu0 0.0
    %2620 = vmatpush2.msra.mxu0 0.0
    %2621 = vmatprep.subr.mxu0 0.0
    %2622 = vmatpush2.msra.mxu0 0.0
    %2623 = vmatprep.subr.mxu0 0.0
    %2624 = vmatpush2.msra.mxu0 0.0
    %2625 = vmatprep.subr.mxu0 0.0
    %2626 = vmatpush2.msra.mxu0 0.0
    %2627 = vmatprep.subr.mxu0 0.0
    %2628 = vmatpush2.msra.mxu0 0.0
    %2629 = vmatprep.subr.mxu0 0.0
    %2630 = vmatpush2.msra.mxu0 0.0
    %2631 = vmatprep.subr.mxu0 0.0
    %2632 = vmatpush2.msra.mxu0 0.0
    %2633 = vmatprep.subr.mxu0 0.0
    %2634 = vmatpush2.msra.mxu0 0.0
    %2635 = vmatprep.subr.mxu0 0.0
    %2636 = vmatpush2.msra.mxu0 0.0
    %2637 = vmatprep.subr.mxu0 0.0
    %2638 = vmatpush2.msra.mxu0 0.0
    %2639 = vmatprep.subr.mxu0 0.0
    %2640 = vmatpush2.msra.mxu0 0.0
    %2641 = vmatprep.subr.mxu0 0.0
    %2642 = vmatpush2.msra.mxu0 0.0
    %2643 = vmatprep.subr.mxu0 0.0
    %2644 = vmatpush2.msra.mxu0 0.0
    %2645 = vmatprep.subr.mxu0 0.0
    %2646 = vmatpush2.msra.mxu0 0.0
    %2647 = vmatprep.mubr.f32.mxu0 0.0
    %2648 = vmatmul.mubr.f32.gmra.mxu0 %v2581
    %v2649 = vpop.f32.mrf.mxu0
    %v2650 = vadd.f32 0.0, %v2649
    %v2651 = vpop.f32.mrf.mxu0
    %2652 = vdwg.mxu0
    %v2659 = vrot.slane %v1249, 7
    %v2660 = vsel %vm2567, %v2659, %v1173
    %v2661 = vrot.slane %v1325, 6
    %v2662 = vsel %vm2570, %v2661, %v2660
    %v2663 = vrot.slane %v1401, 5
    %v2664 = vsel %vm2573, %v2663, %v2662
    %v2665 = vrot.slane %v1477, 4
    %v2666 = vsel %vm2576, %v2665, %v2664
    %v2667 = vrot.slane %v1553, 3
    %v2668 = vsel %vm2579, %v2667, %v2666
    %v2669 = vsel %vm561, %v2668, 0
    %2671 = vmatprep.subr.mxu0 0.0
    %2672 = vmatpush1.msra.mxu0 0.0
    %2673 = vmatprep.subr.mxu0 0.0
    %2674 = vmatpush1.msra.mxu0 0.0
    %2675 = vmatprep.subr.mxu0 0.0
    %2676 = vmatpush1.msra.mxu0 0.0
    %2677 = vmatprep.subr.mxu0 0.0
    %2678 = vmatpush1.msra.mxu0 0.0
    %2679 = vmatprep.subr.mxu0 0.0
    %2680 = vmatpush1.msra.mxu0 0.0
    %2681 = vmatprep.subr.mxu0 0.0
    %2682 = vmatpush1.msra.mxu0 0.0
    %2683 = vmatprep.subr.mxu0 0.0
    %2684 = vmatpush1.msra.mxu0 0.0
    %2685 = vmatprep.subr.mxu0 0.0
    %2686 = vmatpush1.msra.mxu0 0.0
    %2687 = vmatprep.subr.mxu0 0.0
    %2688 = vmatpush1.msra.mxu0 0.0
    %2689 = vmatprep.subr.mxu0 0.0
    %2690 = vmatpush1.msra.mxu0 0.0
    %2691 = vmatprep.subr.mxu0 0.0
    %2692 = vmatpush1.msra.mxu0 0.0
    %2693 = vmatprep.subr.mxu0 0.0
    %2694 = vmatpush1.msra.mxu0 0.0
    %2695 = vmatprep.subr.mxu0 0.0
    %2696 = vmatpush1.msra.mxu0 0.0
    %2697 = vmatprep.subr.mxu0 0.0
    %2698 = vmatpush1.msra.mxu0 0.0
    %2699 = vmatprep.subr.mxu0 0.0
    %2700 = vmatpush1.msra.mxu0 0.0
    %2701 = vmatprep.subr.mxu0 0.0
    %2702 = vmatpush1.msra.mxu0 %v1556
    %2703 = vmatprep.subr.mxu0 0.0
    %2704 = vmatpush2.msra.mxu0 0.0
    %2705 = vmatprep.subr.mxu0 0.0
    %2706 = vmatpush2.msra.mxu0 0.0
    %2707 = vmatprep.subr.mxu0 0.0
    %2708 = vmatpush2.msra.mxu0 0.0
    %2709 = vmatprep.subr.mxu0 0.0
    %2710 = vmatpush2.msra.mxu0 0.0
    %2711 = vmatprep.subr.mxu0 0.0
    %2712 = vmatpush2.msra.mxu0 0.0
    %2713 = vmatprep.subr.mxu0 0.0
    %2714 = vmatpush2.msra.mxu0 0.0
    %2715 = vmatprep.subr.mxu0 0.0
    %2716 = vmatpush2.msra.mxu0 0.0
    %2717 = vmatprep.subr.mxu0 0.0
    %2718 = vmatpush2.msra.mxu0 0.0
    %2719 = vmatprep.subr.mxu0 0.0
    %2720 = vmatpush2.msra.mxu0 0.0
    %2721 = vmatprep.subr.mxu0 0.0
    %2722 = vmatpush2.msra.mxu0 0.0
    %2723 = vmatprep.subr.mxu0 0.0
    %2724 = vmatpush2.msra.mxu0 0.0
    %2725 = vmatprep.subr.mxu0 0.0
    %2726 = vmatpush2.msra.mxu0 0.0
    %2727 = vmatprep.subr.mxu0 0.0
    %2728 = vmatpush2.msra.mxu0 0.0
    %2729 = vmatprep.subr.mxu0 0.0
    %2730 = vmatpush2.msra.mxu0 0.0
    %2731 = vmatprep.subr.mxu0 0.0
    %2732 = vmatpush2.msra.mxu0 0.0
    %2733 = vmatprep.subr.mxu0 0.0
    %2734 = vmatpush2.msra.mxu0 0.0
    %2735 = vmatprep.mubr.f32.mxu0 0.0
    %2736 = vmatmul.mubr.f32.gmra.mxu0 %v2669
    %v2737 = vpop.f32.mrf.mxu0
    %v2738 = vadd.f32 %v2650, %v2737
    %v2739 = vpop.f32.mrf.mxu0
    %2740 = vdwg.mxu0
    %2741 = vrot.lane.b32.xlu0 %v512, 112
    %v2742 = vpop.permute.xlu0 %2741
    %2743 = vrot.lane.b32.xlu0 %v512, 80
    %v2744 = vpop.permute.xlu0 %2743
    %v2745 = vsel %vm561, %v2742, 0
    %v2747 = vsel %vm561, %v2744, 0
    %2749 = vmatprep.subr.mxu0 0.0
    %2750 = vmatpush1.xpose.msra.mxu0 0.0
    %2751 = vmatprep.subr.mxu0 0.0
    %2752 = vmatpush1.xpose.msra.mxu0 0.0
    %2753 = vmatprep.subr.mxu0 0.0
    %2754 = vmatpush1.xpose.msra.mxu0 0.0
    %2755 = vmatprep.subr.mxu0 0.0
    %2756 = vmatpush1.xpose.msra.mxu0 0.0
    %2757 = vmatprep.subr.mxu0 0.0
    %2758 = vmatpush1.xpose.msra.mxu0 0.0
    %2759 = vmatprep.subr.mxu0 0.0
    %2760 = vmatpush1.xpose.msra.mxu0 0.0
    %2761 = vmatprep.subr.mxu0 0.0
    %2762 = vmatpush1.xpose.msra.mxu0 0.0
    %2763 = vmatprep.subr.mxu0 0.0
    %2764 = vmatpush1.xpose.msra.mxu0 0.0
    %2765 = vmatprep.subr.mxu0 0.0
    %2766 = vmatpush1.xpose.msra.mxu0 0.0
    %2767 = vmatprep.subr.mxu0 0.0
    %2768 = vmatpush1.xpose.msra.mxu0 0.0
    %2769 = vmatprep.subr.mxu0 0.0
    %2770 = vmatpush1.xpose.msra.mxu0 0.0
    %2771 = vmatprep.subr.mxu0 0.0
    %2772 = vmatpush1.xpose.msra.mxu0 0.0
    %2773 = vmatprep.subr.mxu0 0.0
    %2774 = vmatpush1.xpose.msra.mxu0 0.0
    %2775 = vmatprep.subr.mxu0 0.0
    %2776 = vmatpush1.xpose.msra.mxu0 0.0
    %2777 = vmatprep.subr.mxu0 0.0
    %2778 = vmatpush1.xpose.msra.mxu0 0.0
    %2779 = vmatprep.subr.mxu0 0.0
    %2780 = vmatpush1.xpose.msra.mxu0 %v2747
    %2781 = vmatprep.subr.mxu0 0.0
    %2782 = vmatpush2.xpose.msra.mxu0 0.0
    %2783 = vmatprep.subr.mxu0 0.0
    %2784 = vmatpush2.xpose.msra.mxu0 0.0
    %2785 = vmatprep.subr.mxu0 0.0
    %2786 = vmatpush2.xpose.msra.mxu0 0.0
    %2787 = vmatprep.subr.mxu0 0.0
    %2788 = vmatpush2.xpose.msra.mxu0 0.0
    %2789 = vmatprep.subr.mxu0 0.0
    %2790 = vmatpush2.xpose.msra.mxu0 0.0
    %2791 = vmatprep.subr.mxu0 0.0
    %2792 = vmatpush2.xpose.msra.mxu0 0.0
    %2793 = vmatprep.subr.mxu0 0.0
    %2794 = vmatpush2.xpose.msra.mxu0 0.0
    %2795 = vmatprep.subr.mxu0 0.0
    %2796 = vmatpush2.xpose.msra.mxu0 0.0
    %2797 = vmatprep.subr.mxu0 0.0
    %2798 = vmatpush2.xpose.msra.mxu0 0.0
    %2799 = vmatprep.subr.mxu0 0.0
    %2800 = vmatpush2.xpose.msra.mxu0 0.0
    %2801 = vmatprep.subr.mxu0 0.0
    %2802 = vmatpush2.xpose.msra.mxu0 0.0
    %2803 = vmatprep.subr.mxu0 0.0
    %2804 = vmatpush2.xpose.msra.mxu0 0.0
    %2805 = vmatprep.subr.mxu0 0.0
    %2806 = vmatpush2.xpose.msra.mxu0 0.0
    %2807 = vmatprep.subr.mxu0 0.0
    %2808 = vmatpush2.xpose.msra.mxu0 0.0
    %2809 = vmatprep.subr.mxu0 0.0
    %2810 = vmatpush2.xpose.msra.mxu0 0.0
    %2811 = vmatprep.subr.mxu0 0.0
    %2812 = vmatpush2.xpose.msra.mxu0 0.0
    %2813 = vmatprep.mubr.f32.mxu0 0.0
    %2814 = vmatmul.mubr.f32.gmra.mxu0 %v2745
    %v2815 = vpop.f32.mrf.mxu0
    %v2816 = vadd.f32 0.0, %v2815
    %v2817 = vpop.f32.mrf.mxu0
    %2818 = vdwg.mxu0
    %2819 = vrot.lane.b32.xlu0 %v517, 112
    %v2820 = vpop.permute.xlu0 %2819
    %2821 = vrot.lane.b32.xlu0 %v517, 80
    %v2822 = vpop.permute.xlu0 %2821
    %v2823 = vsel %vm561, %v2820, 0
    %v2825 = vsel %vm561, %v2822, 0
    %2827 = vmatprep.subr.mxu0 0.0
    %2828 = vmatpush1.xpose.msra.mxu0 0.0
    %2829 = vmatprep.subr.mxu0 0.0
    %2830 = vmatpush1.xpose.msra.mxu0 0.0
    %2831 = vmatprep.subr.mxu0 0.0
    %2832 = vmatpush1.xpose.msra.mxu0 0.0
    %2833 = vmatprep.subr.mxu0 0.0
    %2834 = vmatpush1.xpose.msra.mxu0 0.0
    %2835 = vmatprep.subr.mxu0 0.0
    %2836 = vmatpush1.xpose.msra.mxu0 0.0
    %2837 = vmatprep.subr.mxu0 0.0
    %2838 = vmatpush1.xpose.msra.mxu0 0.0
    %2839 = vmatprep.subr.mxu0 0.0
    %2840 = vmatpush1.xpose.msra.mxu0 0.0
    %2841 = vmatprep.subr.mxu0 0.0
    %2842 = vmatpush1.xpose.msra.mxu0 0.0
    %2843 = vmatprep.subr.mxu0 0.0
    %2844 = vmatpush1.xpose.msra.mxu0 0.0
    %2845 = vmatprep.subr.mxu0 0.0
    %2846 = vmatpush1.xpose.msra.mxu0 0.0
    %2847 = vmatprep.subr.mxu0 0.0
    %2848 = vmatpush1.xpose.msra.mxu0 0.0
    %2849 = vmatprep.subr.mxu0 0.0
    %2850 = vmatpush1.xpose.msra.mxu0 0.0
    %2851 = vmatprep.subr.mxu0 0.0
    %2852 = vmatpush1.xpose.msra.mxu0 0.0
    %2853 = vmatprep.subr.mxu0 0.0
    %2854 = vmatpush1.xpose.msra.mxu0 0.0
    %2855 = vmatprep.subr.mxu0 0.0
    %2856 = vmatpush1.xpose.msra.mxu0 0.0
    %2857 = vmatprep.subr.mxu0 0.0
    %2858 = vmatpush1.xpose.msra.mxu0 %v2825
    %2859 = vmatprep.subr.mxu0 0.0
    %2860 = vmatpush2.xpose.msra.mxu0 0.0
    %2861 = vmatprep.subr.mxu0 0.0
    %2862 = vmatpush2.xpose.msra.mxu0 0.0
    %2863 = vmatprep.subr.mxu0 0.0
    %2864 = vmatpush2.xpose.msra.mxu0 0.0
    %2865 = vmatprep.subr.mxu0 0.0
    %2866 = vmatpush2.xpose.msra.mxu0 0.0
    %2867 = vmatprep.subr.mxu0 0.0
    %2868 = vmatpush2.xpose.msra.mxu0 0.0
    %2869 = vmatprep.subr.mxu0 0.0
    %2870 = vmatpush2.xpose.msra.mxu0 0.0
    %2871 = vmatprep.subr.mxu0 0.0
    %2872 = vmatpush2.xpose.msra.mxu0 0.0
    %2873 = vmatprep.subr.mxu0 0.0
    %2874 = vmatpush2.xpose.msra.mxu0 0.0
    %2875 = vmatprep.subr.mxu0 0.0
    %2876 = vmatpush2.xpose.msra.mxu0 0.0
    %2877 = vmatprep.subr.mxu0 0.0
    %2878 = vmatpush2.xpose.msra.mxu0 0.0
    %2879 = vmatprep.subr.mxu0 0.0
    %2880 = vmatpush2.xpose.msra.mxu0 0.0
    %2881 = vmatprep.subr.mxu0 0.0
    %2882 = vmatpush2.xpose.msra.mxu0 0.0
    %2883 = vmatprep.subr.mxu0 0.0
    %2884 = vmatpush2.xpose.msra.mxu0 0.0
    %2885 = vmatprep.subr.mxu0 0.0
    %2886 = vmatpush2.xpose.msra.mxu0 0.0
    %2887 = vmatprep.subr.mxu0 0.0
    %2888 = vmatpush2.xpose.msra.mxu0 0.0
    %2889 = vmatprep.subr.mxu0 0.0
    %2890 = vmatpush2.xpose.msra.mxu0 0.0
    %2891 = vmatprep.mubr.f32.mxu0 0.0
    %2892 = vmatmul.mubr.f32.gmra.mxu0 %v2823
    %v2893 = vpop.f32.mrf.mxu0
    %v2894 = vadd.f32 0.0, %v2893
    %v2895 = vpop.f32.mrf.mxu0
    %2896 = vdwg.mxu0
    %2897 = vrot.lane.b32.xlu0 %v522, 112
    %v2898 = vpop.permute.xlu0 %2897
    %2899 = vrot.lane.b32.xlu0 %v522, 80
    %v2900 = vpop.permute.xlu0 %2899
    %v2901 = vsel %vm561, %v2898, 0
    %v2903 = vsel %vm561, %v2900, 0
    %2905 = vmatprep.subr.mxu0 0.0
    %2906 = vmatpush1.xpose.msra.mxu0 0.0
    %2907 = vmatprep.subr.mxu0 0.0
    %2908 = vmatpush1.xpose.msra.mxu0 0.0
    %2909 = vmatprep.subr.mxu0 0.0
    %2910 = vmatpush1.xpose.msra.mxu0 0.0
    %2911 = vmatprep.subr.mxu0 0.0
    %2912 = vmatpush1.xpose.msra.mxu0 0.0
    %2913 = vmatprep.subr.mxu0 0.0
    %2914 = vmatpush1.xpose.msra.mxu0 0.0
    %2915 = vmatprep.subr.mxu0 0.0
    %2916 = vmatpush1.xpose.msra.mxu0 0.0
    %2917 = vmatprep.subr.mxu0 0.0
    %2918 = vmatpush1.xpose.msra.mxu0 0.0
    %2919 = vmatprep.subr.mxu0 0.0
    %2920 = vmatpush1.xpose.msra.mxu0 0.0
    %2921 = vmatprep.subr.mxu0 0.0
    %2922 = vmatpush1.xpose.msra.mxu0 0.0
    %2923 = vmatprep.subr.mxu0 0.0
    %2924 = vmatpush1.xpose.msra.mxu0 0.0
    %2925 = vmatprep.subr.mxu0 0.0
    %2926 = vmatpush1.xpose.msra.mxu0 0.0
    %2927 = vmatprep.subr.mxu0 0.0
    %2928 = vmatpush1.xpose.msra.mxu0 0.0
    %2929 = vmatprep.subr.mxu0 0.0
    %2930 = vmatpush1.xpose.msra.mxu0 0.0
    %2931 = vmatprep.subr.mxu0 0.0
    %2932 = vmatpush1.xpose.msra.mxu0 0.0
    %2933 = vmatprep.subr.mxu0 0.0
    %2934 = vmatpush1.xpose.msra.mxu0 0.0
    %2935 = vmatprep.subr.mxu0 0.0
    %2936 = vmatpush1.xpose.msra.mxu0 %v2903
    %2937 = vmatprep.subr.mxu0 0.0
    %2938 = vmatpush2.xpose.msra.mxu0 0.0
    %2939 = vmatprep.subr.mxu0 0.0
    %2940 = vmatpush2.xpose.msra.mxu0 0.0
    %2941 = vmatprep.subr.mxu0 0.0
    %2942 = vmatpush2.xpose.msra.mxu0 0.0
    %2943 = vmatprep.subr.mxu0 0.0
    %2944 = vmatpush2.xpose.msra.mxu0 0.0
    %2945 = vmatprep.subr.mxu0 0.0
    %2946 = vmatpush2.xpose.msra.mxu0 0.0
    %2947 = vmatprep.subr.mxu0 0.0
    %2948 = vmatpush2.xpose.msra.mxu0 0.0
    %2949 = vmatprep.subr.mxu0 0.0
    %2950 = vmatpush2.xpose.msra.mxu0 0.0
    %2951 = vmatprep.subr.mxu0 0.0
    %2952 = vmatpush2.xpose.msra.mxu0 0.0
    %2953 = vmatprep.subr.mxu0 0.0
    %2954 = vmatpush2.xpose.msra.mxu0 0.0
    %2955 = vmatprep.subr.mxu0 0.0
    %2956 = vmatpush2.xpose.msra.mxu0 0.0
    %2957 = vmatprep.subr.mxu0 0.0
    %2958 = vmatpush2.xpose.msra.mxu0 0.0
    %2959 = vmatprep.subr.mxu0 0.0
    %2960 = vmatpush2.xpose.msra.mxu0 0.0
    %2961 = vmatprep.subr.mxu0 0.0
    %2962 = vmatpush2.xpose.msra.mxu0 0.0
    %2963 = vmatprep.subr.mxu0 0.0
    %2964 = vmatpush2.xpose.msra.mxu0 0.0
    %2965 = vmatprep.subr.mxu0 0.0
    %2966 = vmatpush2.xpose.msra.mxu0 0.0
    %2967 = vmatprep.subr.mxu0 0.0
    %2968 = vmatpush2.xpose.msra.mxu0 0.0
    %2969 = vmatprep.mubr.f32.mxu0 0.0
    %2970 = vmatmul.mubr.f32.gmra.mxu0 %v2901
    %v2971 = vpop.f32.mrf.mxu0
    %v2972 = vadd.f32 0.0, %v2971
    %v2973 = vpop.f32.mrf.mxu0
    %2974 = vdwg.mxu0
    %2975 = vrot.lane.b32.xlu0 %v527, 112
    %v2976 = vpop.permute.xlu0 %2975
    %2977 = vrot.lane.b32.xlu0 %v527, 80
    %v2978 = vpop.permute.xlu0 %2977
    %v2979 = vsel %vm561, %v2976, 0
    %v2981 = vsel %vm561, %v2978, 0
    %2983 = vmatprep.subr.mxu0 0.0
    %2984 = vmatpush1.xpose.msra.mxu0 0.0
    %2985 = vmatprep.subr.mxu0 0.0
    %2986 = vmatpush1.xpose.msra.mxu0 0.0
    %2987 = vmatprep.subr.mxu0 0.0
    %2988 = vmatpush1.xpose.msra.mxu0 0.0
    %2989 = vmatprep.subr.mxu0 0.0
    %2990 = vmatpush1.xpose.msra.mxu0 0.0
    %2991 = vmatprep.subr.mxu0 0.0
    %2992 = vmatpush1.xpose.msra.mxu0 0.0
    %2993 = vmatprep.subr.mxu0 0.0
    %2994 = vmatpush1.xpose.msra.mxu0 0.0
    %2995 = vmatprep.subr.mxu0 0.0
    %2996 = vmatpush1.xpose.msra.mxu0 0.0
    %2997 = vmatprep.subr.mxu0 0.0
    %2998 = vmatpush1.xpose.msra.mxu0 0.0
    %2999 = vmatprep.subr.mxu0 0.0
    %3000 = vmatpush1.xpose.msra.mxu0 0.0
    %3001 = vmatprep.subr.mxu0 0.0
    %3002 = vmatpush1.xpose.msra.mxu0 0.0
    %3003 = vmatprep.subr.mxu0 0.0
    %3004 = vmatpush1.xpose.msra.mxu0 0.0
    %3005 = vmatprep.subr.mxu0 0.0
    %3006 = vmatpush1.xpose.msra.mxu0 0.0
    %3007 = vmatprep.subr.mxu0 0.0
    %3008 = vmatpush1.xpose.msra.mxu0 0.0
    %3009 = vmatprep.subr.mxu0 0.0
    %3010 = vmatpush1.xpose.msra.mxu0 0.0
    %3011 = vmatprep.subr.mxu0 0.0
    %3012 = vmatpush1.xpose.msra.mxu0 0.0
    %3013 = vmatprep.subr.mxu0 0.0
    %3014 = vmatpush1.xpose.msra.mxu0 %v2981
    %3015 = vmatprep.subr.mxu0 0.0
    %3016 = vmatpush2.xpose.msra.mxu0 0.0
    %3017 = vmatprep.subr.mxu0 0.0
    %3018 = vmatpush2.xpose.msra.mxu0 0.0
    %3019 = vmatprep.subr.mxu0 0.0
    %3020 = vmatpush2.xpose.msra.mxu0 0.0
    %3021 = vmatprep.subr.mxu0 0.0
    %3022 = vmatpush2.xpose.msra.mxu0 0.0
    %3023 = vmatprep.subr.mxu0 0.0
    %3024 = vmatpush2.xpose.msra.mxu0 0.0
    %3025 = vmatprep.subr.mxu0 0.0
    %3026 = vmatpush2.xpose.msra.mxu0 0.0
    %3027 = vmatprep.subr.mxu0 0.0
    %3028 = vmatpush2.xpose.msra.mxu0 0.0
    %3029 = vmatprep.subr.mxu0 0.0
    %3030 = vmatpush2.xpose.msra.mxu0 0.0
    %3031 = vmatprep.subr.mxu0 0.0
    %3032 = vmatpush2.xpose.msra.mxu0 0.0
    %3033 = vmatprep.subr.mxu0 0.0
    %3034 = vmatpush2.xpose.msra.mxu0 0.0
    %3035 = vmatprep.subr.mxu0 0.0
    %3036 = vmatpush2.xpose.msra.mxu0 0.0
    %3037 = vmatprep.subr.mxu0 0.0
    %3038 = vmatpush2.xpose.msra.mxu0 0.0
    %3039 = vmatprep.subr.mxu0 0.0
    %3040 = vmatpush2.xpose.msra.mxu0 0.0
    %3041 = vmatprep.subr.mxu0 0.0
    %3042 = vmatpush2.xpose.msra.mxu0 0.0
    %3043 = vmatprep.subr.mxu0 0.0
    %3044 = vmatpush2.xpose.msra.mxu0 0.0
    %3045 = vmatprep.subr.mxu0 0.0
    %3046 = vmatpush2.xpose.msra.mxu0 0.0
    %3047 = vmatprep.mubr.f32.mxu0 0.0
    %3048 = vmatmul.mubr.f32.gmra.mxu0 %v2979
    %v3049 = vpop.f32.mrf.mxu0
    %v3050 = vadd.f32 0.0, %v3049
    %v3051 = vpop.f32.mrf.mxu0
    %3052 = vdwg.mxu0
    %3053 = vrot.lane.b32.xlu0 %v532, 112
    %v3054 = vpop.permute.xlu0 %3053
    %3055 = vrot.lane.b32.xlu0 %v532, 80
    %v3056 = vpop.permute.xlu0 %3055
    %v3057 = vsel %vm561, %v3054, 0
    %v3059 = vsel %vm561, %v3056, 0
    %3061 = vmatprep.subr.mxu0 0.0
    %3062 = vmatpush1.xpose.msra.mxu0 0.0
    %3063 = vmatprep.subr.mxu0 0.0
    %3064 = vmatpush1.xpose.msra.mxu0 0.0
    %3065 = vmatprep.subr.mxu0 0.0
    %3066 = vmatpush1.xpose.msra.mxu0 0.0
    %3067 = vmatprep.subr.mxu0 0.0
    %3068 = vmatpush1.xpose.msra.mxu0 0.0
    %3069 = vmatprep.subr.mxu0 0.0
    %3070 = vmatpush1.xpose.msra.mxu0 0.0
    %3071 = vmatprep.subr.mxu0 0.0
    %3072 = vmatpush1.xpose.msra.mxu0 0.0
    %3073 = vmatprep.subr.mxu0 0.0
    %3074 = vmatpush1.xpose.msra.mxu0 0.0
    %3075 = vmatprep.subr.mxu0 0.0
    %3076 = vmatpush1.xpose.msra.mxu0 0.0
    %3077 = vmatprep.subr.mxu0 0.0
    %3078 = vmatpush1.xpose.msra.mxu0 0.0
    %3079 = vmatprep.subr.mxu0 0.0
    %3080 = vmatpush1.xpose.msra.mxu0 0.0
    %3081 = vmatprep.subr.mxu0 0.0
    %3082 = vmatpush1.xpose.msra.mxu0 0.0
    %3083 = vmatprep.subr.mxu0 0.0
    %3084 = vmatpush1.xpose.msra.mxu0 0.0
    %3085 = vmatprep.subr.mxu0 0.0
    %3086 = vmatpush1.xpose.msra.mxu0 0.0
    %3087 = vmatprep.subr.mxu0 0.0
    %3088 = vmatpush1.xpose.msra.mxu0 0.0
    %3089 = vmatprep.subr.mxu0 0.0
    %3090 = vmatpush1.xpose.msra.mxu0 0.0
    %3091 = vmatprep.subr.mxu0 0.0
    %3092 = vmatpush1.xpose.msra.mxu0 %v3059
    %3093 = vmatprep.subr.mxu0 0.0
    %3094 = vmatpush2.xpose.msra.mxu0 0.0
    %3095 = vmatprep.subr.mxu0 0.0
    %3096 = vmatpush2.xpose.msra.mxu0 0.0
    %3097 = vmatprep.subr.mxu0 0.0
    %3098 = vmatpush2.xpose.msra.mxu0 0.0
    %3099 = vmatprep.subr.mxu0 0.0
    %3100 = vmatpush2.xpose.msra.mxu0 0.0
    %3101 = vmatprep.subr.mxu0 0.0
    %3102 = vmatpush2.xpose.msra.mxu0 0.0
    %3103 = vmatprep.subr.mxu0 0.0
    %3104 = vmatpush2.xpose.msra.mxu0 0.0
    %3105 = vmatprep.subr.mxu0 0.0
    %3106 = vmatpush2.xpose.msra.mxu0 0.0
    %3107 = vmatprep.subr.mxu0 0.0
    %3108 = vmatpush2.xpose.msra.mxu0 0.0
    %3109 = vmatprep.subr.mxu0 0.0
    %3110 = vmatpush2.xpose.msra.mxu0 0.0
    %3111 = vmatprep.subr.mxu0 0.0
    %3112 = vmatpush2.xpose.msra.mxu0 0.0
    %3113 = vmatprep.subr.mxu0 0.0
    %3114 = vmatpush2.xpose.msra.mxu0 0.0
    %3115 = vmatprep.subr.mxu0 0.0
    %3116 = vmatpush2.xpose.msra.mxu0 0.0
    %3117 = vmatprep.subr.mxu0 0.0
    %3118 = vmatpush2.xpose.msra.mxu0 0.0
    %3119 = vmatprep.subr.mxu0 0.0
    %3120 = vmatpush2.xpose.msra.mxu0 0.0
    %3121 = vmatprep.subr.mxu0 0.0
    %3122 = vmatpush2.xpose.msra.mxu0 0.0
    %3123 = vmatprep.subr.mxu0 0.0
    %3124 = vmatpush2.xpose.msra.mxu0 0.0
    %3125 = vmatprep.mubr.f32.mxu0 0.0
    %3126 = vmatmul.mubr.f32.gmra.mxu0 %v3057
    %v3127 = vpop.f32.mrf.mxu0
    %v3128 = vadd.f32 0.0, %v3127
    %v3129 = vpop.f32.mrf.mxu0
    %3130 = vdwg.mxu0
    %3131 = vrot.lane.b32.xlu0 %v537, 112
    %v3132 = vpop.permute.xlu0 %3131
    %3133 = vrot.lane.b32.xlu0 %v537, 80
    %v3134 = vpop.permute.xlu0 %3133
    %v3135 = vsel %vm561, %v3132, 0
    %v3137 = vsel %vm561, %v3134, 0
    %3139 = vmatprep.subr.mxu0 0.0
    %3140 = vmatpush1.xpose.msra.mxu0 0.0
    %3141 = vmatprep.subr.mxu0 0.0
    %3142 = vmatpush1.xpose.msra.mxu0 0.0
    %3143 = vmatprep.subr.mxu0 0.0
    %3144 = vmatpush1.xpose.msra.mxu0 0.0
    %3145 = vmatprep.subr.mxu0 0.0
    %3146 = vmatpush1.xpose.msra.mxu0 0.0
    %3147 = vmatprep.subr.mxu0 0.0
    %3148 = vmatpush1.xpose.msra.mxu0 0.0
    %3149 = vmatprep.subr.mxu0 0.0
    %3150 = vmatpush1.xpose.msra.mxu0 0.0
    %3151 = vmatprep.subr.mxu0 0.0
    %3152 = vmatpush1.xpose.msra.mxu0 0.0
    %3153 = vmatprep.subr.mxu0 0.0
    %3154 = vmatpush1.xpose.msra.mxu0 0.0
    %3155 = vmatprep.subr.mxu0 0.0
    %3156 = vmatpush1.xpose.msra.mxu0 0.0
    %3157 = vmatprep.subr.mxu0 0.0
    %3158 = vmatpush1.xpose.msra.mxu0 0.0
    %3159 = vmatprep.subr.mxu0 0.0
    %3160 = vmatpush1.xpose.msra.mxu0 0.0
    %3161 = vmatprep.subr.mxu0 0.0
    %3162 = vmatpush1.xpose.msra.mxu0 0.0
    %3163 = vmatprep.subr.mxu0 0.0
    %3164 = vmatpush1.xpose.msra.mxu0 0.0
    %3165 = vmatprep.subr.mxu0 0.0
    %3166 = vmatpush1.xpose.msra.mxu0 0.0
    %3167 = vmatprep.subr.mxu0 0.0
    %3168 = vmatpush1.xpose.msra.mxu0 0.0
    %3169 = vmatprep.subr.mxu0 0.0
    %3170 = vmatpush1.xpose.msra.mxu0 %v3137
    %3171 = vmatprep.subr.mxu0 0.0
    %3172 = vmatpush2.xpose.msra.mxu0 0.0
    %3173 = vmatprep.subr.mxu0 0.0
    %3174 = vmatpush2.xpose.msra.mxu0 0.0
    %3175 = vmatprep.subr.mxu0 0.0
    %3176 = vmatpush2.xpose.msra.mxu0 0.0
    %3177 = vmatprep.subr.mxu0 0.0
    %3178 = vmatpush2.xpose.msra.mxu0 0.0
    %3179 = vmatprep.subr.mxu0 0.0
    %3180 = vmatpush2.xpose.msra.mxu0 0.0
    %3181 = vmatprep.subr.mxu0 0.0
    %3182 = vmatpush2.xpose.msra.mxu0 0.0
    %3183 = vmatprep.subr.mxu0 0.0
    %3184 = vmatpush2.xpose.msra.mxu0 0.0
    %3185 = vmatprep.subr.mxu0 0.0
    %3186 = vmatpush2.xpose.msra.mxu0 0.0
    %3187 = vmatprep.subr.mxu0 0.0
    %3188 = vmatpush2.xpose.msra.mxu0 0.0
    %3189 = vmatprep.subr.mxu0 0.0
    %3190 = vmatpush2.xpose.msra.mxu0 0.0
    %3191 = vmatprep.subr.mxu0 0.0
    %3192 = vmatpush2.xpose.msra.mxu0 0.0
    %3193 = vmatprep.subr.mxu0 0.0
    %3194 = vmatpush2.xpose.msra.mxu0 0.0
    %3195 = vmatprep.subr.mxu0 0.0
    %3196 = vmatpush2.xpose.msra.mxu0 0.0
    %3197 = vmatprep.subr.mxu0 0.0
    %3198 = vmatpush2.xpose.msra.mxu0 0.0
    %3199 = vmatprep.subr.mxu0 0.0
    %3200 = vmatpush2.xpose.msra.mxu0 0.0
    %3201 = vmatprep.subr.mxu0 0.0
    %3202 = vmatpush2.xpose.msra.mxu0 0.0
    %3203 = vmatprep.mubr.f32.mxu0 0.0
    %3204 = vmatmul.mubr.f32.gmra.mxu0 %v3135
    %v3205 = vpop.f32.mrf.mxu0
    %v3206 = vadd.f32 0.0, %v3205
    %v3207 = vpop.f32.mrf.mxu0
    %3208 = vdwg.mxu0
    %v3209 = vmul.f32 %v2816, 0.35355338
    %v3210 = vmul.f32 %v2894, 0.35355338
    %v3211 = vmul.f32 %v2972, 0.35355338
    %v3212 = vmul.f32 %v3050, 0.35355338
    %v3213 = vmul.f32 %v3128, 0.35355338
    %v3214 = vmul.f32 %v3206, 0.35355338
    %v3215 = vadd.f32 %v3209, %v552
    %v3216 = vadd.f32 %v3210, %v553
    %v3217 = vadd.f32 %v3211, %v554
    %v3218 = vadd.f32 %v3212, %v555
    %v3219 = vadd.f32 %v3213, %v556
    %v3220 = vadd.f32 %v3214, %v557
    %v3221 = vsel %vm1033, %v3215, -inf
    %3222 = vmax.xlane.f32.xlu0 %v3221
    %v3223 = vpop.xlane.xlu0 %3222
    %v3224 = vsel %vm1033, %v3216, -inf
    %3225 = vmax.xlane.f32.xlu0 %v3224
    %v3226 = vpop.xlane.xlu0 %3225
    %v3227 = vsel %vm1033, %v3217, -inf
    %3228 = vmax.xlane.f32.xlu0 %v3227
    %v3229 = vpop.xlane.xlu0 %3228
    %v3230 = vsel %vm1033, %v3218, -inf
    %3231 = vmax.xlane.f32.xlu0 %v3230
    %v3232 = vpop.xlane.xlu0 %3231
    %v3233 = vsel %vm1033, %v3219, -inf
    %3234 = vmax.xlane.f32.xlu0 %v3233
    %v3235 = vpop.xlane.xlu0 %3234
    %v3236 = vsel %vm1033, %v3220, -inf
    %3237 = vmax.xlane.f32.xlu0 %v3236
    %v3238 = vpop.xlane.xlu0 %3237
    %v3239 = vsub.f32 %v3215, %v3223
    %v3240 = vsub.f32 %v3216, %v3226
    %v3241 = vsub.f32 %v3217, %v3229
    %v3242 = vsub.f32 %v3218, %v3232
    %v3243 = vsub.f32 %v3219, %v3235
    %v3244 = vsub.f32 %v3220, %v3238
    %v3245 = vmul.f32 %v3239, 1.442695
    %v3246 = vpow.pop %v3245
    %v3247 = vmul.f32 %v3240, 1.442695
    %v3248 = vpow.pop %v3247
    %v3249 = vmul.f32 %v3241, 1.442695
    %v3250 = vpow.pop %v3249
    %v3251 = vmul.f32 %v3242, 1.442695
    %v3252 = vpow.pop %v3251
    %v3253 = vmul.f32 %v3243, 1.442695
    %v3254 = vpow.pop %v3253
    %v3255 = vmul.f32 %v3244, 1.442695
    %v3256 = vpow.pop %v3255
    %v3257 = vsel %vm1033, %v3246, 0.0
    %3258 = vadd.xlane.f32.xlu0 %v3257
    %v3259 = vpop.xlane.xlu0 %3258
    %v3260 = vsel %vm1033, %v3248, 0.0
    %3261 = vadd.xlane.f32.xlu0 %v3260
    %v3262 = vpop.xlane.xlu0 %3261
    %v3263 = vsel %vm1033, %v3250, 0.0
    %3264 = vadd.xlane.f32.xlu0 %v3263
    %v3265 = vpop.xlane.xlu0 %3264
    %v3266 = vsel %vm1033, %v3252, 0.0
    %3267 = vadd.xlane.f32.xlu0 %v3266
    %v3268 = vpop.xlane.xlu0 %3267
    %v3269 = vsel %vm1033, %v3254, 0.0
    %3270 = vadd.xlane.f32.xlu0 %v3269
    %v3271 = vpop.xlane.xlu0 %3270
    %v3272 = vsel %vm1033, %v3256, 0.0
    %3273 = vadd.xlane.f32.xlu0 %v3272
    %v3274 = vpop.xlane.xlu0 %3273
    %v3275 = vrcp.pop %v3259
    %v3276 = vrcp.pop %v3262
    %v3277 = vrcp.pop %v3265
    %v3278 = vrcp.pop %v3268
    %v3279 = vrcp.pop %v3271
    %v3280 = vrcp.pop %v3274
    %v3281 = vmul.f32 %v3246, %v3275
    %v3282 = vmul.f32 %v3248, %v3276
    %v3283 = vmul.f32 %v3250, %v3277
    %v3284 = vmul.f32 %v3252, %v3278
    %v3285 = vmul.f32 %v3254, %v3279
    %v3286 = vmul.f32 %v3256, %v3280
    %3287 = vrot.lane.b32.xlu0 %v512, 48
    %v3288 = vpop.permute.xlu0 %3287
    %v3291 = vsel %vm561, %v3281, 0
    %3293 = vmatprep.subr.mxu0 0.0
    %3294 = vmatpush1.msra.mxu0 0.0
    %3295 = vmatprep.subr.mxu0 0.0
    %3296 = vmatpush1.msra.mxu0 0.0
    %3297 = vmatprep.subr.mxu0 0.0
    %3298 = vmatpush1.msra.mxu0 0.0
    %3299 = vmatprep.subr.mxu0 0.0
    %3300 = vmatpush1.msra.mxu0 0.0
    %3301 = vmatprep.subr.mxu0 0.0
    %3302 = vmatpush1.msra.mxu0 0.0
    %3303 = vmatprep.subr.mxu0 0.0
    %3304 = vmatpush1.msra.mxu0 0.0
    %3305 = vmatprep.subr.mxu0 0.0
    %3306 = vmatpush1.msra.mxu0 0.0
    %3307 = vmatprep.subr.mxu0 0.0
    %3308 = vmatpush1.msra.mxu0 0.0
    %3309 = vmatprep.subr.mxu0 0.0
    %3310 = vmatpush1.msra.mxu0 0.0
    %3311 = vmatprep.subr.mxu0 0.0
    %3312 = vmatpush1.msra.mxu0 0.0
    %3313 = vmatprep.subr.mxu0 0.0
    %3314 = vmatpush1.msra.mxu0 0.0
    %3315 = vmatprep.subr.mxu0 0.0
    %3316 = vmatpush1.msra.mxu0 0.0
    %3317 = vmatprep.subr.mxu0 0.0
    %3318 = vmatpush1.msra.mxu0 0.0
    %3319 = vmatprep.subr.mxu0 0.0
    %3320 = vmatpush1.msra.mxu0 0.0
    %3321 = vmatprep.subr.mxu0 0.0
    %3322 = vmatpush1.msra.mxu0 0.0
    %3323 = vmatprep.subr.mxu0 0.0
    %3324 = vmatpush1.msra.mxu0 %v3288
    %3325 = vmatprep.subr.mxu0 0.0
    %3326 = vmatpush2.msra.mxu0 0.0
    %3327 = vmatprep.subr.mxu0 0.0
    %3328 = vmatpush2.msra.mxu0 0.0
    %3329 = vmatprep.subr.mxu0 0.0
    %3330 = vmatpush2.msra.mxu0 0.0
    %3331 = vmatprep.subr.mxu0 0.0
    %3332 = vmatpush2.msra.mxu0 0.0
    %3333 = vmatprep.subr.mxu0 0.0
    %3334 = vmatpush2.msra.mxu0 0.0
    %3335 = vmatprep.subr.mxu0 0.0
    %3336 = vmatpush2.msra.mxu0 0.0
    %3337 = vmatprep.subr.mxu0 0.0
    %3338 = vmatpush2.msra.mxu0 0.0
    %3339 = vmatprep.subr.mxu0 0.0
    %3340 = vmatpush2.msra.mxu0 0.0
    %3341 = vmatprep.subr.mxu0 0.0
    %3342 = vmatpush2.msra.mxu0 0.0
    %3343 = vmatprep.subr.mxu0 0.0
    %3344 = vmatpush2.msra.mxu0 0.0
    %3345 = vmatprep.subr.mxu0 0.0
    %3346 = vmatpush2.msra.mxu0 0.0
    %3347 = vmatprep.subr.mxu0 0.0
    %3348 = vmatpush2.msra.mxu0 0.0
    %3349 = vmatprep.subr.mxu0 0.0
    %3350 = vmatpush2.msra.mxu0 0.0
    %3351 = vmatprep.subr.mxu0 0.0
    %3352 = vmatpush2.msra.mxu0 0.0
    %3353 = vmatprep.subr.mxu0 0.0
    %3354 = vmatpush2.msra.mxu0 0.0
    %3355 = vmatprep.subr.mxu0 0.0
    %3356 = vmatpush2.msra.mxu0 0.0
    %3357 = vmatprep.mubr.f32.mxu0 0.0
    %3358 = vmatmul.mubr.f32.gmra.mxu0 %v3291
    %v3359 = vpop.f32.mrf.mxu0
    %v3360 = vadd.f32 0.0, %v3359
    %v3361 = vpop.f32.mrf.mxu0
    %3362 = vdwg.mxu0
    %3363 = vrot.lane.b32.xlu0 %v517, 48
    %v3364 = vpop.permute.xlu0 %3363
    %v3367 = vsel %vm561, %v3282, 0
    %3369 = vmatprep.subr.mxu0 0.0
    %3370 = vmatpush1.msra.mxu0 0.0
    %3371 = vmatprep.subr.mxu0 0.0
    %3372 = vmatpush1.msra.mxu0 0.0
    %3373 = vmatprep.subr.mxu0 0.0
    %3374 = vmatpush1.msra.mxu0 0.0
    %3375 = vmatprep.subr.mxu0 0.0
    %3376 = vmatpush1.msra.mxu0 0.0
    %3377 = vmatprep.subr.mxu0 0.0
    %3378 = vmatpush1.msra.mxu0 0.0
    %3379 = vmatprep.subr.mxu0 0.0
    %3380 = vmatpush1.msra.mxu0 0.0
    %3381 = vmatprep.subr.mxu0 0.0
    %3382 = vmatpush1.msra.mxu0 0.0
    %3383 = vmatprep.subr.mxu0 0.0
    %3384 = vmatpush1.msra.mxu0 0.0
    %3385 = vmatprep.subr.mxu0 0.0
    %3386 = vmatpush1.msra.mxu0 0.0
    %3387 = vmatprep.subr.mxu0 0.0
    %3388 = vmatpush1.msra.mxu0 0.0
    %3389 = vmatprep.subr.mxu0 0.0
    %3390 = vmatpush1.msra.mxu0 0.0
    %3391 = vmatprep.subr.mxu0 0.0
    %3392 = vmatpush1.msra.mxu0 0.0
    %3393 = vmatprep.subr.mxu0 0.0
    %3394 = vmatpush1.msra.mxu0 0.0
    %3395 = vmatprep.subr.mxu0 0.0
    %3396 = vmatpush1.msra.mxu0 0.0
    %3397 = vmatprep.subr.mxu0 0.0
    %3398 = vmatpush1.msra.mxu0 0.0
    %3399 = vmatprep.subr.mxu0 0.0
    %3400 = vmatpush1.msra.mxu0 %v3364
    %3401 = vmatprep.subr.mxu0 0.0
    %3402 = vmatpush2.msra.mxu0 0.0
    %3403 = vmatprep.subr.mxu0 0.0
    %3404 = vmatpush2.msra.mxu0 0.0
    %3405 = vmatprep.subr.mxu0 0.0
    %3406 = vmatpush2.msra.mxu0 0.0
    %3407 = vmatprep.subr.mxu0 0.0
    %3408 = vmatpush2.msra.mxu0 0.0
    %3409 = vmatprep.subr.mxu0 0.0
    %3410 = vmatpush2.msra.mxu0 0.0
    %3411 = vmatprep.subr.mxu0 0.0
    %3412 = vmatpush2.msra.mxu0 0.0
    %3413 = vmatprep.subr.mxu0 0.0
    %3414 = vmatpush2.msra.mxu0 0.0
    %3415 = vmatprep.subr.mxu0 0.0
    %3416 = vmatpush2.msra.mxu0 0.0
    %3417 = vmatprep.subr.mxu0 0.0
    %3418 = vmatpush2.msra.mxu0 0.0
    %3419 = vmatprep.subr.mxu0 0.0
    %3420 = vmatpush2.msra.mxu0 0.0
    %3421 = vmatprep.subr.mxu0 0.0
    %3422 = vmatpush2.msra.mxu0 0.0
    %3423 = vmatprep.subr.mxu0 0.0
    %3424 = vmatpush2.msra.mxu0 0.0
    %3425 = vmatprep.subr.mxu0 0.0
    %3426 = vmatpush2.msra.mxu0 0.0
    %3427 = vmatprep.subr.mxu0 0.0
    %3428 = vmatpush2.msra.mxu0 0.0
    %3429 = vmatprep.subr.mxu0 0.0
    %3430 = vmatpush2.msra.mxu0 0.0
    %3431 = vmatprep.subr.mxu0 0.0
    %3432 = vmatpush2.msra.mxu0 0.0
    %3433 = vmatprep.mubr.f32.mxu0 0.0
    %3434 = vmatmul.mubr.f32.gmra.mxu0 %v3367
    %v3435 = vpop.f32.mrf.mxu0
    %v3436 = vadd.f32 0.0, %v3435
    %v3437 = vpop.f32.mrf.mxu0
    %3438 = vdwg.mxu0
    %3439 = vrot.lane.b32.xlu0 %v522, 48
    %v3440 = vpop.permute.xlu0 %3439
    %v3443 = vsel %vm561, %v3283, 0
    %3445 = vmatprep.subr.mxu0 0.0
    %3446 = vmatpush1.msra.mxu0 0.0
    %3447 = vmatprep.subr.mxu0 0.0
    %3448 = vmatpush1.msra.mxu0 0.0
    %3449 = vmatprep.subr.mxu0 0.0
    %3450 = vmatpush1.msra.mxu0 0.0
    %3451 = vmatprep.subr.mxu0 0.0
    %3452 = vmatpush1.msra.mxu0 0.0
    %3453 = vmatprep.subr.mxu0 0.0
    %3454 = vmatpush1.msra.mxu0 0.0
    %3455 = vmatprep.subr.mxu0 0.0
    %3456 = vmatpush1.msra.mxu0 0.0
    %3457 = vmatprep.subr.mxu0 0.0
    %3458 = vmatpush1.msra.mxu0 0.0
    %3459 = vmatprep.subr.mxu0 0.0
    %3460 = vmatpush1.msra.mxu0 0.0
    %3461 = vmatprep.subr.mxu0 0.0
    %3462 = vmatpush1.msra.mxu0 0.0
    %3463 = vmatprep.subr.mxu0 0.0
    %3464 = vmatpush1.msra.mxu0 0.0
    %3465 = vmatprep.subr.mxu0 0.0
    %3466 = vmatpush1.msra.mxu0 0.0
    %3467 = vmatprep.subr.mxu0 0.0
    %3468 = vmatpush1.msra.mxu0 0.0
    %3469 = vmatprep.subr.mxu0 0.0
    %3470 = vmatpush1.msra.mxu0 0.0
    %3471 = vmatprep.subr.mxu0 0.0
    %3472 = vmatpush1.msra.mxu0 0.0
    %3473 = vmatprep.subr.mxu0 0.0
    %3474 = vmatpush1.msra.mxu0 0.0
    %3475 = vmatprep.subr.mxu0 0.0
    %3476 = vmatpush1.msra.mxu0 %v3440
    %3477 = vmatprep.subr.mxu0 0.0
    %3478 = vmatpush2.msra.mxu0 0.0
    %3479 = vmatprep.subr.mxu0 0.0
    %3480 = vmatpush2.msra.mxu0 0.0
    %3481 = vmatprep.subr.mxu0 0.0
    %3482 = vmatpush2.msra.mxu0 0.0
    %3483 = vmatprep.subr.mxu0 0.0
    %3484 = vmatpush2.msra.mxu0 0.0
    %3485 = vmatprep.subr.mxu0 0.0
    %3486 = vmatpush2.msra.mxu0 0.0
    %3487 = vmatprep.subr.mxu0 0.0
    %3488 = vmatpush2.msra.mxu0 0.0
    %3489 = vmatprep.subr.mxu0 0.0
    %3490 = vmatpush2.msra.mxu0 0.0
    %3491 = vmatprep.subr.mxu0 0.0
    %3492 = vmatpush2.msra.mxu0 0.0
    %3493 = vmatprep.subr.mxu0 0.0
    %3494 = vmatpush2.msra.mxu0 0.0
    %3495 = vmatprep.subr.mxu0 0.0
    %3496 = vmatpush2.msra.mxu0 0.0
    %3497 = vmatprep.subr.mxu0 0.0
    %3498 = vmatpush2.msra.mxu0 0.0
    %3499 = vmatprep.subr.mxu0 0.0
    %3500 = vmatpush2.msra.mxu0 0.0
    %3501 = vmatprep.subr.mxu0 0.0
    %3502 = vmatpush2.msra.mxu0 0.0
    %3503 = vmatprep.subr.mxu0 0.0
    %3504 = vmatpush2.msra.mxu0 0.0
    %3505 = vmatprep.subr.mxu0 0.0
    %3506 = vmatpush2.msra.mxu0 0.0
    %3507 = vmatprep.subr.mxu0 0.0
    %3508 = vmatpush2.msra.mxu0 0.0
    %3509 = vmatprep.mubr.f32.mxu0 0.0
    %3510 = vmatmul.mubr.f32.gmra.mxu0 %v3443
    %v3511 = vpop.f32.mrf.mxu0
    %v3512 = vadd.f32 0.0, %v3511
    %v3513 = vpop.f32.mrf.mxu0
    %3514 = vdwg.mxu0
    %3515 = vrot.lane.b32.xlu0 %v527, 48
    %v3516 = vpop.permute.xlu0 %3515
    %v3519 = vsel %vm561, %v3284, 0
    %3521 = vmatprep.subr.mxu0 0.0
    %3522 = vmatpush1.msra.mxu0 0.0
    %3523 = vmatprep.subr.mxu0 0.0
    %3524 = vmatpush1.msra.mxu0 0.0
    %3525 = vmatprep.subr.mxu0 0.0
    %3526 = vmatpush1.msra.mxu0 0.0
    %3527 = vmatprep.subr.mxu0 0.0
    %3528 = vmatpush1.msra.mxu0 0.0
    %3529 = vmatprep.subr.mxu0 0.0
    %3530 = vmatpush1.msra.mxu0 0.0
    %3531 = vmatprep.subr.mxu0 0.0
    %3532 = vmatpush1.msra.mxu0 0.0
    %3533 = vmatprep.subr.mxu0 0.0
    %3534 = vmatpush1.msra.mxu0 0.0
    %3535 = vmatprep.subr.mxu0 0.0
    %3536 = vmatpush1.msra.mxu0 0.0
    %3537 = vmatprep.subr.mxu0 0.0
    %3538 = vmatpush1.msra.mxu0 0.0
    %3539 = vmatprep.subr.mxu0 0.0
    %3540 = vmatpush1.msra.mxu0 0.0
    %3541 = vmatprep.subr.mxu0 0.0
    %3542 = vmatpush1.msra.mxu0 0.0
    %3543 = vmatprep.subr.mxu0 0.0
    %3544 = vmatpush1.msra.mxu0 0.0
    %3545 = vmatprep.subr.mxu0 0.0
    %3546 = vmatpush1.msra.mxu0 0.0
    %3547 = vmatprep.subr.mxu0 0.0
    %3548 = vmatpush1.msra.mxu0 0.0
    %3549 = vmatprep.subr.mxu0 0.0
    %3550 = vmatpush1.msra.mxu0 0.0
    %3551 = vmatprep.subr.mxu0 0.0
    %3552 = vmatpush1.msra.mxu0 %v3516
    %3553 = vmatprep.subr.mxu0 0.0
    %3554 = vmatpush2.msra.mxu0 0.0
    %3555 = vmatprep.subr.mxu0 0.0
    %3556 = vmatpush2.msra.mxu0 0.0
    %3557 = vmatprep.subr.mxu0 0.0
    %3558 = vmatpush2.msra.mxu0 0.0
    %3559 = vmatprep.subr.mxu0 0.0
    %3560 = vmatpush2.msra.mxu0 0.0
    %3561 = vmatprep.subr.mxu0 0.0
    %3562 = vmatpush2.msra.mxu0 0.0
    %3563 = vmatprep.subr.mxu0 0.0
    %3564 = vmatpush2.msra.mxu0 0.0
    %3565 = vmatprep.subr.mxu0 0.0
    %3566 = vmatpush2.msra.mxu0 0.0
    %3567 = vmatprep.subr.mxu0 0.0
    %3568 = vmatpush2.msra.mxu0 0.0
    %3569 = vmatprep.subr.mxu0 0.0
    %3570 = vmatpush2.msra.mxu0 0.0
    %3571 = vmatprep.subr.mxu0 0.0
    %3572 = vmatpush2.msra.mxu0 0.0
    %3573 = vmatprep.subr.mxu0 0.0
    %3574 = vmatpush2.msra.mxu0 0.0
    %3575 = vmatprep.subr.mxu0 0.0
    %3576 = vmatpush2.msra.mxu0 0.0
    %3577 = vmatprep.subr.mxu0 0.0
    %3578 = vmatpush2.msra.mxu0 0.0
    %3579 = vmatprep.subr.mxu0 0.0
    %3580 = vmatpush2.msra.mxu0 0.0
    %3581 = vmatprep.subr.mxu0 0.0
    %3582 = vmatpush2.msra.mxu0 0.0
    %3583 = vmatprep.subr.mxu0 0.0
    %3584 = vmatpush2.msra.mxu0 0.0
    %3585 = vmatprep.mubr.f32.mxu0 0.0
    %3586 = vmatmul.mubr.f32.gmra.mxu0 %v3519
    %v3587 = vpop.f32.mrf.mxu0
    %v3588 = vadd.f32 0.0, %v3587
    %v3589 = vpop.f32.mrf.mxu0
    %3590 = vdwg.mxu0
    %3591 = vrot.lane.b32.xlu0 %v532, 48
    %v3592 = vpop.permute.xlu0 %3591
    %v3595 = vsel %vm561, %v3285, 0
    %3597 = vmatprep.subr.mxu0 0.0
    %3598 = vmatpush1.msra.mxu0 0.0
    %3599 = vmatprep.subr.mxu0 0.0
    %3600 = vmatpush1.msra.mxu0 0.0
    %3601 = vmatprep.subr.mxu0 0.0
    %3602 = vmatpush1.msra.mxu0 0.0
    %3603 = vmatprep.subr.mxu0 0.0
    %3604 = vmatpush1.msra.mxu0 0.0
    %3605 = vmatprep.subr.mxu0 0.0
    %3606 = vmatpush1.msra.mxu0 0.0
    %3607 = vmatprep.subr.mxu0 0.0
    %3608 = vmatpush1.msra.mxu0 0.0
    %3609 = vmatprep.subr.mxu0 0.0
    %3610 = vmatpush1.msra.mxu0 0.0
    %3611 = vmatprep.subr.mxu0 0.0
    %3612 = vmatpush1.msra.mxu0 0.0
    %3613 = vmatprep.subr.mxu0 0.0
    %3614 = vmatpush1.msra.mxu0 0.0
    %3615 = vmatprep.subr.mxu0 0.0
    %3616 = vmatpush1.msra.mxu0 0.0
    %3617 = vmatprep.subr.mxu0 0.0
    %3618 = vmatpush1.msra.mxu0 0.0
    %3619 = vmatprep.subr.mxu0 0.0
    %3620 = vmatpush1.msra.mxu0 0.0
    %3621 = vmatprep.subr.mxu0 0.0
    %3622 = vmatpush1.msra.mxu0 0.0
    %3623 = vmatprep.subr.mxu0 0.0
    %3624 = vmatpush1.msra.mxu0 0.0
    %3625 = vmatprep.subr.mxu0 0.0
    %3626 = vmatpush1.msra.mxu0 0.0
    %3627 = vmatprep.subr.mxu0 0.0
    %3628 = vmatpush1.msra.mxu0 %v3592
    %3629 = vmatprep.subr.mxu0 0.0
    %3630 = vmatpush2.msra.mxu0 0.0
    %3631 = vmatprep.subr.mxu0 0.0
    %3632 = vmatpush2.msra.mxu0 0.0
    %3633 = vmatprep.subr.mxu0 0.0
    %3634 = vmatpush2.msra.mxu0 0.0
    %3635 = vmatprep.subr.mxu0 0.0
    %3636 = vmatpush2.msra.mxu0 0.0
    %3637 = vmatprep.subr.mxu0 0.0
    %3638 = vmatpush2.msra.mxu0 0.0
    %3639 = vmatprep.subr.mxu0 0.0
    %3640 = vmatpush2.msra.mxu0 0.0
    %3641 = vmatprep.subr.mxu0 0.0
    %3642 = vmatpush2.msra.mxu0 0.0
    %3643 = vmatprep.subr.mxu0 0.0
    %3644 = vmatpush2.msra.mxu0 0.0
    %3645 = vmatprep.subr.mxu0 0.0
    %3646 = vmatpush2.msra.mxu0 0.0
    %3647 = vmatprep.subr.mxu0 0.0
    %3648 = vmatpush2.msra.mxu0 0.0
    %3649 = vmatprep.subr.mxu0 0.0
    %3650 = vmatpush2.msra.mxu0 0.0
    %3651 = vmatprep.subr.mxu0 0.0
    %3652 = vmatpush2.msra.mxu0 0.0
    %3653 = vmatprep.subr.mxu0 0.0
    %3654 = vmatpush2.msra.mxu0 0.0
    %3655 = vmatprep.subr.mxu0 0.0
    %3656 = vmatpush2.msra.mxu0 0.0
    %3657 = vmatprep.subr.mxu0 0.0
    %3658 = vmatpush2.msra.mxu0 0.0
    %3659 = vmatprep.subr.mxu0 0.0
    %3660 = vmatpush2.msra.mxu0 0.0
    %3661 = vmatprep.mubr.f32.mxu0 0.0
    %3662 = vmatmul.mubr.f32.gmra.mxu0 %v3595
    %v3663 = vpop.f32.mrf.mxu0
    %v3664 = vadd.f32 0.0, %v3663
    %v3665 = vpop.f32.mrf.mxu0
    %3666 = vdwg.mxu0
    %3667 = vrot.lane.b32.xlu0 %v537, 48
    %v3668 = vpop.permute.xlu0 %3667
    %v3671 = vsel %vm561, %v3286, 0
    %3673 = vmatprep.subr.mxu0 0.0
    %3674 = vmatpush1.msra.mxu0 0.0
    %3675 = vmatprep.subr.mxu0 0.0
    %3676 = vmatpush1.msra.mxu0 0.0
    %3677 = vmatprep.subr.mxu0 0.0
    %3678 = vmatpush1.msra.mxu0 0.0
    %3679 = vmatprep.subr.mxu0 0.0
    %3680 = vmatpush1.msra.mxu0 0.0
    %3681 = vmatprep.subr.mxu0 0.0
    %3682 = vmatpush1.msra.mxu0 0.0
    %3683 = vmatprep.subr.mxu0 0.0
    %3684 = vmatpush1.msra.mxu0 0.0
    %3685 = vmatprep.subr.mxu0 0.0
    %3686 = vmatpush1.msra.mxu0 0.0
    %3687 = vmatprep.subr.mxu0 0.0
    %3688 = vmatpush1.msra.mxu0 0.0
    %3689 = vmatprep.subr.mxu0 0.0
    %3690 = vmatpush1.msra.mxu0 0.0
    %3691 = vmatprep.subr.mxu0 0.0
    %3692 = vmatpush1.msra.mxu0 0.0
    %3693 = vmatprep.subr.mxu0 0.0
    %3694 = vmatpush1.msra.mxu0 0.0
    %3695 = vmatprep.subr.mxu0 0.0
    %3696 = vmatpush1.msra.mxu0 0.0
    %3697 = vmatprep.subr.mxu0 0.0
    %3698 = vmatpush1.msra.mxu0 0.0
    %3699 = vmatprep.subr.mxu0 0.0
    %3700 = vmatpush1.msra.mxu0 0.0
    %3701 = vmatprep.subr.mxu0 0.0
    %3702 = vmatpush1.msra.mxu0 0.0
    %3703 = vmatprep.subr.mxu0 0.0
    %3704 = vmatpush1.msra.mxu0 %v3668
    %3705 = vmatprep.subr.mxu0 0.0
    %3706 = vmatpush2.msra.mxu0 0.0
    %3707 = vmatprep.subr.mxu0 0.0
    %3708 = vmatpush2.msra.mxu0 0.0
    %3709 = vmatprep.subr.mxu0 0.0
    %3710 = vmatpush2.msra.mxu0 0.0
    %3711 = vmatprep.subr.mxu0 0.0
    %3712 = vmatpush2.msra.mxu0 0.0
    %3713 = vmatprep.subr.mxu0 0.0
    %3714 = vmatpush2.msra.mxu0 0.0
    %3715 = vmatprep.subr.mxu0 0.0
    %3716 = vmatpush2.msra.mxu0 0.0
    %3717 = vmatprep.subr.mxu0 0.0
    %3718 = vmatpush2.msra.mxu0 0.0
    %3719 = vmatprep.subr.mxu0 0.0
    %3720 = vmatpush2.msra.mxu0 0.0
    %3721 = vmatprep.subr.mxu0 0.0
    %3722 = vmatpush2.msra.mxu0 0.0
    %3723 = vmatprep.subr.mxu0 0.0
    %3724 = vmatpush2.msra.mxu0 0.0
    %3725 = vmatprep.subr.mxu0 0.0
    %3726 = vmatpush2.msra.mxu0 0.0
    %3727 = vmatprep.subr.mxu0 0.0
    %3728 = vmatpush2.msra.mxu0 0.0
    %3729 = vmatprep.subr.mxu0 0.0
    %3730 = vmatpush2.msra.mxu0 0.0
    %3731 = vmatprep.subr.mxu0 0.0
    %3732 = vmatpush2.msra.mxu0 0.0
    %3733 = vmatprep.subr.mxu0 0.0
    %3734 = vmatpush2.msra.mxu0 0.0
    %3735 = vmatprep.subr.mxu0 0.0
    %3736 = vmatpush2.msra.mxu0 0.0
    %3737 = vmatprep.mubr.f32.mxu0 0.0
    %3738 = vmatmul.mubr.f32.gmra.mxu0 %v3671
    %v3739 = vpop.f32.mrf.mxu0
    %v3740 = vadd.f32 0.0, %v3739
    %v3741 = vpop.f32.mrf.mxu0
    %3742 = vdwg.mxu0
    %v3743 = vld [vmem:[%s8 + $0x10] sm:$0xff]
    %v3750 = vrot.slane %v3436, 7
    %v3751 = vsel %vm2567, %v3750, %v3360
    %v3752 = vrot.slane %v3512, 6
    %v3753 = vsel %vm2570, %v3752, %v3751
    %v3754 = vrot.slane %v3588, 5
    %v3755 = vsel %vm2573, %v3754, %v3753
    %v3756 = vrot.slane %v3664, 4
    %v3757 = vsel %vm2576, %v3756, %v3755
    %v3758 = vrot.slane %v3740, 3
    %v3759 = vsel %vm2579, %v3758, %v3757
    %v3760 = vsel %vm561, %v3759, 0
    %3762 = vmatprep.subr.mxu0 0.0
    %3763 = vmatpush1.msra.mxu0 0.0
    %3764 = vmatprep.subr.mxu0 0.0
    %3765 = vmatpush1.msra.mxu0 0.0
    %3766 = vmatprep.subr.mxu0 0.0
    %3767 = vmatpush1.msra.mxu0 0.0
    %3768 = vmatprep.subr.mxu0 0.0
    %3769 = vmatpush1.msra.mxu0 0.0
    %3770 = vmatprep.subr.mxu0 0.0
    %3771 = vmatpush1.msra.mxu0 0.0
    %3772 = vmatprep.subr.mxu0 0.0
    %3773 = vmatpush1.msra.mxu0 0.0
    %3774 = vmatprep.subr.mxu0 0.0
    %3775 = vmatpush1.msra.mxu0 0.0
    %3776 = vmatprep.subr.mxu0 0.0
    %3777 = vmatpush1.msra.mxu0 0.0
    %3778 = vmatprep.subr.mxu0 0.0
    %3779 = vmatpush1.msra.mxu0 0.0
    %3780 = vmatprep.subr.mxu0 0.0
    %3781 = vmatpush1.msra.mxu0 0.0
    %3782 = vmatprep.subr.mxu0 0.0
    %3783 = vmatpush1.msra.mxu0 0.0
    %3784 = vmatprep.subr.mxu0 0.0
    %3785 = vmatpush1.msra.mxu0 0.0
    %3786 = vmatprep.subr.mxu0 0.0
    %3787 = vmatpush1.msra.mxu0 0.0
    %3788 = vmatprep.subr.mxu0 0.0
    %3789 = vmatpush1.msra.mxu0 0.0
    %3790 = vmatprep.subr.mxu0 0.0
    %3791 = vmatpush1.msra.mxu0 0.0
    %3792 = vmatprep.subr.mxu0 0.0
    %3793 = vmatpush1.msra.mxu0 %v3743
    %3794 = vmatprep.subr.mxu0 0.0
    %3795 = vmatpush2.msra.mxu0 0.0
    %3796 = vmatprep.subr.mxu0 0.0
    %3797 = vmatpush2.msra.mxu0 0.0
    %3798 = vmatprep.subr.mxu0 0.0
    %3799 = vmatpush2.msra.mxu0 0.0
    %3800 = vmatprep.subr.mxu0 0.0
    %3801 = vmatpush2.msra.mxu0 0.0
    %3802 = vmatprep.subr.mxu0 0.0
    %3803 = vmatpush2.msra.mxu0 0.0
    %3804 = vmatprep.subr.mxu0 0.0
    %3805 = vmatpush2.msra.mxu0 0.0
    %3806 = vmatprep.subr.mxu0 0.0
    %3807 = vmatpush2.msra.mxu0 0.0
    %3808 = vmatprep.subr.mxu0 0.0
    %3809 = vmatpush2.msra.mxu0 0.0
    %3810 = vmatprep.subr.mxu0 0.0
    %3811 = vmatpush2.msra.mxu0 0.0
    %3812 = vmatprep.subr.mxu0 0.0
    %3813 = vmatpush2.msra.mxu0 0.0
    %3814 = vmatprep.subr.mxu0 0.0
    %3815 = vmatpush2.msra.mxu0 0.0
    %3816 = vmatprep.subr.mxu0 0.0
    %3817 = vmatpush2.msra.mxu0 0.0
    %3818 = vmatprep.subr.mxu0 0.0
    %3819 = vmatpush2.msra.mxu0 0.0
    %3820 = vmatprep.subr.mxu0 0.0
    %3821 = vmatpush2.msra.mxu0 0.0
    %3822 = vmatprep.subr.mxu0 0.0
    %3823 = vmatpush2.msra.mxu0 0.0
    %3824 = vmatprep.subr.mxu0 0.0
    %3825 = vmatpush2.msra.mxu0 0.0
    %3826 = vmatprep.mubr.f32.mxu0 0.0
    %3827 = vmatmul.mubr.f32.gmra.mxu0 %v3760
    %v3828 = vpop.f32.mrf.mxu0
    %v3829 = vadd.f32 0.0, %v3828
    %v3830 = vpop.f32.mrf.mxu0
    %3831 = vdwg.mxu0
    %v3832 = vadd.f32 %v2738, %v3829
    %3833 = vrot.lane.b32.xlu0 %v512, 104
    %v3834 = vpop.permute.xlu0 %3833
    %3835 = vrot.lane.b32.xlu0 %v512, 72
    %v3836 = vpop.permute.xlu0 %3835
    %v3837 = vsel %vm561, %v3834, 0
    %v3839 = vsel %vm561, %v3836, 0
    %3841 = vmatprep.subr.mxu0 0.0
    %3842 = vmatpush1.xpose.msra.mxu0 0.0
    %3843 = vmatprep.subr.mxu0 0.0
    %3844 = vmatpush1.xpose.msra.mxu0 0.0
    %3845 = vmatprep.subr.mxu0 0.0
    %3846 = vmatpush1.xpose.msra.mxu0 0.0
    %3847 = vmatprep.subr.mxu0 0.0
    %3848 = vmatpush1.xpose.msra.mxu0 0.0
    %3849 = vmatprep.subr.mxu0 0.0
    %3850 = vmatpush1.xpose.msra.mxu0 0.0
    %3851 = vmatprep.subr.mxu0 0.0
    %3852 = vmatpush1.xpose.msra.mxu0 0.0
    %3853 = vmatprep.subr.mxu0 0.0
    %3854 = vmatpush1.xpose.msra.mxu0 0.0
    %3855 = vmatprep.subr.mxu0 0.0
    %3856 = vmatpush1.xpose.msra.mxu0 0.0
    %3857 = vmatprep.subr.mxu0 0.0
    %3858 = vmatpush1.xpose.msra.mxu0 0.0
    %3859 = vmatprep.subr.mxu0 0.0
    %3860 = vmatpush1.xpose.msra.mxu0 0.0
    %3861 = vmatprep.subr.mxu0 0.0
    %3862 = vmatpush1.xpose.msra.mxu0 0.0
    %3863 = vmatprep.subr.mxu0 0.0
    %3864 = vmatpush1.xpose.msra.mxu0 0.0
    %3865 = vmatprep.subr.mxu0 0.0
    %3866 = vmatpush1.xpose.msra.mxu0 0.0
    %3867 = vmatprep.subr.mxu0 0.0
    %3868 = vmatpush1.xpose.msra.mxu0 0.0
    %3869 = vmatprep.subr.mxu0 0.0
    %3870 = vmatpush1.xpose.msra.mxu0 0.0
    %3871 = vmatprep.subr.mxu0 0.0
    %3872 = vmatpush1.xpose.msra.mxu0 %v3839
    %3873 = vmatprep.subr.mxu0 0.0
    %3874 = vmatpush2.xpose.msra.mxu0 0.0
    %3875 = vmatprep.subr.mxu0 0.0
    %3876 = vmatpush2.xpose.msra.mxu0 0.0
    %3877 = vmatprep.subr.mxu0 0.0
    %3878 = vmatpush2.xpose.msra.mxu0 0.0
    %3879 = vmatprep.subr.mxu0 0.0
    %3880 = vmatpush2.xpose.msra.mxu0 0.0
    %3881 = vmatprep.subr.mxu0 0.0
    %3882 = vmatpush2.xpose.msra.mxu0 0.0
    %3883 = vmatprep.subr.mxu0 0.0
    %3884 = vmatpush2.xpose.msra.mxu0 0.0
    %3885 = vmatprep.subr.mxu0 0.0
    %3886 = vmatpush2.xpose.msra.mxu0 0.0
    %3887 = vmatprep.subr.mxu0 0.0
    %3888 = vmatpush2.xpose.msra.mxu0 0.0
    %3889 = vmatprep.subr.mxu0 0.0
    %3890 = vmatpush2.xpose.msra.mxu0 0.0
    %3891 = vmatprep.subr.mxu0 0.0
    %3892 = vmatpush2.xpose.msra.mxu0 0.0
    %3893 = vmatprep.subr.mxu0 0.0
    %3894 = vmatpush2.xpose.msra.mxu0 0.0
    %3895 = vmatprep.subr.mxu0 0.0
    %3896 = vmatpush2.xpose.msra.mxu0 0.0
    %3897 = vmatprep.subr.mxu0 0.0
    %3898 = vmatpush2.xpose.msra.mxu0 0.0
    %3899 = vmatprep.subr.mxu0 0.0
    %3900 = vmatpush2.xpose.msra.mxu0 0.0
    %3901 = vmatprep.subr.mxu0 0.0
    %3902 = vmatpush2.xpose.msra.mxu0 0.0
    %3903 = vmatprep.subr.mxu0 0.0
    %3904 = vmatpush2.xpose.msra.mxu0 0.0
    %3905 = vmatprep.mubr.f32.mxu0 0.0
    %3906 = vmatmul.mubr.f32.gmra.mxu0 %v3837
    %v3907 = vpop.f32.mrf.mxu0
    %v3908 = vadd.f32 0.0, %v3907
    %v3909 = vpop.f32.mrf.mxu0
    %3910 = vdwg.mxu0
    %3911 = vrot.lane.b32.xlu0 %v517, 104
    %v3912 = vpop.permute.xlu0 %3911
    %3913 = vrot.lane.b32.xlu0 %v517, 72
    %v3914 = vpop.permute.xlu0 %3913
    %v3915 = vsel %vm561, %v3912, 0
    %v3917 = vsel %vm561, %v3914, 0
    %3919 = vmatprep.subr.mxu0 0.0
    %3920 = vmatpush1.xpose.msra.mxu0 0.0
    %3921 = vmatprep.subr.mxu0 0.0
    %3922 = vmatpush1.xpose.msra.mxu0 0.0
    %3923 = vmatprep.subr.mxu0 0.0
    %3924 = vmatpush1.xpose.msra.mxu0 0.0
    %3925 = vmatprep.subr.mxu0 0.0
    %3926 = vmatpush1.xpose.msra.mxu0 0.0
    %3927 = vmatprep.subr.mxu0 0.0
    %3928 = vmatpush1.xpose.msra.mxu0 0.0
    %3929 = vmatprep.subr.mxu0 0.0
    %3930 = vmatpush1.xpose.msra.mxu0 0.0
    %3931 = vmatprep.subr.mxu0 0.0
    %3932 = vmatpush1.xpose.msra.mxu0 0.0
    %3933 = vmatprep.subr.mxu0 0.0
    %3934 = vmatpush1.xpose.msra.mxu0 0.0
    %3935 = vmatprep.subr.mxu0 0.0
    %3936 = vmatpush1.xpose.msra.mxu0 0.0
    %3937 = vmatprep.subr.mxu0 0.0
    %3938 = vmatpush1.xpose.msra.mxu0 0.0
    %3939 = vmatprep.subr.mxu0 0.0
    %3940 = vmatpush1.xpose.msra.mxu0 0.0
    %3941 = vmatprep.subr.mxu0 0.0
    %3942 = vmatpush1.xpose.msra.mxu0 0.0
    %3943 = vmatprep.subr.mxu0 0.0
    %3944 = vmatpush1.xpose.msra.mxu0 0.0
    %3945 = vmatprep.subr.mxu0 0.0
    %3946 = vmatpush1.xpose.msra.mxu0 0.0
    %3947 = vmatprep.subr.mxu0 0.0
    %3948 = vmatpush1.xpose.msra.mxu0 0.0
    %3949 = vmatprep.subr.mxu0 0.0
    %3950 = vmatpush1.xpose.msra.mxu0 %v3917
    %3951 = vmatprep.subr.mxu0 0.0
    %3952 = vmatpush2.xpose.msra.mxu0 0.0
    %3953 = vmatprep.subr.mxu0 0.0
    %3954 = vmatpush2.xpose.msra.mxu0 0.0
    %3955 = vmatprep.subr.mxu0 0.0
    %3956 = vmatpush2.xpose.msra.mxu0 0.0
    %3957 = vmatprep.subr.mxu0 0.0
    %3958 = vmatpush2.xpose.msra.mxu0 0.0
    %3959 = vmatprep.subr.mxu0 0.0
    %3960 = vmatpush2.xpose.msra.mxu0 0.0
    %3961 = vmatprep.subr.mxu0 0.0
    %3962 = vmatpush2.xpose.msra.mxu0 0.0
    %3963 = vmatprep.subr.mxu0 0.0
    %3964 = vmatpush2.xpose.msra.mxu0 0.0
    %3965 = vmatprep.subr.mxu0 0.0
    %3966 = vmatpush2.xpose.msra.mxu0 0.0
    %3967 = vmatprep.subr.mxu0 0.0
    %3968 = vmatpush2.xpose.msra.mxu0 0.0
    %3969 = vmatprep.subr.mxu0 0.0
    %3970 = vmatpush2.xpose.msra.mxu0 0.0
    %3971 = vmatprep.subr.mxu0 0.0
    %3972 = vmatpush2.xpose.msra.mxu0 0.0
    %3973 = vmatprep.subr.mxu0 0.0
    %3974 = vmatpush2.xpose.msra.mxu0 0.0
    %3975 = vmatprep.subr.mxu0 0.0
    %3976 = vmatpush2.xpose.msra.mxu0 0.0
    %3977 = vmatprep.subr.mxu0 0.0
    %3978 = vmatpush2.xpose.msra.mxu0 0.0
    %3979 = vmatprep.subr.mxu0 0.0
    %3980 = vmatpush2.xpose.msra.mxu0 0.0
    %3981 = vmatprep.subr.mxu0 0.0
    %3982 = vmatpush2.xpose.msra.mxu0 0.0
    %3983 = vmatprep.mubr.f32.mxu0 0.0
    %3984 = vmatmul.mubr.f32.gmra.mxu0 %v3915
    %v3985 = vpop.f32.mrf.mxu0
    %v3986 = vadd.f32 0.0, %v3985
    %v3987 = vpop.f32.mrf.mxu0
    %3988 = vdwg.mxu0
    %3989 = vrot.lane.b32.xlu0 %v522, 104
    %v3990 = vpop.permute.xlu0 %3989
    %3991 = vrot.lane.b32.xlu0 %v522, 72
    %v3992 = vpop.permute.xlu0 %3991
    %v3993 = vsel %vm561, %v3990, 0
    %v3995 = vsel %vm561, %v3992, 0
    %3997 = vmatprep.subr.mxu0 0.0
    %3998 = vmatpush1.xpose.msra.mxu0 0.0
    %3999 = vmatprep.subr.mxu0 0.0
    %4000 = vmatpush1.xpose.msra.mxu0 0.0
    %4001 = vmatprep.subr.mxu0 0.0
    %4002 = vmatpush1.xpose.msra.mxu0 0.0
    %4003 = vmatprep.subr.mxu0 0.0
    %4004 = vmatpush1.xpose.msra.mxu0 0.0
    %4005 = vmatprep.subr.mxu0 0.0
    %4006 = vmatpush1.xpose.msra.mxu0 0.0
    %4007 = vmatprep.subr.mxu0 0.0
    %4008 = vmatpush1.xpose.msra.mxu0 0.0
    %4009 = vmatprep.subr.mxu0 0.0
    %4010 = vmatpush1.xpose.msra.mxu0 0.0
    %4011 = vmatprep.subr.mxu0 0.0
    %4012 = vmatpush1.xpose.msra.mxu0 0.0
    %4013 = vmatprep.subr.mxu0 0.0
    %4014 = vmatpush1.xpose.msra.mxu0 0.0
    %4015 = vmatprep.subr.mxu0 0.0
    %4016 = vmatpush1.xpose.msra.mxu0 0.0
    %4017 = vmatprep.subr.mxu0 0.0
    %4018 = vmatpush1.xpose.msra.mxu0 0.0
    %4019 = vmatprep.subr.mxu0 0.0
    %4020 = vmatpush1.xpose.msra.mxu0 0.0
    %4021 = vmatprep.subr.mxu0 0.0
    %4022 = vmatpush1.xpose.msra.mxu0 0.0
    %4023 = vmatprep.subr.mxu0 0.0
    %4024 = vmatpush1.xpose.msra.mxu0 0.0
    %4025 = vmatprep.subr.mxu0 0.0
    %4026 = vmatpush1.xpose.msra.mxu0 0.0
    %4027 = vmatprep.subr.mxu0 0.0
    %4028 = vmatpush1.xpose.msra.mxu0 %v3995
    %4029 = vmatprep.subr.mxu0 0.0
    %4030 = vmatpush2.xpose.msra.mxu0 0.0
    %4031 = vmatprep.subr.mxu0 0.0
    %4032 = vmatpush2.xpose.msra.mxu0 0.0
    %4033 = vmatprep.subr.mxu0 0.0
    %4034 = vmatpush2.xpose.msra.mxu0 0.0
    %4035 = vmatprep.subr.mxu0 0.0
    %4036 = vmatpush2.xpose.msra.mxu0 0.0
    %4037 = vmatprep.subr.mxu0 0.0
    %4038 = vmatpush2.xpose.msra.mxu0 0.0
    %4039 = vmatprep.subr.mxu0 0.0
    %4040 = vmatpush2.xpose.msra.mxu0 0.0
    %4041 = vmatprep.subr.mxu0 0.0
    %4042 = vmatpush2.xpose.msra.mxu0 0.0
    %4043 = vmatprep.subr.mxu0 0.0
    %4044 = vmatpush2.xpose.msra.mxu0 0.0
    %4045 = vmatprep.subr.mxu0 0.0
    %4046 = vmatpush2.xpose.msra.mxu0 0.0
    %4047 = vmatprep.subr.mxu0 0.0
    %4048 = vmatpush2.xpose.msra.mxu0 0.0
    %4049 = vmatprep.subr.mxu0 0.0
    %4050 = vmatpush2.xpose.msra.mxu0 0.0
    %4051 = vmatprep.subr.mxu0 0.0
    %4052 = vmatpush2.xpose.msra.mxu0 0.0
    %4053 = vmatprep.subr.mxu0 0.0
    %4054 = vmatpush2.xpose.msra.mxu0 0.0
    %4055 = vmatprep.subr.mxu0 0.0
    %4056 = vmatpush2.xpose.msra.mxu0 0.0
    %4057 = vmatprep.subr.mxu0 0.0
    %4058 = vmatpush2.xpose.msra.mxu0 0.0
    %4059 = vmatprep.subr.mxu0 0.0
    %4060 = vmatpush2.xpose.msra.mxu0 0.0
    %4061 = vmatprep.mubr.f32.mxu0 0.0
    %4062 = vmatmul.mubr.f32.gmra.mxu0 %v3993
    %v4063 = vpop.f32.mrf.mxu0
    %v4064 = vadd.f32 0.0, %v4063
    %v4065 = vpop.f32.mrf.mxu0
    %4066 = vdwg.mxu0
    %4067 = vrot.lane.b32.xlu0 %v527, 104
    %v4068 = vpop.permute.xlu0 %4067
    %4069 = vrot.lane.b32.xlu0 %v527, 72
    %v4070 = vpop.permute.xlu0 %4069
    %v4071 = vsel %vm561, %v4068, 0
    %v4073 = vsel %vm561, %v4070, 0
    %4075 = vmatprep.subr.mxu0 0.0
    %4076 = vmatpush1.xpose.msra.mxu0 0.0
    %4077 = vmatprep.subr.mxu0 0.0
    %4078 = vmatpush1.xpose.msra.mxu0 0.0
    %4079 = vmatprep.subr.mxu0 0.0
    %4080 = vmatpush1.xpose.msra.mxu0 0.0
    %4081 = vmatprep.subr.mxu0 0.0
    %4082 = vmatpush1.xpose.msra.mxu0 0.0
    %4083 = vmatprep.subr.mxu0 0.0
    %4084 = vmatpush1.xpose.msra.mxu0 0.0
    %4085 = vmatprep.subr.mxu0 0.0
    %4086 = vmatpush1.xpose.msra.mxu0 0.0
    %4087 = vmatprep.subr.mxu0 0.0
    %4088 = vmatpush1.xpose.msra.mxu0 0.0
    %4089 = vmatprep.subr.mxu0 0.0
    %4090 = vmatpush1.xpose.msra.mxu0 0.0
    %4091 = vmatprep.subr.mxu0 0.0
    %4092 = vmatpush1.xpose.msra.mxu0 0.0
    %4093 = vmatprep.subr.mxu0 0.0
    %4094 = vmatpush1.xpose.msra.mxu0 0.0
    %4095 = vmatprep.subr.mxu0 0.0
    %4096 = vmatpush1.xpose.msra.mxu0 0.0
    %4097 = vmatprep.subr.mxu0 0.0
    %4098 = vmatpush1.xpose.msra.mxu0 0.0
    %4099 = vmatprep.subr.mxu0 0.0
    %4100 = vmatpush1.xpose.msra.mxu0 0.0
    %4101 = vmatprep.subr.mxu0 0.0
    %4102 = vmatpush1.xpose.msra.mxu0 0.0
    %4103 = vmatprep.subr.mxu0 0.0
    %4104 = vmatpush1.xpose.msra.mxu0 0.0
    %4105 = vmatprep.subr.mxu0 0.0
    %4106 = vmatpush1.xpose.msra.mxu0 %v4073
    %4107 = vmatprep.subr.mxu0 0.0
    %4108 = vmatpush2.xpose.msra.mxu0 0.0
    %4109 = vmatprep.subr.mxu0 0.0
    %4110 = vmatpush2.xpose.msra.mxu0 0.0
    %4111 = vmatprep.subr.mxu0 0.0
    %4112 = vmatpush2.xpose.msra.mxu0 0.0
    %4113 = vmatprep.subr.mxu0 0.0
    %4114 = vmatpush2.xpose.msra.mxu0 0.0
    %4115 = vmatprep.subr.mxu0 0.0
    %4116 = vmatpush2.xpose.msra.mxu0 0.0
    %4117 = vmatprep.subr.mxu0 0.0
    %4118 = vmatpush2.xpose.msra.mxu0 0.0
    %4119 = vmatprep.subr.mxu0 0.0
    %4120 = vmatpush2.xpose.msra.mxu0 0.0
    %4121 = vmatprep.subr.mxu0 0.0
    %4122 = vmatpush2.xpose.msra.mxu0 0.0
    %4123 = vmatprep.subr.mxu0 0.0
    %4124 = vmatpush2.xpose.msra.mxu0 0.0
    %4125 = vmatprep.subr.mxu0 0.0
    %4126 = vmatpush2.xpose.msra.mxu0 0.0
    %4127 = vmatprep.subr.mxu0 0.0
    %4128 = vmatpush2.xpose.msra.mxu0 0.0
    %4129 = vmatprep.subr.mxu0 0.0
    %4130 = vmatpush2.xpose.msra.mxu0 0.0
    %4131 = vmatprep.subr.mxu0 0.0
    %4132 = vmatpush2.xpose.msra.mxu0 0.0
    %4133 = vmatprep.subr.mxu0 0.0
    %4134 = vmatpush2.xpose.msra.mxu0 0.0
    %4135 = vmatprep.subr.mxu0 0.0
    %4136 = vmatpush2.xpose.msra.mxu0 0.0
    %4137 = vmatprep.subr.mxu0 0.0
    %4138 = vmatpush2.xpose.msra.mxu0 0.0
    %4139 = vmatprep.mubr.f32.mxu0 0.0
    %4140 = vmatmul.mubr.f32.gmra.mxu0 %v4071
    %v4141 = vpop.f32.mrf.mxu0
    %v4142 = vadd.f32 0.0, %v4141
    %v4143 = vpop.f32.mrf.mxu0
    %4144 = vdwg.mxu0
    %4145 = vrot.lane.b32.xlu0 %v532, 104
    %v4146 = vpop.permute.xlu0 %4145
    %4147 = vrot.lane.b32.xlu0 %v532, 72
    %v4148 = vpop.permute.xlu0 %4147
    %v4149 = vsel %vm561, %v4146, 0
    %v4151 = vsel %vm561, %v4148, 0
    %4153 = vmatprep.subr.mxu0 0.0
    %4154 = vmatpush1.xpose.msra.mxu0 0.0
    %4155 = vmatprep.subr.mxu0 0.0
    %4156 = vmatpush1.xpose.msra.mxu0 0.0
    %4157 = vmatprep.subr.mxu0 0.0
    %4158 = vmatpush1.xpose.msra.mxu0 0.0
    %4159 = vmatprep.subr.mxu0 0.0
    %4160 = vmatpush1.xpose.msra.mxu0 0.0
    %4161 = vmatprep.subr.mxu0 0.0
    %4162 = vmatpush1.xpose.msra.mxu0 0.0
    %4163 = vmatprep.subr.mxu0 0.0
    %4164 = vmatpush1.xpose.msra.mxu0 0.0
    %4165 = vmatprep.subr.mxu0 0.0
    %4166 = vmatpush1.xpose.msra.mxu0 0.0
    %4167 = vmatprep.subr.mxu0 0.0
    %4168 = vmatpush1.xpose.msra.mxu0 0.0
    %4169 = vmatprep.subr.mxu0 0.0
    %4170 = vmatpush1.xpose.msra.mxu0 0.0
    %4171 = vmatprep.subr.mxu0 0.0
    %4172 = vmatpush1.xpose.msra.mxu0 0.0
    %4173 = vmatprep.subr.mxu0 0.0
    %4174 = vmatpush1.xpose.msra.mxu0 0.0
    %4175 = vmatprep.subr.mxu0 0.0
    %4176 = vmatpush1.xpose.msra.mxu0 0.0
    %4177 = vmatprep.subr.mxu0 0.0
    %4178 = vmatpush1.xpose.msra.mxu0 0.0
    %4179 = vmatprep.subr.mxu0 0.0
    %4180 = vmatpush1.xpose.msra.mxu0 0.0
    %4181 = vmatprep.subr.mxu0 0.0
    %4182 = vmatpush1.xpose.msra.mxu0 0.0
    %4183 = vmatprep.subr.mxu0 0.0
    %4184 = vmatpush1.xpose.msra.mxu0 %v4151
    %4185 = vmatprep.subr.mxu0 0.0
    %4186 = vmatpush2.xpose.msra.mxu0 0.0
    %4187 = vmatprep.subr.mxu0 0.0
    %4188 = vmatpush2.xpose.msra.mxu0 0.0
    %4189 = vmatprep.subr.mxu0 0.0
    %4190 = vmatpush2.xpose.msra.mxu0 0.0
    %4191 = vmatprep.subr.mxu0 0.0
    %4192 = vmatpush2.xpose.msra.mxu0 0.0
    %4193 = vmatprep.subr.mxu0 0.0
    %4194 = vmatpush2.xpose.msra.mxu0 0.0
    %4195 = vmatprep.subr.mxu0 0.0
    %4196 = vmatpush2.xpose.msra.mxu0 0.0
    %4197 = vmatprep.subr.mxu0 0.0
    %4198 = vmatpush2.xpose.msra.mxu0 0.0
    %4199 = vmatprep.subr.mxu0 0.0
    %4200 = vmatpush2.xpose.msra.mxu0 0.0
    %4201 = vmatprep.subr.mxu0 0.0
    %4202 = vmatpush2.xpose.msra.mxu0 0.0
    %4203 = vmatprep.subr.mxu0 0.0
    %4204 = vmatpush2.xpose.msra.mxu0 0.0
    %4205 = vmatprep.subr.mxu0 0.0
    %4206 = vmatpush2.xpose.msra.mxu0 0.0
    %4207 = vmatprep.subr.mxu0 0.0
    %4208 = vmatpush2.xpose.msra.mxu0 0.0
    %4209 = vmatprep.subr.mxu0 0.0
    %4210 = vmatpush2.xpose.msra.mxu0 0.0
    %4211 = vmatprep.subr.mxu0 0.0
    %4212 = vmatpush2.xpose.msra.mxu0 0.0
    %4213 = vmatprep.subr.mxu0 0.0
    %4214 = vmatpush2.xpose.msra.mxu0 0.0
    %4215 = vmatprep.subr.mxu0 0.0
    %4216 = vmatpush2.xpose.msra.mxu0 0.0
    %4217 = vmatprep.mubr.f32.mxu0 0.0
    %4218 = vmatmul.mubr.f32.gmra.mxu0 %v4149
    %v4219 = vpop.f32.mrf.mxu0
    %v4220 = vadd.f32 0.0, %v4219
    %v4221 = vpop.f32.mrf.mxu0
    %4222 = vdwg.mxu0
    %4223 = vrot.lane.b32.xlu0 %v537, 104
    %v4224 = vpop.permute.xlu0 %4223
    %4225 = vrot.lane.b32.xlu0 %v537, 72
    %v4226 = vpop.permute.xlu0 %4225
    %v4227 = vsel %vm561, %v4224, 0
    %v4229 = vsel %vm561, %v4226, 0
    %4231 = vmatprep.subr.mxu0 0.0
    %4232 = vmatpush1.xpose.msra.mxu0 0.0
    %4233 = vmatprep.subr.mxu0 0.0
    %4234 = vmatpush1.xpose.msra.mxu0 0.0
    %4235 = vmatprep.subr.mxu0 0.0
    %4236 = vmatpush1.xpose.msra.mxu0 0.0
    %4237 = vmatprep.subr.mxu0 0.0
    %4238 = vmatpush1.xpose.msra.mxu0 0.0
    %4239 = vmatprep.subr.mxu0 0.0
    %4240 = vmatpush1.xpose.msra.mxu0 0.0
    %4241 = vmatprep.subr.mxu0 0.0
    %4242 = vmatpush1.xpose.msra.mxu0 0.0
    %4243 = vmatprep.subr.mxu0 0.0
    %4244 = vmatpush1.xpose.msra.mxu0 0.0
    %4245 = vmatprep.subr.mxu0 0.0
    %4246 = vmatpush1.xpose.msra.mxu0 0.0
    %4247 = vmatprep.subr.mxu0 0.0
    %4248 = vmatpush1.xpose.msra.mxu0 0.0
    %4249 = vmatprep.subr.mxu0 0.0
    %4250 = vmatpush1.xpose.msra.mxu0 0.0
    %4251 = vmatprep.subr.mxu0 0.0
    %4252 = vmatpush1.xpose.msra.mxu0 0.0
    %4253 = vmatprep.subr.mxu0 0.0
    %4254 = vmatpush1.xpose.msra.mxu0 0.0
    %4255 = vmatprep.subr.mxu0 0.0
    %4256 = vmatpush1.xpose.msra.mxu0 0.0
    %4257 = vmatprep.subr.mxu0 0.0
    %4258 = vmatpush1.xpose.msra.mxu0 0.0
    %4259 = vmatprep.subr.mxu0 0.0
    %4260 = vmatpush1.xpose.msra.mxu0 0.0
    %4261 = vmatprep.subr.mxu0 0.0
    %4262 = vmatpush1.xpose.msra.mxu0 %v4229
    %4263 = vmatprep.subr.mxu0 0.0
    %4264 = vmatpush2.xpose.msra.mxu0 0.0
    %4265 = vmatprep.subr.mxu0 0.0
    %4266 = vmatpush2.xpose.msra.mxu0 0.0
    %4267 = vmatprep.subr.mxu0 0.0
    %4268 = vmatpush2.xpose.msra.mxu0 0.0
    %4269 = vmatprep.subr.mxu0 0.0
    %4270 = vmatpush2.xpose.msra.mxu0 0.0
    %4271 = vmatprep.subr.mxu0 0.0
    %4272 = vmatpush2.xpose.msra.mxu0 0.0
    %4273 = vmatprep.subr.mxu0 0.0
    %4274 = vmatpush2.xpose.msra.mxu0 0.0
    %4275 = vmatprep.subr.mxu0 0.0
    %4276 = vmatpush2.xpose.msra.mxu0 0.0
    %4277 = vmatprep.subr.mxu0 0.0
    %4278 = vmatpush2.xpose.msra.mxu0 0.0
    %4279 = vmatprep.subr.mxu0 0.0
    %4280 = vmatpush2.xpose.msra.mxu0 0.0
    %4281 = vmatprep.subr.mxu0 0.0
    %4282 = vmatpush2.xpose.msra.mxu0 0.0
    %4283 = vmatprep.subr.mxu0 0.0
    %4284 = vmatpush2.xpose.msra.mxu0 0.0
    %4285 = vmatprep.subr.mxu0 0.0
    %4286 = vmatpush2.xpose.msra.mxu0 0.0
    %4287 = vmatprep.subr.mxu0 0.0
    %4288 = vmatpush2.xpose.msra.mxu0 0.0
    %4289 = vmatprep.subr.mxu0 0.0
    %4290 = vmatpush2.xpose.msra.mxu0 0.0
    %4291 = vmatprep.subr.mxu0 0.0
    %4292 = vmatpush2.xpose.msra.mxu0 0.0
    %4293 = vmatprep.subr.mxu0 0.0
    %4294 = vmatpush2.xpose.msra.mxu0 0.0
    %4295 = vmatprep.mubr.f32.mxu0 0.0
    %4296 = vmatmul.mubr.f32.gmra.mxu0 %v4227
    %v4297 = vpop.f32.mrf.mxu0
    %v4298 = vadd.f32 0.0, %v4297
    %v4299 = vpop.f32.mrf.mxu0
    %4300 = vdwg.mxu0
    %v4301 = vmul.f32 %v3908, 0.35355338
    %v4302 = vmul.f32 %v3986, 0.35355338
    %v4303 = vmul.f32 %v4064, 0.35355338
    %v4304 = vmul.f32 %v4142, 0.35355338
    %v4305 = vmul.f32 %v4220, 0.35355338
    %v4306 = vmul.f32 %v4298, 0.35355338
    %v4307 = vadd.f32 %v4301, %v552
    %v4308 = vadd.f32 %v4302, %v553
    %v4309 = vadd.f32 %v4303, %v554
    %v4310 = vadd.f32 %v4304, %v555
    %v4311 = vadd.f32 %v4305, %v556
    %v4312 = vadd.f32 %v4306, %v557
    %v4313 = vsel %vm1033, %v4307, -inf
    %4314 = vmax.xlane.f32.xlu0 %v4313
    %v4315 = vpop.xlane.xlu0 %4314
    %v4316 = vsel %vm1033, %v4308, -inf
    %4317 = vmax.xlane.f32.xlu0 %v4316
    %v4318 = vpop.xlane.xlu0 %4317
    %v4319 = vsel %vm1033, %v4309, -inf
    %4320 = vmax.xlane.f32.xlu0 %v4319
    %v4321 = vpop.xlane.xlu0 %4320
    %v4322 = vsel %vm1033, %v4310, -inf
    %4323 = vmax.xlane.f32.xlu0 %v4322
    %v4324 = vpop.xlane.xlu0 %4323
    %v4325 = vsel %vm1033, %v4311, -inf
    %4326 = vmax.xlane.f32.xlu0 %v4325
    %v4327 = vpop.xlane.xlu0 %4326
    %v4328 = vsel %vm1033, %v4312, -inf
    %4329 = vmax.xlane.f32.xlu0 %v4328
    %v4330 = vpop.xlane.xlu0 %4329
    %v4331 = vsub.f32 %v4307, %v4315
    %v4332 = vsub.f32 %v4308, %v4318
    %v4333 = vsub.f32 %v4309, %v4321
    %v4334 = vsub.f32 %v4310, %v4324
    %v4335 = vsub.f32 %v4311, %v4327
    %v4336 = vsub.f32 %v4312, %v4330
    %v4337 = vmul.f32 %v4331, 1.442695
    %v4338 = vpow.pop %v4337
    %v4339 = vmul.f32 %v4332, 1.442695
    %v4340 = vpow.pop %v4339
    %v4341 = vmul.f32 %v4333, 1.442695
    %v4342 = vpow.pop %v4341
    %v4343 = vmul.f32 %v4334, 1.442695
    %v4344 = vpow.pop %v4343
    %v4345 = vmul.f32 %v4335, 1.442695
    %v4346 = vpow.pop %v4345
    %v4347 = vmul.f32 %v4336, 1.442695
    %v4348 = vpow.pop %v4347
    %v4349 = vsel %vm1033, %v4338, 0.0
    %4350 = vadd.xlane.f32.xlu0 %v4349
    %v4351 = vpop.xlane.xlu0 %4350
    %v4352 = vsel %vm1033, %v4340, 0.0
    %4353 = vadd.xlane.f32.xlu0 %v4352
    %v4354 = vpop.xlane.xlu0 %4353
    %v4355 = vsel %vm1033, %v4342, 0.0
    %4356 = vadd.xlane.f32.xlu0 %v4355
    %v4357 = vpop.xlane.xlu0 %4356
    %v4358 = vsel %vm1033, %v4344, 0.0
    %4359 = vadd.xlane.f32.xlu0 %v4358
    %v4360 = vpop.xlane.xlu0 %4359
    %v4361 = vsel %vm1033, %v4346, 0.0
    %4362 = vadd.xlane.f32.xlu0 %v4361
    %v4363 = vpop.xlane.xlu0 %4362
    %v4364 = vsel %vm1033, %v4348, 0.0
    %4365 = vadd.xlane.f32.xlu0 %v4364
    %v4366 = vpop.xlane.xlu0 %4365
    %v4367 = vrcp.pop %v4351
    %v4368 = vrcp.pop %v4354
    %v4369 = vrcp.pop %v4357
    %v4370 = vrcp.pop %v4360
    %v4371 = vrcp.pop %v4363
    %v4372 = vrcp.pop %v4366
    %v4373 = vmul.f32 %v4338, %v4367
    %v4374 = vmul.f32 %v4340, %v4368
    %v4375 = vmul.f32 %v4342, %v4369
    %v4376 = vmul.f32 %v4344, %v4370
    %v4377 = vmul.f32 %v4346, %v4371
    %v4378 = vmul.f32 %v4348, %v4372
    %4379 = vrot.lane.b32.xlu0 %v512, 40
    %v4380 = vpop.permute.xlu0 %4379
    %v4383 = vsel %vm561, %v4373, 0
    %4385 = vmatprep.subr.mxu0 0.0
    %4386 = vmatpush1.msra.mxu0 0.0
    %4387 = vmatprep.subr.mxu0 0.0
    %4388 = vmatpush1.msra.mxu0 0.0
    %4389 = vmatprep.subr.mxu0 0.0
    %4390 = vmatpush1.msra.mxu0 0.0
    %4391 = vmatprep.subr.mxu0 0.0
    %4392 = vmatpush1.msra.mxu0 0.0
    %4393 = vmatprep.subr.mxu0 0.0
    %4394 = vmatpush1.msra.mxu0 0.0
    %4395 = vmatprep.subr.mxu0 0.0
    %4396 = vmatpush1.msra.mxu0 0.0
    %4397 = vmatprep.subr.mxu0 0.0
    %4398 = vmatpush1.msra.mxu0 0.0
    %4399 = vmatprep.subr.mxu0 0.0
    %4400 = vmatpush1.msra.mxu0 0.0
    %4401 = vmatprep.subr.mxu0 0.0
    %4402 = vmatpush1.msra.mxu0 0.0
    %4403 = vmatprep.subr.mxu0 0.0
    %4404 = vmatpush1.msra.mxu0 0.0
    %4405 = vmatprep.subr.mxu0 0.0
    %4406 = vmatpush1.msra.mxu0 0.0
    %4407 = vmatprep.subr.mxu0 0.0
    %4408 = vmatpush1.msra.mxu0 0.0
    %4409 = vmatprep.subr.mxu0 0.0
    %4410 = vmatpush1.msra.mxu0 0.0
    %4411 = vmatprep.subr.mxu0 0.0
    %4412 = vmatpush1.msra.mxu0 0.0
    %4413 = vmatprep.subr.mxu0 0.0
    %4414 = vmatpush1.msra.mxu0 0.0
    %4415 = vmatprep.subr.mxu0 0.0
    %4416 = vmatpush1.msra.mxu0 %v4380
    %4417 = vmatprep.subr.mxu0 0.0
    %4418 = vmatpush2.msra.mxu0 0.0
    %4419 = vmatprep.subr.mxu0 0.0
    %4420 = vmatpush2.msra.mxu0 0.0
    %4421 = vmatprep.subr.mxu0 0.0
    %4422 = vmatpush2.msra.mxu0 0.0
    %4423 = vmatprep.subr.mxu0 0.0
    %4424 = vmatpush2.msra.mxu0 0.0
    %4425 = vmatprep.subr.mxu0 0.0
    %4426 = vmatpush2.msra.mxu0 0.0
    %4427 = vmatprep.subr.mxu0 0.0
    %4428 = vmatpush2.msra.mxu0 0.0
    %4429 = vmatprep.subr.mxu0 0.0
    %4430 = vmatpush2.msra.mxu0 0.0
    %4431 = vmatprep.subr.mxu0 0.0
    %4432 = vmatpush2.msra.mxu0 0.0
    %4433 = vmatprep.subr.mxu0 0.0
    %4434 = vmatpush2.msra.mxu0 0.0
    %4435 = vmatprep.subr.mxu0 0.0
    %4436 = vmatpush2.msra.mxu0 0.0
    %4437 = vmatprep.subr.mxu0 0.0
    %4438 = vmatpush2.msra.mxu0 0.0
    %4439 = vmatprep.subr.mxu0 0.0
    %4440 = vmatpush2.msra.mxu0 0.0
    %4441 = vmatprep.subr.mxu0 0.0
    %4442 = vmatpush2.msra.mxu0 0.0
    %4443 = vmatprep.subr.mxu0 0.0
    %4444 = vmatpush2.msra.mxu0 0.0
    %4445 = vmatprep.subr.mxu0 0.0
    %4446 = vmatpush2.msra.mxu0 0.0
    %4447 = vmatprep.subr.mxu0 0.0
    %4448 = vmatpush2.msra.mxu0 0.0
    %4449 = vmatprep.mubr.f32.mxu0 0.0
    %4450 = vmatmul.mubr.f32.gmra.mxu0 %v4383
    %v4451 = vpop.f32.mrf.mxu0
    %v4452 = vadd.f32 0.0, %v4451
    %v4453 = vpop.f32.mrf.mxu0
    %4454 = vdwg.mxu0
    %4455 = vrot.lane.b32.xlu0 %v517, 40
    %v4456 = vpop.permute.xlu0 %4455
    %v4459 = vsel %vm561, %v4374, 0
    %4461 = vmatprep.subr.mxu0 0.0
    %4462 = vmatpush1.msra.mxu0 0.0
    %4463 = vmatprep.subr.mxu0 0.0
    %4464 = vmatpush1.msra.mxu0 0.0
    %4465 = vmatprep.subr.mxu0 0.0
    %4466 = vmatpush1.msra.mxu0 0.0
    %4467 = vmatprep.subr.mxu0 0.0
    %4468 = vmatpush1.msra.mxu0 0.0
    %4469 = vmatprep.subr.mxu0 0.0
    %4470 = vmatpush1.msra.mxu0 0.0
    %4471 = vmatprep.subr.mxu0 0.0
    %4472 = vmatpush1.msra.mxu0 0.0
    %4473 = vmatprep.subr.mxu0 0.0
    %4474 = vmatpush1.msra.mxu0 0.0
    %4475 = vmatprep.subr.mxu0 0.0
    %4476 = vmatpush1.msra.mxu0 0.0
    %4477 = vmatprep.subr.mxu0 0.0
    %4478 = vmatpush1.msra.mxu0 0.0
    %4479 = vmatprep.subr.mxu0 0.0
    %4480 = vmatpush1.msra.mxu0 0.0
    %4481 = vmatprep.subr.mxu0 0.0
    %4482 = vmatpush1.msra.mxu0 0.0
    %4483 = vmatprep.subr.mxu0 0.0
    %4484 = vmatpush1.msra.mxu0 0.0
    %4485 = vmatprep.subr.mxu0 0.0
    %4486 = vmatpush1.msra.mxu0 0.0
    %4487 = vmatprep.subr.mxu0 0.0
    %4488 = vmatpush1.msra.mxu0 0.0
    %4489 = vmatprep.subr.mxu0 0.0
    %4490 = vmatpush1.msra.mxu0 0.0
    %4491 = vmatprep.subr.mxu0 0.0
    %4492 = vmatpush1.msra.mxu0 %v4456
    %4493 = vmatprep.subr.mxu0 0.0
    %4494 = vmatpush2.msra.mxu0 0.0
    %4495 = vmatprep.subr.mxu0 0.0
    %4496 = vmatpush2.msra.mxu0 0.0
    %4497 = vmatprep.subr.mxu0 0.0
    %4498 = vmatpush2.msra.mxu0 0.0
    %4499 = vmatprep.subr.mxu0 0.0
    %4500 = vmatpush2.msra.mxu0 0.0
    %4501 = vmatprep.subr.mxu0 0.0
    %4502 = vmatpush2.msra.mxu0 0.0
    %4503 = vmatprep.subr.mxu0 0.0
    %4504 = vmatpush2.msra.mxu0 0.0
    %4505 = vmatprep.subr.mxu0 0.0
    %4506 = vmatpush2.msra.mxu0 0.0
    %4507 = vmatprep.subr.mxu0 0.0
    %4508 = vmatpush2.msra.mxu0 0.0
    %4509 = vmatprep.subr.mxu0 0.0
    %4510 = vmatpush2.msra.mxu0 0.0
    %4511 = vmatprep.subr.mxu0 0.0
    %4512 = vmatpush2.msra.mxu0 0.0
    %4513 = vmatprep.subr.mxu0 0.0
    %4514 = vmatpush2.msra.mxu0 0.0
    %4515 = vmatprep.subr.mxu0 0.0
    %4516 = vmatpush2.msra.mxu0 0.0
    %4517 = vmatprep.subr.mxu0 0.0
    %4518 = vmatpush2.msra.mxu0 0.0
    %4519 = vmatprep.subr.mxu0 0.0
    %4520 = vmatpush2.msra.mxu0 0.0
    %4521 = vmatprep.subr.mxu0 0.0
    %4522 = vmatpush2.msra.mxu0 0.0
    %4523 = vmatprep.subr.mxu0 0.0
    %4524 = vmatpush2.msra.mxu0 0.0
    %4525 = vmatprep.mubr.f32.mxu0 0.0
    %4526 = vmatmul.mubr.f32.gmra.mxu0 %v4459
    %v4527 = vpop.f32.mrf.mxu0
    %v4528 = vadd.f32 0.0, %v4527
    %v4529 = vpop.f32.mrf.mxu0
    %4530 = vdwg.mxu0
    %4531 = vrot.lane.b32.xlu0 %v522, 40
    %v4532 = vpop.permute.xlu0 %4531
    %v4535 = vsel %vm561, %v4375, 0
    %4537 = vmatprep.subr.mxu0 0.0
    %4538 = vmatpush1.msra.mxu0 0.0
    %4539 = vmatprep.subr.mxu0 0.0
    %4540 = vmatpush1.msra.mxu0 0.0
    %4541 = vmatprep.subr.mxu0 0.0
    %4542 = vmatpush1.msra.mxu0 0.0
    %4543 = vmatprep.subr.mxu0 0.0
    %4544 = vmatpush1.msra.mxu0 0.0
    %4545 = vmatprep.subr.mxu0 0.0
    %4546 = vmatpush1.msra.mxu0 0.0
    %4547 = vmatprep.subr.mxu0 0.0
    %4548 = vmatpush1.msra.mxu0 0.0
    %4549 = vmatprep.subr.mxu0 0.0
    %4550 = vmatpush1.msra.mxu0 0.0
    %4551 = vmatprep.subr.mxu0 0.0
    %4552 = vmatpush1.msra.mxu0 0.0
    %4553 = vmatprep.subr.mxu0 0.0
    %4554 = vmatpush1.msra.mxu0 0.0
    %4555 = vmatprep.subr.mxu0 0.0
    %4556 = vmatpush1.msra.mxu0 0.0
    %4557 = vmatprep.subr.mxu0 0.0
    %4558 = vmatpush1.msra.mxu0 0.0
    %4559 = vmatprep.subr.mxu0 0.0
    %4560 = vmatpush1.msra.mxu0 0.0
    %4561 = vmatprep.subr.mxu0 0.0
    %4562 = vmatpush1.msra.mxu0 0.0
    %4563 = vmatprep.subr.mxu0 0.0
    %4564 = vmatpush1.msra.mxu0 0.0
    %4565 = vmatprep.subr.mxu0 0.0
    %4566 = vmatpush1.msra.mxu0 0.0
    %4567 = vmatprep.subr.mxu0 0.0
    %4568 = vmatpush1.msra.mxu0 %v4532
    %4569 = vmatprep.subr.mxu0 0.0
    %4570 = vmatpush2.msra.mxu0 0.0
    %4571 = vmatprep.subr.mxu0 0.0
    %4572 = vmatpush2.msra.mxu0 0.0
    %4573 = vmatprep.subr.mxu0 0.0
    %4574 = vmatpush2.msra.mxu0 0.0
    %4575 = vmatprep.subr.mxu0 0.0
    %4576 = vmatpush2.msra.mxu0 0.0
    %4577 = vmatprep.subr.mxu0 0.0
    %4578 = vmatpush2.msra.mxu0 0.0
    %4579 = vmatprep.subr.mxu0 0.0
    %4580 = vmatpush2.msra.mxu0 0.0
    %4581 = vmatprep.subr.mxu0 0.0
    %4582 = vmatpush2.msra.mxu0 0.0
    %4583 = vmatprep.subr.mxu0 0.0
    %4584 = vmatpush2.msra.mxu0 0.0
    %4585 = vmatprep.subr.mxu0 0.0
    %4586 = vmatpush2.msra.mxu0 0.0
    %4587 = vmatprep.subr.mxu0 0.0
    %4588 = vmatpush2.msra.mxu0 0.0
    %4589 = vmatprep.subr.mxu0 0.0
    %4590 = vmatpush2.msra.mxu0 0.0
    %4591 = vmatprep.subr.mxu0 0.0
    %4592 = vmatpush2.msra.mxu0 0.0
    %4593 = vmatprep.subr.mxu0 0.0
    %4594 = vmatpush2.msra.mxu0 0.0
    %4595 = vmatprep.subr.mxu0 0.0
    %4596 = vmatpush2.msra.mxu0 0.0
    %4597 = vmatprep.subr.mxu0 0.0
    %4598 = vmatpush2.msra.mxu0 0.0
    %4599 = vmatprep.subr.mxu0 0.0
    %4600 = vmatpush2.msra.mxu0 0.0
    %4601 = vmatprep.mubr.f32.mxu0 0.0
    %4602 = vmatmul.mubr.f32.gmra.mxu0 %v4535
    %v4603 = vpop.f32.mrf.mxu0
    %v4604 = vadd.f32 0.0, %v4603
    %v4605 = vpop.f32.mrf.mxu0
    %4606 = vdwg.mxu0
    %4607 = vrot.lane.b32.xlu0 %v527, 40
    %v4608 = vpop.permute.xlu0 %4607
    %v4611 = vsel %vm561, %v4376, 0
    %4613 = vmatprep.subr.mxu0 0.0
    %4614 = vmatpush1.msra.mxu0 0.0
    %4615 = vmatprep.subr.mxu0 0.0
    %4616 = vmatpush1.msra.mxu0 0.0
    %4617 = vmatprep.subr.mxu0 0.0
    %4618 = vmatpush1.msra.mxu0 0.0
    %4619 = vmatprep.subr.mxu0 0.0
    %4620 = vmatpush1.msra.mxu0 0.0
    %4621 = vmatprep.subr.mxu0 0.0
    %4622 = vmatpush1.msra.mxu0 0.0
    %4623 = vmatprep.subr.mxu0 0.0
    %4624 = vmatpush1.msra.mxu0 0.0
    %4625 = vmatprep.subr.mxu0 0.0
    %4626 = vmatpush1.msra.mxu0 0.0
    %4627 = vmatprep.subr.mxu0 0.0
    %4628 = vmatpush1.msra.mxu0 0.0
    %4629 = vmatprep.subr.mxu0 0.0
    %4630 = vmatpush1.msra.mxu0 0.0
    %4631 = vmatprep.subr.mxu0 0.0
    %4632 = vmatpush1.msra.mxu0 0.0
    %4633 = vmatprep.subr.mxu0 0.0
    %4634 = vmatpush1.msra.mxu0 0.0
    %4635 = vmatprep.subr.mxu0 0.0
    %4636 = vmatpush1.msra.mxu0 0.0
    %4637 = vmatprep.subr.mxu0 0.0
    %4638 = vmatpush1.msra.mxu0 0.0
    %4639 = vmatprep.subr.mxu0 0.0
    %4640 = vmatpush1.msra.mxu0 0.0
    %4641 = vmatprep.subr.mxu0 0.0
    %4642 = vmatpush1.msra.mxu0 0.0
    %4643 = vmatprep.subr.mxu0 0.0
    %4644 = vmatpush1.msra.mxu0 %v4608
    %4645 = vmatprep.subr.mxu0 0.0
    %4646 = vmatpush2.msra.mxu0 0.0
    %4647 = vmatprep.subr.mxu0 0.0
    %4648 = vmatpush2.msra.mxu0 0.0
    %4649 = vmatprep.subr.mxu0 0.0
    %4650 = vmatpush2.msra.mxu0 0.0
    %4651 = vmatprep.subr.mxu0 0.0
    %4652 = vmatpush2.msra.mxu0 0.0
    %4653 = vmatprep.subr.mxu0 0.0
    %4654 = vmatpush2.msra.mxu0 0.0
    %4655 = vmatprep.subr.mxu0 0.0
    %4656 = vmatpush2.msra.mxu0 0.0
    %4657 = vmatprep.subr.mxu0 0.0
    %4658 = vmatpush2.msra.mxu0 0.0
    %4659 = vmatprep.subr.mxu0 0.0
    %4660 = vmatpush2.msra.mxu0 0.0
    %4661 = vmatprep.subr.mxu0 0.0
    %4662 = vmatpush2.msra.mxu0 0.0
    %4663 = vmatprep.subr.mxu0 0.0
    %4664 = vmatpush2.msra.mxu0 0.0
    %4665 = vmatprep.subr.mxu0 0.0
    %4666 = vmatpush2.msra.mxu0 0.0
    %4667 = vmatprep.subr.mxu0 0.0
    %4668 = vmatpush2.msra.mxu0 0.0
    %4669 = vmatprep.subr.mxu0 0.0
    %4670 = vmatpush2.msra.mxu0 0.0
    %4671 = vmatprep.subr.mxu0 0.0
    %4672 = vmatpush2.msra.mxu0 0.0
    %4673 = vmatprep.subr.mxu0 0.0
    %4674 = vmatpush2.msra.mxu0 0.0
    %4675 = vmatprep.subr.mxu0 0.0
    %4676 = vmatpush2.msra.mxu0 0.0
    %4677 = vmatprep.mubr.f32.mxu0 0.0
    %4678 = vmatmul.mubr.f32.gmra.mxu0 %v4611
    %v4679 = vpop.f32.mrf.mxu0
    %v4680 = vadd.f32 0.0, %v4679
    %v4681 = vpop.f32.mrf.mxu0
    %4682 = vdwg.mxu0
    %4683 = vrot.lane.b32.xlu0 %v532, 40
    %v4684 = vpop.permute.xlu0 %4683
    %v4687 = vsel %vm561, %v4377, 0
    %4689 = vmatprep.subr.mxu0 0.0
    %4690 = vmatpush1.msra.mxu0 0.0
    %4691 = vmatprep.subr.mxu0 0.0
    %4692 = vmatpush1.msra.mxu0 0.0
    %4693 = vmatprep.subr.mxu0 0.0
    %4694 = vmatpush1.msra.mxu0 0.0
    %4695 = vmatprep.subr.mxu0 0.0
    %4696 = vmatpush1.msra.mxu0 0.0
    %4697 = vmatprep.subr.mxu0 0.0
    %4698 = vmatpush1.msra.mxu0 0.0
    %4699 = vmatprep.subr.mxu0 0.0
    %4700 = vmatpush1.msra.mxu0 0.0
    %4701 = vmatprep.subr.mxu0 0.0
    %4702 = vmatpush1.msra.mxu0 0.0
    %4703 = vmatprep.subr.mxu0 0.0
    %4704 = vmatpush1.msra.mxu0 0.0
    %4705 = vmatprep.subr.mxu0 0.0
    %4706 = vmatpush1.msra.mxu0 0.0
    %4707 = vmatprep.subr.mxu0 0.0
    %4708 = vmatpush1.msra.mxu0 0.0
    %4709 = vmatprep.subr.mxu0 0.0
    %4710 = vmatpush1.msra.mxu0 0.0
    %4711 = vmatprep.subr.mxu0 0.0
    %4712 = vmatpush1.msra.mxu0 0.0
    %4713 = vmatprep.subr.mxu0 0.0
    %4714 = vmatpush1.msra.mxu0 0.0
    %4715 = vmatprep.subr.mxu0 0.0
    %4716 = vmatpush1.msra.mxu0 0.0
    %4717 = vmatprep.subr.mxu0 0.0
    %4718 = vmatpush1.msra.mxu0 0.0
    %4719 = vmatprep.subr.mxu0 0.0
    %4720 = vmatpush1.msra.mxu0 %v4684
    %4721 = vmatprep.subr.mxu0 0.0
    %4722 = vmatpush2.msra.mxu0 0.0
    %4723 = vmatprep.subr.mxu0 0.0
    %4724 = vmatpush2.msra.mxu0 0.0
    %4725 = vmatprep.subr.mxu0 0.0
    %4726 = vmatpush2.msra.mxu0 0.0
    %4727 = vmatprep.subr.mxu0 0.0
    %4728 = vmatpush2.msra.mxu0 0.0
    %4729 = vmatprep.subr.mxu0 0.0
    %4730 = vmatpush2.msra.mxu0 0.0
    %4731 = vmatprep.subr.mxu0 0.0
    %4732 = vmatpush2.msra.mxu0 0.0
    %4733 = vmatprep.subr.mxu0 0.0
    %4734 = vmatpush2.msra.mxu0 0.0
    %4735 = vmatprep.subr.mxu0 0.0
    %4736 = vmatpush2.msra.mxu0 0.0
    %4737 = vmatprep.subr.mxu0 0.0
    %4738 = vmatpush2.msra.mxu0 0.0
    %4739 = vmatprep.subr.mxu0 0.0
    %4740 = vmatpush2.msra.mxu0 0.0
    %4741 = vmatprep.subr.mxu0 0.0
    %4742 = vmatpush2.msra.mxu0 0.0
    %4743 = vmatprep.subr.mxu0 0.0
    %4744 = vmatpush2.msra.mxu0 0.0
    %4745 = vmatprep.subr.mxu0 0.0
    %4746 = vmatpush2.msra.mxu0 0.0
    %4747 = vmatprep.subr.mxu0 0.0
    %4748 = vmatpush2.msra.mxu0 0.0
    %4749 = vmatprep.subr.mxu0 0.0
    %4750 = vmatpush2.msra.mxu0 0.0
    %4751 = vmatprep.subr.mxu0 0.0
    %4752 = vmatpush2.msra.mxu0 0.0
    %4753 = vmatprep.mubr.f32.mxu0 0.0
    %4754 = vmatmul.mubr.f32.gmra.mxu0 %v4687
    %v4755 = vpop.f32.mrf.mxu0
    %v4756 = vadd.f32 0.0, %v4755
    %v4757 = vpop.f32.mrf.mxu0
    %4758 = vdwg.mxu0
    %4759 = vrot.lane.b32.xlu0 %v537, 40
    %v4760 = vpop.permute.xlu0 %4759
    %v4763 = vsel %vm561, %v4378, 0
    %4765 = vmatprep.subr.mxu0 0.0
    %4766 = vmatpush1.msra.mxu0 0.0
    %4767 = vmatprep.subr.mxu0 0.0
    %4768 = vmatpush1.msra.mxu0 0.0
    %4769 = vmatprep.subr.mxu0 0.0
    %4770 = vmatpush1.msra.mxu0 0.0
    %4771 = vmatprep.subr.mxu0 0.0
    %4772 = vmatpush1.msra.mxu0 0.0
    %4773 = vmatprep.subr.mxu0 0.0
    %4774 = vmatpush1.msra.mxu0 0.0
    %4775 = vmatprep.subr.mxu0 0.0
    %4776 = vmatpush1.msra.mxu0 0.0
    %4777 = vmatprep.subr.mxu0 0.0
    %4778 = vmatpush1.msra.mxu0 0.0
    %4779 = vmatprep.subr.mxu0 0.0
    %4780 = vmatpush1.msra.mxu0 0.0
    %4781 = vmatprep.subr.mxu0 0.0
    %4782 = vmatpush1.msra.mxu0 0.0
    %4783 = vmatprep.subr.mxu0 0.0
    %4784 = vmatpush1.msra.mxu0 0.0
    %4785 = vmatprep.subr.mxu0 0.0
    %4786 = vmatpush1.msra.mxu0 0.0
    %4787 = vmatprep.subr.mxu0 0.0
    %4788 = vmatpush1.msra.mxu0 0.0
    %4789 = vmatprep.subr.mxu0 0.0
    %4790 = vmatpush1.msra.mxu0 0.0
    %4791 = vmatprep.subr.mxu0 0.0
    %4792 = vmatpush1.msra.mxu0 0.0
    %4793 = vmatprep.subr.mxu0 0.0
    %4794 = vmatpush1.msra.mxu0 0.0
    %4795 = vmatprep.subr.mxu0 0.0
    %4796 = vmatpush1.msra.mxu0 %v4760
    %4797 = vmatprep.subr.mxu0 0.0
    %4798 = vmatpush2.msra.mxu0 0.0
    %4799 = vmatprep.subr.mxu0 0.0
    %4800 = vmatpush2.msra.mxu0 0.0
    %4801 = vmatprep.subr.mxu0 0.0
    %4802 = vmatpush2.msra.mxu0 0.0
    %4803 = vmatprep.subr.mxu0 0.0
    %4804 = vmatpush2.msra.mxu0 0.0
    %4805 = vmatprep.subr.mxu0 0.0
    %4806 = vmatpush2.msra.mxu0 0.0
    %4807 = vmatprep.subr.mxu0 0.0
    %4808 = vmatpush2.msra.mxu0 0.0
    %4809 = vmatprep.subr.mxu0 0.0
    %4810 = vmatpush2.msra.mxu0 0.0
    %4811 = vmatprep.subr.mxu0 0.0
    %4812 = vmatpush2.msra.mxu0 0.0
    %4813 = vmatprep.subr.mxu0 0.0
    %4814 = vmatpush2.msra.mxu0 0.0
    %4815 = vmatprep.subr.mxu0 0.0
    %4816 = vmatpush2.msra.mxu0 0.0
    %4817 = vmatprep.subr.mxu0 0.0
    %4818 = vmatpush2.msra.mxu0 0.0
    %4819 = vmatprep.subr.mxu0 0.0
    %4820 = vmatpush2.msra.mxu0 0.0
    %4821 = vmatprep.subr.mxu0 0.0
    %4822 = vmatpush2.msra.mxu0 0.0
    %4823 = vmatprep.subr.mxu0 0.0
    %4824 = vmatpush2.msra.mxu0 0.0
    %4825 = vmatprep.subr.mxu0 0.0
    %4826 = vmatpush2.msra.mxu0 0.0
    %4827 = vmatprep.subr.mxu0 0.0
    %4828 = vmatpush2.msra.mxu0 0.0
    %4829 = vmatprep.mubr.f32.mxu0 0.0
    %4830 = vmatmul.mubr.f32.gmra.mxu0 %v4763
    %v4831 = vpop.f32.mrf.mxu0
    %v4832 = vadd.f32 0.0, %v4831
    %v4833 = vpop.f32.mrf.mxu0
    %4834 = vdwg.mxu0
    %v4835 = vld [vmem:[%s8 + $0x18] sm:$0xff]
    %v4842 = vrot.slane %v4528, 7
    %v4843 = vsel %vm2567, %v4842, %v4452
    %v4844 = vrot.slane %v4604, 6
    %v4845 = vsel %vm2570, %v4844, %v4843
    %v4846 = vrot.slane %v4680, 5
    %v4847 = vsel %vm2573, %v4846, %v4845
    %v4848 = vrot.slane %v4756, 4
    %v4849 = vsel %vm2576, %v4848, %v4847
    %v4850 = vrot.slane %v4832, 3
    %v4851 = vsel %vm2579, %v4850, %v4849
    %v4852 = vsel %vm561, %v4851, 0
    %4854 = vmatprep.subr.mxu0 0.0
    %4855 = vmatpush1.msra.mxu0 0.0
    %4856 = vmatprep.subr.mxu0 0.0
    %4857 = vmatpush1.msra.mxu0 0.0
    %4858 = vmatprep.subr.mxu0 0.0
    %4859 = vmatpush1.msra.mxu0 0.0
    %4860 = vmatprep.subr.mxu0 0.0
    %4861 = vmatpush1.msra.mxu0 0.0
    %4862 = vmatprep.subr.mxu0 0.0
    %4863 = vmatpush1.msra.mxu0 0.0
    %4864 = vmatprep.subr.mxu0 0.0
    %4865 = vmatpush1.msra.mxu0 0.0
    %4866 = vmatprep.subr.mxu0 0.0
    %4867 = vmatpush1.msra.mxu0 0.0
    %4868 = vmatprep.subr.mxu0 0.0
    %4869 = vmatpush1.msra.mxu0 0.0
    %4870 = vmatprep.subr.mxu0 0.0
    %4871 = vmatpush1.msra.mxu0 0.0
    %4872 = vmatprep.subr.mxu0 0.0
    %4873 = vmatpush1.msra.mxu0 0.0
    %4874 = vmatprep.subr.mxu0 0.0
    %4875 = vmatpush1.msra.mxu0 0.0
    %4876 = vmatprep.subr.mxu0 0.0
    %4877 = vmatpush1.msra.mxu0 0.0
    %4878 = vmatprep.subr.mxu0 0.0
    %4879 = vmatpush1.msra.mxu0 0.0
    %4880 = vmatprep.subr.mxu0 0.0
    %4881 = vmatpush1.msra.mxu0 0.0
    %4882 = vmatprep.subr.mxu0 0.0
    %4883 = vmatpush1.msra.mxu0 0.0
    %4884 = vmatprep.subr.mxu0 0.0
    %4885 = vmatpush1.msra.mxu0 %v4835
    %4886 = vmatprep.subr.mxu0 0.0
    %4887 = vmatpush2.msra.mxu0 0.0
    %4888 = vmatprep.subr.mxu0 0.0
    %4889 = vmatpush2.msra.mxu0 0.0
    %4890 = vmatprep.subr.mxu0 0.0
    %4891 = vmatpush2.msra.mxu0 0.0
    %4892 = vmatprep.subr.mxu0 0.0
    %4893 = vmatpush2.msra.mxu0 0.0
    %4894 = vmatprep.subr.mxu0 0.0
    %4895 = vmatpush2.msra.mxu0 0.0
    %4896 = vmatprep.subr.mxu0 0.0
    %4897 = vmatpush2.msra.mxu0 0.0
    %4898 = vmatprep.subr.mxu0 0.0
    %4899 = vmatpush2.msra.mxu0 0.0
    %4900 = vmatprep.subr.mxu0 0.0
    %4901 = vmatpush2.msra.mxu0 0.0
    %4902 = vmatprep.subr.mxu0 0.0
    %4903 = vmatpush2.msra.mxu0 0.0
    %4904 = vmatprep.subr.mxu0 0.0
    %4905 = vmatpush2.msra.mxu0 0.0
    %4906 = vmatprep.subr.mxu0 0.0
    %4907 = vmatpush2.msra.mxu0 0.0
    %4908 = vmatprep.subr.mxu0 0.0
    %4909 = vmatpush2.msra.mxu0 0.0
    %4910 = vmatprep.subr.mxu0 0.0
    %4911 = vmatpush2.msra.mxu0 0.0
    %4912 = vmatprep.subr.mxu0 0.0
    %4913 = vmatpush2.msra.mxu0 0.0
    %4914 = vmatprep.subr.mxu0 0.0
    %4915 = vmatpush2.msra.mxu0 0.0
    %4916 = vmatprep.subr.mxu0 0.0
    %4917 = vmatpush2.msra.mxu0 0.0
    %4918 = vmatprep.mubr.f32.mxu0 0.0
    %4919 = vmatmul.mubr.f32.gmra.mxu0 %v4852
    %v4920 = vpop.f32.mrf.mxu0
    %v4921 = vadd.f32 0.0, %v4920
    %v4922 = vpop.f32.mrf.mxu0
    %4923 = vdwg.mxu0
    %v4924 = vadd.f32 %v3832, %v4921
    %v4925 = vld [vmem:[%s9] sm:$0x1]
    %v4927 = vlaneseq
    %v4928 = vshrl.u32 %v4927, 7
    %v4929 = vsub.s32 0, %v4928
    %v4930 = vrot.slane %v4925, %v4929
    %v4932 = vadd.f32 %v4924, %v4930
    %v4934 = vrot.slane %v4932, 1
    %v4935 = vrot.slane %v4932, 2
    %v4936 = vrot.slane %v4932, 3
    %v4937 = vrot.slane %v4932, 4
    %v4938 = vrot.slane %v4932, 5
    %v4945 = vadd.f32 %v409, %v4932
    %v4946 = vadd.f32 %v410, %v4934
    %v4947 = vadd.f32 %v411, %v4935
    %v4948 = vadd.f32 %v412, %v4936
    %v4949 = vadd.f32 %v413, %v4937
    %v4950 = vadd.f32 %v414, %v4938
    %v4951 = vld [vmem:[%s10] sm:$0x1]
    %v4952 = vld [vmem:[%s11] sm:$0x1]
    %v4959 = vrot.slane %v4946, 7
    %v4960 = vsel %vm2567, %v4959, %v4945
    %v4961 = vrot.slane %v4947, 6
    %v4962 = vsel %vm2570, %v4961, %v4960
    %v4963 = vrot.slane %v4948, 5
    %v4964 = vsel %vm2573, %v4963, %v4962
    %v4965 = vrot.slane %v4949, 4
    %v4966 = vsel %vm2576, %v4965, %v4964
    %v4967 = vrot.slane %v4950, 3
    %v4968 = vsel %vm2579, %v4967, %v4966
    %vm4970 = vcmask 259072
    %v4971 = vsel %vm4970, %v4968, 0.0
    %4972 = vadd.xlane.f32.xlu0 %v4971
    %v4973 = vpop.xlane.xlu0 %4972
    %v4974 = vrcp.pop 32.0
    %v4975 = vmul.f32 %v4973, %v4974
    %v4977 = vrot.slane %v4975, 1
    %v4978 = vrot.slane %v4975, 2
    %v4979 = vrot.slane %v4975, 3
    %v4980 = vrot.slane %v4975, 4
    %v4981 = vrot.slane %v4975, 5
    %v4988 = vsub.f32 %v4945, %v4975
    %v4989 = vsub.f32 %v4946, %v4977
    %v4990 = vsub.f32 %v4947, %v4978
    %v4991 = vsub.f32 %v4948, %v4979
    %v4992 = vsub.f32 %v4949, %v4980
    %v4993 = vsub.f32 %v4950, %v4981
    %v4994 = vmul.f32 %v4988, %v4988
    %v4995 = vmul.f32 %v4989, %v4989
    %v4996 = vmul.f32 %v4990, %v4990
    %v4997 = vmul.f32 %v4991, %v4991
    %v4998 = vmul.f32 %v4992, %v4992
    %v4999 = vmul.f32 %v4993, %v4993
    %v5006 = vrot.slane %v4995, 7
    %v5007 = vsel %vm2567, %v5006, %v4994
    %v5008 = vrot.slane %v4996, 6
    %v5009 = vsel %vm2570, %v5008, %v5007
    %v5010 = vrot.slane %v4997, 5
    %v5011 = vsel %vm2573, %v5010, %v5009
    %v5012 = vrot.slane %v4998, 4
    %v5013 = vsel %vm2576, %v5012, %v5011
    %v5014 = vrot.slane %v4999, 3
    %v5015 = vsel %vm2579, %v5014, %v5013
    %v5017 = vsel %vm4970, %v5015, 0.0
    %5018 = vadd.xlane.f32.xlu0 %v5017
    %v5019 = vpop.xlane.xlu0 %5018
    %v5020 = vmul.f32 %v5019, %v4974
    %v5021 = vadd.f32 %v5020, 1e-05
    %v5022 = vrsqrt.pop %v5021
    %v5024 = vrot.slane %v5022, 1
    %v5025 = vrot.slane %v5022, 2
    %v5026 = vrot.slane %v5022, 3
    %v5027 = vrot.slane %v5022, 4
    %v5028 = vrot.slane %v5022, 5
    %v5035 = vmul.f32 %v4988, %v5022
    %v5036 = vmul.f32 %v4989, %v5024
    %v5037 = vmul.f32 %v4990, %v5025
    %v5038 = vmul.f32 %v4991, %v5026
    %v5039 = vmul.f32 %v4992, %v5027
    %v5040 = vmul.f32 %v4993, %v5028
    %v5042 = vlaneseq
    %v5043 = vshrl.u32 %v5042, 7
    %v5044 = vsub.s32 0, %v5043
    %v5045 = vrot.slane %v4951, %v5044
    %v5047 = vmul.f32 %v5035, %v5045
    %v5048 = vmul.f32 %v5036, %v5045
    %v5049 = vmul.f32 %v5037, %v5045
    %v5050 = vmul.f32 %v5038, %v5045
    %v5051 = vmul.f32 %v5039, %v5045
    %v5052 = vmul.f32 %v5040, %v5045
    %v5054 = vlaneseq
    %v5055 = vshrl.u32 %v5054, 7
    %v5056 = vsub.s32 0, %v5055
    %v5057 = vrot.slane %v4952, %v5056
    %v5059 = vadd.f32 %v5047, %v5057
    %v5060 = vadd.f32 %v5048, %v5057
    %v5061 = vadd.f32 %v5049, %v5057
    %v5062 = vadd.f32 %v5050, %v5057
    %v5063 = vadd.f32 %v5051, %v5057
    %v5064 = vadd.f32 %v5052, %v5057
    %v5065 = vld [vmem:[%s12] sm:$0xff]
    %v5066 = vld [vmem:[%s12 + $0x8] sm:$0xff]
    %v5067 = vld [vmem:[%s12 + $0x10] sm:$0xff]
    %v5068 = vld [vmem:[%s12 + $0x18] sm:$0xff]
    %v5069 = vld [vmem:[%s13] sm:$0x1]
    %v5071 = vlaneseq
    %v5072 = vshrl.u32 %v5071, 7
    %v5073 = vsub.s32 0, %v5072
    %v5074 = vrot.slane %v5069, %v5073
    %v5082 = vrot.slane %v5060, 7
    %v5083 = vsel %vm2567, %v5082, %v5059
    %v5084 = vrot.slane %v5061, 6
    %v5085 = vsel %vm2570, %v5084, %v5083
    %v5086 = vrot.slane %v5062, 5
    %v5087 = vsel %vm2573, %v5086, %v5085
    %v5088 = vrot.slane %v5063, 4
    %v5089 = vsel %vm2576, %v5088, %v5087
    %v5090 = vrot.slane %v5064, 3
    %v5091 = vsel %vm2579, %v5090, %v5089
    %v5092 = vsel %vm426, %v5091, 0
    %5094 = vmatprep.subr.mxu0 0.0
    %5095 = vmatpush1.msra.mxu0 0.0
    %5096 = vmatprep.subr.mxu0 0.0
    %5097 = vmatpush1.msra.mxu0 0.0
    %5098 = vmatprep.subr.mxu0 0.0
    %5099 = vmatpush1.msra.mxu0 0.0
    %5100 = vmatprep.subr.mxu0 0.0
    %5101 = vmatpush1.msra.mxu0 0.0
    %5102 = vmatprep.subr.mxu0 0.0
    %5103 = vmatpush1.msra.mxu0 0.0
    %5104 = vmatprep.subr.mxu0 0.0
    %5105 = vmatpush1.msra.mxu0 0.0
    %5106 = vmatprep.subr.mxu0 0.0
    %5107 = vmatpush1.msra.mxu0 0.0
    %5108 = vmatprep.subr.mxu0 0.0
    %5109 = vmatpush1.msra.mxu0 0.0
    %5110 = vmatprep.subr.mxu0 0.0
    %5111 = vmatpush1.msra.mxu0 0.0
    %5112 = vmatprep.subr.mxu0 0.0
    %5113 = vmatpush1.msra.mxu0 0.0
    %5114 = vmatprep.subr.mxu0 0.0
    %5115 = vmatpush1.msra.mxu0 0.0
    %5116 = vmatprep.subr.mxu0 0.0
    %5117 = vmatpush1.msra.mxu0 0.0
    %5118 = vmatprep.subr.mxu0 0.0
    %5119 = vmatpush1.msra.mxu0 %v5068
    %5120 = vmatprep.subr.mxu0 0.0
    %5121 = vmatpush1.msra.mxu0 %v5067
    %5122 = vmatprep.subr.mxu0 0.0
    %5123 = vmatpush1.msra.mxu0 %v5066
    %5124 = vmatprep.subr.mxu0 0.0
    %5125 = vmatpush1.msra.mxu0 %v5065
    %5126 = vmatprep.subr.mxu0 0.0
    %5127 = vmatpush2.msra.mxu0 0.0
    %5128 = vmatprep.subr.mxu0 0.0
    %5129 = vmatpush2.msra.mxu0 0.0
    %5130 = vmatprep.subr.mxu0 0.0
    %5131 = vmatpush2.msra.mxu0 0.0
    %5132 = vmatprep.subr.mxu0 0.0
    %5133 = vmatpush2.msra.mxu0 0.0
    %5134 = vmatprep.subr.mxu0 0.0
    %5135 = vmatpush2.msra.mxu0 0.0
    %5136 = vmatprep.subr.mxu0 0.0
    %5137 = vmatpush2.msra.mxu0 0.0
    %5138 = vmatprep.subr.mxu0 0.0
    %5139 = vmatpush2.msra.mxu0 0.0
    %5140 = vmatprep.subr.mxu0 0.0
    %5141 = vmatpush2.msra.mxu0 0.0
    %5142 = vmatprep.subr.mxu0 0.0
    %5143 = vmatpush2.msra.mxu0 0.0
    %5144 = vmatprep.subr.mxu0 0.0
    %5145 = vmatpush2.msra.mxu0 0.0
    %5146 = vmatprep.subr.mxu0 0.0
    %5147 = vmatpush2.msra.mxu0 0.0
    %5148 = vmatprep.subr.mxu0 0.0
    %5149 = vmatpush2.msra.mxu0 0.0
    %5150 = vmatprep.subr.mxu0 0.0
    %5151 = vmatpush2.msra.mxu0 0.0
    %5152 = vmatprep.subr.mxu0 0.0
    %5153 = vmatpush2.msra.mxu0 0.0
    %5154 = vmatprep.subr.mxu0 0.0
    %5155 = vmatpush2.msra.mxu0 0.0
    %5156 = vmatprep.subr.mxu0 0.0
    %5157 = vmatpush2.msra.mxu0 0.0
    %5158 = vmatprep.mubr.f32.mxu0 0.0
    %5159 = vmatmul.mubr.f32.gmra.mxu0 %v5092
    %v5160 = vpop.f32.mrf.mxu0
    %v5161 = vadd.f32 %v5074, %v5160
    %v5162 = vpop.f32.mrf.mxu0
    %5163 = vdwg.mxu0
    %v5164 = vmul.f32 %v5161, %v5161
    %v5165 = vmul.f32 %v5161, %v5164
    %v5166 = vmul.f32 %v5165, 0.044715
    %v5167 = vadd.f32 %v5161, %v5166
    %v5168 = vmul.f32 %v5167, 0.7978846
    %v5169 = vtanh.pop %v5168
    %v5170 = vadd.f32 %v5169, 1.0
    %v5171 = vmul.f32 %v5170, 0.5
    %v5172 = vmul.f32 %v5161, %v5171
    %v5173 = vld [vmem:[%s14] sm:$0xff]
    %v5174 = vld [vmem:[%s14 + $0x8] sm:$0xff]
    %v5175 = vld [vmem:[%s14 + $0x10] sm:$0xff]
    %v5176 = vld [vmem:[%s14 + $0x18] sm:$0xff]
    %v5177 = vld [vmem:[%s14 + $0x20] sm:$0xff]
    %v5178 = vld [vmem:[%s14 + $0x28] sm:$0xff]
    %v5179 = vld [vmem:[%s14 + $0x30] sm:$0xff]
    %v5180 = vld [vmem:[%s14 + $0x38] sm:$0xff]
    %v5181 = vld [vmem:[%s15] sm:$0x1]
    %v5183 = vlaneseq
    %v5184 = vshrl.u32 %v5183, 7
    %v5185 = vsub.s32 0, %v5184
    %v5186 = vrot.slane %v5181, %v5185
    %vm5188 = vcmask 523264
    %v5190 = vsel %vm5188, %v5172, 0
    %5192 = vmatprep.subr.mxu0 0.0
    %5193 = vmatpush1.msra.mxu0 0.0
    %5194 = vmatprep.subr.mxu0 0.0
    %5195 = vmatpush1.msra.mxu0 0.0
    %5196 = vmatprep.subr.mxu0 0.0
    %5197 = vmatpush1.msra.mxu0 0.0
    %5198 = vmatprep.subr.mxu0 0.0
    %5199 = vmatpush1.msra.mxu0 0.0
    %5200 = vmatprep.subr.mxu0 0.0
    %5201 = vmatpush1.msra.mxu0 0.0
    %5202 = vmatprep.subr.mxu0 0.0
    %5203 = vmatpush1.msra.mxu0 0.0
    %5204 = vmatprep.subr.mxu0 0.0
    %5205 = vmatpush1.msra.mxu0 0.0
    %5206 = vmatprep.subr.mxu0 0.0
    %5207 = vmatpush1.msra.mxu0 0.0
    %5208 = vmatprep.subr.mxu0 0.0
    %5209 = vmatpush1.msra.mxu0 %v5180
    %5210 = vmatprep.subr.mxu0 0.0
    %5211 = vmatpush1.msra.mxu0 %v5179
    %5212 = vmatprep.subr.mxu0 0.0
    %5213 = vmatpush1.msra.mxu0 %v5178
    %5214 = vmatprep.subr.mxu0 0.0
    %5215 = vmatpush1.msra.mxu0 %v5177
    %5216 = vmatprep.subr.mxu0 0.0
    %5217 = vmatpush1.msra.mxu0 %v5176
    %5218 = vmatprep.subr.mxu0 0.0
    %5219 = vmatpush1.msra.mxu0 %v5175
    %5220 = vmatprep.subr.mxu0 0.0
    %5221 = vmatpush1.msra.mxu0 %v5174
    %5222 = vmatprep.subr.mxu0 0.0
    %5223 = vmatpush1.msra.mxu0 %v5173
    %5224 = vmatprep.subr.mxu0 0.0
    %5225 = vmatpush2.msra.mxu0 0.0
    %5226 = vmatprep.subr.mxu0 0.0
    %5227 = vmatpush2.msra.mxu0 0.0
    %5228 = vmatprep.subr.mxu0 0.0
    %5229 = vmatpush2.msra.mxu0 0.0
    %5230 = vmatprep.subr.mxu0 0.0
    %5231 = vmatpush2.msra.mxu0 0.0
    %5232 = vmatprep.subr.mxu0 0.0
    %5233 = vmatpush2.msra.mxu0 0.0
    %5234 = vmatprep.subr.mxu0 0.0
    %5235 = vmatpush2.msra.mxu0 0.0
    %5236 = vmatprep.subr.mxu0 0.0
    %5237 = vmatpush2.msra.mxu0 0.0
    %5238 = vmatprep.subr.mxu0 0.0
    %5239 = vmatpush2.msra.mxu0 0.0
    %5240 = vmatprep.subr.mxu0 0.0
    %5241 = vmatpush2.msra.mxu0 0.0
    %5242 = vmatprep.subr.mxu0 0.0
    %5243 = vmatpush2.msra.mxu0 0.0
    %5244 = vmatprep.subr.mxu0 0.0
    %5245 = vmatpush2.msra.mxu0 0.0
    %5246 = vmatprep.subr.mxu0 0.0
    %5247 = vmatpush2.msra.mxu0 0.0
    %5248 = vmatprep.subr.mxu0 0.0
    %5249 = vmatpush2.msra.mxu0 0.0
    %5250 = vmatprep.subr.mxu0 0.0
    %5251 = vmatpush2.msra.mxu0 0.0
    %5252 = vmatprep.subr.mxu0 0.0
    %5253 = vmatpush2.msra.mxu0 0.0
    %5254 = vmatprep.subr.mxu0 0.0
    %5255 = vmatpush2.msra.mxu0 0.0
    %5256 = vmatprep.mubr.f32.mxu0 0.0
    %5257 = vmatmul.mubr.f32.gmra.mxu0 %v5190
    %v5258 = vpop.f32.mrf.mxu0
    %v5259 = vadd.f32 %v5186, %v5258
    %v5260 = vpop.f32.mrf.mxu0
    %5261 = vdwg.mxu0
    %v5263 = vrot.slane %v5259, 1
    %v5264 = vrot.slane %v5259, 2
    %v5265 = vrot.slane %v5259, 3
    %v5266 = vrot.slane %v5259, 4
    %v5267 = vrot.slane %v5259, 5
    %v5274 = vadd.f32 %v5059, %v5259
    %v5275 = vadd.f32 %v5060, %v5263
    %v5276 = vadd.f32 %v5061, %v5264
    %v5277 = vadd.f32 %v5062, %v5265
    %v5278 = vadd.f32 %v5063, %v5266
    %v5279 = vadd.f32 %v5064, %v5267
    %v5280 = vld [vmem:[%s16] sm:$0x1]
    %v5281 = vld [vmem:[%s17] sm:$0x1]
    %v5288 = vrot.slane %v5275, 7
    %v5289 = vsel %vm2567, %v5288, %v5274
    %v5290 = vrot.slane %v5276, 6
    %v5291 = vsel %vm2570, %v5290, %v5289
    %v5292 = vrot.slane %v5277, 5
    %v5293 = vsel %vm2573, %v5292, %v5291
    %v5294 = vrot.slane %v5278, 4
    %v5295 = vsel %vm2576, %v5294, %v5293
    %v5296 = vrot.slane %v5279, 3
    %v5297 = vsel %vm2579, %v5296, %v5295
    %v5299 = vsel %vm4970, %v5297, 0.0
    %5300 = vadd.xlane.f32.xlu0 %v5299
    %v5301 = vpop.xlane.xlu0 %5300
    %v5302 = vmul.f32 %v5301, %v4974
    %v5304 = vrot.slane %v5302, 1
    %v5305 = vrot.slane %v5302, 2
    %v5306 = vrot.slane %v5302, 3
    %v5307 = vrot.slane %v5302, 4
    %v5308 = vrot.slane %v5302, 5
    %v5315 = vsub.f32 %v5274, %v5302
    %v5316 = vsub.f32 %v5275, %v5304
    %v5317 = vsub.f32 %v5276, %v5305
    %v5318 = vsub.f32 %v5277, %v5306
    %v5319 = vsub.f32 %v5278, %v5307
    %v5320 = vsub.f32 %v5279, %v5308
    %v5321 = vmul.f32 %v5315, %v5315
    %v5322 = vmul.f32 %v5316, %v5316
    %v5323 = vmul.f32 %v5317, %v5317
    %v5324 = vmul.f32 %v5318, %v5318
    %v5325 = vmul.f32 %v5319, %v5319
    %v5326 = vmul.f32 %v5320, %v5320
    %v5333 = vrot.slane %v5322, 7
    %v5334 = vsel %vm2567, %v5333, %v5321
    %v5335 = vrot.slane %v5323, 6
    %v5336 = vsel %vm2570, %v5335, %v5334
    %v5337 = vrot.slane %v5324, 5
    %v5338 = vsel %vm2573, %v5337, %v5336
    %v5339 = vrot.slane %v5325, 4
    %v5340 = vsel %vm2576, %v5339, %v5338
    %v5341 = vrot.slane %v5326, 3
    %v5342 = vsel %vm2579, %v5341, %v5340
    %v5344 = vsel %vm4970, %v5342, 0.0
    %5345 = vadd.xlane.f32.xlu0 %v5344
    %v5346 = vpop.xlane.xlu0 %5345
    %v5347 = vmul.f32 %v5346, %v4974
    %v5348 = vadd.f32 %v5347, 1e-05
    %v5349 = vrsqrt.pop %v5348
    %v5351 = vrot.slane %v5349, 1
    %v5352 = vrot.slane %v5349, 2
    %v5353 = vrot.slane %v5349, 3
    %v5354 = vrot.slane %v5349, 4
    %v5355 = vrot.slane %v5349, 5
    %v5362 = vmul.f32 %v5315, %v5349
    %v5363 = vmul.f32 %v5316, %v5351
    %v5364 = vmul.f32 %v5317, %v5352
    %v5365 = vmul.f32 %v5318, %v5353
    %v5366 = vmul.f32 %v5319, %v5354
    %v5367 = vmul.f32 %v5320, %v5355
    %v5369 = vlaneseq
    %v5370 = vshrl.u32 %v5369, 7
    %v5371 = vsub.s32 0, %v5370
    %v5372 = vrot.slane %v5280, %v5371
    %v5374 = vmul.f32 %v5362, %v5372
    %v5375 = vmul.f32 %v5363, %v5372
    %v5376 = vmul.f32 %v5364, %v5372
    %v5377 = vmul.f32 %v5365, %v5372
    %v5378 = vmul.f32 %v5366, %v5372
    %v5379 = vmul.f32 %v5367, %v5372
    %v5381 = vlaneseq
    %v5382 = vshrl.u32 %v5381, 7
    %v5383 = vsub.s32 0, %v5382
    %v5384 = vrot.slane %v5281, %v5383
    %v5386 = vadd.f32 %v5374, %v5384
    %v5387 = vadd.f32 %v5375, %v5384
    %v5388 = vadd.f32 %v5376, %v5384
    %v5389 = vadd.f32 %v5377, %v5384
    %v5390 = vadd.f32 %v5378, %v5384
    %v5391 = vadd.f32 %v5379, %v5384
    %s5392 = sld [smem:[#allocation2]]
    %v5393 = vld [vmem:[%s18] sm:$0xff]
    %v5394 = vld [vmem:[%s18 + $0x8] sm:$0xff]
    %v5395 = vld [vmem:[%s18 + $0x10] sm:$0xff]
    %v5396 = vld [vmem:[%s18 + $0x18] sm:$0xff]
    %v5397 = vld [vmem:[%s19] sm:$0x1]
    %v5399 = vlaneseq
    %v5400 = vshrl.u32 %v5399, 7
    %v5401 = vsub.s32 0, %v5400
    %v5402 = vrot.slane %v5397, %v5401
    %v5406 = vrot.slane %v5387, 7
    %v5407 = vsel %vm2567, %v5406, %v5386
    %v5408 = vsel %vm426, %v5407, 0
    %5410 = vmatprep.subr.mxu0 0.0
    %5411 = vmatpush1.msra.mxu0 0.0
    %5412 = vmatprep.subr.mxu0 0.0
    %5413 = vmatpush1.msra.mxu0 0.0
    %5414 = vmatprep.subr.mxu0 0.0
    %5415 = vmatpush1.msra.mxu0 0.0
    %5416 = vmatprep.subr.mxu0 0.0
    %5417 = vmatpush1.msra.mxu0 0.0
    %5418 = vmatprep.subr.mxu0 0.0
    %5419 = vmatpush1.msra.mxu0 0.0
    %5420 = vmatprep.subr.mxu0 0.0
    %5421 = vmatpush1.msra.mxu0 0.0
    %5422 = vmatprep.subr.mxu0 0.0
    %5423 = vmatpush1.msra.mxu0 0.0
    %5424 = vmatprep.subr.mxu0 0.0
    %5425 = vmatpush1.msra.mxu0 0.0
    %5426 = vmatprep.subr.mxu0 0.0
    %5427 = vmatpush1.msra.mxu0 0.0
    %5428 = vmatprep.subr.mxu0 0.0
    %5429 = vmatpush1.msra.mxu0 0.0
    %5430 = vmatprep.subr.mxu0 0.0
    %5431 = vmatpush1.msra.mxu0 0.0
    %5432 = vmatprep.subr.mxu0 0.0
    %5433 = vmatpush1.msra.mxu0 0.0
    %5434 = vmatprep.subr.mxu0 0.0
    %5435 = vmatpush1.msra.mxu0 %v5396
    %5436 = vmatprep.subr.mxu0 0.0
    %5437 = vmatpush1.msra.mxu0 %v5395
    %5438 = vmatprep.subr.mxu0 0.0
    %5439 = vmatpush1.msra.mxu0 %v5394
    %5440 = vmatprep.subr.mxu0 0.0
    %5441 = vmatpush1.msra.mxu0 %v5393
    %5442 = vmatprep.subr.mxu0 0.0
    %5443 = vmatpush2.msra.mxu0 0.0
    %5444 = vmatprep.subr.mxu0 0.0
    %5445 = vmatpush2.msra.mxu0 0.0
    %5446 = vmatprep.subr.mxu0 0.0
    %5447 = vmatpush2.msra.mxu0 0.0
    %5448 = vmatprep.subr.mxu0 0.0
    %5449 = vmatpush2.msra.mxu0 0.0
    %5450 = vmatprep.subr.mxu0 0.0
    %5451 = vmatpush2.msra.mxu0 0.0
    %5452 = vmatprep.subr.mxu0 0.0
    %5453 = vmatpush2.msra.mxu0 0.0
    %5454 = vmatprep.subr.mxu0 0.0
    %5455 = vmatpush2.msra.mxu0 0.0
    %5456 = vmatprep.subr.mxu0 0.0
    %5457 = vmatpush2.msra.mxu0 0.0
    %5458 = vmatprep.subr.mxu0 0.0
    %5459 = vmatpush2.msra.mxu0 0.0
    %5460 = vmatprep.subr.mxu0 0.0
    %5461 = vmatpush2.msra.mxu0 0.0
    %5462 = vmatprep.subr.mxu0 0.0
    %5463 = vmatpush2.msra.mxu0 0.0
    %5464 = vmatprep.subr.mxu0 0.0
    %5465 = vmatpush2.msra.mxu0 0.0
    %5466 = vmatprep.subr.mxu0 0.0
    %5467 = vmatpush2.msra.mxu0 0.0
    %5468 = vmatprep.subr.mxu0 0.0
    %5469 = vmatpush2.msra.mxu0 0.0
    %5470 = vmatprep.subr.mxu0 0.0
    %5471 = vmatpush2.msra.mxu0 0.0
    %5472 = vmatprep.subr.mxu0 0.0
    %5473 = vmatpush2.msra.mxu0 0.0
    %5474 = vmatprep.mubr.f32.mxu0 0.0
    %5475 = vmatmul.mubr.f32.gmra.mxu0 %v5408
    %v5476 = vpop.f32.mrf.mxu0
    %v5477 = vadd.f32 %v5402, %v5476
    %v5478 = vpop.f32.mrf.mxu0
    %5479 = vdwg.mxu0
    %v5480 = vld [vmem:[%s20] sm:$0xff]
    %v5481 = vld [vmem:[%s20 + $0x8] sm:$0xff]
    %v5482 = vld [vmem:[%s20 + $0x10] sm:$0xff]
    %v5483 = vld [vmem:[%s20 + $0x18] sm:$0xff]
    %v5484 = vld [vmem:[%s21] sm:$0x1]
    %v5486 = vlaneseq
    %v5487 = vshrl.u32 %v5486, 7
    %v5488 = vsub.s32 0, %v5487
    %v5489 = vrot.slane %v5484, %v5488
    %v5493 = vrot.slane %v5389, 7
    %v5494 = vsel %vm2567, %v5493, %v5388
    %v5495 = vsel %vm426, %v5494, 0
    %5497 = vmatprep.subr.mxu0 0.0
    %5498 = vmatpush1.msra.mxu0 0.0
    %5499 = vmatprep.subr.mxu0 0.0
    %5500 = vmatpush1.msra.mxu0 0.0
    %5501 = vmatprep.subr.mxu0 0.0
    %5502 = vmatpush1.msra.mxu0 0.0
    %5503 = vmatprep.subr.mxu0 0.0
    %5504 = vmatpush1.msra.mxu0 0.0
    %5505 = vmatprep.subr.mxu0 0.0
    %5506 = vmatpush1.msra.mxu0 0.0
    %5507 = vmatprep.subr.mxu0 0.0
    %5508 = vmatpush1.msra.mxu0 0.0
    %5509 = vmatprep.subr.mxu0 0.0
    %5510 = vmatpush1.msra.mxu0 0.0
    %5511 = vmatprep.subr.mxu0 0.0
    %5512 = vmatpush1.msra.mxu0 0.0
    %5513 = vmatprep.subr.mxu0 0.0
    %5514 = vmatpush1.msra.mxu0 0.0
    %5515 = vmatprep.subr.mxu0 0.0
    %5516 = vmatpush1.msra.mxu0 0.0
    %5517 = vmatprep.subr.mxu0 0.0
    %5518 = vmatpush1.msra.mxu0 0.0
    %5519 = vmatprep.subr.mxu0 0.0
    %5520 = vmatpush1.msra.mxu0 0.0
    %5521 = vmatprep.subr.mxu0 0.0
    %5522 = vmatpush1.msra.mxu0 %v5483
    %5523 = vmatprep.subr.mxu0 0.0
    %5524 = vmatpush1.msra.mxu0 %v5482
    %5525 = vmatprep.subr.mxu0 0.0
    %5526 = vmatpush1.msra.mxu0 %v5481
    %5527 = vmatprep.subr.mxu0 0.0
    %5528 = vmatpush1.msra.mxu0 %v5480
    %5529 = vmatprep.subr.mxu0 0.0
    %5530 = vmatpush2.msra.mxu0 0.0
    %5531 = vmatprep.subr.mxu0 0.0
    %5532 = vmatpush2.msra.mxu0 0.0
    %5533 = vmatprep.subr.mxu0 0.0
    %5534 = vmatpush2.msra.mxu0 0.0
    %5535 = vmatprep.subr.mxu0 0.0
    %5536 = vmatpush2.msra.mxu0 0.0
    %5537 = vmatprep.subr.mxu0 0.0
    %5538 = vmatpush2.msra.mxu0 0.0
    %5539 = vmatprep.subr.mxu0 0.0
    %5540 = vmatpush2.msra.mxu0 0.0
    %5541 = vmatprep.subr.mxu0 0.0
    %5542 = vmatpush2.msra.mxu0 0.0
    %5543 = vmatprep.subr.mxu0 0.0
    %5544 = vmatpush2.msra.mxu0 0.0
    %5545 = vmatprep.subr.mxu0 0.0
    %5546 = vmatpush2.msra.mxu0 0.0
    %5547 = vmatprep.subr.mxu0 0.0
    %5548 = vmatpush2.msra.mxu0 0.0
    %5549 = vmatprep.subr.mxu0 0.0
    %5550 = vmatpush2.msra.mxu0 0.0
    %5551 = vmatprep.subr.mxu0 0.0
    %5552 = vmatpush2.msra.mxu0 0.0
    %5553 = vmatprep.subr.mxu0 0.0
    %5554 = vmatpush2.msra.mxu0 0.0
    %5555 = vmatprep.subr.mxu0 0.0
    %5556 = vmatpush2.msra.mxu0 0.0
    %5557 = vmatprep.subr.mxu0 0.0
    %5558 = vmatpush2.msra.mxu0 0.0
    %5559 = vmatprep.subr.mxu0 0.0
    %5560 = vmatpush2.msra.mxu0 0.0
    %5561 = vmatprep.mubr.f32.mxu0 0.0
    %5562 = vmatmul.mubr.f32.gmra.mxu0 %v5495
    %v5563 = vpop.f32.mrf.mxu0
    %v5564 = vadd.f32 %v5489, %v5563
    %v5565 = vpop.f32.mrf.mxu0
    %5566 = vdwg.mxu0
    %v5567 = vld [vmem:[%s22] sm:$0xff]
    %v5568 = vld [vmem:[%s22 + $0x8] sm:$0xff]
    %v5569 = vld [vmem:[%s22 + $0x10] sm:$0xff]
    %v5570 = vld [vmem:[%s22 + $0x18] sm:$0xff]
    %v5571 = vld [vmem:[%s23] sm:$0x1]
    %v5573 = vlaneseq
    %v5574 = vshrl.u32 %v5573, 7
    %v5575 = vsub.s32 0, %v5574
    %v5576 = vrot.slane %v5571, %v5575
    %v5580 = vrot.slane %v5391, 7
    %v5581 = vsel %vm2567, %v5580, %v5390
    %v5582 = vsel %vm426, %v5581, 0
    %5584 = vmatprep.subr.mxu0 0.0
    %5585 = vmatpush1.msra.mxu0 0.0
    %5586 = vmatprep.subr.mxu0 0.0
    %5587 = vmatpush1.msra.mxu0 0.0
    %5588 = vmatprep.subr.mxu0 0.0
    %5589 = vmatpush1.msra.mxu0 0.0
    %5590 = vmatprep.subr.mxu0 0.0
    %5591 = vmatpush1.msra.mxu0 0.0
    %5592 = vmatprep.subr.mxu0 0.0
    %5593 = vmatpush1.msra.mxu0 0.0
    %5594 = vmatprep.subr.mxu0 0.0
    %5595 = vmatpush1.msra.mxu0 0.0
    %5596 = vmatprep.subr.mxu0 0.0
    %5597 = vmatpush1.msra.mxu0 0.0
    %5598 = vmatprep.subr.mxu0 0.0
    %5599 = vmatpush1.msra.mxu0 0.0
    %5600 = vmatprep.subr.mxu0 0.0
    %5601 = vmatpush1.msra.mxu0 0.0
    %5602 = vmatprep.subr.mxu0 0.0
    %5603 = vmatpush1.msra.mxu0 0.0
    %5604 = vmatprep.subr.mxu0 0.0
    %5605 = vmatpush1.msra.mxu0 0.0
    %5606 = vmatprep.subr.mxu0 0.0
    %5607 = vmatpush1.msra.mxu0 0.0
    %5608 = vmatprep.subr.mxu0 0.0
    %5609 = vmatpush1.msra.mxu0 %v5570
    %5610 = vmatprep.subr.mxu0 0.0
    %5611 = vmatpush1.msra.mxu0 %v5569
    %5612 = vmatprep.subr.mxu0 0.0
    %5613 = vmatpush1.msra.mxu0 %v5568
    %5614 = vmatprep.subr.mxu0 0.0
    %5615 = vmatpush1.msra.mxu0 %v5567
    %5616 = vmatprep.subr.mxu0 0.0
    %5617 = vmatpush2.msra.mxu0 0.0
    %5618 = vmatprep.subr.mxu0 0.0
    %5619 = vmatpush2.msra.mxu0 0.0
    %5620 = vmatprep.subr.mxu0 0.0
    %5621 = vmatpush2.msra.mxu0 0.0
    %5622 = vmatprep.subr.mxu0 0.0
    %5623 = vmatpush2.msra.mxu0 0.0
    %5624 = vmatprep.subr.mxu0 0.0
    %5625 = vmatpush2.msra.mxu0 0.0
    %5626 = vmatprep.subr.mxu0 0.0
    %5627 = vmatpush2.msra.mxu0 0.0
    %5628 = vmatprep.subr.mxu0 0.0
    %5629 = vmatpush2.msra.mxu0 0.0
    %5630 = vmatprep.subr.mxu0 0.0
    %5631 = vmatpush2.msra.mxu0 0.0
    %5632 = vmatprep.subr.mxu0 0.0
    %5633 = vmatpush2.msra.mxu0 0.0
    %5634 = vmatprep.subr.mxu0 0.0
    %5635 = vmatpush2.msra.mxu0 0.0
    %5636 = vmatprep.subr.mxu0 0.0
    %5637 = vmatpush2.msra.mxu0 0.0
    %5638 = vmatprep.subr.mxu0 0.0
    %5639 = vmatpush2.msra.mxu0 0.0
    %5640 = vmatprep.subr.mxu0 0.0
    %5641 = vmatpush2.msra.mxu0 0.0
    %5642 = vmatprep.subr.mxu0 0.0
    %5643 = vmatpush2.msra.mxu0 0.0
    %5644 = vmatprep.subr.mxu0 0.0
    %5645 = vmatpush2.msra.mxu0 0.0
    %5646 = vmatprep.subr.mxu0 0.0
    %5647 = vmatpush2.msra.mxu0 0.0
    %5648 = vmatprep.mubr.f32.mxu0 0.0
    %5649 = vmatmul.mubr.f32.gmra.mxu0 %v5582
    %v5650 = vpop.f32.mrf.mxu0
    %v5651 = vadd.f32 %v5576, %v5650
    %v5652 = vpop.f32.mrf.mxu0
    %5653 = vdwg.mxu0
    %v5654 = vld [vmem:[%s3] sm:$0x3]
    %5655 = vset.pattern.permute.xlu0 0
    %5656 = vperm.xlu0 %5655, %v5654
    %v5657 = vpop.permute.xlu0 %5656
    %vm5658 = vcmp.eq.s32.totalorder %v92, %v5657
    %v5659 = vstv %s5392
    %v5660 = vrcp.pop %v5659
    %v5661 = vmul.f32 %v5564, %v5660
    %vm5662 = vcmask 33792
    %v5663 = vsel %vm5662, %v5661, -inf
    %5664 = vmax.xlane.f32.xlu0 %v5663
    %v5665 = vpop.xlane.xlu0 %5664
    %v5666 = vsub.f32 %v5661, %v5665
    %v5667 = vmul.f32 %v5666, 1.442695
    %v5668 = vpow.pop %v5667
    %v5669 = vsel %vm5662, %v5668, 0.0
    %5670 = vadd.xlane.f32.xlu0 %v5669
    %v5671 = vpop.xlane.xlu0 %5670
    %v5672 = vlog2.pop %v5671
    %v5673 = vmul.f32 %v5672, 0.6931472
    %v5674 = vsub.f32 %v5666, %v5673
    %v5675 = vmul.f32 %v5477, %v5660
    %v5676 = vsel %vm5662, %v5675, -inf
    %5677 = vmax.xlane.f32.xlu0 %v5676
    %v5678 = vpop.xlane.xlu0 %5677
    %v5679 = vsub.f32 %v5675, %v5678
    %v5680 = vmul.f32 %v5679, 1.442695
    %v5681 = vpow.pop %v5680
    %v5682 = vsel %vm5662, %v5681, 0.0
    %5683 = vadd.xlane.f32.xlu0 %v5682
    %v5684 = vpop.xlane.xlu0 %5683
    %v5685 = vrcp.pop %v5684
    %v5686 = vmul.f32 %v5681, %v5685
    %v5687 = vlog2.pop %v5686
    %v5688 = vmul.f32 %v5687, 0.6931472
    %v5689 = vsub.f32 %v5688, %v5674
    %v5690 = vmul.f32 %v5686, %v5689
    %v5691 = vsel %vm5662, %v5690, 0.0
    %5692 = vadd.xlane.f32.xlu0 %v5691
    %v5693 = vpop.xlane.xlu0 %5692
    %v5694 = vrot.slane %v5693, 4
    %v5695 = vadd.f32 %v5693, %v5694
    %v5696 = vrot.slane %v5695, 2
    %v5697 = vadd.f32 %v5695, %v5696
    %v5698 = vrot.slane %v5697, 1
    %v5699 = vadd.f32 %v5697, %v5698
    %s5700 = vtos %v5699
    %v5701 = vrcp.pop 2.0
    %s5702 = vtos %v5701
    %s5703 = smul.f32 %s5700, %s5702
    %v5704 = vmul.f32 %v5651, %v5660
    %v5705 = vsel %vm5662, %v5704, -inf
    %5706 = vmax.xlane.f32.xlu0 %v5705
    %v5707 = vpop.xlane.xlu0 %5706
    %v5708 = vsub.f32 %v5704, %v5707
    %v5709 = vmul.f32 %v5708, 1.442695
    %v5710 = vpow.pop %v5709
    %v5711 = vsel %vm5662, %v5710, 0.0
    %5712 = vadd.xlane.f32.xlu0 %v5711
    %v5713 = vpop.xlane.xlu0 %5712
    %v5714 = vlog2.pop %v5713
    %v5715 = vmul.f32 %v5714, 0.6931472
    %v5716 = vsub.f32 %v5708, %v5715
    %v5717 = vsub.f32 %v5688, %v5716
    %v5718 = vmul.f32 %v5686, %v5717
    %v5719 = vsel %vm5662, %v5718, 0.0
    %5720 = vadd.xlane.f32.xlu0 %v5719
    %v5721 = vpop.xlane.xlu0 %5720
    %v5722 = vrot.slane %v5721, 4
    %v5723 = vadd.f32 %v5721, %v5722
    %v5724 = vrot.slane %v5723, 2
    %v5725 = vadd.f32 %v5723, %v5724
    %v5726 = vrot.slane %v5725, 1
    %v5727 = vadd.f32 %v5725, %v5726
    %s5728 = vtos %v5727
    %v5729 = vrcp.pop 2.0
    %s5730 = vtos %v5729
    %s5731 = smul.f32 %s5728, %s5730
    %v5732 = vrcp.pop %v5671
    %v5733 = vmul.f32 %v5668, %v5732
    %v5734 = vlog2.pop %v5733
    %v5735 = vmul.f32 %v5734, 0.6931472
    %v5736 = vsub.f32 %v5735, %v5716
    %v5737 = vmul.f32 %v5733, %v5736
    %v5738 = vsel %vm5662, %v5737, 0.0
    %5739 = vadd.xlane.f32.xlu0 %v5738
    %v5740 = vpop.xlane.xlu0 %5739
    %v5741 = vrot.slane %v5740, 4
    %v5742 = vadd.f32 %v5740, %v5741
    %v5743 = vrot.slane %v5742, 2
    %v5744 = vadd.f32 %v5742, %v5743
    %v5745 = vrot.slane %v5744, 1
    %v5746 = vadd.f32 %v5744, %v5745
    %s5747 = vtos %v5746
    %v5748 = vrcp.pop 2.0
    %s5749 = vtos %v5748
    %s5750 = smul.f32 %s5747, %s5749
    %v5751 = vsel %vm5662, %v5477, -inf
    %5752 = vmax.xlane.f32.xlu0 %v5751
    %v5753 = vpop.xlane.xlu0 %5752
    %v5754 = vsub.f32 %v5477, %v5753
    %v5755 = vmul.f32 %v5754, 1.442695
    %v5756 = vpow.pop %v5755
    %v5757 = vsel %vm5662, %v5756, 0.0
    %5758 = vadd.xlane.f32.xlu0 %v5757
    %v5759 = vpop.xlane.xlu0 %5758
    %v5760 = vlog2.pop %v5759
    %v5761 = vmul.f32 %v5760, 0.6931472
    %v5762 = vsub.f32 %v5754, %v5761
    %v5763 = vsel %vm5658, %v5762, 0.0
    %v5764 = vsel %vm5662, %v5763, 0.0
    %5765 = vadd.xlane.f32.xlu0 %v5764
    %v5766 = vpop.xlane.xlu0 %5765
    %v5767 = vrot.slane %v5766, 4
    %v5768 = vadd.f32 %v5766, %v5767
    %v5769 = vrot.slane %v5768, 2
    %v5770 = vadd.f32 %v5768, %v5769
    %v5771 = vrot.slane %v5770, 1
    %v5772 = vadd.f32 %v5770, %v5771
    %s5773 = vtos %v5772
    %s5774 = ssub.f32 0.0, %s5773
    %v5775 = vrcp.pop 2.0
    %s5776 = vtos %v5775
    %s5777 = smul.f32 %s5774, %s5776
    %v5778 = vsel %vm5662, %v5564, -inf
    %5779 = vmax.xlane.f32.xlu0 %v5778
    %v5780 = vpop.xlane.xlu0 %5779
    %v5781 = vsub.f32 %v5564, %v5780
    %v5782 = vmul.f32 %v5781, 1.442695
    %v5783 = vpow.pop %v5782
    %v5784 = vsel %vm5662, %v5783, 0.0
    %5785 = vadd.xlane.f32.xlu0 %v5784
    %v5786 = vpop.xlane.xlu0 %5785
    %v5787 = vlog2.pop %v5786
    %v5788 = vmul.f32 %v5787, 0.6931472
    %v5789 = vsub.f32 %v5781, %v5788
    %v5790 = vsel %vm5658, %v5789, 0.0
    %v5791 = vsel %vm5662, %v5790, 0.0
    %5792 = vadd.xlane.f32.xlu0 %v5791
    %v5793 = vpop.xlane.xlu0 %5792
    %v5794 = vrot.slane %v5793, 4
    %v5795 = vadd.f32 %v5793, %v5794
    %v5796 = vrot.slane %v5795, 2
    %v5797 = vadd.f32 %v5795, %v5796
    %v5798 = vrot.slane %v5797, 1
    %v5799 = vadd.f32 %v5797, %v5798
    %s5800 = vtos %v5799
    %s5801 = ssub.f32 0.0, %s5800
    %v5802 = vrcp.pop 2.0
    %s5803 = vtos %v5802
    %s5804 = smul.f32 %s5801, %s5803
    %v5805 = vsel %vm5662, %v5651, -inf
    %5806 = vmax.xlane.f32.xlu0 %v5805
    %v5807 = vpop.xlane.xlu0 %5806
    %v5808 = vsub.f32 %v5651, %v5807
    %v5809 = vmul.f32 %v5808, 1.442695
    %v5810 = vpow.pop %v5809
    %v5811 = vsel %vm5662, %v5810, 0.0
    %5812 = vadd.xlane.f32.xlu0 %v5811
    %v5813 = vpop.xlane.xlu0 %5812
    %v5814 = vlog2.pop %v5813
    %v5815 = vmul.f32 %v5814, 0.6931472
    %v5816 = vsub.f32 %v5808, %v5815
    %v5817 = vsel %vm5658, %v5816, 0.0
    %v5818 = vsel %vm5662, %v5817, 0.0
    %5819 = vadd.xlane.f32.xlu0 %v5818
    %v5820 = vpop.xlane.xlu0 %5819
    %v5821 = vrot.slane %v5820, 4
    %v5822 = vadd.f32 %v5820, %v5821
    %v5823 = vrot.slane %v5822, 2
    %v5824 = vadd.f32 %v5822, %v5823
    %v5825 = vrot.slane %v5824, 1
    %v5826 = vadd.f32 %v5824, %v5825
    %s5827 = vtos %v5826
    %s5828 = ssub.f32 0.0, %s5827
    %v5829 = vrcp.pop 2.0
    %s5830 = vtos %v5829
    %s5831 = smul.f32 %s5828, %s5830
    %s5832 = sadd.f32 %s5777, %s5804
    %s5833 = sadd.f32 %s5832, %s5831
    %s5834 = smul.f32 %s5833, 0.6
    %s5835 = sadd.f32 %s5703, %s5731
    %s5836 = sadd.f32 %s5835, %s5750
    %s5837 = smul.f32 %s5836, 0.4
    %s5838 = smul.f32 %s5837, %s5392
    %s5839 = smul.f32 %s5838, %s5392
    %s5840 = sadd.f32 %s5834, %s5839
    %v5841 = vstv %s5840
    %vm5842 = vcmask 0
    %5843 = vst.msk [vmem:[#allocation3] sm:$0x1] %vm5842, %v5841
    %v5844 = vadd.f32 %v5477, %v5564
    %v5845 = vadd.f32 %v5844, %v5651
    %5846 = vst.msk [vmem:[#allocation5] sm:$0x3] %vm5662, %v5845
    // Predicated region
    $region102: #{tpu_custom_call.1} parent=1 // pred_check
      _
    $region103: #{tpu_custom_call.1} parent=1 // pred_check_branch
      %5848 = sbr.rel (0) target = $region105
    $region104: #{tpu_custom_call.1} parent=1 // pred_region
      %s5850 = ssub.s32 16, 16
      %5851 = vsyncadd [#allocation4], %s5850
      %s5853 = sshll.u32 [#allocation3], 4
      %s5854 = int_to_ptr.vmem [resolvable:$true] %s5853
      %5856 = dma.vmem_to_hbm [thread:$0]  %s5854, 16, %s25, [#allocation4]
    $region105: #{tpu_custom_call.1} parent=1 // pred_fallthru
      _
    // Predicated region
    $region106: #{tpu_custom_call.1} parent=1 // pred_check
      _
    $region107: #{tpu_custom_call.1} parent=1 // pred_check_branch
      %5858 = sbr.rel (0) target = $region109
    $region108: #{tpu_custom_call.1} parent=1 // pred_region
      %s5860 = ssub.s32 32, 32
      %5861 = vsyncadd [#allocation6], %s5860
      %s5863 = sshll.u32 [#allocation5], 4
      %s5864 = int_to_ptr.vmem [resolvable:$true] %s5863
      %5866 = dma.vmem_to_hbm [thread:$0]  %s5864, 32, %s26, [#allocation6]
    $region109: #{tpu_custom_call.1} parent=1 // pred_fallthru
      _
    // Predicated region
    $region110: #{tpu_custom_call.1} parent=1 // pred_check
      _
    $region111: #{tpu_custom_call.1} parent=1 // pred_check_branch
      %5868 = sbr.rel (0) target = $region113
    $region112: #{tpu_custom_call.1} parent=1 // pred_region
      %5869 = dma.done [#allocation4], 16
    $region113: #{tpu_custom_call.1} parent=1 // pred_fallthru
      _
    // Predicated region
    $region114: #{tpu_custom_call.1} parent=1 // pred_check
      _
    $region115: #{tpu_custom_call.1} parent=1 // pred_check_branch
      %5871 = sbr.rel (0) target = $region117
    $region116: #{tpu_custom_call.1} parent=1 // pred_region
      %5872 = dma.done [#allocation6], 32
    $region117: #{tpu_custom_call.1} parent=1 // pred_fallthru
      _
    %5873 = vsyncpa [#allocation4], 1
    %5874 = vsyncpa [#allocation6], 1

</llo_original>
